<compile_context>
chip_gen: v7x
topology: tpu7x:2x2x1
jax: 0.10.0
libtpu: 0.0.40
codegen_flags: <defaults>
</compile_context>

<pallas_src>
import functools

import jax
import jax.numpy as jnp
from jax.experimental import pallas as pl
from jax.experimental.pallas import tpu as pltpu


# ---------------------------------------------------------------------------
# In-kernel math helpers (all ops lower cleanly in Mosaic)
# ---------------------------------------------------------------------------
def _erf(x):
    # Abramowitz & Stegun 7.1.26 rational approximation, |err| <= 1.5e-7.
    # The divide is pushed to the EUP via an approximate reciprocal so the GELU
    # epilogue on the (S, 4D) MLP hidden stays off the VPU divide path.
    p = 0.3275911
    a1, a2, a3, a4, a5 = (0.254829592, -0.284496736, 1.421413741,
                          -1.453152027, 1.061405429)
    z = jnp.abs(x)
    t = pl.reciprocal(1.0 + p * z, approx=True)
    poly = ((((a5 * t + a4) * t + a3) * t + a2) * t + a1) * t
    y = 1.0 - poly * jnp.exp(-z * z)
    return jnp.where(x < 0.0, -y, y)


def _gelu(x):
    # erf-based GELU, matching torch.nn.GELU(default) up to the approximations above
    return 0.5 * x * (1.0 + _erf(x * 0.7071067811865475))


def _layernorm(x, g, b, eps):
    mu = jnp.mean(x, axis=-1, keepdims=True)
    var = jnp.mean((x - mu) ** 2, axis=-1, keepdims=True)
    return (x - mu) * jax.lax.rsqrt(var + eps) * g + b


def _mha(q, k, v, nhead, mm_dtype):
    """q:(Sq,D) (softmax scale pre-folded into the Q projection), k/v:(Sk,D) -> (Sq,D)."""
    D = q.shape[-1]
    dh = D // nhead
    outs = []
    for h in range(nhead):            # static unroll over heads (trace time)
        lo = h * dh
        qh = q[:, lo:lo + dh].astype(mm_dtype)
        kh = k[:, lo:lo + dh].astype(mm_dtype)
        vh = v[:, lo:lo + dh].astype(mm_dtype)
        # contraction on the last axis of both operands -> no explicit k.T;
        # low-precision MXU operands, f32 accumulation.
        s = jax.lax.dot_general(qh, kh, (((1,), (1,)), ((), ())),
                                preferred_element_type=jnp.float32)
        s = s - jnp.max(s, axis=-1, keepdims=True)
        pr = jnp.exp(s)
        pr = pr * pl.reciprocal(jnp.sum(pr, axis=-1, keepdims=True), approx=True)
        outs.append(jnp.dot(pr.astype(mm_dtype), vh,
                            preferred_element_type=jnp.float32))
    return jnp.concatenate(outs, axis=-1)


# ---------------------------------------------------------------------------
# Fused TransformerDecoderLayer kernel (one grid step == one batch element)
# ---------------------------------------------------------------------------
def _decoder_layer_kernel(
        x_ref, mem_ref,
        wqkv_ref, bqkv_ref, wo_ref, bo_ref,
        cwq_ref, cbq_ref, cwkv_ref, cbkv_ref, cwo_ref, cbo_ref,
        w1_ref, b1_ref, w2_ref, b2_ref,
        ln1g_ref, ln1b_ref, ln2g_ref, ln2b_ref, ln3g_ref, ln3b_ref,
        o_ref, *, nhead, eps, norm_first, mm_dtype):
    f32 = jnp.float32
    x = x_ref[0].astype(f32)       # (S, D)
    mem = mem_ref[0].astype(f32)   # (Sk, D)
    D = x.shape[-1]

    def mm(a, w_ref, b_ref):
        # weights already live at mm_dtype (prepare_params) -> cast only the
        # activation; f32 accumulation; bias added in the f32 epilogue.
        return (jnp.dot(a.astype(mm_dtype), w_ref[...],
                        preferred_element_type=f32)
                + b_ref[...].astype(f32))

    def self_attn(inp):
        qkv = mm(inp, wqkv_ref, bqkv_ref)                      # (S, 3D) fused QKV
        a = _mha(qkv[:, :D], qkv[:, D:2 * D], qkv[:, 2 * D:], nhead, mm_dtype)
        return mm(a, wo_ref, bo_ref)

    def cross_attn(inp):
        q = mm(inp, cwq_ref, cbq_ref)                          # scale folded in cwq
        kv = mm(mem, cwkv_ref, cbkv_ref)                       # (Sk, 2D) fused KV
        a = _mha(q, kv[:, :D], kv[:, D:], nhead, mm_dtype)
        return mm(a, cwo_ref, cbo_ref)

    def mlp(inp):
        h = _gelu(mm(inp, w1_ref, b1_ref))                     # hidden stays in VMEM
        return mm(h, w2_ref, b2_ref)

    if norm_first:                                             # pre-norm (default)
        x = x + self_attn(_layernorm(x, ln1g_ref[...], ln1b_ref[...], eps))
        x = x + cross_attn(_layernorm(x, ln2g_ref[...], ln2b_ref[...], eps))
        x = x + mlp(_layernorm(x, ln3g_ref[...], ln3b_ref[...], eps))
    else:                                                      # post-norm
        x = _layernorm(x + self_attn(x), ln1g_ref[...], ln1b_ref[...], eps)
        x = _layernorm(x + cross_attn(x), ln2g_ref[...], ln2b_ref[...], eps)
        x = _layernorm(x + mlp(x), ln3g_ref[...], ln3b_ref[...], eps)

    o_ref[0] = x.astype(o_ref.dtype)


def _default_vmem_limit():
    # Raise the scoped-VMEM cap above v5e's 16 MiB default while staying well
    # under v7x's 64 MiB physical VMEM.
    try:
        cap = int(pltpu.get_tpu_info().vmem_capacity_bytes)
    except Exception:
        cap = 128 * 1024 * 1024
    return min(48 * 1024 * 1024, (cap * 3) // 4)


def decoder_layer(x, mem, p, nhead, *, norm_first=True, eps=1e-5,
                  mm_dtype=jnp.float32, single_buffer_weights=False,
                  vmem_limit_bytes=None):
    B, S, D = x.shape

    def weight_spec(a):
        # Grid-invariant resident weights. With single_buffer_weights the default
        # double-buffering is dropped (constant index_map -> a second buffer buys
        # nothing); recommended on v7x at large d_model to halve weight VMEM.
        if single_buffer_weights:
            return pl.BlockSpec(a.shape, lambda b: (0,) * a.ndim,
                                pipeline_mode=pl.Buffered(1))
        return pl.BlockSpec(a.shape, lambda b: (0,) * a.ndim)

    def seq_spec(a):        # [B, S, D] tensors: one batch element per grid step
        return pl.BlockSpec((1,) + a.shape[1:], lambda b: (b, 0, 0))

    operands = [
        x, mem,
        p["wqkv"], p["bqkv"], p["wo"], p["bo"],
        p["cwq"], p["cbq"], p["cwkv"], p["cbkv"], p["cwo"], p["cbo"],
        p["w1"], p["b1"], p["w2"], p["b2"],
        p["ln1_g"], p["ln1_b"], p["ln2_g"], p["ln2_b"], p["ln3_g"], p["ln3_b"],
    ]
    in_specs = [seq_spec(x), seq_spec(mem)] + [weight_spec(a) for a in operands[2:]]

    if vmem_limit_bytes is None:
        vmem_limit_bytes = _default_vmem_limit()

    return pl.pallas_call(
        functools.partial(_decoder_layer_kernel, nhead=nhead, eps=eps,
                          norm_first=norm_first, mm_dtype=mm_dtype),
        out_shape=jax.ShapeDtypeStruct((B, S, D), x.dtype),
        grid=(B,),
        in_specs=in_specs,
        out_specs=pl.BlockSpec((1, S, D), lambda b: (b, 0, 0)),
        compiler_params=pltpu.CompilerParams(
            # TODO(synk): on v7x verify batch sharding across the 2 TensorCores;
            # switch to pltpu.CORE_PARALLEL / explicit core split if needed.
            dimension_semantics=("parallel",),
            vmem_limit_bytes=vmem_limit_bytes),
    )(*operands)


def trans_module(content_feature, style_feature, params, nhead, *,
                 norm_first=True, mm_dtype=jnp.float32,
                 single_buffer_weights=False):
    """content_feature, style_feature: [B, S, D] -> [B, S, D] (eval-mode forward)."""
    x = content_feature
    for lp in params:
        x = decoder_layer(x, style_feature, lp, nhead,
                          norm_first=norm_first, mm_dtype=mm_dtype,
                          single_buffer_weights=single_buffer_weights)
    return x


# ---------------------------------------------------------------------------
# Parameter construction / preparation (fused QKV / KV, scale folded into Q)
# ---------------------------------------------------------------------------
def init_params(key, nlayer, d_model, nhead, mlp_ratio, qkv_bias):
    hidden = int(d_model * mlp_ratio)
    scale = float(d_model // nhead) ** -0.5
    params = []

    def dense(k, fan_in, fan_out):
        w = jax.random.normal(k, (fan_in, fan_out), jnp.float32) * 0.02
        b = jnp.zeros((1, fan_out), jnp.float32)
        return w, b

    for _ in range(nlayer):
        key, *ks = jax.random.split(key, 11)
        wq, bq = dense(ks[0], d_model, d_model)
        wk, bk = dense(ks[1], d_model, d_model)
        wv, bv = dense(ks[2], d_model, d_model)
        wo, bo = dense(ks[3], d_model, d_model)
        cwq, cbq = dense(ks[4], d_model, d_model)
        cwk, cbk = dense(ks[5], d_model, d_model)
        cwv, cbv = dense(ks[6], d_model, d_model)
        cwo, cbo = dense(ks[7], d_model, d_model)
        w1, b1 = dense(ks[8], d_model, hidden)
        w2, b2 = dense(ks[9], hidden, d_model)
        # Fold the 1/sqrt(dh) softmax scale into the Q projections (weight AND bias)
        # so the kernel does no per-token scale multiplies.
        wq, bq = wq * scale, bq * scale
        cwq, cbq = cwq * scale, cbq * scale
        # qkv_bias only toggles whether the PyTorch module *has* q/k/v biases;
        # they are zero at init either way, so the fused zero bias is exact.
        # NOTE: when importing trained PyTorch weights, pack the real in_proj
        # biases (times `scale` for the Q part) into bqkv / cbq / cbkv.
        params.append({
            "wqkv": jnp.concatenate([wq, wk, wv], axis=1),   # (D, 3D)
            "bqkv": jnp.concatenate([bq, bk, bv], axis=1),   # (1, 3D)
            "wo": wo, "bo": bo,
            "cwq": cwq, "cbq": cbq,
            "cwkv": jnp.concatenate([cwk, cwv], axis=1),     # (D, 2D)
            "cbkv": jnp.concatenate([cbk, cbv], axis=1),     # (1, 2D)
            "cwo": cwo, "cbo": cbo,
            "w1": w1, "b1": b1, "w2": w2, "b2": b2,
            "ln1_g": jnp.ones((1, d_model), jnp.float32),
            "ln1_b": jnp.zeros((1, d_model), jnp.float32),
            "ln2_g": jnp.ones((1, d_model), jnp.float32),
            "ln2_b": jnp.zeros((1, d_model), jnp.float32),
            "ln3_g": jnp.ones((1, d_model), jnp.float32),
            "ln3_b": jnp.zeros((1, d_model), jnp.float32),
        })
    return params


_WEIGHT_KEYS = ("wqkv", "wo", "cwq", "cwkv", "cwo", "w1", "w2")


def prepare_params(params, mm_dtype):
    """Store matmul weights in HBM at mm_dtype (e.g. bf16 on v5e/v6e/v7x): halves
    weight DMA bytes + resident weight VMEM and removes the per-grid-step in-kernel
    cast. Biases / LayerNorm params stay f32 (applied in f32 epilogues)."""
    if mm_dtype == jnp.float32:
        return params
    out = []
    for lp in params:
        lp = dict(lp)
        for k in _WEIGHT_KEYS:
            lp[k] = lp[k].astype(mm_dtype)
        out.append(lp)
    return out


# ---------------------------------------------------------------------------
if __name__ == "__main__":
    # small config consistent with TransModule_Config; production d_model should be
    # a multiple of 128 for lane-dense stores (demo D=32 exercises masked lanes).
    B, S, D = 2, 8, 32
    NHEAD = 4
    MLP_RATIO = 4
    NLAYER = 2
    QKV_BIAS = False
    NORM_FIRST = True
    MM_DTYPE = jnp.float32   # production on v5e/v6e/v7x: jnp.bfloat16 (f32 accum kept)

    key = jax.random.PRNGKey(0)
    k_c, k_s, k_p = jax.random.split(key, 3)
    content_feature = jax.random.normal(k_c, (B, S, D), jnp.float32)
    style_feature = jax.random.normal(k_s, (B, S, D), jnp.float32)
    params = prepare_params(
        init_params(k_p, NLAYER, D, NHEAD, MLP_RATIO, QKV_BIAS), MM_DTYPE)

    run = jax.jit(functools.partial(
        trans_module, nhead=NHEAD, norm_first=NORM_FIRST, mm_dtype=MM_DTYPE,
        single_buffer_weights=False))   # set True on v7x at large d_model
    out = jax.block_until_ready(run(content_feature, style_feature, params))
    assert out.shape == (B, S, D) and out.dtype == jnp.float32
    assert bool(jnp.all(jnp.isfinite(out)))
    print("KERNEL_OK")
</pallas_src>

<mosaic_0001>
module attributes {stable_mosaic.version = 11 : i64} {
  func.func @_decoder_layer_kernel(%arg0: i32, %arg1: memref<1x8x32xf32, #tpu.memory_space<vmem>>, %arg2: memref<1x8x32xf32, #tpu.memory_space<vmem>>, %arg3: memref<32x96xf32, #tpu.memory_space<vmem>>, %arg4: memref<1x96xf32, #tpu.memory_space<vmem>>, %arg5: memref<32x32xf32, #tpu.memory_space<vmem>>, %arg6: memref<1x32xf32, #tpu.memory_space<vmem>>, %arg7: memref<32x32xf32, #tpu.memory_space<vmem>>, %arg8: memref<1x32xf32, #tpu.memory_space<vmem>>, %arg9: memref<32x64xf32, #tpu.memory_space<vmem>>, %arg10: memref<1x64xf32, #tpu.memory_space<vmem>>, %arg11: memref<32x32xf32, #tpu.memory_space<vmem>>, %arg12: memref<1x32xf32, #tpu.memory_space<vmem>>, %arg13: memref<32x128xf32, #tpu.memory_space<vmem>>, %arg14: memref<1x128xf32, #tpu.memory_space<vmem>>, %arg15: memref<128x32xf32, #tpu.memory_space<vmem>>, %arg16: memref<1x32xf32, #tpu.memory_space<vmem>>, %arg17: memref<1x32xf32, #tpu.memory_space<vmem>>, %arg18: memref<1x32xf32, #tpu.memory_space<vmem>>, %arg19: memref<1x32xf32, #tpu.memory_space<vmem>>, %arg20: memref<1x32xf32, #tpu.memory_space<vmem>>, %arg21: memref<1x32xf32, #tpu.memory_space<vmem>>, %arg22: memref<1x32xf32, #tpu.memory_space<vmem>>, %arg23: memref<1x8x32xf32, #tpu.memory_space<vmem>>) attributes {dimension_semantics = [#tpu.dimension_semantics<parallel>], iteration_bounds = array<i64: 2>, scalar_prefetch = 0 : i64, scratch_operands = 0 : i64, tpu.core_type = #tpu.core_type<tc>, window_params = [{transform_indices = @transform_0, window_bounds = array<i64: 1, 8, 32>}, {transform_indices = @transform_1, window_bounds = array<i64: 1, 8, 32>}, {pipeline_mode = #tpu.pipeline_mode<synchronous>, transform_indices = @transform_2, window_bounds = array<i64: 32, 96>}, {pipeline_mode = #tpu.pipeline_mode<synchronous>, transform_indices = @transform_3, window_bounds = array<i64: 1, 96>}, {pipeline_mode = #tpu.pipeline_mode<synchronous>, transform_indices = @transform_4, window_bounds = array<i64: 32, 32>}, {pipeline_mode = #tpu.pipeline_mode<synchronous>, transform_indices = @transform_5, window_bounds = array<i64: 1, 32>}, {pipeline_mode = #tpu.pipeline_mode<synchronous>, transform_indices = @transform_6, window_bounds = array<i64: 32, 32>}, {pipeline_mode = #tpu.pipeline_mode<synchronous>, transform_indices = @transform_7, window_bounds = array<i64: 1, 32>}, {pipeline_mode = #tpu.pipeline_mode<synchronous>, transform_indices = @transform_8, window_bounds = array<i64: 32, 64>}, {pipeline_mode = #tpu.pipeline_mode<synchronous>, transform_indices = @transform_9, window_bounds = array<i64: 1, 64>}, {pipeline_mode = #tpu.pipeline_mode<synchronous>, transform_indices = @transform_10, window_bounds = array<i64: 32, 32>}, {pipeline_mode = #tpu.pipeline_mode<synchronous>, transform_indices = @transform_11, window_bounds = array<i64: 1, 32>}, {pipeline_mode = #tpu.pipeline_mode<synchronous>, transform_indices = @transform_12, window_bounds = array<i64: 32, 128>}, {pipeline_mode = #tpu.pipeline_mode<synchronous>, transform_indices = @transform_13, window_bounds = array<i64: 1, 128>}, {pipeline_mode = #tpu.pipeline_mode<synchronous>, transform_indices = @transform_14, window_bounds = array<i64: 128, 32>}, {pipeline_mode = #tpu.pipeline_mode<synchronous>, transform_indices = @transform_15, window_bounds = array<i64: 1, 32>}, {pipeline_mode = #tpu.pipeline_mode<synchronous>, transform_indices = @transform_16, window_bounds = array<i64: 1, 32>}, {pipeline_mode = #tpu.pipeline_mode<synchronous>, transform_indices = @transform_17, window_bounds = array<i64: 1, 32>}, {pipeline_mode = #tpu.pipeline_mode<synchronous>, transform_indices = @transform_18, window_bounds = array<i64: 1, 32>}, {pipeline_mode = #tpu.pipeline_mode<synchronous>, transform_indices = @transform_19, window_bounds = array<i64: 1, 32>}, {pipeline_mode = #tpu.pipeline_mode<synchronous>, transform_indices = @transform_20, window_bounds = array<i64: 1, 32>}, {pipeline_mode = #tpu.pipeline_mode<synchronous>, transform_indices = @transform_21, window_bounds = array<i64: 1, 32>}, {transform_indices = @transform_22, window_bounds = array<i64: 1, 8, 32>}]} {
    %c0 = arith.constant 0 : index
    %c0_0 = arith.constant 0 : index
    %c0_1 = arith.constant 0 : index
    %0 = vector.load %arg1[%c0, %c0_0, %c0_1] : memref<1x8x32xf32, #tpu.memory_space<vmem>>, vector<1x8x32xf32>
    %1 = vector.shape_cast %0 : vector<1x8x32xf32> to vector<8x32xf32>
    %c0_2 = arith.constant 0 : index
    %c0_3 = arith.constant 0 : index
    %c0_4 = arith.constant 0 : index
    %2 = vector.load %arg2[%c0_2, %c0_3, %c0_4] : memref<1x8x32xf32, #tpu.memory_space<vmem>>, vector<1x8x32xf32>
    %3 = vector.shape_cast %2 : vector<1x8x32xf32> to vector<8x32xf32>
    %c0_5 = arith.constant 0 : index
    %c0_6 = arith.constant 0 : index
    %4 = vector.load %arg17[%c0_5, %c0_6] : memref<1x32xf32, #tpu.memory_space<vmem>>, vector<1x32xf32>
    %c0_7 = arith.constant 0 : index
    %c0_8 = arith.constant 0 : index
    %5 = vector.load %arg18[%c0_7, %c0_8] : memref<1x32xf32, #tpu.memory_space<vmem>>, vector<1x32xf32>
    %cst = arith.constant dense<0.000000e+00> : vector<8xf32>
    %6 = vector.multi_reduction <add>, %1, %cst [1] : vector<8x32xf32> to vector<8xf32>
    %7 = vector.shape_cast %6 : vector<8xf32> to vector<8x1xf32>
    %cst_9 = arith.constant 3.200000e+01 : f32
    %8 = vector.broadcast %cst_9 : f32 to vector<8x1xf32>
    %9 = arith.divf %7, %8 : vector<8x1xf32>
    %10 = vector.broadcast %9 : vector<8x1xf32> to vector<8x32xf32>
    %11 = arith.subf %1, %10 : vector<8x32xf32>
    %12 = arith.mulf %11, %11 : vector<8x32xf32>
    %cst_10 = arith.constant dense<0.000000e+00> : vector<8xf32>
    %13 = vector.multi_reduction <add>, %12, %cst_10 [1] : vector<8x32xf32> to vector<8xf32>
    %14 = vector.shape_cast %13 : vector<8xf32> to vector<8x1xf32>
    %cst_11 = arith.constant 3.200000e+01 : f32
    %15 = vector.broadcast %cst_11 : f32 to vector<8x1xf32>
    %16 = arith.divf %14, %15 : vector<8x1xf32>
    %17 = vector.broadcast %9 : vector<8x1xf32> to vector<8x32xf32>
    %18 = arith.subf %1, %17 : vector<8x32xf32>
    %cst_12 = arith.constant 9.99999974E-6 : f32
    %19 = vector.broadcast %cst_12 : f32 to vector<8x1xf32>
    %20 = arith.addf %16, %19 : vector<8x1xf32>
    %21 = math.rsqrt %20 : vector<8x1xf32>
    %22 = vector.broadcast %21 : vector<8x1xf32> to vector<8x32xf32>
    %23 = arith.mulf %18, %22 : vector<8x32xf32>
    %24 = vector.broadcast %4 : vector<1x32xf32> to vector<8x32xf32>
    %25 = arith.mulf %23, %24 : vector<8x32xf32>
    %26 = vector.broadcast %5 : vector<1x32xf32> to vector<8x32xf32>
    %27 = arith.addf %25, %26 : vector<8x32xf32>
    %c0_13 = arith.constant 0 : index
    %c0_14 = arith.constant 0 : index
    %28 = vector.load %arg3[%c0_13, %c0_14] : memref<32x96xf32, #tpu.memory_space<vmem>>, vector<32x96xf32>
    %cst_15 = arith.constant dense<0.000000e+00> : vector<8x96xf32>
    %29 = tpu.matmul %27, %28, %cst_15 {dimension_numbers = #tpu.dot_dimension_numbers<[1], [0], [0], [1], [0, 0, 1, 1], [], []>} : vector<8x32xf32>, vector<32x96xf32>, vector<8x96xf32> -> vector<8x96xf32>
    %c0_16 = arith.constant 0 : index
    %c0_17 = arith.constant 0 : index
    %30 = vector.load %arg4[%c0_16, %c0_17] : memref<1x96xf32, #tpu.memory_space<vmem>>, vector<1x96xf32>
    %31 = vector.broadcast %30 : vector<1x96xf32> to vector<8x96xf32>
    %32 = arith.addf %29, %31 : vector<8x96xf32>
    %33 = vector.extract_strided_slice %32 {offsets = [0, 0], sizes = [8, 32], strides = [1, 1]} : vector<8x96xf32> to vector<8x32xf32>
    %34 = vector.extract_strided_slice %32 {offsets = [0, 32], sizes = [8, 32], strides = [1, 1]} : vector<8x96xf32> to vector<8x32xf32>
    %35 = vector.extract_strided_slice %32 {offsets = [0, 64], sizes = [8, 32], strides = [1, 1]} : vector<8x96xf32> to vector<8x32xf32>
    %36 = vector.extract_strided_slice %33 {offsets = [0, 0], sizes = [8, 8], strides = [1, 1]} : vector<8x32xf32> to vector<8x8xf32>
    %37 = vector.extract_strided_slice %34 {offsets = [0, 0], sizes = [8, 8], strides = [1, 1]} : vector<8x32xf32> to vector<8x8xf32>
    %38 = vector.extract_strided_slice %35 {offsets = [0, 0], sizes = [8, 8], strides = [1, 1]} : vector<8x32xf32> to vector<8x8xf32>
    %cst_18 = arith.constant dense<0.000000e+00> : vector<8x8xf32>
    %39 = tpu.matmul %36, %37, %cst_18 {dimension_numbers = #tpu.dot_dimension_numbers<[1], [1], [0], [0], [0, 0, 1, 0], [], []>} : vector<8x8xf32>, vector<8x8xf32>, vector<8x8xf32> -> vector<8x8xf32>
    %cst_19 = arith.constant dense<0xFF800000> : vector<8xf32>
    %40 = vector.multi_reduction <maximumf>, %39, %cst_19 [1] : vector<8x8xf32> to vector<8xf32>
    %41 = vector.shape_cast %40 : vector<8xf32> to vector<8x1xf32>
    %42 = vector.broadcast %41 : vector<8x1xf32> to vector<8x8xf32>
    %43 = arith.subf %39, %42 : vector<8x8xf32>
    %44 = math.exp %43 : vector<8x8xf32>
    %cst_20 = arith.constant dense<0.000000e+00> : vector<8xf32>
    %45 = vector.multi_reduction <add>, %44, %cst_20 [1] : vector<8x8xf32> to vector<8xf32>
    %46 = vector.shape_cast %45 : vector<8xf32> to vector<8x1xf32>
    %47 = tpu.reciprocal %46 {approx = true} : vector<8x1xf32> -> vector<8x1xf32>
    %48 = vector.broadcast %47 : vector<8x1xf32> to vector<8x8xf32>
    %49 = arith.mulf %44, %48 : vector<8x8xf32>
    %cst_21 = arith.constant dense<0.000000e+00> : vector<8x8xf32>
    %50 = tpu.matmul %49, %38, %cst_21 {dimension_numbers = #tpu.dot_dimension_numbers<[1], [0], [0], [1], [0, 0, 1, 1], [], []>} : vector<8x8xf32>, vector<8x8xf32>, vector<8x8xf32> -> vector<8x8xf32>
    %51 = vector.extract_strided_slice %33 {offsets = [0, 8], sizes = [8, 8], strides = [1, 1]} : vector<8x32xf32> to vector<8x8xf32>
    %52 = vector.extract_strided_slice %34 {offsets = [0, 8], sizes = [8, 8], strides = [1, 1]} : vector<8x32xf32> to vector<8x8xf32>
    %53 = vector.extract_strided_slice %35 {offsets = [0, 8], sizes = [8, 8], strides = [1, 1]} : vector<8x32xf32> to vector<8x8xf32>
    %cst_22 = arith.constant dense<0.000000e+00> : vector<8x8xf32>
    %54 = tpu.matmul %51, %52, %cst_22 {dimension_numbers = #tpu.dot_dimension_numbers<[1], [1], [0], [0], [0, 0, 1, 0], [], []>} : vector<8x8xf32>, vector<8x8xf32>, vector<8x8xf32> -> vector<8x8xf32>
    %cst_23 = arith.constant dense<0xFF800000> : vector<8xf32>
    %55 = vector.multi_reduction <maximumf>, %54, %cst_23 [1] : vector<8x8xf32> to vector<8xf32>
    %56 = vector.shape_cast %55 : vector<8xf32> to vector<8x1xf32>
    %57 = vector.broadcast %56 : vector<8x1xf32> to vector<8x8xf32>
    %58 = arith.subf %54, %57 : vector<8x8xf32>
    %59 = math.exp %58 : vector<8x8xf32>
    %cst_24 = arith.constant dense<0.000000e+00> : vector<8xf32>
    %60 = vector.multi_reduction <add>, %59, %cst_24 [1] : vector<8x8xf32> to vector<8xf32>
    %61 = vector.shape_cast %60 : vector<8xf32> to vector<8x1xf32>
    %62 = tpu.reciprocal %61 {approx = true} : vector<8x1xf32> -> vector<8x1xf32>
    %63 = vector.broadcast %62 : vector<8x1xf32> to vector<8x8xf32>
    %64 = arith.mulf %59, %63 : vector<8x8xf32>
    %cst_25 = arith.constant dense<0.000000e+00> : vector<8x8xf32>
    %65 = tpu.matmul %64, %53, %cst_25 {dimension_numbers = #tpu.dot_dimension_numbers<[1], [0], [0], [1], [0, 0, 1, 1], [], []>} : vector<8x8xf32>, vector<8x8xf32>, vector<8x8xf32> -> vector<8x8xf32>
    %66 = vector.extract_strided_slice %33 {offsets = [0, 16], sizes = [8, 8], strides = [1, 1]} : vector<8x32xf32> to vector<8x8xf32>
    %67 = vector.extract_strided_slice %34 {offsets = [0, 16], sizes = [8, 8], strides = [1, 1]} : vector<8x32xf32> to vector<8x8xf32>
    %68 = vector.extract_strided_slice %35 {offsets = [0, 16], sizes = [8, 8], strides = [1, 1]} : vector<8x32xf32> to vector<8x8xf32>
    %cst_26 = arith.constant dense<0.000000e+00> : vector<8x8xf32>
    %69 = tpu.matmul %66, %67, %cst_26 {dimension_numbers = #tpu.dot_dimension_numbers<[1], [1], [0], [0], [0, 0, 1, 0], [], []>} : vector<8x8xf32>, vector<8x8xf32>, vector<8x8xf32> -> vector<8x8xf32>
    %cst_27 = arith.constant dense<0xFF800000> : vector<8xf32>
    %70 = vector.multi_reduction <maximumf>, %69, %cst_27 [1] : vector<8x8xf32> to vector<8xf32>
    %71 = vector.shape_cast %70 : vector<8xf32> to vector<8x1xf32>
    %72 = vector.broadcast %71 : vector<8x1xf32> to vector<8x8xf32>
    %73 = arith.subf %69, %72 : vector<8x8xf32>
    %74 = math.exp %73 : vector<8x8xf32>
    %cst_28 = arith.constant dense<0.000000e+00> : vector<8xf32>
    %75 = vector.multi_reduction <add>, %74, %cst_28 [1] : vector<8x8xf32> to vector<8xf32>
    %76 = vector.shape_cast %75 : vector<8xf32> to vector<8x1xf32>
    %77 = tpu.reciprocal %76 {approx = true} : vector<8x1xf32> -> vector<8x1xf32>
    %78 = vector.broadcast %77 : vector<8x1xf32> to vector<8x8xf32>
    %79 = arith.mulf %74, %78 : vector<8x8xf32>
    %cst_29 = arith.constant dense<0.000000e+00> : vector<8x8xf32>
    %80 = tpu.matmul %79, %68, %cst_29 {dimension_numbers = #tpu.dot_dimension_numbers<[1], [0], [0], [1], [0, 0, 1, 1], [], []>} : vector<8x8xf32>, vector<8x8xf32>, vector<8x8xf32> -> vector<8x8xf32>
    %81 = vector.extract_strided_slice %33 {offsets = [0, 24], sizes = [8, 8], strides = [1, 1]} : vector<8x32xf32> to vector<8x8xf32>
    %82 = vector.extract_strided_slice %34 {offsets = [0, 24], sizes = [8, 8], strides = [1, 1]} : vector<8x32xf32> to vector<8x8xf32>
    %83 = vector.extract_strided_slice %35 {offsets = [0, 24], sizes = [8, 8], strides = [1, 1]} : vector<8x32xf32> to vector<8x8xf32>
    %cst_30 = arith.constant dense<0.000000e+00> : vector<8x8xf32>
    %84 = tpu.matmul %81, %82, %cst_30 {dimension_numbers = #tpu.dot_dimension_numbers<[1], [1], [0], [0], [0, 0, 1, 0], [], []>} : vector<8x8xf32>, vector<8x8xf32>, vector<8x8xf32> -> vector<8x8xf32>
    %cst_31 = arith.constant dense<0xFF800000> : vector<8xf32>
    %85 = vector.multi_reduction <maximumf>, %84, %cst_31 [1] : vector<8x8xf32> to vector<8xf32>
    %86 = vector.shape_cast %85 : vector<8xf32> to vector<8x1xf32>
    %87 = vector.broadcast %86 : vector<8x1xf32> to vector<8x8xf32>
    %88 = arith.subf %84, %87 : vector<8x8xf32>
    %89 = math.exp %88 : vector<8x8xf32>
    %cst_32 = arith.constant dense<0.000000e+00> : vector<8xf32>
    %90 = vector.multi_reduction <add>, %89, %cst_32 [1] : vector<8x8xf32> to vector<8xf32>
    %91 = vector.shape_cast %90 : vector<8xf32> to vector<8x1xf32>
    %92 = tpu.reciprocal %91 {approx = true} : vector<8x1xf32> -> vector<8x1xf32>
    %93 = vector.broadcast %92 : vector<8x1xf32> to vector<8x8xf32>
    %94 = arith.mulf %89, %93 : vector<8x8xf32>
    %cst_33 = arith.constant dense<0.000000e+00> : vector<8x8xf32>
    %95 = tpu.matmul %94, %83, %cst_33 {dimension_numbers = #tpu.dot_dimension_numbers<[1], [0], [0], [1], [0, 0, 1, 1], [], []>} : vector<8x8xf32>, vector<8x8xf32>, vector<8x8xf32> -> vector<8x8xf32>
    %96 = tpu.concatenate %50, %65, %80, %95 in 1 : vector<8x8xf32>, vector<8x8xf32>, vector<8x8xf32>, vector<8x8xf32> -> vector<8x32xf32>
    %c0_34 = arith.constant 0 : index
    %c0_35 = arith.constant 0 : index
    %97 = vector.load %arg5[%c0_34, %c0_35] : memref<32x32xf32, #tpu.memory_space<vmem>>, vector<32x32xf32>
    %cst_36 = arith.constant dense<0.000000e+00> : vector<8x32xf32>
    %98 = tpu.matmul %96, %97, %cst_36 {dimension_numbers = #tpu.dot_dimension_numbers<[1], [0], [0], [1], [0, 0, 1, 1], [], []>} : vector<8x32xf32>, vector<32x32xf32>, vector<8x32xf32> -> vector<8x32xf32>
    %c0_37 = arith.constant 0 : index
    %c0_38 = arith.constant 0 : index
    %99 = vector.load %arg6[%c0_37, %c0_38] : memref<1x32xf32, #tpu.memory_space<vmem>>, vector<1x32xf32>
    %100 = vector.broadcast %99 : vector<1x32xf32> to vector<8x32xf32>
    %101 = arith.addf %98, %100 : vector<8x32xf32>
    %102 = arith.addf %1, %101 : vector<8x32xf32>
    %c0_39 = arith.constant 0 : index
    %c0_40 = arith.constant 0 : index
    %103 = vector.load %arg19[%c0_39, %c0_40] : memref<1x32xf32, #tpu.memory_space<vmem>>, vector<1x32xf32>
    %c0_41 = arith.constant 0 : index
    %c0_42 = arith.constant 0 : index
    %104 = vector.load %arg20[%c0_41, %c0_42] : memref<1x32xf32, #tpu.memory_space<vmem>>, vector<1x32xf32>
    %cst_43 = arith.constant dense<0.000000e+00> : vector<8xf32>
    %105 = vector.multi_reduction <add>, %102, %cst_43 [1] : vector<8x32xf32> to vector<8xf32>
    %106 = vector.shape_cast %105 : vector<8xf32> to vector<8x1xf32>
    %cst_44 = arith.constant 3.200000e+01 : f32
    %107 = vector.broadcast %cst_44 : f32 to vector<8x1xf32>
    %108 = arith.divf %106, %107 : vector<8x1xf32>
    %109 = vector.broadcast %108 : vector<8x1xf32> to vector<8x32xf32>
    %110 = arith.subf %102, %109 : vector<8x32xf32>
    %111 = arith.mulf %110, %110 : vector<8x32xf32>
    %cst_45 = arith.constant dense<0.000000e+00> : vector<8xf32>
    %112 = vector.multi_reduction <add>, %111, %cst_45 [1] : vector<8x32xf32> to vector<8xf32>
    %113 = vector.shape_cast %112 : vector<8xf32> to vector<8x1xf32>
    %cst_46 = arith.constant 3.200000e+01 : f32
    %114 = vector.broadcast %cst_46 : f32 to vector<8x1xf32>
    %115 = arith.divf %113, %114 : vector<8x1xf32>
    %116 = vector.broadcast %108 : vector<8x1xf32> to vector<8x32xf32>
    %117 = arith.subf %102, %116 : vector<8x32xf32>
    %cst_47 = arith.constant 9.99999974E-6 : f32
    %118 = vector.broadcast %cst_47 : f32 to vector<8x1xf32>
    %119 = arith.addf %115, %118 : vector<8x1xf32>
    %120 = math.rsqrt %119 : vector<8x1xf32>
    %121 = vector.broadcast %120 : vector<8x1xf32> to vector<8x32xf32>
    %122 = arith.mulf %117, %121 : vector<8x32xf32>
    %123 = vector.broadcast %103 : vector<1x32xf32> to vector<8x32xf32>
    %124 = arith.mulf %122, %123 : vector<8x32xf32>
    %125 = vector.broadcast %104 : vector<1x32xf32> to vector<8x32xf32>
    %126 = arith.addf %124, %125 : vector<8x32xf32>
    %c0_48 = arith.constant 0 : index
    %c0_49 = arith.constant 0 : index
    %127 = vector.load %arg7[%c0_48, %c0_49] : memref<32x32xf32, #tpu.memory_space<vmem>>, vector<32x32xf32>
    %cst_50 = arith.constant dense<0.000000e+00> : vector<8x32xf32>
    %128 = tpu.matmul %126, %127, %cst_50 {dimension_numbers = #tpu.dot_dimension_numbers<[1], [0], [0], [1], [0, 0, 1, 1], [], []>} : vector<8x32xf32>, vector<32x32xf32>, vector<8x32xf32> -> vector<8x32xf32>
    %c0_51 = arith.constant 0 : index
    %c0_52 = arith.constant 0 : index
    %129 = vector.load %arg8[%c0_51, %c0_52] : memref<1x32xf32, #tpu.memory_space<vmem>>, vector<1x32xf32>
    %130 = vector.broadcast %129 : vector<1x32xf32> to vector<8x32xf32>
    %131 = arith.addf %128, %130 : vector<8x32xf32>
    %c0_53 = arith.constant 0 : index
    %c0_54 = arith.constant 0 : index
    %132 = vector.load %arg9[%c0_53, %c0_54] : memref<32x64xf32, #tpu.memory_space<vmem>>, vector<32x64xf32>
    %cst_55 = arith.constant dense<0.000000e+00> : vector<8x64xf32>
    %133 = tpu.matmul %3, %132, %cst_55 {dimension_numbers = #tpu.dot_dimension_numbers<[1], [0], [0], [1], [0, 0, 1, 1], [], []>} : vector<8x32xf32>, vector<32x64xf32>, vector<8x64xf32> -> vector<8x64xf32>
    %c0_56 = arith.constant 0 : index
    %c0_57 = arith.constant 0 : index
    %134 = vector.load %arg10[%c0_56, %c0_57] : memref<1x64xf32, #tpu.memory_space<vmem>>, vector<1x64xf32>
    %135 = vector.broadcast %134 : vector<1x64xf32> to vector<8x64xf32>
    %136 = arith.addf %133, %135 : vector<8x64xf32>
    %137 = vector.extract_strided_slice %136 {offsets = [0, 0], sizes = [8, 32], strides = [1, 1]} : vector<8x64xf32> to vector<8x32xf32>
    %138 = vector.extract_strided_slice %136 {offsets = [0, 32], sizes = [8, 32], strides = [1, 1]} : vector<8x64xf32> to vector<8x32xf32>
    %139 = vector.extract_strided_slice %131 {offsets = [0, 0], sizes = [8, 8], strides = [1, 1]} : vector<8x32xf32> to vector<8x8xf32>
    %140 = vector.extract_strided_slice %137 {offsets = [0, 0], sizes = [8, 8], strides = [1, 1]} : vector<8x32xf32> to vector<8x8xf32>
    %141 = vector.extract_strided_slice %138 {offsets = [0, 0], sizes = [8, 8], strides = [1, 1]} : vector<8x32xf32> to vector<8x8xf32>
    %cst_58 = arith.constant dense<0.000000e+00> : vector<8x8xf32>
    %142 = tpu.matmul %139, %140, %cst_58 {dimension_numbers = #tpu.dot_dimension_numbers<[1], [1], [0], [0], [0, 0, 1, 0], [], []>} : vector<8x8xf32>, vector<8x8xf32>, vector<8x8xf32> -> vector<8x8xf32>
    %cst_59 = arith.constant dense<0xFF800000> : vector<8xf32>
    %143 = vector.multi_reduction <maximumf>, %142, %cst_59 [1] : vector<8x8xf32> to vector<8xf32>
    %144 = vector.shape_cast %143 : vector<8xf32> to vector<8x1xf32>
    %145 = vector.broadcast %144 : vector<8x1xf32> to vector<8x8xf32>
    %146 = arith.subf %142, %145 : vector<8x8xf32>
    %147 = math.exp %146 : vector<8x8xf32>
    %cst_60 = arith.constant dense<0.000000e+00> : vector<8xf32>
    %148 = vector.multi_reduction <add>, %147, %cst_60 [1] : vector<8x8xf32> to vector<8xf32>
    %149 = vector.shape_cast %148 : vector<8xf32> to vector<8x1xf32>
    %150 = tpu.reciprocal %149 {approx = true} : vector<8x1xf32> -> vector<8x1xf32>
    %151 = vector.broadcast %150 : vector<8x1xf32> to vector<8x8xf32>
    %152 = arith.mulf %147, %151 : vector<8x8xf32>
    %cst_61 = arith.constant dense<0.000000e+00> : vector<8x8xf32>
    %153 = tpu.matmul %152, %141, %cst_61 {dimension_numbers = #tpu.dot_dimension_numbers<[1], [0], [0], [1], [0, 0, 1, 1], [], []>} : vector<8x8xf32>, vector<8x8xf32>, vector<8x8xf32> -> vector<8x8xf32>
    %154 = vector.extract_strided_slice %131 {offsets = [0, 8], sizes = [8, 8], strides = [1, 1]} : vector<8x32xf32> to vector<8x8xf32>
    %155 = vector.extract_strided_slice %137 {offsets = [0, 8], sizes = [8, 8], strides = [1, 1]} : vector<8x32xf32> to vector<8x8xf32>
    %156 = vector.extract_strided_slice %138 {offsets = [0, 8], sizes = [8, 8], strides = [1, 1]} : vector<8x32xf32> to vector<8x8xf32>
    %cst_62 = arith.constant dense<0.000000e+00> : vector<8x8xf32>
    %157 = tpu.matmul %154, %155, %cst_62 {dimension_numbers = #tpu.dot_dimension_numbers<[1], [1], [0], [0], [0, 0, 1, 0], [], []>} : vector<8x8xf32>, vector<8x8xf32>, vector<8x8xf32> -> vector<8x8xf32>
    %cst_63 = arith.constant dense<0xFF800000> : vector<8xf32>
    %158 = vector.multi_reduction <maximumf>, %157, %cst_63 [1] : vector<8x8xf32> to vector<8xf32>
    %159 = vector.shape_cast %158 : vector<8xf32> to vector<8x1xf32>
    %160 = vector.broadcast %159 : vector<8x1xf32> to vector<8x8xf32>
    %161 = arith.subf %157, %160 : vector<8x8xf32>
    %162 = math.exp %161 : vector<8x8xf32>
    %cst_64 = arith.constant dense<0.000000e+00> : vector<8xf32>
    %163 = vector.multi_reduction <add>, %162, %cst_64 [1] : vector<8x8xf32> to vector<8xf32>
    %164 = vector.shape_cast %163 : vector<8xf32> to vector<8x1xf32>
    %165 = tpu.reciprocal %164 {approx = true} : vector<8x1xf32> -> vector<8x1xf32>
    %166 = vector.broadcast %165 : vector<8x1xf32> to vector<8x8xf32>
    %167 = arith.mulf %162, %166 : vector<8x8xf32>
    %cst_65 = arith.constant dense<0.000000e+00> : vector<8x8xf32>
    %168 = tpu.matmul %167, %156, %cst_65 {dimension_numbers = #tpu.dot_dimension_numbers<[1], [0], [0], [1], [0, 0, 1, 1], [], []>} : vector<8x8xf32>, vector<8x8xf32>, vector<8x8xf32> -> vector<8x8xf32>
    %169 = vector.extract_strided_slice %131 {offsets = [0, 16], sizes = [8, 8], strides = [1, 1]} : vector<8x32xf32> to vector<8x8xf32>
    %170 = vector.extract_strided_slice %137 {offsets = [0, 16], sizes = [8, 8], strides = [1, 1]} : vector<8x32xf32> to vector<8x8xf32>
    %171 = vector.extract_strided_slice %138 {offsets = [0, 16], sizes = [8, 8], strides = [1, 1]} : vector<8x32xf32> to vector<8x8xf32>
    %cst_66 = arith.constant dense<0.000000e+00> : vector<8x8xf32>
    %172 = tpu.matmul %169, %170, %cst_66 {dimension_numbers = #tpu.dot_dimension_numbers<[1], [1], [0], [0], [0, 0, 1, 0], [], []>} : vector<8x8xf32>, vector<8x8xf32>, vector<8x8xf32> -> vector<8x8xf32>
    %cst_67 = arith.constant dense<0xFF800000> : vector<8xf32>
    %173 = vector.multi_reduction <maximumf>, %172, %cst_67 [1] : vector<8x8xf32> to vector<8xf32>
    %174 = vector.shape_cast %173 : vector<8xf32> to vector<8x1xf32>
    %175 = vector.broadcast %174 : vector<8x1xf32> to vector<8x8xf32>
    %176 = arith.subf %172, %175 : vector<8x8xf32>
    %177 = math.exp %176 : vector<8x8xf32>
    %cst_68 = arith.constant dense<0.000000e+00> : vector<8xf32>
    %178 = vector.multi_reduction <add>, %177, %cst_68 [1] : vector<8x8xf32> to vector<8xf32>
    %179 = vector.shape_cast %178 : vector<8xf32> to vector<8x1xf32>
    %180 = tpu.reciprocal %179 {approx = true} : vector<8x1xf32> -> vector<8x1xf32>
    %181 = vector.broadcast %180 : vector<8x1xf32> to vector<8x8xf32>
    %182 = arith.mulf %177, %181 : vector<8x8xf32>
    %cst_69 = arith.constant dense<0.000000e+00> : vector<8x8xf32>
    %183 = tpu.matmul %182, %171, %cst_69 {dimension_numbers = #tpu.dot_dimension_numbers<[1], [0], [0], [1], [0, 0, 1, 1], [], []>} : vector<8x8xf32>, vector<8x8xf32>, vector<8x8xf32> -> vector<8x8xf32>
    %184 = vector.extract_strided_slice %131 {offsets = [0, 24], sizes = [8, 8], strides = [1, 1]} : vector<8x32xf32> to vector<8x8xf32>
    %185 = vector.extract_strided_slice %137 {offsets = [0, 24], sizes = [8, 8], strides = [1, 1]} : vector<8x32xf32> to vector<8x8xf32>
    %186 = vector.extract_strided_slice %138 {offsets = [0, 24], sizes = [8, 8], strides = [1, 1]} : vector<8x32xf32> to vector<8x8xf32>
    %cst_70 = arith.constant dense<0.000000e+00> : vector<8x8xf32>
    %187 = tpu.matmul %184, %185, %cst_70 {dimension_numbers = #tpu.dot_dimension_numbers<[1], [1], [0], [0], [0, 0, 1, 0], [], []>} : vector<8x8xf32>, vector<8x8xf32>, vector<8x8xf32> -> vector<8x8xf32>
    %cst_71 = arith.constant dense<0xFF800000> : vector<8xf32>
    %188 = vector.multi_reduction <maximumf>, %187, %cst_71 [1] : vector<8x8xf32> to vector<8xf32>
    %189 = vector.shape_cast %188 : vector<8xf32> to vector<8x1xf32>
    %190 = vector.broadcast %189 : vector<8x1xf32> to vector<8x8xf32>
    %191 = arith.subf %187, %190 : vector<8x8xf32>
    %192 = math.exp %191 : vector<8x8xf32>
    %cst_72 = arith.constant dense<0.000000e+00> : vector<8xf32>
    %193 = vector.multi_reduction <add>, %192, %cst_72 [1] : vector<8x8xf32> to vector<8xf32>
    %194 = vector.shape_cast %193 : vector<8xf32> to vector<8x1xf32>
    %195 = tpu.reciprocal %194 {approx = true} : vector<8x1xf32> -> vector<8x1xf32>
    %196 = vector.broadcast %195 : vector<8x1xf32> to vector<8x8xf32>
    %197 = arith.mulf %192, %196 : vector<8x8xf32>
    %cst_73 = arith.constant dense<0.000000e+00> : vector<8x8xf32>
    %198 = tpu.matmul %197, %186, %cst_73 {dimension_numbers = #tpu.dot_dimension_numbers<[1], [0], [0], [1], [0, 0, 1, 1], [], []>} : vector<8x8xf32>, vector<8x8xf32>, vector<8x8xf32> -> vector<8x8xf32>
    %199 = tpu.concatenate %153, %168, %183, %198 in 1 : vector<8x8xf32>, vector<8x8xf32>, vector<8x8xf32>, vector<8x8xf32> -> vector<8x32xf32>
    %c0_74 = arith.constant 0 : index
    %c0_75 = arith.constant 0 : index
    %200 = vector.load %arg11[%c0_74, %c0_75] : memref<32x32xf32, #tpu.memory_space<vmem>>, vector<32x32xf32>
    %cst_76 = arith.constant dense<0.000000e+00> : vector<8x32xf32>
    %201 = tpu.matmul %199, %200, %cst_76 {dimension_numbers = #tpu.dot_dimension_numbers<[1], [0], [0], [1], [0, 0, 1, 1], [], []>} : vector<8x32xf32>, vector<32x32xf32>, vector<8x32xf32> -> vector<8x32xf32>
    %c0_77 = arith.constant 0 : index
    %c0_78 = arith.constant 0 : index
    %202 = vector.load %arg12[%c0_77, %c0_78] : memref<1x32xf32, #tpu.memory_space<vmem>>, vector<1x32xf32>
    %203 = vector.broadcast %202 : vector<1x32xf32> to vector<8x32xf32>
    %204 = arith.addf %201, %203 : vector<8x32xf32>
    %205 = arith.addf %102, %204 : vector<8x32xf32>
    %c0_79 = arith.constant 0 : index
    %c0_80 = arith.constant 0 : index
    %206 = vector.load %arg21[%c0_79, %c0_80] : memref<1x32xf32, #tpu.memory_space<vmem>>, vector<1x32xf32>
    %c0_81 = arith.constant 0 : index
    %c0_82 = arith.constant 0 : index
    %207 = vector.load %arg22[%c0_81, %c0_82] : memref<1x32xf32, #tpu.memory_space<vmem>>, vector<1x32xf32>
    %cst_83 = arith.constant dense<0.000000e+00> : vector<8xf32>
    %208 = vector.multi_reduction <add>, %205, %cst_83 [1] : vector<8x32xf32> to vector<8xf32>
    %209 = vector.shape_cast %208 : vector<8xf32> to vector<8x1xf32>
    %cst_84 = arith.constant 3.200000e+01 : f32
    %210 = vector.broadcast %cst_84 : f32 to vector<8x1xf32>
    %211 = arith.divf %209, %210 : vector<8x1xf32>
    %212 = vector.broadcast %211 : vector<8x1xf32> to vector<8x32xf32>
    %213 = arith.subf %205, %212 : vector<8x32xf32>
    %214 = arith.mulf %213, %213 : vector<8x32xf32>
    %cst_85 = arith.constant dense<0.000000e+00> : vector<8xf32>
    %215 = vector.multi_reduction <add>, %214, %cst_85 [1] : vector<8x32xf32> to vector<8xf32>
    %216 = vector.shape_cast %215 : vector<8xf32> to vector<8x1xf32>
    %cst_86 = arith.constant 3.200000e+01 : f32
    %217 = vector.broadcast %cst_86 : f32 to vector<8x1xf32>
    %218 = arith.divf %216, %217 : vector<8x1xf32>
    %219 = vector.broadcast %211 : vector<8x1xf32> to vector<8x32xf32>
    %220 = arith.subf %205, %219 : vector<8x32xf32>
    %cst_87 = arith.constant 9.99999974E-6 : f32
    %221 = vector.broadcast %cst_87 : f32 to vector<8x1xf32>
    %222 = arith.addf %218, %221 : vector<8x1xf32>
    %223 = math.rsqrt %222 : vector<8x1xf32>
    %224 = vector.broadcast %223 : vector<8x1xf32> to vector<8x32xf32>
    %225 = arith.mulf %220, %224 : vector<8x32xf32>
    %226 = vector.broadcast %206 : vector<1x32xf32> to vector<8x32xf32>
    %227 = arith.mulf %225, %226 : vector<8x32xf32>
    %228 = vector.broadcast %207 : vector<1x32xf32> to vector<8x32xf32>
    %229 = arith.addf %227, %228 : vector<8x32xf32>
    %c0_88 = arith.constant 0 : index
    %c0_89 = arith.constant 0 : index
    %230 = vector.load %arg13[%c0_88, %c0_89] : memref<32x128xf32, #tpu.memory_space<vmem>>, vector<32x128xf32>
    %cst_90 = arith.constant dense<0.000000e+00> : vector<8x128xf32>
    %231 = tpu.matmul %229, %230, %cst_90 {dimension_numbers = #tpu.dot_dimension_numbers<[1], [0], [0], [1], [0, 0, 1, 1], [], []>} : vector<8x32xf32>, vector<32x128xf32>, vector<8x128xf32> -> vector<8x128xf32>
    %c0_91 = arith.constant 0 : index
    %c0_92 = arith.constant 0 : index
    %232 = vector.load %arg14[%c0_91, %c0_92] : memref<1x128xf32, #tpu.memory_space<vmem>>, vector<1x128xf32>
    %233 = vector.broadcast %232 : vector<1x128xf32> to vector<8x128xf32>
    %234 = arith.addf %231, %233 : vector<8x128xf32>
    %cst_93 = arith.constant 5.000000e-01 : f32
    %235 = vector.broadcast %cst_93 : f32 to vector<8x128xf32>
    %236 = arith.mulf %235, %234 : vector<8x128xf32>
    %cst_94 = arith.constant 0.707106769 : f32
    %237 = vector.broadcast %cst_94 : f32 to vector<8x128xf32>
    %238 = arith.mulf %234, %237 : vector<8x128xf32>
    %239 = math.absf %238 : vector<8x128xf32>
    %cst_95 = arith.constant 0.327591091 : f32
    %240 = vector.broadcast %cst_95 : f32 to vector<8x128xf32>
    %241 = arith.mulf %240, %239 : vector<8x128xf32>
    %cst_96 = arith.constant 1.000000e+00 : f32
    %242 = vector.broadcast %cst_96 : f32 to vector<8x128xf32>
    %243 = arith.addf %242, %241 : vector<8x128xf32>
    %244 = tpu.reciprocal %243 {approx = true} : vector<8x128xf32> -> vector<8x128xf32>
    %cst_97 = arith.constant 1.06140542 : f32
    %245 = vector.broadcast %cst_97 : f32 to vector<8x128xf32>
    %246 = arith.mulf %245, %244 : vector<8x128xf32>
    %cst_98 = arith.constant -1.45315206 : f32
    %247 = vector.broadcast %cst_98 : f32 to vector<8x128xf32>
    %248 = arith.addf %246, %247 : vector<8x128xf32>
    %249 = arith.mulf %248, %244 : vector<8x128xf32>
    %cst_99 = arith.constant 1.42141378 : f32
    %250 = vector.broadcast %cst_99 : f32 to vector<8x128xf32>
    %251 = arith.addf %249, %250 : vector<8x128xf32>
    %252 = arith.mulf %251, %244 : vector<8x128xf32>
    %cst_100 = arith.constant -0.284496725 : f32
    %253 = vector.broadcast %cst_100 : f32 to vector<8x128xf32>
    %254 = arith.addf %252, %253 : vector<8x128xf32>
    %255 = arith.mulf %254, %244 : vector<8x128xf32>
    %cst_101 = arith.constant 0.254829586 : f32
    %256 = vector.broadcast %cst_101 : f32 to vector<8x128xf32>
    %257 = arith.addf %255, %256 : vector<8x128xf32>
    %258 = arith.mulf %257, %244 : vector<8x128xf32>
    %cst_102 = arith.constant 0.000000e+00 : f32
    %259 = vector.broadcast %cst_102 : f32 to vector<8x128xf32>
    %260 = arith.subf %259, %239 : vector<8x128xf32>
    %261 = arith.mulf %260, %239 : vector<8x128xf32>
    %262 = math.exp %261 : vector<8x128xf32>
    %263 = arith.mulf %258, %262 : vector<8x128xf32>
    %cst_103 = arith.constant 1.000000e+00 : f32
    %264 = vector.broadcast %cst_103 : f32 to vector<8x128xf32>
    %265 = arith.subf %264, %263 : vector<8x128xf32>
    %cst_104 = arith.constant 0.000000e+00 : f32
    %266 = vector.broadcast %cst_104 : f32 to vector<8x128xf32>
    %267 = arith.cmpf olt, %238, %266 : vector<8x128xf32>
    %cst_105 = arith.constant 0.000000e+00 : f32
    %268 = vector.broadcast %cst_105 : f32 to vector<8x128xf32>
    %269 = arith.subf %268, %265 : vector<8x128xf32>
    %270 = arith.select %267, %269, %265 : vector<8x128xi1>, vector<8x128xf32>
    %cst_106 = arith.constant 1.000000e+00 : f32
    %271 = vector.broadcast %cst_106 : f32 to vector<8x128xf32>
    %272 = arith.addf %271, %270 : vector<8x128xf32>
    %273 = arith.mulf %236, %272 : vector<8x128xf32>
    %c0_107 = arith.constant 0 : index
    %c0_108 = arith.constant 0 : index
    %274 = vector.load %arg15[%c0_107, %c0_108] : memref<128x32xf32, #tpu.memory_space<vmem>>, vector<128x32xf32>
    %cst_109 = arith.constant dense<0.000000e+00> : vector<8x32xf32>
    %275 = tpu.matmul %273, %274, %cst_109 {dimension_numbers = #tpu.dot_dimension_numbers<[1], [0], [0], [1], [0, 0, 1, 1], [], []>} : vector<8x128xf32>, vector<128x32xf32>, vector<8x32xf32> -> vector<8x32xf32>
    %c0_110 = arith.constant 0 : index
    %c0_111 = arith.constant 0 : index
    %276 = vector.load %arg16[%c0_110, %c0_111] : memref<1x32xf32, #tpu.memory_space<vmem>>, vector<1x32xf32>
    %277 = vector.broadcast %276 : vector<1x32xf32> to vector<8x32xf32>
    %278 = arith.addf %275, %277 : vector<8x32xf32>
    %279 = arith.addf %205, %278 : vector<8x32xf32>
    %c0_112 = arith.constant 0 : index
    %c0_113 = arith.constant 0 : index
    %c0_114 = arith.constant 0 : index
    %280 = vector.load %arg23[%c0_112, %c0_113, %c0_114] : memref<1x8x32xf32, #tpu.memory_space<vmem>>, vector<1x8x32xf32>
    %281 = vector.shape_cast %280 : vector<1x8x32xf32> to vector<8x32xf32>
    %282 = vector.shape_cast %279 : vector<8x32xf32> to vector<1x8x32xf32>
    tpu.vector_store %arg23[%c0_112, %c0_113, %c0_114], %282 {strides = array<i32>} : memref<1x8x32xf32, #tpu.memory_space<vmem>>, vector<1x8x32xf32>,
    return
  }
  func.func @transform_0(%arg0: i32) -> (i32, i32, i32) {
    %c0_i32 = arith.constant 0 : i32
    %c0_i32_0 = arith.constant 0 : i32
    %c0_i32_1 = arith.constant 0 : i32
    return %arg0, %c0_i32, %c0_i32_0 : i32, i32, i32
  }
  func.func @transform_1(%arg0: i32) -> (i32, i32, i32) {
    %c0_i32 = arith.constant 0 : i32
    %c0_i32_0 = arith.constant 0 : i32
    %c0_i32_1 = arith.constant 0 : i32
    return %arg0, %c0_i32, %c0_i32_0 : i32, i32, i32
  }
  func.func @transform_2(%arg0: i32) -> (i32, i32) {
    %c0_i32 = arith.constant 0 : i32
    %c0_i32_0 = arith.constant 0 : i32
    %c0_i32_1 = arith.constant 0 : i32
    return %c0_i32, %c0_i32_0 : i32, i32
  }
  func.func @transform_3(%arg0: i32) -> (i32, i32) {
    %c0_i32 = arith.constant 0 : i32
    %c0_i32_0 = arith.constant 0 : i32
    %c0_i32_1 = arith.constant 0 : i32
    return %c0_i32, %c0_i32_0 : i32, i32
  }
  func.func @transform_4(%arg0: i32) -> (i32, i32) {
    %c0_i32 = arith.constant 0 : i32
    %c0_i32_0 = arith.constant 0 : i32
    %c0_i32_1 = arith.constant 0 : i32
    return %c0_i32, %c0_i32_0 : i32, i32
  }
  func.func @transform_5(%arg0: i32) -> (i32, i32) {
    %c0_i32 = arith.constant 0 : i32
    %c0_i32_0 = arith.constant 0 : i32
    %c0_i32_1 = arith.constant 0 : i32
    return %c0_i32, %c0_i32_0 : i32, i32
  }
  func.func @transform_6(%arg0: i32) -> (i32, i32) {
    %c0_i32 = arith.constant 0 : i32
    %c0_i32_0 = arith.constant 0 : i32
    %c0_i32_1 = arith.constant 0 : i32
    return %c0_i32, %c0_i32_0 : i32, i32
  }
  func.func @transform_7(%arg0: i32) -> (i32, i32) {
    %c0_i32 = arith.constant 0 : i32
    %c0_i32_0 = arith.constant 0 : i32
    %c0_i32_1 = arith.constant 0 : i32
    return %c0_i32, %c0_i32_0 : i32, i32
  }
  func.func @transform_8(%arg0: i32) -> (i32, i32) {
    %c0_i32 = arith.constant 0 : i32
    %c0_i32_0 = arith.constant 0 : i32
    %c0_i32_1 = arith.constant 0 : i32
    return %c0_i32, %c0_i32_0 : i32, i32
  }
  func.func @transform_9(%arg0: i32) -> (i32, i32) {
    %c0_i32 = arith.constant 0 : i32
    %c0_i32_0 = arith.constant 0 : i32
    %c0_i32_1 = arith.constant 0 : i32
    return %c0_i32, %c0_i32_0 : i32, i32
  }
  func.func @transform_10(%arg0: i32) -> (i32, i32) {
    %c0_i32 = arith.constant 0 : i32
    %c0_i32_0 = arith.constant 0 : i32
    %c0_i32_1 = arith.constant 0 : i32
    return %c0_i32, %c0_i32_0 : i32, i32
  }
  func.func @transform_11(%arg0: i32) -> (i32, i32) {
    %c0_i32 = arith.constant 0 : i32
    %c0_i32_0 = arith.constant 0 : i32
    %c0_i32_1 = arith.constant 0 : i32
    return %c0_i32, %c0_i32_0 : i32, i32
  }
  func.func @transform_12(%arg0: i32) -> (i32, i32) {
    %c0_i32 = arith.constant 0 : i32
    %c0_i32_0 = arith.constant 0 : i32
    %c0_i32_1 = arith.constant 0 : i32
    return %c0_i32, %c0_i32_0 : i32, i32
  }
  func.func @transform_13(%arg0: i32) -> (i32, i32) {
    %c0_i32 = arith.constant 0 : i32
    %c0_i32_0 = arith.constant 0 : i32
    %c0_i32_1 = arith.constant 0 : i32
    return %c0_i32, %c0_i32_0 : i32, i32
  }
  func.func @transform_14(%arg0: i32) -> (i32, i32) {
    %c0_i32 = arith.constant 0 : i32
    %c0_i32_0 = arith.constant 0 : i32
    %c0_i32_1 = arith.constant 0 : i32
    return %c0_i32, %c0_i32_0 : i32, i32
  }
  func.func @transform_15(%arg0: i32) -> (i32, i32) {
    %c0_i32 = arith.constant 0 : i32
    %c0_i32_0 = arith.constant 0 : i32
    %c0_i32_1 = arith.constant 0 : i32
    return %c0_i32, %c0_i32_0 : i32, i32
  }
  func.func @transform_16(%arg0: i32) -> (i32, i32) {
    %c0_i32 = arith.constant 0 : i32
    %c0_i32_0 = arith.constant 0 : i32
    %c0_i32_1 = arith.constant 0 : i32
    return %c0_i32, %c0_i32_0 : i32, i32
  }
  func.func @transform_17(%arg0: i32) -> (i32, i32) {
    %c0_i32 = arith.constant 0 : i32
    %c0_i32_0 = arith.constant 0 : i32
    %c0_i32_1 = arith.constant 0 : i32
    return %c0_i32, %c0_i32_0 : i32, i32
  }
  func.func @transform_18(%arg0: i32) -> (i32, i32) {
    %c0_i32 = arith.constant 0 : i32
    %c0_i32_0 = arith.constant 0 : i32
    %c0_i32_1 = arith.constant 0 : i32
    return %c0_i32, %c0_i32_0 : i32, i32
  }
  func.func @transform_19(%arg0: i32) -> (i32, i32) {
    %c0_i32 = arith.constant 0 : i32
    %c0_i32_0 = arith.constant 0 : i32
    %c0_i32_1 = arith.constant 0 : i32
    return %c0_i32, %c0_i32_0 : i32, i32
  }
  func.func @transform_20(%arg0: i32) -> (i32, i32) {
    %c0_i32 = arith.constant 0 : i32
    %c0_i32_0 = arith.constant 0 : i32
    %c0_i32_1 = arith.constant 0 : i32
    return %c0_i32, %c0_i32_0 : i32, i32
  }
  func.func @transform_21(%arg0: i32) -> (i32, i32) {
    %c0_i32 = arith.constant 0 : i32
    %c0_i32_0 = arith.constant 0 : i32
    %c0_i32_1 = arith.constant 0 : i32
    return %c0_i32, %c0_i32_0 : i32, i32
  }
  func.func @transform_22(%arg0: i32) -> (i32, i32, i32) {
    %c0_i32 = arith.constant 0 : i32
    %c0_i32_0 = arith.constant 0 : i32
    %c0_i32_1 = arith.constant 0 : i32
    return %arg0, %c0_i32, %c0_i32_0 : i32, i32, i32
  }
}

module attributes {stable_mosaic.version = 11 : i64} {
  func.func @_decoder_layer_kernel(%arg0: i32, %arg1: memref<1x8x32xf32, #tpu.memory_space<vmem>>, %arg2: memref<1x8x32xf32, #tpu.memory_space<vmem>>, %arg3: memref<32x96xf32, #tpu.memory_space<vmem>>, %arg4: memref<1x96xf32, #tpu.memory_space<vmem>>, %arg5: memref<32x32xf32, #tpu.memory_space<vmem>>, %arg6: memref<1x32xf32, #tpu.memory_space<vmem>>, %arg7: memref<32x32xf32, #tpu.memory_space<vmem>>, %arg8: memref<1x32xf32, #tpu.memory_space<vmem>>, %arg9: memref<32x64xf32, #tpu.memory_space<vmem>>, %arg10: memref<1x64xf32, #tpu.memory_space<vmem>>, %arg11: memref<32x32xf32, #tpu.memory_space<vmem>>, %arg12: memref<1x32xf32, #tpu.memory_space<vmem>>, %arg13: memref<32x128xf32, #tpu.memory_space<vmem>>, %arg14: memref<1x128xf32, #tpu.memory_space<vmem>>, %arg15: memref<128x32xf32, #tpu.memory_space<vmem>>, %arg16: memref<1x32xf32, #tpu.memory_space<vmem>>, %arg17: memref<1x32xf32, #tpu.memory_space<vmem>>, %arg18: memref<1x32xf32, #tpu.memory_space<vmem>>, %arg19: memref<1x32xf32, #tpu.memory_space<vmem>>, %arg20: memref<1x32xf32, #tpu.memory_space<vmem>>, %arg21: memref<1x32xf32, #tpu.memory_space<vmem>>, %arg22: memref<1x32xf32, #tpu.memory_space<vmem>>, %arg23: memref<1x8x32xf32, #tpu.memory_space<vmem>>) attributes {dimension_semantics = [#tpu.dimension_semantics<parallel>], iteration_bounds = array<i64: 2>, scalar_prefetch = 0 : i64, scratch_operands = 0 : i64, tpu.core_type = #tpu.core_type<tc>, window_params = [{transform_indices = @transform_0, window_bounds = array<i64: 1, 8, 32>}, {transform_indices = @transform_1, window_bounds = array<i64: 1, 8, 32>}, {pipeline_mode = #tpu.pipeline_mode<synchronous>, transform_indices = @transform_2, window_bounds = array<i64: 32, 96>}, {pipeline_mode = #tpu.pipeline_mode<synchronous>, transform_indices = @transform_3, window_bounds = array<i64: 1, 96>}, {pipeline_mode = #tpu.pipeline_mode<synchronous>, transform_indices = @transform_4, window_bounds = array<i64: 32, 32>}, {pipeline_mode = #tpu.pipeline_mode<synchronous>, transform_indices = @transform_5, window_bounds = array<i64: 1, 32>}, {pipeline_mode = #tpu.pipeline_mode<synchronous>, transform_indices = @transform_6, window_bounds = array<i64: 32, 32>}, {pipeline_mode = #tpu.pipeline_mode<synchronous>, transform_indices = @transform_7, window_bounds = array<i64: 1, 32>}, {pipeline_mode = #tpu.pipeline_mode<synchronous>, transform_indices = @transform_8, window_bounds = array<i64: 32, 64>}, {pipeline_mode = #tpu.pipeline_mode<synchronous>, transform_indices = @transform_9, window_bounds = array<i64: 1, 64>}, {pipeline_mode = #tpu.pipeline_mode<synchronous>, transform_indices = @transform_10, window_bounds = array<i64: 32, 32>}, {pipeline_mode = #tpu.pipeline_mode<synchronous>, transform_indices = @transform_11, window_bounds = array<i64: 1, 32>}, {pipeline_mode = #tpu.pipeline_mode<synchronous>, transform_indices = @transform_12, window_bounds = array<i64: 32, 128>}, {pipeline_mode = #tpu.pipeline_mode<synchronous>, transform_indices = @transform_13, window_bounds = array<i64: 1, 128>}, {pipeline_mode = #tpu.pipeline_mode<synchronous>, transform_indices = @transform_14, window_bounds = array<i64: 128, 32>}, {pipeline_mode = #tpu.pipeline_mode<synchronous>, transform_indices = @transform_15, window_bounds = array<i64: 1, 32>}, {pipeline_mode = #tpu.pipeline_mode<synchronous>, transform_indices = @transform_16, window_bounds = array<i64: 1, 32>}, {pipeline_mode = #tpu.pipeline_mode<synchronous>, transform_indices = @transform_17, window_bounds = array<i64: 1, 32>}, {pipeline_mode = #tpu.pipeline_mode<synchronous>, transform_indices = @transform_18, window_bounds = array<i64: 1, 32>}, {pipeline_mode = #tpu.pipeline_mode<synchronous>, transform_indices = @transform_19, window_bounds = array<i64: 1, 32>}, {pipeline_mode = #tpu.pipeline_mode<synchronous>, transform_indices = @transform_20, window_bounds = array<i64: 1, 32>}, {pipeline_mode = #tpu.pipeline_mode<synchronous>, transform_indices = @transform_21, window_bounds = array<i64: 1, 32>}, {transform_indices = @transform_22, window_bounds = array<i64: 1, 8, 32>}]} {
    %c0 = arith.constant 0 : index
    %c0_0 = arith.constant 0 : index
    %c0_1 = arith.constant 0 : index
    %0 = vector.load %arg1[%c0, %c0_0, %c0_1] : memref<1x8x32xf32, #tpu.memory_space<vmem>>, vector<1x8x32xf32>
    %1 = vector.shape_cast %0 : vector<1x8x32xf32> to vector<8x32xf32>
    %c0_2 = arith.constant 0 : index
    %c0_3 = arith.constant 0 : index
    %c0_4 = arith.constant 0 : index
    %2 = vector.load %arg2[%c0_2, %c0_3, %c0_4] : memref<1x8x32xf32, #tpu.memory_space<vmem>>, vector<1x8x32xf32>
    %3 = vector.shape_cast %2 : vector<1x8x32xf32> to vector<8x32xf32>
    %c0_5 = arith.constant 0 : index
    %c0_6 = arith.constant 0 : index
    %4 = vector.load %arg17[%c0_5, %c0_6] : memref<1x32xf32, #tpu.memory_space<vmem>>, vector<1x32xf32>
    %c0_7 = arith.constant 0 : index
    %c0_8 = arith.constant 0 : index
    %5 = vector.load %arg18[%c0_7, %c0_8] : memref<1x32xf32, #tpu.memory_space<vmem>>, vector<1x32xf32>
    %cst = arith.constant dense<0.000000e+00> : vector<8xf32>
    %6 = vector.multi_reduction <add>, %1, %cst [1] : vector<8x32xf32> to vector<8xf32>
    %7 = vector.shape_cast %6 : vector<8xf32> to vector<8x1xf32>
    %cst_9 = arith.constant 3.200000e+01 : f32
    %8 = vector.broadcast %cst_9 : f32 to vector<8x1xf32>
    %9 = arith.divf %7, %8 : vector<8x1xf32>
    %10 = vector.broadcast %9 : vector<8x1xf32> to vector<8x32xf32>
    %11 = arith.subf %1, %10 : vector<8x32xf32>
    %12 = arith.mulf %11, %11 : vector<8x32xf32>
    %cst_10 = arith.constant dense<0.000000e+00> : vector<8xf32>
    %13 = vector.multi_reduction <add>, %12, %cst_10 [1] : vector<8x32xf32> to vector<8xf32>
    %14 = vector.shape_cast %13 : vector<8xf32> to vector<8x1xf32>
    %cst_11 = arith.constant 3.200000e+01 : f32
    %15 = vector.broadcast %cst_11 : f32 to vector<8x1xf32>
    %16 = arith.divf %14, %15 : vector<8x1xf32>
    %17 = vector.broadcast %9 : vector<8x1xf32> to vector<8x32xf32>
    %18 = arith.subf %1, %17 : vector<8x32xf32>
    %cst_12 = arith.constant 9.99999974E-6 : f32
    %19 = vector.broadcast %cst_12 : f32 to vector<8x1xf32>
    %20 = arith.addf %16, %19 : vector<8x1xf32>
    %21 = math.rsqrt %20 : vector<8x1xf32>
    %22 = vector.broadcast %21 : vector<8x1xf32> to vector<8x32xf32>
    %23 = arith.mulf %18, %22 : vector<8x32xf32>
    %24 = vector.broadcast %4 : vector<1x32xf32> to vector<8x32xf32>
    %25 = arith.mulf %23, %24 : vector<8x32xf32>
    %26 = vector.broadcast %5 : vector<1x32xf32> to vector<8x32xf32>
    %27 = arith.addf %25, %26 : vector<8x32xf32>
    %c0_13 = arith.constant 0 : index
    %c0_14 = arith.constant 0 : index
    %28 = vector.load %arg3[%c0_13, %c0_14] : memref<32x96xf32, #tpu.memory_space<vmem>>, vector<32x96xf32>
    %cst_15 = arith.constant dense<0.000000e+00> : vector<8x96xf32>
    %29 = tpu.matmul %27, %28, %cst_15 {dimension_numbers = #tpu.dot_dimension_numbers<[1], [0], [0], [1], [0, 0, 1, 1], [], []>} : vector<8x32xf32>, vector<32x96xf32>, vector<8x96xf32> -> vector<8x96xf32>
    %c0_16 = arith.constant 0 : index
    %c0_17 = arith.constant 0 : index
    %30 = vector.load %arg4[%c0_16, %c0_17] : memref<1x96xf32, #tpu.memory_space<vmem>>, vector<1x96xf32>
    %31 = vector.broadcast %30 : vector<1x96xf32> to vector<8x96xf32>
    %32 = arith.addf %29, %31 : vector<8x96xf32>
    %33 = vector.extract_strided_slice %32 {offsets = [0, 0], sizes = [8, 32], strides = [1, 1]} : vector<8x96xf32> to vector<8x32xf32>
    %34 = vector.extract_strided_slice %32 {offsets = [0, 32], sizes = [8, 32], strides = [1, 1]} : vector<8x96xf32> to vector<8x32xf32>
    %35 = vector.extract_strided_slice %32 {offsets = [0, 64], sizes = [8, 32], strides = [1, 1]} : vector<8x96xf32> to vector<8x32xf32>
    %36 = vector.extract_strided_slice %33 {offsets = [0, 0], sizes = [8, 8], strides = [1, 1]} : vector<8x32xf32> to vector<8x8xf32>
    %37 = vector.extract_strided_slice %34 {offsets = [0, 0], sizes = [8, 8], strides = [1, 1]} : vector<8x32xf32> to vector<8x8xf32>
    %38 = vector.extract_strided_slice %35 {offsets = [0, 0], sizes = [8, 8], strides = [1, 1]} : vector<8x32xf32> to vector<8x8xf32>
    %cst_18 = arith.constant dense<0.000000e+00> : vector<8x8xf32>
    %39 = tpu.matmul %36, %37, %cst_18 {dimension_numbers = #tpu.dot_dimension_numbers<[1], [1], [0], [0], [0, 0, 1, 0], [], []>} : vector<8x8xf32>, vector<8x8xf32>, vector<8x8xf32> -> vector<8x8xf32>
    %cst_19 = arith.constant dense<0xFF800000> : vector<8xf32>
    %40 = vector.multi_reduction <maximumf>, %39, %cst_19 [1] : vector<8x8xf32> to vector<8xf32>
    %41 = vector.shape_cast %40 : vector<8xf32> to vector<8x1xf32>
    %42 = vector.broadcast %41 : vector<8x1xf32> to vector<8x8xf32>
    %43 = arith.subf %39, %42 : vector<8x8xf32>
    %44 = math.exp %43 : vector<8x8xf32>
    %cst_20 = arith.constant dense<0.000000e+00> : vector<8xf32>
    %45 = vector.multi_reduction <add>, %44, %cst_20 [1] : vector<8x8xf32> to vector<8xf32>
    %46 = vector.shape_cast %45 : vector<8xf32> to vector<8x1xf32>
    %47 = tpu.reciprocal %46 {approx = true} : vector<8x1xf32> -> vector<8x1xf32>
    %48 = vector.broadcast %47 : vector<8x1xf32> to vector<8x8xf32>
    %49 = arith.mulf %44, %48 : vector<8x8xf32>
    %cst_21 = arith.constant dense<0.000000e+00> : vector<8x8xf32>
    %50 = tpu.matmul %49, %38, %cst_21 {dimension_numbers = #tpu.dot_dimension_numbers<[1], [0], [0], [1], [0, 0, 1, 1], [], []>} : vector<8x8xf32>, vector<8x8xf32>, vector<8x8xf32> -> vector<8x8xf32>
    %51 = vector.extract_strided_slice %33 {offsets = [0, 8], sizes = [8, 8], strides = [1, 1]} : vector<8x32xf32> to vector<8x8xf32>
    %52 = vector.extract_strided_slice %34 {offsets = [0, 8], sizes = [8, 8], strides = [1, 1]} : vector<8x32xf32> to vector<8x8xf32>
    %53 = vector.extract_strided_slice %35 {offsets = [0, 8], sizes = [8, 8], strides = [1, 1]} : vector<8x32xf32> to vector<8x8xf32>
    %cst_22 = arith.constant dense<0.000000e+00> : vector<8x8xf32>
    %54 = tpu.matmul %51, %52, %cst_22 {dimension_numbers = #tpu.dot_dimension_numbers<[1], [1], [0], [0], [0, 0, 1, 0], [], []>} : vector<8x8xf32>, vector<8x8xf32>, vector<8x8xf32> -> vector<8x8xf32>
    %cst_23 = arith.constant dense<0xFF800000> : vector<8xf32>
    %55 = vector.multi_reduction <maximumf>, %54, %cst_23 [1] : vector<8x8xf32> to vector<8xf32>
    %56 = vector.shape_cast %55 : vector<8xf32> to vector<8x1xf32>
    %57 = vector.broadcast %56 : vector<8x1xf32> to vector<8x8xf32>
    %58 = arith.subf %54, %57 : vector<8x8xf32>
    %59 = math.exp %58 : vector<8x8xf32>
    %cst_24 = arith.constant dense<0.000000e+00> : vector<8xf32>
    %60 = vector.multi_reduction <add>, %59, %cst_24 [1] : vector<8x8xf32> to vector<8xf32>
    %61 = vector.shape_cast %60 : vector<8xf32> to vector<8x1xf32>
    %62 = tpu.reciprocal %61 {approx = true} : vector<8x1xf32> -> vector<8x1xf32>
    %63 = vector.broadcast %62 : vector<8x1xf32> to vector<8x8xf32>
    %64 = arith.mulf %59, %63 : vector<8x8xf32>
    %cst_25 = arith.constant dense<0.000000e+00> : vector<8x8xf32>
    %65 = tpu.matmul %64, %53, %cst_25 {dimension_numbers = #tpu.dot_dimension_numbers<[1], [0], [0], [1], [0, 0, 1, 1], [], []>} : vector<8x8xf32>, vector<8x8xf32>, vector<8x8xf32> -> vector<8x8xf32>
    %66 = vector.extract_strided_slice %33 {offsets = [0, 16], sizes = [8, 8], strides = [1, 1]} : vector<8x32xf32> to vector<8x8xf32>
    %67 = vector.extract_strided_slice %34 {offsets = [0, 16], sizes = [8, 8], strides = [1, 1]} : vector<8x32xf32> to vector<8x8xf32>
    %68 = vector.extract_strided_slice %35 {offsets = [0, 16], sizes = [8, 8], strides = [1, 1]} : vector<8x32xf32> to vector<8x8xf32>
    %cst_26 = arith.constant dense<0.000000e+00> : vector<8x8xf32>
    %69 = tpu.matmul %66, %67, %cst_26 {dimension_numbers = #tpu.dot_dimension_numbers<[1], [1], [0], [0], [0, 0, 1, 0], [], []>} : vector<8x8xf32>, vector<8x8xf32>, vector<8x8xf32> -> vector<8x8xf32>
    %cst_27 = arith.constant dense<0xFF800000> : vector<8xf32>
    %70 = vector.multi_reduction <maximumf>, %69, %cst_27 [1] : vector<8x8xf32> to vector<8xf32>
    %71 = vector.shape_cast %70 : vector<8xf32> to vector<8x1xf32>
    %72 = vector.broadcast %71 : vector<8x1xf32> to vector<8x8xf32>
    %73 = arith.subf %69, %72 : vector<8x8xf32>
    %74 = math.exp %73 : vector<8x8xf32>
    %cst_28 = arith.constant dense<0.000000e+00> : vector<8xf32>
    %75 = vector.multi_reduction <add>, %74, %cst_28 [1] : vector<8x8xf32> to vector<8xf32>
    %76 = vector.shape_cast %75 : vector<8xf32> to vector<8x1xf32>
    %77 = tpu.reciprocal %76 {approx = true} : vector<8x1xf32> -> vector<8x1xf32>
    %78 = vector.broadcast %77 : vector<8x1xf32> to vector<8x8xf32>
    %79 = arith.mulf %74, %78 : vector<8x8xf32>
    %cst_29 = arith.constant dense<0.000000e+00> : vector<8x8xf32>
    %80 = tpu.matmul %79, %68, %cst_29 {dimension_numbers = #tpu.dot_dimension_numbers<[1], [0], [0], [1], [0, 0, 1, 1], [], []>} : vector<8x8xf32>, vector<8x8xf32>, vector<8x8xf32> -> vector<8x8xf32>
    %81 = vector.extract_strided_slice %33 {offsets = [0, 24], sizes = [8, 8], strides = [1, 1]} : vector<8x32xf32> to vector<8x8xf32>
    %82 = vector.extract_strided_slice %34 {offsets = [0, 24], sizes = [8, 8], strides = [1, 1]} : vector<8x32xf32> to vector<8x8xf32>
    %83 = vector.extract_strided_slice %35 {offsets = [0, 24], sizes = [8, 8], strides = [1, 1]} : vector<8x32xf32> to vector<8x8xf32>
    %cst_30 = arith.constant dense<0.000000e+00> : vector<8x8xf32>
    %84 = tpu.matmul %81, %82, %cst_30 {dimension_numbers = #tpu.dot_dimension_numbers<[1], [1], [0], [0], [0, 0, 1, 0], [], []>} : vector<8x8xf32>, vector<8x8xf32>, vector<8x8xf32> -> vector<8x8xf32>
    %cst_31 = arith.constant dense<0xFF800000> : vector<8xf32>
    %85 = vector.multi_reduction <maximumf>, %84, %cst_31 [1] : vector<8x8xf32> to vector<8xf32>
    %86 = vector.shape_cast %85 : vector<8xf32> to vector<8x1xf32>
    %87 = vector.broadcast %86 : vector<8x1xf32> to vector<8x8xf32>
    %88 = arith.subf %84, %87 : vector<8x8xf32>
    %89 = math.exp %88 : vector<8x8xf32>
    %cst_32 = arith.constant dense<0.000000e+00> : vector<8xf32>
    %90 = vector.multi_reduction <add>, %89, %cst_32 [1] : vector<8x8xf32> to vector<8xf32>
    %91 = vector.shape_cast %90 : vector<8xf32> to vector<8x1xf32>
    %92 = tpu.reciprocal %91 {approx = true} : vector<8x1xf32> -> vector<8x1xf32>
    %93 = vector.broadcast %92 : vector<8x1xf32> to vector<8x8xf32>
    %94 = arith.mulf %89, %93 : vector<8x8xf32>
    %cst_33 = arith.constant dense<0.000000e+00> : vector<8x8xf32>
    %95 = tpu.matmul %94, %83, %cst_33 {dimension_numbers = #tpu.dot_dimension_numbers<[1], [0], [0], [1], [0, 0, 1, 1], [], []>} : vector<8x8xf32>, vector<8x8xf32>, vector<8x8xf32> -> vector<8x8xf32>
    %96 = tpu.concatenate %50, %65, %80, %95 in 1 : vector<8x8xf32>, vector<8x8xf32>, vector<8x8xf32>, vector<8x8xf32> -> vector<8x32xf32>
    %c0_34 = arith.constant 0 : index
    %c0_35 = arith.constant 0 : index
    %97 = vector.load %arg5[%c0_34, %c0_35] : memref<32x32xf32, #tpu.memory_space<vmem>>, vector<32x32xf32>
    %cst_36 = arith.constant dense<0.000000e+00> : vector<8x32xf32>
    %98 = tpu.matmul %96, %97, %cst_36 {dimension_numbers = #tpu.dot_dimension_numbers<[1], [0], [0], [1], [0, 0, 1, 1], [], []>} : vector<8x32xf32>, vector<32x32xf32>, vector<8x32xf32> -> vector<8x32xf32>
    %c0_37 = arith.constant 0 : index
    %c0_38 = arith.constant 0 : index
    %99 = vector.load %arg6[%c0_37, %c0_38] : memref<1x32xf32, #tpu.memory_space<vmem>>, vector<1x32xf32>
    %100 = vector.broadcast %99 : vector<1x32xf32> to vector<8x32xf32>
    %101 = arith.addf %98, %100 : vector<8x32xf32>
    %102 = arith.addf %1, %101 : vector<8x32xf32>
    %c0_39 = arith.constant 0 : index
    %c0_40 = arith.constant 0 : index
    %103 = vector.load %arg19[%c0_39, %c0_40] : memref<1x32xf32, #tpu.memory_space<vmem>>, vector<1x32xf32>
    %c0_41 = arith.constant 0 : index
    %c0_42 = arith.constant 0 : index
    %104 = vector.load %arg20[%c0_41, %c0_42] : memref<1x32xf32, #tpu.memory_space<vmem>>, vector<1x32xf32>
    %cst_43 = arith.constant dense<0.000000e+00> : vector<8xf32>
    %105 = vector.multi_reduction <add>, %102, %cst_43 [1] : vector<8x32xf32> to vector<8xf32>
    %106 = vector.shape_cast %105 : vector<8xf32> to vector<8x1xf32>
    %cst_44 = arith.constant 3.200000e+01 : f32
    %107 = vector.broadcast %cst_44 : f32 to vector<8x1xf32>
    %108 = arith.divf %106, %107 : vector<8x1xf32>
    %109 = vector.broadcast %108 : vector<8x1xf32> to vector<8x32xf32>
    %110 = arith.subf %102, %109 : vector<8x32xf32>
    %111 = arith.mulf %110, %110 : vector<8x32xf32>
    %cst_45 = arith.constant dense<0.000000e+00> : vector<8xf32>
    %112 = vector.multi_reduction <add>, %111, %cst_45 [1] : vector<8x32xf32> to vector<8xf32>
    %113 = vector.shape_cast %112 : vector<8xf32> to vector<8x1xf32>
    %cst_46 = arith.constant 3.200000e+01 : f32
    %114 = vector.broadcast %cst_46 : f32 to vector<8x1xf32>
    %115 = arith.divf %113, %114 : vector<8x1xf32>
    %116 = vector.broadcast %108 : vector<8x1xf32> to vector<8x32xf32>
    %117 = arith.subf %102, %116 : vector<8x32xf32>
    %cst_47 = arith.constant 9.99999974E-6 : f32
    %118 = vector.broadcast %cst_47 : f32 to vector<8x1xf32>
    %119 = arith.addf %115, %118 : vector<8x1xf32>
    %120 = math.rsqrt %119 : vector<8x1xf32>
    %121 = vector.broadcast %120 : vector<8x1xf32> to vector<8x32xf32>
    %122 = arith.mulf %117, %121 : vector<8x32xf32>
    %123 = vector.broadcast %103 : vector<1x32xf32> to vector<8x32xf32>
    %124 = arith.mulf %122, %123 : vector<8x32xf32>
    %125 = vector.broadcast %104 : vector<1x32xf32> to vector<8x32xf32>
    %126 = arith.addf %124, %125 : vector<8x32xf32>
    %c0_48 = arith.constant 0 : index
    %c0_49 = arith.constant 0 : index
    %127 = vector.load %arg7[%c0_48, %c0_49] : memref<32x32xf32, #tpu.memory_space<vmem>>, vector<32x32xf32>
    %cst_50 = arith.constant dense<0.000000e+00> : vector<8x32xf32>
    %128 = tpu.matmul %126, %127, %cst_50 {dimension_numbers = #tpu.dot_dimension_numbers<[1], [0], [0], [1], [0, 0, 1, 1], [], []>} : vector<8x32xf32>, vector<32x32xf32>, vector<8x32xf32> -> vector<8x32xf32>
    %c0_51 = arith.constant 0 : index
    %c0_52 = arith.constant 0 : index
    %129 = vector.load %arg8[%c0_51, %c0_52] : memref<1x32xf32, #tpu.memory_space<vmem>>, vector<1x32xf32>
    %130 = vector.broadcast %129 : vector<1x32xf32> to vector<8x32xf32>
    %131 = arith.addf %128, %130 : vector<8x32xf32>
    %c0_53 = arith.constant 0 : index
    %c0_54 = arith.constant 0 : index
    %132 = vector.load %arg9[%c0_53, %c0_54] : memref<32x64xf32, #tpu.memory_space<vmem>>, vector<32x64xf32>
    %cst_55 = arith.constant dense<0.000000e+00> : vector<8x64xf32>
    %133 = tpu.matmul %3, %132, %cst_55 {dimension_numbers = #tpu.dot_dimension_numbers<[1], [0], [0], [1], [0, 0, 1, 1], [], []>} : vector<8x32xf32>, vector<32x64xf32>, vector<8x64xf32> -> vector<8x64xf32>
    %c0_56 = arith.constant 0 : index
    %c0_57 = arith.constant 0 : index
    %134 = vector.load %arg10[%c0_56, %c0_57] : memref<1x64xf32, #tpu.memory_space<vmem>>, vector<1x64xf32>
    %135 = vector.broadcast %134 : vector<1x64xf32> to vector<8x64xf32>
    %136 = arith.addf %133, %135 : vector<8x64xf32>
    %137 = vector.extract_strided_slice %136 {offsets = [0, 0], sizes = [8, 32], strides = [1, 1]} : vector<8x64xf32> to vector<8x32xf32>
    %138 = vector.extract_strided_slice %136 {offsets = [0, 32], sizes = [8, 32], strides = [1, 1]} : vector<8x64xf32> to vector<8x32xf32>
    %139 = vector.extract_strided_slice %131 {offsets = [0, 0], sizes = [8, 8], strides = [1, 1]} : vector<8x32xf32> to vector<8x8xf32>
    %140 = vector.extract_strided_slice %137 {offsets = [0, 0], sizes = [8, 8], strides = [1, 1]} : vector<8x32xf32> to vector<8x8xf32>
    %141 = vector.extract_strided_slice %138 {offsets = [0, 0], sizes = [8, 8], strides = [1, 1]} : vector<8x32xf32> to vector<8x8xf32>
    %cst_58 = arith.constant dense<0.000000e+00> : vector<8x8xf32>
    %142 = tpu.matmul %139, %140, %cst_58 {dimension_numbers = #tpu.dot_dimension_numbers<[1], [1], [0], [0], [0, 0, 1, 0], [], []>} : vector<8x8xf32>, vector<8x8xf32>, vector<8x8xf32> -> vector<8x8xf32>
    %cst_59 = arith.constant dense<0xFF800000> : vector<8xf32>
    %143 = vector.multi_reduction <maximumf>, %142, %cst_59 [1] : vector<8x8xf32> to vector<8xf32>
    %144 = vector.shape_cast %143 : vector<8xf32> to vector<8x1xf32>
    %145 = vector.broadcast %144 : vector<8x1xf32> to vector<8x8xf32>
    %146 = arith.subf %142, %145 : vector<8x8xf32>
    %147 = math.exp %146 : vector<8x8xf32>
    %cst_60 = arith.constant dense<0.000000e+00> : vector<8xf32>
    %148 = vector.multi_reduction <add>, %147, %cst_60 [1] : vector<8x8xf32> to vector<8xf32>
    %149 = vector.shape_cast %148 : vector<8xf32> to vector<8x1xf32>
    %150 = tpu.reciprocal %149 {approx = true} : vector<8x1xf32> -> vector<8x1xf32>
    %151 = vector.broadcast %150 : vector<8x1xf32> to vector<8x8xf32>
    %152 = arith.mulf %147, %151 : vector<8x8xf32>
    %cst_61 = arith.constant dense<0.000000e+00> : vector<8x8xf32>
    %153 = tpu.matmul %152, %141, %cst_61 {dimension_numbers = #tpu.dot_dimension_numbers<[1], [0], [0], [1], [0, 0, 1, 1], [], []>} : vector<8x8xf32>, vector<8x8xf32>, vector<8x8xf32> -> vector<8x8xf32>
    %154 = vector.extract_strided_slice %131 {offsets = [0, 8], sizes = [8, 8], strides = [1, 1]} : vector<8x32xf32> to vector<8x8xf32>
    %155 = vector.extract_strided_slice %137 {offsets = [0, 8], sizes = [8, 8], strides = [1, 1]} : vector<8x32xf32> to vector<8x8xf32>
    %156 = vector.extract_strided_slice %138 {offsets = [0, 8], sizes = [8, 8], strides = [1, 1]} : vector<8x32xf32> to vector<8x8xf32>
    %cst_62 = arith.constant dense<0.000000e+00> : vector<8x8xf32>
    %157 = tpu.matmul %154, %155, %cst_62 {dimension_numbers = #tpu.dot_dimension_numbers<[1], [1], [0], [0], [0, 0, 1, 0], [], []>} : vector<8x8xf32>, vector<8x8xf32>, vector<8x8xf32> -> vector<8x8xf32>
    %cst_63 = arith.constant dense<0xFF800000> : vector<8xf32>
    %158 = vector.multi_reduction <maximumf>, %157, %cst_63 [1] : vector<8x8xf32> to vector<8xf32>
    %159 = vector.shape_cast %158 : vector<8xf32> to vector<8x1xf32>
    %160 = vector.broadcast %159 : vector<8x1xf32> to vector<8x8xf32>
    %161 = arith.subf %157, %160 : vector<8x8xf32>
    %162 = math.exp %161 : vector<8x8xf32>
    %cst_64 = arith.constant dense<0.000000e+00> : vector<8xf32>
    %163 = vector.multi_reduction <add>, %162, %cst_64 [1] : vector<8x8xf32> to vector<8xf32>
    %164 = vector.shape_cast %163 : vector<8xf32> to vector<8x1xf32>
    %165 = tpu.reciprocal %164 {approx = true} : vector<8x1xf32> -> vector<8x1xf32>
    %166 = vector.broadcast %165 : vector<8x1xf32> to vector<8x8xf32>
    %167 = arith.mulf %162, %166 : vector<8x8xf32>
    %cst_65 = arith.constant dense<0.000000e+00> : vector<8x8xf32>
    %168 = tpu.matmul %167, %156, %cst_65 {dimension_numbers = #tpu.dot_dimension_numbers<[1], [0], [0], [1], [0, 0, 1, 1], [], []>} : vector<8x8xf32>, vector<8x8xf32>, vector<8x8xf32> -> vector<8x8xf32>
    %169 = vector.extract_strided_slice %131 {offsets = [0, 16], sizes = [8, 8], strides = [1, 1]} : vector<8x32xf32> to vector<8x8xf32>
    %170 = vector.extract_strided_slice %137 {offsets = [0, 16], sizes = [8, 8], strides = [1, 1]} : vector<8x32xf32> to vector<8x8xf32>
    %171 = vector.extract_strided_slice %138 {offsets = [0, 16], sizes = [8, 8], strides = [1, 1]} : vector<8x32xf32> to vector<8x8xf32>
    %cst_66 = arith.constant dense<0.000000e+00> : vector<8x8xf32>
    %172 = tpu.matmul %169, %170, %cst_66 {dimension_numbers = #tpu.dot_dimension_numbers<[1], [1], [0], [0], [0, 0, 1, 0], [], []>} : vector<8x8xf32>, vector<8x8xf32>, vector<8x8xf32> -> vector<8x8xf32>
    %cst_67 = arith.constant dense<0xFF800000> : vector<8xf32>
    %173 = vector.multi_reduction <maximumf>, %172, %cst_67 [1] : vector<8x8xf32> to vector<8xf32>
    %174 = vector.shape_cast %173 : vector<8xf32> to vector<8x1xf32>
    %175 = vector.broadcast %174 : vector<8x1xf32> to vector<8x8xf32>
    %176 = arith.subf %172, %175 : vector<8x8xf32>
    %177 = math.exp %176 : vector<8x8xf32>
    %cst_68 = arith.constant dense<0.000000e+00> : vector<8xf32>
    %178 = vector.multi_reduction <add>, %177, %cst_68 [1] : vector<8x8xf32> to vector<8xf32>
    %179 = vector.shape_cast %178 : vector<8xf32> to vector<8x1xf32>
    %180 = tpu.reciprocal %179 {approx = true} : vector<8x1xf32> -> vector<8x1xf32>
    %181 = vector.broadcast %180 : vector<8x1xf32> to vector<8x8xf32>
    %182 = arith.mulf %177, %181 : vector<8x8xf32>
    %cst_69 = arith.constant dense<0.000000e+00> : vector<8x8xf32>
    %183 = tpu.matmul %182, %171, %cst_69 {dimension_numbers = #tpu.dot_dimension_numbers<[1], [0], [0], [1], [0, 0, 1, 1], [], []>} : vector<8x8xf32>, vector<8x8xf32>, vector<8x8xf32> -> vector<8x8xf32>
    %184 = vector.extract_strided_slice %131 {offsets = [0, 24], sizes = [8, 8], strides = [1, 1]} : vector<8x32xf32> to vector<8x8xf32>
    %185 = vector.extract_strided_slice %137 {offsets = [0, 24], sizes = [8, 8], strides = [1, 1]} : vector<8x32xf32> to vector<8x8xf32>
    %186 = vector.extract_strided_slice %138 {offsets = [0, 24], sizes = [8, 8], strides = [1, 1]} : vector<8x32xf32> to vector<8x8xf32>
    %cst_70 = arith.constant dense<0.000000e+00> : vector<8x8xf32>
    %187 = tpu.matmul %184, %185, %cst_70 {dimension_numbers = #tpu.dot_dimension_numbers<[1], [1], [0], [0], [0, 0, 1, 0], [], []>} : vector<8x8xf32>, vector<8x8xf32>, vector<8x8xf32> -> vector<8x8xf32>
    %cst_71 = arith.constant dense<0xFF800000> : vector<8xf32>
    %188 = vector.multi_reduction <maximumf>, %187, %cst_71 [1] : vector<8x8xf32> to vector<8xf32>
    %189 = vector.shape_cast %188 : vector<8xf32> to vector<8x1xf32>
    %190 = vector.broadcast %189 : vector<8x1xf32> to vector<8x8xf32>
    %191 = arith.subf %187, %190 : vector<8x8xf32>
    %192 = math.exp %191 : vector<8x8xf32>
    %cst_72 = arith.constant dense<0.000000e+00> : vector<8xf32>
    %193 = vector.multi_reduction <add>, %192, %cst_72 [1] : vector<8x8xf32> to vector<8xf32>
    %194 = vector.shape_cast %193 : vector<8xf32> to vector<8x1xf32>
    %195 = tpu.reciprocal %194 {approx = true} : vector<8x1xf32> -> vector<8x1xf32>
    %196 = vector.broadcast %195 : vector<8x1xf32> to vector<8x8xf32>
    %197 = arith.mulf %192, %196 : vector<8x8xf32>
    %cst_73 = arith.constant dense<0.000000e+00> : vector<8x8xf32>
    %198 = tpu.matmul %197, %186, %cst_73 {dimension_numbers = #tpu.dot_dimension_numbers<[1], [0], [0], [1], [0, 0, 1, 1], [], []>} : vector<8x8xf32>, vector<8x8xf32>, vector<8x8xf32> -> vector<8x8xf32>
    %199 = tpu.concatenate %153, %168, %183, %198 in 1 : vector<8x8xf32>, vector<8x8xf32>, vector<8x8xf32>, vector<8x8xf32> -> vector<8x32xf32>
    %c0_74 = arith.constant 0 : index
    %c0_75 = arith.constant 0 : index
    %200 = vector.load %arg11[%c0_74, %c0_75] : memref<32x32xf32, #tpu.memory_space<vmem>>, vector<32x32xf32>
    %cst_76 = arith.constant dense<0.000000e+00> : vector<8x32xf32>
    %201 = tpu.matmul %199, %200, %cst_76 {dimension_numbers = #tpu.dot_dimension_numbers<[1], [0], [0], [1], [0, 0, 1, 1], [], []>} : vector<8x32xf32>, vector<32x32xf32>, vector<8x32xf32> -> vector<8x32xf32>
    %c0_77 = arith.constant 0 : index
    %c0_78 = arith.constant 0 : index
    %202 = vector.load %arg12[%c0_77, %c0_78] : memref<1x32xf32, #tpu.memory_space<vmem>>, vector<1x32xf32>
    %203 = vector.broadcast %202 : vector<1x32xf32> to vector<8x32xf32>
    %204 = arith.addf %201, %203 : vector<8x32xf32>
    %205 = arith.addf %102, %204 : vector<8x32xf32>
    %c0_79 = arith.constant 0 : index
    %c0_80 = arith.constant 0 : index
    %206 = vector.load %arg21[%c0_79, %c0_80] : memref<1x32xf32, #tpu.memory_space<vmem>>, vector<1x32xf32>
    %c0_81 = arith.constant 0 : index
    %c0_82 = arith.constant 0 : index
    %207 = vector.load %arg22[%c0_81, %c0_82] : memref<1x32xf32, #tpu.memory_space<vmem>>, vector<1x32xf32>
    %cst_83 = arith.constant dense<0.000000e+00> : vector<8xf32>
    %208 = vector.multi_reduction <add>, %205, %cst_83 [1] : vector<8x32xf32> to vector<8xf32>
    %209 = vector.shape_cast %208 : vector<8xf32> to vector<8x1xf32>
    %cst_84 = arith.constant 3.200000e+01 : f32
    %210 = vector.broadcast %cst_84 : f32 to vector<8x1xf32>
    %211 = arith.divf %209, %210 : vector<8x1xf32>
    %212 = vector.broadcast %211 : vector<8x1xf32> to vector<8x32xf32>
    %213 = arith.subf %205, %212 : vector<8x32xf32>
    %214 = arith.mulf %213, %213 : vector<8x32xf32>
    %cst_85 = arith.constant dense<0.000000e+00> : vector<8xf32>
    %215 = vector.multi_reduction <add>, %214, %cst_85 [1] : vector<8x32xf32> to vector<8xf32>
    %216 = vector.shape_cast %215 : vector<8xf32> to vector<8x1xf32>
    %cst_86 = arith.constant 3.200000e+01 : f32
    %217 = vector.broadcast %cst_86 : f32 to vector<8x1xf32>
    %218 = arith.divf %216, %217 : vector<8x1xf32>
    %219 = vector.broadcast %211 : vector<8x1xf32> to vector<8x32xf32>
    %220 = arith.subf %205, %219 : vector<8x32xf32>
    %cst_87 = arith.constant 9.99999974E-6 : f32
    %221 = vector.broadcast %cst_87 : f32 to vector<8x1xf32>
    %222 = arith.addf %218, %221 : vector<8x1xf32>
    %223 = math.rsqrt %222 : vector<8x1xf32>
    %224 = vector.broadcast %223 : vector<8x1xf32> to vector<8x32xf32>
    %225 = arith.mulf %220, %224 : vector<8x32xf32>
    %226 = vector.broadcast %206 : vector<1x32xf32> to vector<8x32xf32>
    %227 = arith.mulf %225, %226 : vector<8x32xf32>
    %228 = vector.broadcast %207 : vector<1x32xf32> to vector<8x32xf32>
    %229 = arith.addf %227, %228 : vector<8x32xf32>
    %c0_88 = arith.constant 0 : index
    %c0_89 = arith.constant 0 : index
    %230 = vector.load %arg13[%c0_88, %c0_89] : memref<32x128xf32, #tpu.memory_space<vmem>>, vector<32x128xf32>
    %cst_90 = arith.constant dense<0.000000e+00> : vector<8x128xf32>
    %231 = tpu.matmul %229, %230, %cst_90 {dimension_numbers = #tpu.dot_dimension_numbers<[1], [0], [0], [1], [0, 0, 1, 1], [], []>} : vector<8x32xf32>, vector<32x128xf32>, vector<8x128xf32> -> vector<8x128xf32>
    %c0_91 = arith.constant 0 : index
    %c0_92 = arith.constant 0 : index
    %232 = vector.load %arg14[%c0_91, %c0_92] : memref<1x128xf32, #tpu.memory_space<vmem>>, vector<1x128xf32>
    %233 = vector.broadcast %232 : vector<1x128xf32> to vector<8x128xf32>
    %234 = arith.addf %231, %233 : vector<8x128xf32>
    %cst_93 = arith.constant 5.000000e-01 : f32
    %235 = vector.broadcast %cst_93 : f32 to vector<8x128xf32>
    %236 = arith.mulf %235, %234 : vector<8x128xf32>
    %cst_94 = arith.constant 0.707106769 : f32
    %237 = vector.broadcast %cst_94 : f32 to vector<8x128xf32>
    %238 = arith.mulf %234, %237 : vector<8x128xf32>
    %239 = math.absf %238 : vector<8x128xf32>
    %cst_95 = arith.constant 0.327591091 : f32
    %240 = vector.broadcast %cst_95 : f32 to vector<8x128xf32>
    %241 = arith.mulf %240, %239 : vector<8x128xf32>
    %cst_96 = arith.constant 1.000000e+00 : f32
    %242 = vector.broadcast %cst_96 : f32 to vector<8x128xf32>
    %243 = arith.addf %242, %241 : vector<8x128xf32>
    %244 = tpu.reciprocal %243 {approx = true} : vector<8x128xf32> -> vector<8x128xf32>
    %cst_97 = arith.constant 1.06140542 : f32
    %245 = vector.broadcast %cst_97 : f32 to vector<8x128xf32>
    %246 = arith.mulf %245, %244 : vector<8x128xf32>
    %cst_98 = arith.constant -1.45315206 : f32
    %247 = vector.broadcast %cst_98 : f32 to vector<8x128xf32>
    %248 = arith.addf %246, %247 : vector<8x128xf32>
    %249 = arith.mulf %248, %244 : vector<8x128xf32>
    %cst_99 = arith.constant 1.42141378 : f32
    %250 = vector.broadcast %cst_99 : f32 to vector<8x128xf32>
    %251 = arith.addf %249, %250 : vector<8x128xf32>
    %252 = arith.mulf %251, %244 : vector<8x128xf32>
    %cst_100 = arith.constant -0.284496725 : f32
    %253 = vector.broadcast %cst_100 : f32 to vector<8x128xf32>
    %254 = arith.addf %252, %253 : vector<8x128xf32>
    %255 = arith.mulf %254, %244 : vector<8x128xf32>
    %cst_101 = arith.constant 0.254829586 : f32
    %256 = vector.broadcast %cst_101 : f32 to vector<8x128xf32>
    %257 = arith.addf %255, %256 : vector<8x128xf32>
    %258 = arith.mulf %257, %244 : vector<8x128xf32>
    %cst_102 = arith.constant 0.000000e+00 : f32
    %259 = vector.broadcast %cst_102 : f32 to vector<8x128xf32>
    %260 = arith.subf %259, %239 : vector<8x128xf32>
    %261 = arith.mulf %260, %239 : vector<8x128xf32>
    %262 = math.exp %261 : vector<8x128xf32>
    %263 = arith.mulf %258, %262 : vector<8x128xf32>
    %cst_103 = arith.constant 1.000000e+00 : f32
    %264 = vector.broadcast %cst_103 : f32 to vector<8x128xf32>
    %265 = arith.subf %264, %263 : vector<8x128xf32>
    %cst_104 = arith.constant 0.000000e+00 : f32
    %266 = vector.broadcast %cst_104 : f32 to vector<8x128xf32>
    %267 = arith.cmpf olt, %238, %266 : vector<8x128xf32>
    %cst_105 = arith.constant 0.000000e+00 : f32
    %268 = vector.broadcast %cst_105 : f32 to vector<8x128xf32>
    %269 = arith.subf %268, %265 : vector<8x128xf32>
    %270 = arith.select %267, %269, %265 : vector<8x128xi1>, vector<8x128xf32>
    %cst_106 = arith.constant 1.000000e+00 : f32
    %271 = vector.broadcast %cst_106 : f32 to vector<8x128xf32>
    %272 = arith.addf %271, %270 : vector<8x128xf32>
    %273 = arith.mulf %236, %272 : vector<8x128xf32>
    %c0_107 = arith.constant 0 : index
    %c0_108 = arith.constant 0 : index
    %274 = vector.load %arg15[%c0_107, %c0_108] : memref<128x32xf32, #tpu.memory_space<vmem>>, vector<128x32xf32>
    %cst_109 = arith.constant dense<0.000000e+00> : vector<8x32xf32>
    %275 = tpu.matmul %273, %274, %cst_109 {dimension_numbers = #tpu.dot_dimension_numbers<[1], [0], [0], [1], [0, 0, 1, 1], [], []>} : vector<8x128xf32>, vector<128x32xf32>, vector<8x32xf32> -> vector<8x32xf32>
    %c0_110 = arith.constant 0 : index
    %c0_111 = arith.constant 0 : index
    %276 = vector.load %arg16[%c0_110, %c0_111] : memref<1x32xf32, #tpu.memory_space<vmem>>, vector<1x32xf32>
    %277 = vector.broadcast %276 : vector<1x32xf32> to vector<8x32xf32>
    %278 = arith.addf %275, %277 : vector<8x32xf32>
    %279 = arith.addf %205, %278 : vector<8x32xf32>
    %c0_112 = arith.constant 0 : index
    %c0_113 = arith.constant 0 : index
    %c0_114 = arith.constant 0 : index
    %280 = vector.load %arg23[%c0_112, %c0_113, %c0_114] : memref<1x8x32xf32, #tpu.memory_space<vmem>>, vector<1x8x32xf32>
    %281 = vector.shape_cast %280 : vector<1x8x32xf32> to vector<8x32xf32>
    %282 = vector.shape_cast %279 : vector<8x32xf32> to vector<1x8x32xf32>
    tpu.vector_store %arg23[%c0_112, %c0_113, %c0_114], %282 {strides = array<i32>} : memref<1x8x32xf32, #tpu.memory_space<vmem>>, vector<1x8x32xf32>,
    return
  }
  func.func @transform_0(%arg0: i32) -> (i32, i32, i32) {
    %c0_i32 = arith.constant 0 : i32
    %c0_i32_0 = arith.constant 0 : i32
    %c0_i32_1 = arith.constant 0 : i32
    return %arg0, %c0_i32, %c0_i32_0 : i32, i32, i32
  }
  func.func @transform_1(%arg0: i32) -> (i32, i32, i32) {
    %c0_i32 = arith.constant 0 : i32
    %c0_i32_0 = arith.constant 0 : i32
    %c0_i32_1 = arith.constant 0 : i32
    return %arg0, %c0_i32, %c0_i32_0 : i32, i32, i32
  }
  func.func @transform_2(%arg0: i32) -> (i32, i32) {
    %c0_i32 = arith.constant 0 : i32
    %c0_i32_0 = arith.constant 0 : i32
    %c0_i32_1 = arith.constant 0 : i32
    return %c0_i32, %c0_i32_0 : i32, i32
  }
  func.func @transform_3(%arg0: i32) -> (i32, i32) {
    %c0_i32 = arith.constant 0 : i32
    %c0_i32_0 = arith.constant 0 : i32
    %c0_i32_1 = arith.constant 0 : i32
    return %c0_i32, %c0_i32_0 : i32, i32
  }
  func.func @transform_4(%arg0: i32) -> (i32, i32) {
    %c0_i32 = arith.constant 0 : i32
    %c0_i32_0 = arith.constant 0 : i32
    %c0_i32_1 = arith.constant 0 : i32
    return %c0_i32, %c0_i32_0 : i32, i32
  }
  func.func @transform_5(%arg0: i32) -> (i32, i32) {
    %c0_i32 = arith.constant 0 : i32
    %c0_i32_0 = arith.constant 0 : i32
    %c0_i32_1 = arith.constant 0 : i32
    return %c0_i32, %c0_i32_0 : i32, i32
  }
  func.func @transform_6(%arg0: i32) -> (i32, i32) {
    %c0_i32 = arith.constant 0 : i32
    %c0_i32_0 = arith.constant 0 : i32
    %c0_i32_1 = arith.constant 0 : i32
    return %c0_i32, %c0_i32_0 : i32, i32
  }
  func.func @transform_7(%arg0: i32) -> (i32, i32) {
    %c0_i32 = arith.constant 0 : i32
    %c0_i32_0 = arith.constant 0 : i32
    %c0_i32_1 = arith.constant 0 : i32
    return %c0_i32, %c0_i32_0 : i32, i32
  }
  func.func @transform_8(%arg0: i32) -> (i32, i32) {
    %c0_i32 = arith.constant 0 : i32
    %c0_i32_0 = arith.constant 0 : i32
    %c0_i32_1 = arith.constant 0 : i32
    return %c0_i32, %c0_i32_0 : i32, i32
  }
  func.func @transform_9(%arg0: i32) -> (i32, i32) {
    %c0_i32 = arith.constant 0 : i32
    %c0_i32_0 = arith.constant 0 : i32
    %c0_i32_1 = arith.constant 0 : i32
    return %c0_i32, %c0_i32_0 : i32, i32
  }
  func.func @transform_10(%arg0: i32) -> (i32, i32) {
    %c0_i32 = arith.constant 0 : i32
    %c0_i32_0 = arith.constant 0 : i32
    %c0_i32_1 = arith.constant 0 : i32
    return %c0_i32, %c0_i32_0 : i32, i32
  }
  func.func @transform_11(%arg0: i32) -> (i32, i32) {
    %c0_i32 = arith.constant 0 : i32
    %c0_i32_0 = arith.constant 0 : i32
    %c0_i32_1 = arith.constant 0 : i32
    return %c0_i32, %c0_i32_0 : i32, i32
  }
  func.func @transform_12(%arg0: i32) -> (i32, i32) {
    %c0_i32 = arith.constant 0 : i32
    %c0_i32_0 = arith.constant 0 : i32
    %c0_i32_1 = arith.constant 0 : i32
    return %c0_i32, %c0_i32_0 : i32, i32
  }
  func.func @transform_13(%arg0: i32) -> (i32, i32) {
    %c0_i32 = arith.constant 0 : i32
    %c0_i32_0 = arith.constant 0 : i32
    %c0_i32_1 = arith.constant 0 : i32
    return %c0_i32, %c0_i32_0 : i32, i32
  }
  func.func @transform_14(%arg0: i32) -> (i32, i32) {
    %c0_i32 = arith.constant 0 : i32
    %c0_i32_0 = arith.constant 0 : i32
    %c0_i32_1 = arith.constant 0 : i32
    return %c0_i32, %c0_i32_0 : i32, i32
  }
  func.func @transform_15(%arg0: i32) -> (i32, i32) {
    %c0_i32 = arith.constant 0 : i32
    %c0_i32_0 = arith.constant 0 : i32
    %c0_i32_1 = arith.constant 0 : i32
    return %c0_i32, %c0_i32_0 : i32, i32
  }
  func.func @transform_16(%arg0: i32) -> (i32, i32) {
    %c0_i32 = arith.constant 0 : i32
    %c0_i32_0 = arith.constant 0 : i32
    %c0_i32_1 = arith.constant 0 : i32
    return %c0_i32, %c0_i32_0 : i32, i32
  }
  func.func @transform_17(%arg0: i32) -> (i32, i32) {
    %c0_i32 = arith.constant 0 : i32
    %c0_i32_0 = arith.constant 0 : i32
    %c0_i32_1 = arith.constant 0 : i32
    return %c0_i32, %c0_i32_0 : i32, i32
  }
  func.func @transform_18(%arg0: i32) -> (i32, i32) {
    %c0_i32 = arith.constant 0 : i32
    %c0_i32_0 = arith.constant 0 : i32
    %c0_i32_1 = arith.constant 0 : i32
    return %c0_i32, %c0_i32_0 : i32, i32
  }
  func.func @transform_19(%arg0: i32) -> (i32, i32) {
    %c0_i32 = arith.constant 0 : i32
    %c0_i32_0 = arith.constant 0 : i32
    %c0_i32_1 = arith.constant 0 : i32
    return %c0_i32, %c0_i32_0 : i32, i32
  }
  func.func @transform_20(%arg0: i32) -> (i32, i32) {
    %c0_i32 = arith.constant 0 : i32
    %c0_i32_0 = arith.constant 0 : i32
    %c0_i32_1 = arith.constant 0 : i32
    return %c0_i32, %c0_i32_0 : i32, i32
  }
  func.func @transform_21(%arg0: i32) -> (i32, i32) {
    %c0_i32 = arith.constant 0 : i32
    %c0_i32_0 = arith.constant 0 : i32
    %c0_i32_1 = arith.constant 0 : i32
    return %c0_i32, %c0_i32_0 : i32, i32
  }
  func.func @transform_22(%arg0: i32) -> (i32, i32, i32) {
    %c0_i32 = arith.constant 0 : i32
    %c0_i32_0 = arith.constant 0 : i32
    %c0_i32_1 = arith.constant 0 : i32
    return %arg0, %c0_i32, %c0_i32_0 : i32, i32, i32
  }
}

</mosaic_0001>

<llo_original>
// kernel: trans_module.2
$region0: #{trans_module.2}
  #allocation0 [shape = 'u32[]', space=smem, size = 0x4, offset = 0x4, fixed_abs, tag = 'smem constant byte address 0x4 - core index']
  #allocation1 [shape = 'u32[144,128]{1,0:T(1,128)}', space=vmem, size = 0x12000, scoped, tag = 'internal scratch']
  %s0 = inlined_call_operand.hbm [shape: f32[2,8,32], index: 0, kind: input, shape index: {}]
  %s1 = inlined_call_operand.vmem [shape: f32[2,8,32], index: 1, kind: input, shape index: {}]
  %s2 = inlined_call_operand.vmem [shape: f32[32,96], index: 2, kind: input, shape index: {}]
  %s3 = inlined_call_operand.vmem [shape: f32[1,96], index: 3, kind: input, shape index: {}]
  %s4 = inlined_call_operand.vmem [shape: f32[32,32], index: 4, kind: input, shape index: {}]
  %s5 = inlined_call_operand.vmem [shape: f32[1,32], index: 5, kind: input, shape index: {}]
  %s6 = inlined_call_operand.vmem [shape: f32[32,32], index: 6, kind: input, shape index: {}]
  %s7 = inlined_call_operand.vmem [shape: f32[1,32], index: 7, kind: input, shape index: {}]
  %s8 = inlined_call_operand.vmem [shape: f32[32,64], index: 8, kind: input, shape index: {}]
  %s9 = inlined_call_operand.hbm [shape: f32[1,64], index: 9, kind: input, shape index: {}]
  %s10 = inlined_call_operand.vmem [shape: f32[32,32], index: 10, kind: input, shape index: {}]
  %s11 = inlined_call_operand.vmem [shape: f32[1,32], index: 11, kind: input, shape index: {}]
  %s12 = inlined_call_operand.hbm [shape: f32[32,128], index: 12, kind: input, shape index: {}]
  %s13 = inlined_call_operand.hbm [shape: f32[1,128], index: 13, kind: input, shape index: {}]
  %s14 = inlined_call_operand.vmem [shape: f32[128,32], index: 14, kind: input, shape index: {}]
  %s15 = inlined_call_operand.hbm [shape: f32[1,32], index: 15, kind: input, shape index: {}]
  %s16 = inlined_call_operand.vmem [shape: f32[1,32], index: 16, kind: input, shape index: {}]
  %s17 = inlined_call_operand.vmem [shape: f32[1,32], index: 17, kind: input, shape index: {}]
  %s18 = inlined_call_operand.vmem [shape: f32[1,32], index: 18, kind: input, shape index: {}]
  %s19 = inlined_call_operand.vmem [shape: f32[1,32], index: 19, kind: input, shape index: {}]
  %s20 = inlined_call_operand.vmem [shape: f32[1,32], index: 20, kind: input, shape index: {}]
  %s21 = inlined_call_operand.vmem [shape: f32[1,32], index: 21, kind: input, shape index: {}]
  %s22 = inlined_call_operand.vmem [shape: f32[2,8,32], index: 22, kind: output, shape index: {}]
  %s23 = sld [smem:[#allocation0]]
  $region141: #{trans_module.2} parent=0
    _
  %s25 = ssub.s32 1, %s23
  %s26 = scalar_select 0, %s25, %s23
  $region1: #{trans_module.2} parent=0
    #allocation2 [shape = 'u8[8192]{0}', space=vmem, size = 0x2000, scoped, tag = 'input window, operand 0']
    #allocation3 [shape = 's32[2]{0}', space=sflag, size = 0x8, scoped, tag = 'scoped memory for trans_module.2']
    #allocation4 [shape = 'u8[512]{0}', space=vmem, size = 0x400, scoped, tag = 'input window, operand 9, single buffered']
    #allocation5 [shape = 's32[1]{0}', space=sflag, size = 0x4, scoped, tag = 'scoped memory for trans_module.2']
    #allocation6 [shape = 'u8[16384]{0}', space=vmem, size = 0x4000, scoped, tag = 'input window, operand 12, single buffered']
    #allocation7 [shape = 'u8[512]{0}', space=vmem, size = 0x400, scoped, tag = 'input window, operand 13, single buffered']
    #allocation8 [shape = 's32[1]{0}', space=sflag, size = 0x4, scoped, tag = 'scoped memory for trans_module.2']
    #allocation9 [shape = 'u8[512]{0}', space=vmem, size = 0x400, scoped, tag = 'input window, operand 15, single buffered']
    %27 = vsyncpa [#allocation3], 0
    %s28 = scalar_lea.sflag [#allocation3], 1
    %29 = vsyncpa %s28, 0
    %30 = vsyncpa [#allocation5], 0
    %31 = vsyncpa [#allocation8], 0
    loop: start=0, step=1, limit=4
    $region2: #{trans_module.2} parent=1 // loop_pre_header
      _
    $region3: #{trans_module.2} parent=1 // loop_header
      %s33 = sphi 0, %s37
      %p34 = scmp.ge.s32.totalorder %s33, 4
      %s43 = sphi 0, %s45
      %s46 = sphi 0, %s43
      %s47 = sphi 0, %s46
      %s63 = sphi 0, %s47
      %s69 = sphi 0, %s71
      %s72 = sphi 0, %s69
      %s73 = sphi 0, %s72
      %s89 = sphi 0, %s73
      %s93 = sphi 0, %s93
      %s95 = sphi 0, %s93
      %s96 = sphi 0, %s95
      %s110 = sphi 0, %s96
      %s114 = sphi 0, %s114
      %s116 = sphi 0, %s114
      %s117 = sphi 0, %s116
      %s131 = sphi 0, %s117
      %s135 = sphi 0, %s135
      %s137 = sphi 0, %s135
      %s138 = sphi 0, %s137
      %s152 = sphi 0, %s138
      %s156 = sphi 0, %s156
      %s158 = sphi 0, %s156
      %s159 = sphi 0, %s158
      %s173 = sphi 0, %s159
      %s177 = sphi 0, %s177
      %s179 = sphi 0, %s177
      %s180 = sphi 0, %s179
      %s194 = sphi 0, %s180
      %s198 = sphi 0, %s198
      %s200 = sphi 0, %s198
      %s201 = sphi 0, %s200
      %s215 = sphi 0, %s201
      %s219 = sphi 0, %s219
      %s221 = sphi 0, %s219
      %s222 = sphi 0, %s221
      %s236 = sphi 0, %s222
      %s240 = sphi 0, %s240
      %s242 = sphi 0, %s240
      %s243 = sphi 0, %s242
      %s257 = sphi 0, %s243
      %s261 = sphi 0, %s261
      %s263 = sphi 0, %s261
      %s264 = sphi 0, %s263
      %s278 = sphi 0, %s264
      %s282 = sphi 0, %s282
      %s284 = sphi 0, %s282
      %s285 = sphi 0, %s284
      %s299 = sphi 0, %s285
      %s303 = sphi 0, %s303
      %s305 = sphi 0, %s303
      %s306 = sphi 0, %s305
      %s320 = sphi 0, %s306
      %s324 = sphi 0, %s324
      %s326 = sphi 0, %s324
      %s327 = sphi 0, %s326
      %s341 = sphi 0, %s327
      %s345 = sphi 0, %s345
      %s347 = sphi 0, %s345
      %s348 = sphi 0, %s347
      %s362 = sphi 0, %s348
      %s366 = sphi 0, %s366
      %s368 = sphi 0, %s366
      %s369 = sphi 0, %s368
      %s383 = sphi 0, %s369
      %s387 = sphi 0, %s387
      %s389 = sphi 0, %s387
      %s390 = sphi 0, %s389
      %s404 = sphi 0, %s390
      %s408 = sphi 0, %s408
      %s410 = sphi 0, %s408
      %s411 = sphi 0, %s410
      %s425 = sphi 0, %s411
      %s429 = sphi 0, %s429
      %s431 = sphi 0, %s429
      %s432 = sphi 0, %s431
      %s446 = sphi 0, %s432
      %s450 = sphi 0, %s450
      %s452 = sphi 0, %s450
      %s453 = sphi 0, %s452
      %s467 = sphi 0, %s453
      %s471 = sphi 0, %s471
      %s473 = sphi 0, %s471
      %s474 = sphi 0, %s473
      %s488 = sphi 0, %s474
      %s492 = sphi 0, %s492
      %s494 = sphi 0, %s492
      %s495 = sphi 0, %s494
      %s509 = sphi 0, %s495
      %s515 = sphi 0, %s517
      %s518 = sphi 0, %s515
      %s519 = sphi 0, %s518
      %s535 = sphi 0, %s519
    $region4: #{trans_module.2} parent=1 // loop_header_branch
      %36 = sbr.rel (%p34) target = $region8
    $region5: #{trans_module.2} parent=1 // loop_body
      %s38 = ssub.s32 %s33, 1
      %s39 = ssub.s32 %s33, 2
      %s40 = sadd.s32 %s33, 1
      %s41 = ssub.s32 %s33, %s40
      %p42 = scmp.eq.s32.totalorder %s41, 0
      %s44 = sadd.s32 %s43, 1
      %s45 = scalar_select %p42, %s43, %s44
      %p48 = pneg %p42
      %p49 = scmp.eq.s32.totalorder %s33, 1
      %p50 = por %p48, %p49
      %p51 = scmp.ne.s32.totalorder %s43, %s46
      %p52 = scmp.eq.s32.totalorder %s33, 0
      %p53 = por %p51, %p52
      %p54 = scmp.ne.s32.totalorder %s43, %s46
      %p55 = scmp.eq.s32.totalorder %s38, 1
      %p56 = por %p54, %p55
      %p57 = scmp.ne.s32.totalorder %s46, %s47
      %p58 = scmp.eq.s32.totalorder %s38, 0
      %p59 = por %p57, %p58
      %p60 = scmp.ne.s32.totalorder %s46, %s47
      %p61 = scmp.eq.s32.totalorder %s39, 1
      %p62 = por %p60, %p61
      %p64 = scmp.ne.s32.totalorder %s47, %s63
      %p65 = scmp.eq.s32.totalorder %s39, 0
      %p66 = por %p64, %p65
      %s67 = ssub.s32 %s33, %s40
      %p68 = scmp.eq.s32.totalorder %s67, 0
      %s70 = sadd.s32 %s69, 1
      %s71 = scalar_select %p68, %s69, %s70
      %p74 = pneg %p68
      %p75 = scmp.eq.s32.totalorder %s33, 1
      %p76 = por %p74, %p75
      %p77 = scmp.ne.s32.totalorder %s69, %s72
      %p78 = scmp.eq.s32.totalorder %s33, 0
      %p79 = por %p77, %p78
      %p80 = scmp.ne.s32.totalorder %s69, %s72
      %p81 = scmp.eq.s32.totalorder %s38, 1
      %p82 = por %p80, %p81
      %p83 = scmp.ne.s32.totalorder %s72, %s73
      %p84 = scmp.eq.s32.totalorder %s38, 0
      %p85 = por %p83, %p84
      %p86 = scmp.ne.s32.totalorder %s72, %s73
      %p87 = scmp.eq.s32.totalorder %s39, 1
      %p88 = por %p86, %p87
      %p90 = scmp.ne.s32.totalorder %s73, %s89
      %p91 = scmp.eq.s32.totalorder %s39, 0
      %p92 = por %p90, %p91
      %s94 = sadd.s32 %s93, 1
      %p97 = scmp.eq.s32.totalorder %s33, 1
      %p98 = scmp.ne.s32.totalorder %s93, %s95
      %p99 = scmp.eq.s32.totalorder %s33, 0
      %p100 = por %p98, %p99
      %p101 = scmp.ne.s32.totalorder %s93, %s95
      %p102 = scmp.eq.s32.totalorder %s38, 1
      %p103 = por %p101, %p102
      %p104 = scmp.ne.s32.totalorder %s95, %s96
      %p105 = scmp.eq.s32.totalorder %s38, 0
      %p106 = por %p104, %p105
      %p107 = scmp.ne.s32.totalorder %s95, %s96
      %p108 = scmp.eq.s32.totalorder %s39, 1
      %p109 = por %p107, %p108
      %p111 = scmp.ne.s32.totalorder %s96, %s110
      %p112 = scmp.eq.s32.totalorder %s39, 0
      %p113 = por %p111, %p112
      %s115 = sadd.s32 %s114, 1
      %p118 = scmp.eq.s32.totalorder %s33, 1
      %p119 = scmp.ne.s32.totalorder %s114, %s116
      %p120 = scmp.eq.s32.totalorder %s33, 0
      %p121 = por %p119, %p120
      %p122 = scmp.ne.s32.totalorder %s114, %s116
      %p123 = scmp.eq.s32.totalorder %s38, 1
      %p124 = por %p122, %p123
      %p125 = scmp.ne.s32.totalorder %s116, %s117
      %p126 = scmp.eq.s32.totalorder %s38, 0
      %p127 = por %p125, %p126
      %p128 = scmp.ne.s32.totalorder %s116, %s117
      %p129 = scmp.eq.s32.totalorder %s39, 1
      %p130 = por %p128, %p129
      %p132 = scmp.ne.s32.totalorder %s117, %s131
      %p133 = scmp.eq.s32.totalorder %s39, 0
      %p134 = por %p132, %p133
      %s136 = sadd.s32 %s135, 1
      %p139 = scmp.eq.s32.totalorder %s33, 1
      %p140 = scmp.ne.s32.totalorder %s135, %s137
      %p141 = scmp.eq.s32.totalorder %s33, 0
      %p142 = por %p140, %p141
      %p143 = scmp.ne.s32.totalorder %s135, %s137
      %p144 = scmp.eq.s32.totalorder %s38, 1
      %p145 = por %p143, %p144
      %p146 = scmp.ne.s32.totalorder %s137, %s138
      %p147 = scmp.eq.s32.totalorder %s38, 0
      %p148 = por %p146, %p147
      %p149 = scmp.ne.s32.totalorder %s137, %s138
      %p150 = scmp.eq.s32.totalorder %s39, 1
      %p151 = por %p149, %p150
      %p153 = scmp.ne.s32.totalorder %s138, %s152
      %p154 = scmp.eq.s32.totalorder %s39, 0
      %p155 = por %p153, %p154
      %s157 = sadd.s32 %s156, 1
      %p160 = scmp.eq.s32.totalorder %s33, 1
      %p161 = scmp.ne.s32.totalorder %s156, %s158
      %p162 = scmp.eq.s32.totalorder %s33, 0
      %p163 = por %p161, %p162
      %p164 = scmp.ne.s32.totalorder %s156, %s158
      %p165 = scmp.eq.s32.totalorder %s38, 1
      %p166 = por %p164, %p165
      %p167 = scmp.ne.s32.totalorder %s158, %s159
      %p168 = scmp.eq.s32.totalorder %s38, 0
      %p169 = por %p167, %p168
      %p170 = scmp.ne.s32.totalorder %s158, %s159
      %p171 = scmp.eq.s32.totalorder %s39, 1
      %p172 = por %p170, %p171
      %p174 = scmp.ne.s32.totalorder %s159, %s173
      %p175 = scmp.eq.s32.totalorder %s39, 0
      %p176 = por %p174, %p175
      %s178 = sadd.s32 %s177, 1
      %p181 = scmp.eq.s32.totalorder %s33, 1
      %p182 = scmp.ne.s32.totalorder %s177, %s179
      %p183 = scmp.eq.s32.totalorder %s33, 0
      %p184 = por %p182, %p183
      %p185 = scmp.ne.s32.totalorder %s177, %s179
      %p186 = scmp.eq.s32.totalorder %s38, 1
      %p187 = por %p185, %p186
      %p188 = scmp.ne.s32.totalorder %s179, %s180
      %p189 = scmp.eq.s32.totalorder %s38, 0
      %p190 = por %p188, %p189
      %p191 = scmp.ne.s32.totalorder %s179, %s180
      %p192 = scmp.eq.s32.totalorder %s39, 1
      %p193 = por %p191, %p192
      %p195 = scmp.ne.s32.totalorder %s180, %s194
      %p196 = scmp.eq.s32.totalorder %s39, 0
      %p197 = por %p195, %p196
      %s199 = sadd.s32 %s198, 1
      %p202 = scmp.eq.s32.totalorder %s33, 1
      %p203 = scmp.ne.s32.totalorder %s198, %s200
      %p204 = scmp.eq.s32.totalorder %s33, 0
      %p205 = por %p203, %p204
      %p206 = scmp.ne.s32.totalorder %s198, %s200
      %p207 = scmp.eq.s32.totalorder %s38, 1
      %p208 = por %p206, %p207
      %p209 = scmp.ne.s32.totalorder %s200, %s201
      %p210 = scmp.eq.s32.totalorder %s38, 0
      %p211 = por %p209, %p210
      %p212 = scmp.ne.s32.totalorder %s200, %s201
      %p213 = scmp.eq.s32.totalorder %s39, 1
      %p214 = por %p212, %p213
      %p216 = scmp.ne.s32.totalorder %s201, %s215
      %p217 = scmp.eq.s32.totalorder %s39, 0
      %p218 = por %p216, %p217
      %s220 = sadd.s32 %s219, 1
      %p223 = scmp.eq.s32.totalorder %s33, 1
      %p224 = scmp.ne.s32.totalorder %s219, %s221
      %p225 = scmp.eq.s32.totalorder %s33, 0
      %p226 = por %p224, %p225
      %p227 = scmp.ne.s32.totalorder %s219, %s221
      %p228 = scmp.eq.s32.totalorder %s38, 1
      %p229 = por %p227, %p228
      %p230 = scmp.ne.s32.totalorder %s221, %s222
      %p231 = scmp.eq.s32.totalorder %s38, 0
      %p232 = por %p230, %p231
      %p233 = scmp.ne.s32.totalorder %s221, %s222
      %p234 = scmp.eq.s32.totalorder %s39, 1
      %p235 = por %p233, %p234
      %p237 = scmp.ne.s32.totalorder %s222, %s236
      %p238 = scmp.eq.s32.totalorder %s39, 0
      %p239 = por %p237, %p238
      %s241 = sadd.s32 %s240, 1
      %p244 = scmp.eq.s32.totalorder %s33, 1
      %p245 = scmp.ne.s32.totalorder %s240, %s242
      %p246 = scmp.eq.s32.totalorder %s33, 0
      %p247 = por %p245, %p246
      %p248 = scmp.ne.s32.totalorder %s240, %s242
      %p249 = scmp.eq.s32.totalorder %s38, 1
      %p250 = por %p248, %p249
      %p251 = scmp.ne.s32.totalorder %s242, %s243
      %p252 = scmp.eq.s32.totalorder %s38, 0
      %p253 = por %p251, %p252
      %p254 = scmp.ne.s32.totalorder %s242, %s243
      %p255 = scmp.eq.s32.totalorder %s39, 1
      %p256 = por %p254, %p255
      %p258 = scmp.ne.s32.totalorder %s243, %s257
      %p259 = scmp.eq.s32.totalorder %s39, 0
      %p260 = por %p258, %p259
      %s262 = sadd.s32 %s261, 1
      %p265 = scmp.eq.s32.totalorder %s33, 1
      %p266 = scmp.ne.s32.totalorder %s261, %s263
      %p267 = scmp.eq.s32.totalorder %s33, 0
      %p268 = por %p266, %p267
      %p269 = scmp.ne.s32.totalorder %s261, %s263
      %p270 = scmp.eq.s32.totalorder %s38, 1
      %p271 = por %p269, %p270
      %p272 = scmp.ne.s32.totalorder %s263, %s264
      %p273 = scmp.eq.s32.totalorder %s38, 0
      %p274 = por %p272, %p273
      %p275 = scmp.ne.s32.totalorder %s263, %s264
      %p276 = scmp.eq.s32.totalorder %s39, 1
      %p277 = por %p275, %p276
      %p279 = scmp.ne.s32.totalorder %s264, %s278
      %p280 = scmp.eq.s32.totalorder %s39, 0
      %p281 = por %p279, %p280
      %s283 = sadd.s32 %s282, 1
      %p286 = scmp.eq.s32.totalorder %s33, 1
      %p287 = scmp.ne.s32.totalorder %s282, %s284
      %p288 = scmp.eq.s32.totalorder %s33, 0
      %p289 = por %p287, %p288
      %p290 = scmp.ne.s32.totalorder %s282, %s284
      %p291 = scmp.eq.s32.totalorder %s38, 1
      %p292 = por %p290, %p291
      %p293 = scmp.ne.s32.totalorder %s284, %s285
      %p294 = scmp.eq.s32.totalorder %s38, 0
      %p295 = por %p293, %p294
      %p296 = scmp.ne.s32.totalorder %s284, %s285
      %p297 = scmp.eq.s32.totalorder %s39, 1
      %p298 = por %p296, %p297
      %p300 = scmp.ne.s32.totalorder %s285, %s299
      %p301 = scmp.eq.s32.totalorder %s39, 0
      %p302 = por %p300, %p301
      %s304 = sadd.s32 %s303, 1
      %p307 = scmp.eq.s32.totalorder %s33, 1
      %p308 = scmp.ne.s32.totalorder %s303, %s305
      %p309 = scmp.eq.s32.totalorder %s33, 0
      %p310 = por %p308, %p309
      %p311 = scmp.ne.s32.totalorder %s303, %s305
      %p312 = scmp.eq.s32.totalorder %s38, 1
      %p313 = por %p311, %p312
      %p314 = scmp.ne.s32.totalorder %s305, %s306
      %p315 = scmp.eq.s32.totalorder %s38, 0
      %p316 = por %p314, %p315
      %p317 = scmp.ne.s32.totalorder %s305, %s306
      %p318 = scmp.eq.s32.totalorder %s39, 1
      %p319 = por %p317, %p318
      %p321 = scmp.ne.s32.totalorder %s306, %s320
      %p322 = scmp.eq.s32.totalorder %s39, 0
      %p323 = por %p321, %p322
      %s325 = sadd.s32 %s324, 1
      %p328 = scmp.eq.s32.totalorder %s33, 1
      %p329 = scmp.ne.s32.totalorder %s324, %s326
      %p330 = scmp.eq.s32.totalorder %s33, 0
      %p331 = por %p329, %p330
      %p332 = scmp.ne.s32.totalorder %s324, %s326
      %p333 = scmp.eq.s32.totalorder %s38, 1
      %p334 = por %p332, %p333
      %p335 = scmp.ne.s32.totalorder %s326, %s327
      %p336 = scmp.eq.s32.totalorder %s38, 0
      %p337 = por %p335, %p336
      %p338 = scmp.ne.s32.totalorder %s326, %s327
      %p339 = scmp.eq.s32.totalorder %s39, 1
      %p340 = por %p338, %p339
      %p342 = scmp.ne.s32.totalorder %s327, %s341
      %p343 = scmp.eq.s32.totalorder %s39, 0
      %p344 = por %p342, %p343
      %s346 = sadd.s32 %s345, 1
      %p349 = scmp.eq.s32.totalorder %s33, 1
      %p350 = scmp.ne.s32.totalorder %s345, %s347
      %p351 = scmp.eq.s32.totalorder %s33, 0
      %p352 = por %p350, %p351
      %p353 = scmp.ne.s32.totalorder %s345, %s347
      %p354 = scmp.eq.s32.totalorder %s38, 1
      %p355 = por %p353, %p354
      %p356 = scmp.ne.s32.totalorder %s347, %s348
      %p357 = scmp.eq.s32.totalorder %s38, 0
      %p358 = por %p356, %p357
      %p359 = scmp.ne.s32.totalorder %s347, %s348
      %p360 = scmp.eq.s32.totalorder %s39, 1
      %p361 = por %p359, %p360
      %p363 = scmp.ne.s32.totalorder %s348, %s362
      %p364 = scmp.eq.s32.totalorder %s39, 0
      %p365 = por %p363, %p364
      %s367 = sadd.s32 %s366, 1
      %p370 = scmp.eq.s32.totalorder %s33, 1
      %p371 = scmp.ne.s32.totalorder %s366, %s368
      %p372 = scmp.eq.s32.totalorder %s33, 0
      %p373 = por %p371, %p372
      %p374 = scmp.ne.s32.totalorder %s366, %s368
      %p375 = scmp.eq.s32.totalorder %s38, 1
      %p376 = por %p374, %p375
      %p377 = scmp.ne.s32.totalorder %s368, %s369
      %p378 = scmp.eq.s32.totalorder %s38, 0
      %p379 = por %p377, %p378
      %p380 = scmp.ne.s32.totalorder %s368, %s369
      %p381 = scmp.eq.s32.totalorder %s39, 1
      %p382 = por %p380, %p381
      %p384 = scmp.ne.s32.totalorder %s369, %s383
      %p385 = scmp.eq.s32.totalorder %s39, 0
      %p386 = por %p384, %p385
      %s388 = sadd.s32 %s387, 1
      %p391 = scmp.eq.s32.totalorder %s33, 1
      %p392 = scmp.ne.s32.totalorder %s387, %s389
      %p393 = scmp.eq.s32.totalorder %s33, 0
      %p394 = por %p392, %p393
      %p395 = scmp.ne.s32.totalorder %s387, %s389
      %p396 = scmp.eq.s32.totalorder %s38, 1
      %p397 = por %p395, %p396
      %p398 = scmp.ne.s32.totalorder %s389, %s390
      %p399 = scmp.eq.s32.totalorder %s38, 0
      %p400 = por %p398, %p399
      %p401 = scmp.ne.s32.totalorder %s389, %s390
      %p402 = scmp.eq.s32.totalorder %s39, 1
      %p403 = por %p401, %p402
      %p405 = scmp.ne.s32.totalorder %s390, %s404
      %p406 = scmp.eq.s32.totalorder %s39, 0
      %p407 = por %p405, %p406
      %s409 = sadd.s32 %s408, 1
      %p412 = scmp.eq.s32.totalorder %s33, 1
      %p413 = scmp.ne.s32.totalorder %s408, %s410
      %p414 = scmp.eq.s32.totalorder %s33, 0
      %p415 = por %p413, %p414
      %p416 = scmp.ne.s32.totalorder %s408, %s410
      %p417 = scmp.eq.s32.totalorder %s38, 1
      %p418 = por %p416, %p417
      %p419 = scmp.ne.s32.totalorder %s410, %s411
      %p420 = scmp.eq.s32.totalorder %s38, 0
      %p421 = por %p419, %p420
      %p422 = scmp.ne.s32.totalorder %s410, %s411
      %p423 = scmp.eq.s32.totalorder %s39, 1
      %p424 = por %p422, %p423
      %p426 = scmp.ne.s32.totalorder %s411, %s425
      %p427 = scmp.eq.s32.totalorder %s39, 0
      %p428 = por %p426, %p427
      %s430 = sadd.s32 %s429, 1
      %p433 = scmp.eq.s32.totalorder %s33, 1
      %p434 = scmp.ne.s32.totalorder %s429, %s431
      %p435 = scmp.eq.s32.totalorder %s33, 0
      %p436 = por %p434, %p435
      %p437 = scmp.ne.s32.totalorder %s429, %s431
      %p438 = scmp.eq.s32.totalorder %s38, 1
      %p439 = por %p437, %p438
      %p440 = scmp.ne.s32.totalorder %s431, %s432
      %p441 = scmp.eq.s32.totalorder %s38, 0
      %p442 = por %p440, %p441
      %p443 = scmp.ne.s32.totalorder %s431, %s432
      %p444 = scmp.eq.s32.totalorder %s39, 1
      %p445 = por %p443, %p444
      %p447 = scmp.ne.s32.totalorder %s432, %s446
      %p448 = scmp.eq.s32.totalorder %s39, 0
      %p449 = por %p447, %p448
      %s451 = sadd.s32 %s450, 1
      %p454 = scmp.eq.s32.totalorder %s33, 1
      %p455 = scmp.ne.s32.totalorder %s450, %s452
      %p456 = scmp.eq.s32.totalorder %s33, 0
      %p457 = por %p455, %p456
      %p458 = scmp.ne.s32.totalorder %s450, %s452
      %p459 = scmp.eq.s32.totalorder %s38, 1
      %p460 = por %p458, %p459
      %p461 = scmp.ne.s32.totalorder %s452, %s453
      %p462 = scmp.eq.s32.totalorder %s38, 0
      %p463 = por %p461, %p462
      %p464 = scmp.ne.s32.totalorder %s452, %s453
      %p465 = scmp.eq.s32.totalorder %s39, 1
      %p466 = por %p464, %p465
      %p468 = scmp.ne.s32.totalorder %s453, %s467
      %p469 = scmp.eq.s32.totalorder %s39, 0
      %p470 = por %p468, %p469
      %s472 = sadd.s32 %s471, 1
      %p475 = scmp.eq.s32.totalorder %s33, 1
      %p476 = scmp.ne.s32.totalorder %s471, %s473
      %p477 = scmp.eq.s32.totalorder %s33, 0
      %p478 = por %p476, %p477
      %p479 = scmp.ne.s32.totalorder %s471, %s473
      %p480 = scmp.eq.s32.totalorder %s38, 1
      %p481 = por %p479, %p480
      %p482 = scmp.ne.s32.totalorder %s473, %s474
      %p483 = scmp.eq.s32.totalorder %s38, 0
      %p484 = por %p482, %p483
      %p485 = scmp.ne.s32.totalorder %s473, %s474
      %p486 = scmp.eq.s32.totalorder %s39, 1
      %p487 = por %p485, %p486
      %p489 = scmp.ne.s32.totalorder %s474, %s488
      %p490 = scmp.eq.s32.totalorder %s39, 0
      %p491 = por %p489, %p490
      %s493 = sadd.s32 %s492, 1
      %p496 = scmp.eq.s32.totalorder %s33, 1
      %p497 = scmp.ne.s32.totalorder %s492, %s494
      %p498 = scmp.eq.s32.totalorder %s33, 0
      %p499 = por %p497, %p498
      %p500 = scmp.ne.s32.totalorder %s492, %s494
      %p501 = scmp.eq.s32.totalorder %s38, 1
      %p502 = por %p500, %p501
      %p503 = scmp.ne.s32.totalorder %s494, %s495
      %p504 = scmp.eq.s32.totalorder %s38, 0
      %p505 = por %p503, %p504
      %p506 = scmp.ne.s32.totalorder %s494, %s495
      %p507 = scmp.eq.s32.totalorder %s39, 1
      %p508 = por %p506, %p507
      %p510 = scmp.ne.s32.totalorder %s495, %s509
      %p511 = scmp.eq.s32.totalorder %s39, 0
      %p512 = por %p510, %p511
      %s513 = ssub.s32 %s33, %s40
      %p514 = scmp.eq.s32.totalorder %s513, 0
      %s516 = sadd.s32 %s515, 1
      %s517 = scalar_select %p514, %s515, %s516
      %p520 = pneg %p514
      %p521 = scmp.eq.s32.totalorder %s33, 1
      %p522 = por %p520, %p521
      %p523 = scmp.ne.s32.totalorder %s515, %s518
      %p524 = scmp.eq.s32.totalorder %s33, 0
      %p525 = por %p523, %p524
      %p526 = scmp.ne.s32.totalorder %s515, %s518
      %p527 = scmp.eq.s32.totalorder %s38, 1
      %p528 = por %p526, %p527
      %p529 = scmp.ne.s32.totalorder %s518, %s519
      %p530 = scmp.eq.s32.totalorder %s38, 0
      %p531 = por %p529, %p530
      %p532 = scmp.ne.s32.totalorder %s518, %s519
      %p533 = scmp.eq.s32.totalorder %s39, 1
      %p534 = por %p532, %p533
      %p536 = scmp.ne.s32.totalorder %s519, %s535
      %p537 = scmp.eq.s32.totalorder %s39, 0
      %p538 = por %p536, %p537
      %p539 = scmp.le.s32.totalorder 1, %s33
      %p540 = scmp.lt.s32.totalorder %s33, 3
      %p541 = pnand %p539, %p540
      %p542 = pneg %p541
      // Predicated region
      $region9: #{trans_module.2} parent=5 // pred_check
        _
      $region10: #{trans_module.2} parent=5 // pred_check_branch
        %544 = sbr.rel (%p541) target = $region12
      $region11: #{trans_module.2} parent=5 // pred_region
        %s545 = ssub.s32 %s33, 1
        // Predicated region
        $region13: #{trans_module.2} parent=11 // pred_check
          %p546 = pneg %p106
        $region14: #{trans_module.2} parent=11 // pred_check_branch
          %548 = sbr.rel (%p546) target = $region16
        $region15: #{trans_module.2} parent=11 // pred_region
          _
        $region16: #{trans_module.2} parent=11 // pred_fallthru
          _
        // Predicated region
        $region17: #{trans_module.2} parent=11 // pred_check
          %p549 = pneg %p127
        $region18: #{trans_module.2} parent=11 // pred_check_branch
          %551 = sbr.rel (%p549) target = $region20
        $region19: #{trans_module.2} parent=11 // pred_region
          _
        $region20: #{trans_module.2} parent=11 // pred_fallthru
          _
        // Predicated region
        $region21: #{trans_module.2} parent=11 // pred_check
          %p552 = pneg %p148
        $region22: #{trans_module.2} parent=11 // pred_check_branch
          %554 = sbr.rel (%p552) target = $region24
        $region23: #{trans_module.2} parent=11 // pred_region
          _
        $region24: #{trans_module.2} parent=11 // pred_fallthru
          _
        // Predicated region
        $region25: #{trans_module.2} parent=11 // pred_check
          %p555 = pneg %p169
        $region26: #{trans_module.2} parent=11 // pred_check_branch
          %557 = sbr.rel (%p555) target = $region28
        $region27: #{trans_module.2} parent=11 // pred_region
          _
        $region28: #{trans_module.2} parent=11 // pred_fallthru
          _
        // Predicated region
        $region29: #{trans_module.2} parent=11 // pred_check
          %p558 = pneg %p190
        $region30: #{trans_module.2} parent=11 // pred_check_branch
          %560 = sbr.rel (%p558) target = $region32
        $region31: #{trans_module.2} parent=11 // pred_region
          _
        $region32: #{trans_module.2} parent=11 // pred_fallthru
          _
        // Predicated region
        $region33: #{trans_module.2} parent=11 // pred_check
          %p561 = pneg %p211
        $region34: #{trans_module.2} parent=11 // pred_check_branch
          %563 = sbr.rel (%p561) target = $region36
        $region35: #{trans_module.2} parent=11 // pred_region
          _
        $region36: #{trans_module.2} parent=11 // pred_fallthru
          _
        // Predicated region
        $region37: #{trans_module.2} parent=11 // pred_check
          %p564 = pneg %p232
        $region38: #{trans_module.2} parent=11 // pred_check_branch
          %566 = sbr.rel (%p564) target = $region40
        $region39: #{trans_module.2} parent=11 // pred_region
          _
        $region40: #{trans_module.2} parent=11 // pred_fallthru
          _
        // Predicated region
        $region41: #{trans_module.2} parent=11 // pred_check
          %p567 = pneg %p253
        $region42: #{trans_module.2} parent=11 // pred_check_branch
          %569 = sbr.rel (%p567) target = $region44
        $region43: #{trans_module.2} parent=11 // pred_region
          %s571 = ssub.s32 16, 16
          %572 = vsyncadd [#allocation5], %s571
          %s574 = sshll.u32 [#allocation4], 4
          %s575 = int_to_ptr.vmem [resolvable:$true] %s574
          %577 = dma.hbm_to_vmem [thread:$0]  %s9, 16, %s575, [#allocation5]
        $region44: #{trans_module.2} parent=11 // pred_fallthru
          _
        // Predicated region
        $region45: #{trans_module.2} parent=11 // pred_check
          %p578 = pneg %p274
        $region46: #{trans_module.2} parent=11 // pred_check_branch
          %580 = sbr.rel (%p578) target = $region48
        $region47: #{trans_module.2} parent=11 // pred_region
          _
        $region48: #{trans_module.2} parent=11 // pred_fallthru
          _
        // Predicated region
        $region49: #{trans_module.2} parent=11 // pred_check
          %p581 = pneg %p295
        $region50: #{trans_module.2} parent=11 // pred_check_branch
          %583 = sbr.rel (%p581) target = $region52
        $region51: #{trans_module.2} parent=11 // pred_region
          _
        $region52: #{trans_module.2} parent=11 // pred_fallthru
          _
        // Predicated region
        $region53: #{trans_module.2} parent=11 // pred_check
          %p584 = pneg %p316
        $region54: #{trans_module.2} parent=11 // pred_check_branch
          %586 = sbr.rel (%p584) target = $region56
        $region55: #{trans_module.2} parent=11 // pred_region
          %s588 = ssub.s32 512, 512
          %589 = vsyncadd [#allocation5], %s588
          %s590 = sshll.u32 [#allocation6], 4
          %s591 = int_to_ptr.vmem [resolvable:$true] %s590
          %596 = dma.hbm_to_vmem [thread:$0]  %s12, 512, %s591, [#allocation5], 128, 128, 8
        $region56: #{trans_module.2} parent=11 // pred_fallthru
          _
        // Predicated region
        $region57: #{trans_module.2} parent=11 // pred_check
          %p597 = pneg %p337
        $region58: #{trans_module.2} parent=11 // pred_check_branch
          %599 = sbr.rel (%p597) target = $region60
        $region59: #{trans_module.2} parent=11 // pred_region
          %s601 = ssub.s32 16, 16
          %602 = vsyncadd [#allocation8], %s601
          %s604 = sshll.u32 [#allocation7], 4
          %s605 = int_to_ptr.vmem [resolvable:$true] %s604
          %607 = dma.hbm_to_vmem [thread:$0]  %s13, 16, %s605, [#allocation8]
        $region60: #{trans_module.2} parent=11 // pred_fallthru
          _
        // Predicated region
        $region61: #{trans_module.2} parent=11 // pred_check
          %p608 = pneg %p358
        $region62: #{trans_module.2} parent=11 // pred_check_branch
          %610 = sbr.rel (%p608) target = $region64
        $region63: #{trans_module.2} parent=11 // pred_region
          _
        $region64: #{trans_module.2} parent=11 // pred_fallthru
          _
        // Predicated region
        $region65: #{trans_module.2} parent=11 // pred_check
          %p611 = pneg %p379
        $region66: #{trans_module.2} parent=11 // pred_check_branch
          %613 = sbr.rel (%p611) target = $region68
        $region67: #{trans_module.2} parent=11 // pred_region
          %s615 = ssub.s32 16, 16
          %616 = vsyncadd [#allocation8], %s615
          %s618 = sshll.u32 [#allocation9], 4
          %s619 = int_to_ptr.vmem [resolvable:$true] %s618
          %621 = dma.hbm_to_vmem [thread:$0]  %s15, 16, %s619, [#allocation8]
        $region68: #{trans_module.2} parent=11 // pred_fallthru
          _
        // Predicated region
        $region69: #{trans_module.2} parent=11 // pred_check
          %p622 = pneg %p400
        $region70: #{trans_module.2} parent=11 // pred_check_branch
          %624 = sbr.rel (%p622) target = $region72
        $region71: #{trans_module.2} parent=11 // pred_region
          _
        $region72: #{trans_module.2} parent=11 // pred_fallthru
          _
        // Predicated region
        $region73: #{trans_module.2} parent=11 // pred_check
          %p625 = pneg %p421
        $region74: #{trans_module.2} parent=11 // pred_check_branch
          %627 = sbr.rel (%p625) target = $region76
        $region75: #{trans_module.2} parent=11 // pred_region
          _
        $region76: #{trans_module.2} parent=11 // pred_fallthru
          _
        // Predicated region
        $region77: #{trans_module.2} parent=11 // pred_check
          %p628 = pneg %p442
        $region78: #{trans_module.2} parent=11 // pred_check_branch
          %630 = sbr.rel (%p628) target = $region80
        $region79: #{trans_module.2} parent=11 // pred_region
          _
        $region80: #{trans_module.2} parent=11 // pred_fallthru
          _
        // Predicated region
        $region81: #{trans_module.2} parent=11 // pred_check
          %p631 = pneg %p463
        $region82: #{trans_module.2} parent=11 // pred_check_branch
          %633 = sbr.rel (%p631) target = $region84
        $region83: #{trans_module.2} parent=11 // pred_region
          _
        $region84: #{trans_module.2} parent=11 // pred_fallthru
          _
        // Predicated region
        $region85: #{trans_module.2} parent=11 // pred_check
          %p634 = pneg %p484
        $region86: #{trans_module.2} parent=11 // pred_check_branch
          %636 = sbr.rel (%p634) target = $region88
        $region87: #{trans_module.2} parent=11 // pred_region
          _
        $region88: #{trans_module.2} parent=11 // pred_fallthru
          _
        // Predicated region
        $region89: #{trans_module.2} parent=11 // pred_check
          %p637 = pneg %p505
        $region90: #{trans_module.2} parent=11 // pred_check_branch
          %639 = sbr.rel (%p637) target = $region92
        $region91: #{trans_module.2} parent=11 // pred_region
          _
        $region92: #{trans_module.2} parent=11 // pred_fallthru
          _
      $region12: #{trans_module.2} parent=5 // pred_fallthru
        _
      %p640 = scmp.lt.s32.totalorder %s33, 2
      // Predicated region
      $region93: #{trans_module.2} parent=5 // pred_check
        %p641 = pneg %p640
      $region94: #{trans_module.2} parent=5 // pred_check_branch
        %643 = sbr.rel (%p641) target = $region96
      $region95: #{trans_module.2} parent=5 // pred_region
        // Predicated region
        $region97: #{trans_module.2} parent=95 // pred_check
          %p644 = pneg %p53
        $region98: #{trans_module.2} parent=95 // pred_check_branch
          %646 = sbr.rel (%p644) target = $region100
        $region99: #{trans_module.2} parent=95 // pred_region
          %s647 = sand.u32 %s43, 1
          %s648 = scalar_lea.sflag [#allocation3], %s647
          %s649 = sand.u32 %s43, 1
          %s650 = smul.addr %s649, 8
          %s651 = scalar_lea.vmem [#allocation2], %s650
          %s653 = ssub.s32 128, 128
          %654 = vsyncadd %s648, %s653
          %s655 = smul.addr %s33, 128
          %s656 = scalar_lea.hbm %s0, %s655
          %s658 = sshll.u32 %s651, 4
          %s659 = int_to_ptr.vmem [resolvable:$true] %s658
          %661 = dma.hbm_to_vmem [thread:$0]  %s656, 128, %s659, %s648
        $region100: #{trans_module.2} parent=95 // pred_fallthru
          _
        // Predicated region
        $region101: #{trans_module.2} parent=95 // pred_check
          %p662 = pneg %p79
        $region102: #{trans_module.2} parent=95 // pred_check_branch
          %664 = sbr.rel (%p662) target = $region104
        $region103: #{trans_module.2} parent=95 // pred_region
          %p665 = scmp.lt.s32.totalorder %s33, 1
          %s666 = scalar_select %p665, %s33, 1
          %s667 = smul.addr %s666, 8
          %s668 = scalar_lea.vmem %s1, %s667
        $region104: #{trans_module.2} parent=95 // pred_fallthru
          _
      $region96: #{trans_module.2} parent=5 // pred_fallthru
        _
      %p669 = scmp.le.s32.totalorder 1, %s33
      %p670 = scmp.lt.s32.totalorder %s33, 3
      %p671 = pnand %p669, %p670
      %p672 = pneg %p671
      // Predicated region
      $region105: #{trans_module.2} parent=5 // pred_check
        _
      $region106: #{trans_module.2} parent=5 // pred_check_branch
        %674 = sbr.rel (%p671) target = $region108
      $region107: #{trans_module.2} parent=5 // pred_region
        %s675 = ssub.s32 %s33, 1
        %s676 = sand.u32 %s46, 1
        %s677 = scalar_lea.sflag [#allocation3], %s676
        %s678 = sand.u32 %s46, 1
        %s679 = smul.addr %s678, 8
        %s680 = scalar_lea.vmem [#allocation2], %s679
        // Predicated region
        $region109: #{trans_module.2} parent=107 // pred_check
          %p681 = pneg %p59
        $region110: #{trans_module.2} parent=107 // pred_check_branch
          %683 = sbr.rel (%p681) target = $region112
        $region111: #{trans_module.2} parent=107 // pred_region
          %684 = dma.done %s677, 128
        $region112: #{trans_module.2} parent=107 // pred_fallthru
          _
        // Predicated region
        $region113: #{trans_module.2} parent=107 // pred_check
          %p685 = pneg %p253
        $region114: #{trans_module.2} parent=107 // pred_check_branch
          %687 = sbr.rel (%p685) target = $region116
        $region115: #{trans_module.2} parent=107 // pred_region
          %688 = dma.done [#allocation5], 16
        $region116: #{trans_module.2} parent=107 // pred_fallthru
          _
        // Predicated region
        $region117: #{trans_module.2} parent=107 // pred_check
          %p689 = pneg %p316
        $region118: #{trans_module.2} parent=107 // pred_check_branch
          %691 = sbr.rel (%p689) target = $region120
        $region119: #{trans_module.2} parent=107 // pred_region
          %692 = dma.done [#allocation5], 512
        $region120: #{trans_module.2} parent=107 // pred_fallthru
          _
        // Predicated region
        $region121: #{trans_module.2} parent=107 // pred_check
          %p693 = pneg %p337
        $region122: #{trans_module.2} parent=107 // pred_check_branch
          %695 = sbr.rel (%p693) target = $region124
        $region123: #{trans_module.2} parent=107 // pred_region
          %696 = dma.done [#allocation8], 16
        $region124: #{trans_module.2} parent=107 // pred_fallthru
          _
        // Predicated region
        $region125: #{trans_module.2} parent=107 // pred_check
          %p697 = pneg %p379
        $region126: #{trans_module.2} parent=107 // pred_check_branch
          %699 = sbr.rel (%p697) target = $region128
        $region127: #{trans_module.2} parent=107 // pred_region
          %700 = dma.done [#allocation8], 16
        $region128: #{trans_module.2} parent=107 // pred_fallthru
          _
        %s701 = sand.u32 %s46, 1
        %s702 = scalar_lea.sflag [#allocation3], %s701
        %s703 = sand.u32 %s46, 1
        %s704 = smul.addr %s703, 8
        %s705 = scalar_lea.vmem [#allocation2], %s704
        %p706 = pneg %p59
        %p707 = pneg %p56
        %p708 = scmp.lt.s32.totalorder %s38, 1
        %s709 = scalar_select %p708, %s38, 1
        %s710 = smul.addr %s709, 8
        %s711 = scalar_lea.vmem %s1, %s710
        %p712 = pneg %p85
        %p713 = pneg %p82
        %p714 = pneg %p106
        %p715 = pneg %p103
        %p716 = pneg %p127
        %p717 = pneg %p124
        %p718 = pneg %p148
        %p719 = pneg %p145
        %p720 = pneg %p169
        %p721 = pneg %p166
        %p722 = pneg %p190
        %p723 = pneg %p187
        %p724 = pneg %p211
        %p725 = pneg %p208
        %p726 = pneg %p232
        %p727 = pneg %p229
        %p728 = pneg %p253
        %p729 = pneg %p250
        %p730 = pneg %p274
        %p731 = pneg %p271
        %p732 = pneg %p295
        %p733 = pneg %p292
        %p734 = pneg %p316
        %p735 = pneg %p313
        %p736 = pneg %p337
        %p737 = pneg %p334
        %p738 = pneg %p358
        %p739 = pneg %p355
        %p740 = pneg %p379
        %p741 = pneg %p376
        %p742 = pneg %p400
        %p743 = pneg %p397
        %p744 = pneg %p421
        %p745 = pneg %p418
        %p746 = pneg %p442
        %p747 = pneg %p439
        %p748 = pneg %p463
        %p749 = pneg %p460
        %p750 = pneg %p484
        %p751 = pneg %p481
        %p752 = pneg %p505
        %p753 = pneg %p502
        %p754 = pneg %p531
        %p755 = pneg %p528
        %p756 = scmp.lt.s32.totalorder %s38, 1
        %s757 = scalar_select %p756, %s38, 1
        %s758 = smul.addr %s757, 8
        %s759 = scalar_lea.vmem %s22, %s758
        %p760 = scmp.lt.s32.totalorder %s38, 1
        %s761 = scalar_select %p760, %s38, 1
        %s762 = smul.addr %s761, 8
        %s763 = scalar_lea.vmem %s1, %s762
        %p764 = scmp.lt.s32.totalorder %s38, 1
        %s765 = scalar_select %p764, %s38, 1
        %s766 = smul.addr %s765, 8
        %s767 = scalar_lea.vmem %s22, %s766
        %v768 = vld [vmem:[%s680] sm:$0xff]
        %v769 = vld [vmem:[%s763] sm:$0xff]
        %v770 = vld [vmem:[%s16] sm:$0x1]
        %v771 = vld [vmem:[%s17] sm:$0x1]
        %vm772 = vcmask 261120
        %v773 = vsel %vm772, %v768, 0.0
        %774 = vadd.xlane.f32.xlu0 %v773
        %v775 = vpop.xlane.xlu0 %774
        %v776 = vrcp.pop 32.0
        %v777 = vmul.f32 %v775, %v776
        %v778 = vsub.f32 %v768, %v777
        %v779 = vmul.f32 %v778, %v778
        %v780 = vsel %vm772, %v779, 0.0
        %781 = vadd.xlane.f32.xlu0 %v780
        %v782 = vpop.xlane.xlu0 %781
        %v783 = vmul.f32 %v782, %v776
        %v784 = vadd.f32 %v783, 1e-05
        %v785 = vrsqrt.pop %v784
        %v786 = vmul.f32 %v778, %v785
        %v788 = vlaneseq
        %v789 = vshrl.u32 %v788, 7
        %v790 = vsub.s32 0, %v789
        %v791 = vrot.slane %v770, %v790
        %v793 = vmul.f32 %v786, %v791
        %v795 = vlaneseq
        %v796 = vshrl.u32 %v795, 7
        %v797 = vsub.s32 0, %v796
        %v798 = vrot.slane %v771, %v797
        %v800 = vadd.f32 %v793, %v798
        %v801 = vld [vmem:[%s2] sm:$0xff]
        %v802 = vld [vmem:[%s2 + $0x8] sm:$0xff]
        %v803 = vld [vmem:[%s2 + $0x10] sm:$0xff]
        %v804 = vld [vmem:[%s2 + $0x18] sm:$0xff]
        %v805 = vld [vmem:[%s3] sm:$0x1]
        %v807 = vlaneseq
        %v808 = vshrl.u32 %v807, 7
        %v809 = vsub.s32 0, %v808
        %v810 = vrot.slane %v805, %v809
        %v813 = vsel %vm772, %v800, 0
        %815 = vmatprep.subr.mxu0 0.0
        %816 = vmatpush1.msra.mxu0 %v801
        %817 = vmatprep.subr.mxu0 0.0
        %818 = vmatpush1.msra.mxu0 %v802
        %819 = vmatprep.subr.mxu0 0.0
        %820 = vmatpush1.msra.mxu0 %v803
        %821 = vmatprep.subr.mxu0 0.0
        %822 = vmatpush1.msra.mxu0 %v804
        %823 = vmatprep.subr.mxu0 0.0
        %824 = vmatpush1.msra.mxu0 0.0
        %825 = vmatprep.subr.mxu0 0.0
        %826 = vmatpush1.msra.mxu0 0.0
        %827 = vmatprep.subr.mxu0 0.0
        %828 = vmatpush1.msra.mxu0 0.0
        %829 = vmatprep.subr.mxu0 0.0
        %830 = vmatpush1.msra.mxu0 0.0
        %831 = vmatprep.subr.mxu0 0.0
        %832 = vmatpush1.msra.mxu0 0.0
        %833 = vmatprep.subr.mxu0 0.0
        %834 = vmatpush1.msra.mxu0 0.0
        %835 = vmatprep.subr.mxu0 0.0
        %836 = vmatpush1.msra.mxu0 0.0
        %837 = vmatprep.subr.mxu0 0.0
        %838 = vmatpush1.msra.mxu0 0.0
        %839 = vmatprep.subr.mxu0 0.0
        %840 = vmatpush1.msra.mxu0 0.0
        %841 = vmatprep.subr.mxu0 0.0
        %842 = vmatpush1.msra.mxu0 0.0
        %843 = vmatprep.subr.mxu0 0.0
        %844 = vmatpush1.msra.mxu0 0.0
        %845 = vmatprep.subr.mxu0 0.0
        %846 = vmatpush1.msra.mxu0 0.0
        %847 = vmatprep.subr.mxu0 0.0
        %848 = vmatpush1.msra.mxu0 0.0
        %849 = vmatprep.subr.mxu0 0.0
        %850 = vmatpush1.msra.mxu0 0.0
        %851 = vmatprep.subr.mxu0 0.0
        %852 = vmatpush1.msra.mxu0 0.0
        %853 = vmatprep.subr.mxu0 0.0
        %854 = vmatpush1.msra.mxu0 0.0
        %855 = vmatprep.subr.mxu0 0.0
        %856 = vmatpush1.msra.mxu0 0.0
        %857 = vmatprep.subr.mxu0 0.0
        %858 = vmatpush1.msra.mxu0 0.0
        %859 = vmatprep.subr.mxu0 0.0
        %860 = vmatpush1.msra.mxu0 0.0
        %861 = vmatprep.subr.mxu0 0.0
        %862 = vmatpush1.msra.mxu0 0.0
        %863 = vmatprep.subr.mxu0 0.0
        %864 = vmatpush1.msra.mxu0 0.0
        %865 = vmatprep.subr.mxu0 0.0
        %866 = vmatpush1.msra.mxu0 0.0
        %867 = vmatprep.subr.mxu0 0.0
        %868 = vmatpush1.msra.mxu0 0.0
        %869 = vmatprep.subr.mxu0 0.0
        %870 = vmatpush1.msra.mxu0 0.0
        %871 = vmatprep.subr.mxu0 0.0
        %872 = vmatpush1.msra.mxu0 0.0
        %873 = vmatprep.subr.mxu0 0.0
        %874 = vmatpush1.msra.mxu0 0.0
        %875 = vmatprep.subr.mxu0 0.0
        %876 = vmatpush1.msra.mxu0 0.0
        %877 = vmatprep.subr.mxu0 0.0
        %878 = vmatpush1.msra.mxu0 0.0
        %879 = vmatprep.mubr.f32.mxu0 0.0
        %880 = vmatmul.mubr.f32.gmra.mrb[0].mxu0 %v813
        %v881 = vpop.f32.mrb[0].mxu0
        %v882 = vadd.f32 %v810, %v881
        %v883 = vpop.f32.mrb[0].mxu0
        %884 = vdwg.mxu0
        %886 = vrot.lane.b32.xlu0 %v882, 96
        %v887 = vpop.permute.xlu0 %886
        %vm888 = vcmask 64512
        %v889 = vsel %vm888, %v882, 0
        %v891 = vsel %vm888, %v887, 0
        %893 = vmatprep.subr.mxu0 0.0
        %894 = vmatpush1.xpose.msra.mxu0 %v891
        %895 = vmatprep.subr.mxu0 0.0
        %896 = vmatpush1.xpose.msra.mxu0 0.0
        %897 = vmatprep.subr.mxu0 0.0
        %898 = vmatpush1.xpose.msra.mxu0 0.0
        %899 = vmatprep.subr.mxu0 0.0
        %900 = vmatpush1.xpose.msra.mxu0 0.0
        %901 = vmatprep.subr.mxu0 0.0
        %902 = vmatpush1.xpose.msra.mxu0 0.0
        %903 = vmatprep.subr.mxu0 0.0
        %904 = vmatpush1.xpose.msra.mxu0 0.0
        %905 = vmatprep.subr.mxu0 0.0
        %906 = vmatpush1.xpose.msra.mxu0 0.0
        %907 = vmatprep.subr.mxu0 0.0
        %908 = vmatpush1.xpose.msra.mxu0 0.0
        %909 = vmatprep.subr.mxu0 0.0
        %910 = vmatpush1.xpose.msra.mxu0 0.0
        %911 = vmatprep.subr.mxu0 0.0
        %912 = vmatpush1.xpose.msra.mxu0 0.0
        %913 = vmatprep.subr.mxu0 0.0
        %914 = vmatpush1.xpose.msra.mxu0 0.0
        %915 = vmatprep.subr.mxu0 0.0
        %916 = vmatpush1.xpose.msra.mxu0 0.0
        %917 = vmatprep.subr.mxu0 0.0
        %918 = vmatpush1.xpose.msra.mxu0 0.0
        %919 = vmatprep.subr.mxu0 0.0
        %920 = vmatpush1.xpose.msra.mxu0 0.0
        %921 = vmatprep.subr.mxu0 0.0
        %922 = vmatpush1.xpose.msra.mxu0 0.0
        %923 = vmatprep.subr.mxu0 0.0
        %924 = vmatpush1.xpose.msra.mxu0 0.0
        %925 = vmatprep.subr.mxu0 0.0
        %926 = vmatpush1.xpose.msra.mxu0 0.0
        %927 = vmatprep.subr.mxu0 0.0
        %928 = vmatpush1.xpose.msra.mxu0 0.0
        %929 = vmatprep.subr.mxu0 0.0
        %930 = vmatpush1.xpose.msra.mxu0 0.0
        %931 = vmatprep.subr.mxu0 0.0
        %932 = vmatpush1.xpose.msra.mxu0 0.0
        %933 = vmatprep.subr.mxu0 0.0
        %934 = vmatpush1.xpose.msra.mxu0 0.0
        %935 = vmatprep.subr.mxu0 0.0
        %936 = vmatpush1.xpose.msra.mxu0 0.0
        %937 = vmatprep.subr.mxu0 0.0
        %938 = vmatpush1.xpose.msra.mxu0 0.0
        %939 = vmatprep.subr.mxu0 0.0
        %940 = vmatpush1.xpose.msra.mxu0 0.0
        %941 = vmatprep.subr.mxu0 0.0
        %942 = vmatpush1.xpose.msra.mxu0 0.0
        %943 = vmatprep.subr.mxu0 0.0
        %944 = vmatpush1.xpose.msra.mxu0 0.0
        %945 = vmatprep.subr.mxu0 0.0
        %946 = vmatpush1.xpose.msra.mxu0 0.0
        %947 = vmatprep.subr.mxu0 0.0
        %948 = vmatpush1.xpose.msra.mxu0 0.0
        %949 = vmatprep.subr.mxu0 0.0
        %950 = vmatpush1.xpose.msra.mxu0 0.0
        %951 = vmatprep.subr.mxu0 0.0
        %952 = vmatpush1.xpose.msra.mxu0 0.0
        %953 = vmatprep.subr.mxu0 0.0
        %954 = vmatpush1.xpose.msra.mxu0 0.0
        %955 = vmatprep.subr.mxu0 0.0
        %956 = vmatpush1.xpose.msra.mxu0 0.0
        %957 = vmatprep.mubr.f32.mxu0 0.0
        %958 = vmatmul.mubr.f32.gmra.mrb[0].mxu0 %v889
        %v959 = vpop.f32.mrb[0].mxu0
        %v960 = vadd.f32 0.0, %v959
        %v961 = vpop.f32.mrb[0].mxu0
        %962 = vdwg.mxu0
        %v963 = vsel %vm888, %v960, -inf
        %964 = vmax.xlane.f32.xlu0 %v963
        %v965 = vpop.xlane.xlu0 %964
        %v966 = vsub.f32 %v960, %v965
        %v967 = vmul.f32 %v966, 1.442695
        %v968 = vpow.pop %v967
        %v969 = vsel %vm888, %v968, 0.0
        %970 = vadd.xlane.f32.xlu0 %v969
        %v971 = vpop.xlane.xlu0 %970
        %v972 = vrcp.pop %v971
        %v973 = vmul.f32 %v968, %v972
        %974 = vrot.lane.b32.xlu0 %v882, 64
        %v975 = vpop.permute.xlu0 %974
        %v978 = vsel %vm888, %v973, 0
        %980 = vmatprep.subr.mxu0 0.0
        %981 = vmatpush1.msra.mxu0 %v975
        %982 = vmatprep.subr.mxu0 0.0
        %983 = vmatpush1.msra.mxu0 0.0
        %984 = vmatprep.subr.mxu0 0.0
        %985 = vmatpush1.msra.mxu0 0.0
        %986 = vmatprep.subr.mxu0 0.0
        %987 = vmatpush1.msra.mxu0 0.0
        %988 = vmatprep.subr.mxu0 0.0
        %989 = vmatpush1.msra.mxu0 0.0
        %990 = vmatprep.subr.mxu0 0.0
        %991 = vmatpush1.msra.mxu0 0.0
        %992 = vmatprep.subr.mxu0 0.0
        %993 = vmatpush1.msra.mxu0 0.0
        %994 = vmatprep.subr.mxu0 0.0
        %995 = vmatpush1.msra.mxu0 0.0
        %996 = vmatprep.subr.mxu0 0.0
        %997 = vmatpush1.msra.mxu0 0.0
        %998 = vmatprep.subr.mxu0 0.0
        %999 = vmatpush1.msra.mxu0 0.0
        %1000 = vmatprep.subr.mxu0 0.0
        %1001 = vmatpush1.msra.mxu0 0.0
        %1002 = vmatprep.subr.mxu0 0.0
        %1003 = vmatpush1.msra.mxu0 0.0
        %1004 = vmatprep.subr.mxu0 0.0
        %1005 = vmatpush1.msra.mxu0 0.0
        %1006 = vmatprep.subr.mxu0 0.0
        %1007 = vmatpush1.msra.mxu0 0.0
        %1008 = vmatprep.subr.mxu0 0.0
        %1009 = vmatpush1.msra.mxu0 0.0
        %1010 = vmatprep.subr.mxu0 0.0
        %1011 = vmatpush1.msra.mxu0 0.0
        %1012 = vmatprep.subr.mxu0 0.0
        %1013 = vmatpush1.msra.mxu0 0.0
        %1014 = vmatprep.subr.mxu0 0.0
        %1015 = vmatpush1.msra.mxu0 0.0
        %1016 = vmatprep.subr.mxu0 0.0
        %1017 = vmatpush1.msra.mxu0 0.0
        %1018 = vmatprep.subr.mxu0 0.0
        %1019 = vmatpush1.msra.mxu0 0.0
        %1020 = vmatprep.subr.mxu0 0.0
        %1021 = vmatpush1.msra.mxu0 0.0
        %1022 = vmatprep.subr.mxu0 0.0
        %1023 = vmatpush1.msra.mxu0 0.0
        %1024 = vmatprep.subr.mxu0 0.0
        %1025 = vmatpush1.msra.mxu0 0.0
        %1026 = vmatprep.subr.mxu0 0.0
        %1027 = vmatpush1.msra.mxu0 0.0
        %1028 = vmatprep.subr.mxu0 0.0
        %1029 = vmatpush1.msra.mxu0 0.0
        %1030 = vmatprep.subr.mxu0 0.0
        %1031 = vmatpush1.msra.mxu0 0.0
        %1032 = vmatprep.subr.mxu0 0.0
        %1033 = vmatpush1.msra.mxu0 0.0
        %1034 = vmatprep.subr.mxu0 0.0
        %1035 = vmatpush1.msra.mxu0 0.0
        %1036 = vmatprep.subr.mxu0 0.0
        %1037 = vmatpush1.msra.mxu0 0.0
        %1038 = vmatprep.subr.mxu0 0.0
        %1039 = vmatpush1.msra.mxu0 0.0
        %1040 = vmatprep.subr.mxu0 0.0
        %1041 = vmatpush1.msra.mxu0 0.0
        %1042 = vmatprep.subr.mxu0 0.0
        %1043 = vmatpush1.msra.mxu0 0.0
        %1044 = vmatprep.mubr.f32.mxu0 0.0
        %1045 = vmatmul.mubr.f32.gmra.mrb[0].mxu0 %v978
        %v1046 = vpop.f32.mrb[0].mxu0
        %v1047 = vadd.f32 0.0, %v1046
        %v1048 = vpop.f32.mrb[0].mxu0
        %1049 = vdwg.mxu0
        %1050 = vrot.lane.b32.xlu0 %v882, 120
        %v1051 = vpop.permute.xlu0 %1050
        %1052 = vrot.lane.b32.xlu0 %v882, 88
        %v1053 = vpop.permute.xlu0 %1052
        %v1054 = vsel %vm888, %v1051, 0
        %v1056 = vsel %vm888, %v1053, 0
        %1058 = vmatprep.subr.mxu0 0.0
        %1059 = vmatpush1.xpose.msra.mxu0 %v1056
        %1060 = vmatprep.subr.mxu0 0.0
        %1061 = vmatpush1.xpose.msra.mxu0 0.0
        %1062 = vmatprep.subr.mxu0 0.0
        %1063 = vmatpush1.xpose.msra.mxu0 0.0
        %1064 = vmatprep.subr.mxu0 0.0
        %1065 = vmatpush1.xpose.msra.mxu0 0.0
        %1066 = vmatprep.subr.mxu0 0.0
        %1067 = vmatpush1.xpose.msra.mxu0 0.0
        %1068 = vmatprep.subr.mxu0 0.0
        %1069 = vmatpush1.xpose.msra.mxu0 0.0
        %1070 = vmatprep.subr.mxu0 0.0
        %1071 = vmatpush1.xpose.msra.mxu0 0.0
        %1072 = vmatprep.subr.mxu0 0.0
        %1073 = vmatpush1.xpose.msra.mxu0 0.0
        %1074 = vmatprep.subr.mxu0 0.0
        %1075 = vmatpush1.xpose.msra.mxu0 0.0
        %1076 = vmatprep.subr.mxu0 0.0
        %1077 = vmatpush1.xpose.msra.mxu0 0.0
        %1078 = vmatprep.subr.mxu0 0.0
        %1079 = vmatpush1.xpose.msra.mxu0 0.0
        %1080 = vmatprep.subr.mxu0 0.0
        %1081 = vmatpush1.xpose.msra.mxu0 0.0
        %1082 = vmatprep.subr.mxu0 0.0
        %1083 = vmatpush1.xpose.msra.mxu0 0.0
        %1084 = vmatprep.subr.mxu0 0.0
        %1085 = vmatpush1.xpose.msra.mxu0 0.0
        %1086 = vmatprep.subr.mxu0 0.0
        %1087 = vmatpush1.xpose.msra.mxu0 0.0
        %1088 = vmatprep.subr.mxu0 0.0
        %1089 = vmatpush1.xpose.msra.mxu0 0.0
        %1090 = vmatprep.subr.mxu0 0.0
        %1091 = vmatpush1.xpose.msra.mxu0 0.0
        %1092 = vmatprep.subr.mxu0 0.0
        %1093 = vmatpush1.xpose.msra.mxu0 0.0
        %1094 = vmatprep.subr.mxu0 0.0
        %1095 = vmatpush1.xpose.msra.mxu0 0.0
        %1096 = vmatprep.subr.mxu0 0.0
        %1097 = vmatpush1.xpose.msra.mxu0 0.0
        %1098 = vmatprep.subr.mxu0 0.0
        %1099 = vmatpush1.xpose.msra.mxu0 0.0
        %1100 = vmatprep.subr.mxu0 0.0
        %1101 = vmatpush1.xpose.msra.mxu0 0.0
        %1102 = vmatprep.subr.mxu0 0.0
        %1103 = vmatpush1.xpose.msra.mxu0 0.0
        %1104 = vmatprep.subr.mxu0 0.0
        %1105 = vmatpush1.xpose.msra.mxu0 0.0
        %1106 = vmatprep.subr.mxu0 0.0
        %1107 = vmatpush1.xpose.msra.mxu0 0.0
        %1108 = vmatprep.subr.mxu0 0.0
        %1109 = vmatpush1.xpose.msra.mxu0 0.0
        %1110 = vmatprep.subr.mxu0 0.0
        %1111 = vmatpush1.xpose.msra.mxu0 0.0
        %1112 = vmatprep.subr.mxu0 0.0
        %1113 = vmatpush1.xpose.msra.mxu0 0.0
        %1114 = vmatprep.subr.mxu0 0.0
        %1115 = vmatpush1.xpose.msra.mxu0 0.0
        %1116 = vmatprep.subr.mxu0 0.0
        %1117 = vmatpush1.xpose.msra.mxu0 0.0
        %1118 = vmatprep.subr.mxu0 0.0
        %1119 = vmatpush1.xpose.msra.mxu0 0.0
        %1120 = vmatprep.subr.mxu0 0.0
        %1121 = vmatpush1.xpose.msra.mxu0 0.0
        %1122 = vmatprep.mubr.f32.mxu0 0.0
        %1123 = vmatmul.mubr.f32.gmra.mrb[0].mxu0 %v1054
        %v1124 = vpop.f32.mrb[0].mxu0
        %v1125 = vadd.f32 0.0, %v1124
        %v1126 = vpop.f32.mrb[0].mxu0
        %1127 = vdwg.mxu0
        %v1128 = vsel %vm888, %v1125, -inf
        %1129 = vmax.xlane.f32.xlu0 %v1128
        %v1130 = vpop.xlane.xlu0 %1129
        %v1131 = vsub.f32 %v1125, %v1130
        %v1132 = vmul.f32 %v1131, 1.442695
        %v1133 = vpow.pop %v1132
        %v1134 = vsel %vm888, %v1133, 0.0
        %1135 = vadd.xlane.f32.xlu0 %v1134
        %v1136 = vpop.xlane.xlu0 %1135
        %v1137 = vrcp.pop %v1136
        %v1138 = vmul.f32 %v1133, %v1137
        %1139 = vrot.lane.b32.xlu0 %v882, 56
        %v1140 = vpop.permute.xlu0 %1139
        %v1143 = vsel %vm888, %v1138, 0
        %1145 = vmatprep.subr.mxu0 0.0
        %1146 = vmatpush1.msra.mxu0 %v1140
        %1147 = vmatprep.subr.mxu0 0.0
        %1148 = vmatpush1.msra.mxu0 0.0
        %1149 = vmatprep.subr.mxu0 0.0
        %1150 = vmatpush1.msra.mxu0 0.0
        %1151 = vmatprep.subr.mxu0 0.0
        %1152 = vmatpush1.msra.mxu0 0.0
        %1153 = vmatprep.subr.mxu0 0.0
        %1154 = vmatpush1.msra.mxu0 0.0
        %1155 = vmatprep.subr.mxu0 0.0
        %1156 = vmatpush1.msra.mxu0 0.0
        %1157 = vmatprep.subr.mxu0 0.0
        %1158 = vmatpush1.msra.mxu0 0.0
        %1159 = vmatprep.subr.mxu0 0.0
        %1160 = vmatpush1.msra.mxu0 0.0
        %1161 = vmatprep.subr.mxu0 0.0
        %1162 = vmatpush1.msra.mxu0 0.0
        %1163 = vmatprep.subr.mxu0 0.0
        %1164 = vmatpush1.msra.mxu0 0.0
        %1165 = vmatprep.subr.mxu0 0.0
        %1166 = vmatpush1.msra.mxu0 0.0
        %1167 = vmatprep.subr.mxu0 0.0
        %1168 = vmatpush1.msra.mxu0 0.0
        %1169 = vmatprep.subr.mxu0 0.0
        %1170 = vmatpush1.msra.mxu0 0.0
        %1171 = vmatprep.subr.mxu0 0.0
        %1172 = vmatpush1.msra.mxu0 0.0
        %1173 = vmatprep.subr.mxu0 0.0
        %1174 = vmatpush1.msra.mxu0 0.0
        %1175 = vmatprep.subr.mxu0 0.0
        %1176 = vmatpush1.msra.mxu0 0.0
        %1177 = vmatprep.subr.mxu0 0.0
        %1178 = vmatpush1.msra.mxu0 0.0
        %1179 = vmatprep.subr.mxu0 0.0
        %1180 = vmatpush1.msra.mxu0 0.0
        %1181 = vmatprep.subr.mxu0 0.0
        %1182 = vmatpush1.msra.mxu0 0.0
        %1183 = vmatprep.subr.mxu0 0.0
        %1184 = vmatpush1.msra.mxu0 0.0
        %1185 = vmatprep.subr.mxu0 0.0
        %1186 = vmatpush1.msra.mxu0 0.0
        %1187 = vmatprep.subr.mxu0 0.0
        %1188 = vmatpush1.msra.mxu0 0.0
        %1189 = vmatprep.subr.mxu0 0.0
        %1190 = vmatpush1.msra.mxu0 0.0
        %1191 = vmatprep.subr.mxu0 0.0
        %1192 = vmatpush1.msra.mxu0 0.0
        %1193 = vmatprep.subr.mxu0 0.0
        %1194 = vmatpush1.msra.mxu0 0.0
        %1195 = vmatprep.subr.mxu0 0.0
        %1196 = vmatpush1.msra.mxu0 0.0
        %1197 = vmatprep.subr.mxu0 0.0
        %1198 = vmatpush1.msra.mxu0 0.0
        %1199 = vmatprep.subr.mxu0 0.0
        %1200 = vmatpush1.msra.mxu0 0.0
        %1201 = vmatprep.subr.mxu0 0.0
        %1202 = vmatpush1.msra.mxu0 0.0
        %1203 = vmatprep.subr.mxu0 0.0
        %1204 = vmatpush1.msra.mxu0 0.0
        %1205 = vmatprep.subr.mxu0 0.0
        %1206 = vmatpush1.msra.mxu0 0.0
        %1207 = vmatprep.subr.mxu0 0.0
        %1208 = vmatpush1.msra.mxu0 0.0
        %1209 = vmatprep.mubr.f32.mxu0 0.0
        %1210 = vmatmul.mubr.f32.gmra.mrb[0].mxu0 %v1143
        %v1211 = vpop.f32.mrb[0].mxu0
        %v1212 = vadd.f32 0.0, %v1211
        %v1213 = vpop.f32.mrb[0].mxu0
        %1214 = vdwg.mxu0
        %1215 = vrot.lane.b32.xlu0 %v882, 112
        %v1216 = vpop.permute.xlu0 %1215
        %1217 = vrot.lane.b32.xlu0 %v882, 80
        %v1218 = vpop.permute.xlu0 %1217
        %v1219 = vsel %vm888, %v1216, 0
        %v1221 = vsel %vm888, %v1218, 0
        %1223 = vmatprep.subr.mxu0 0.0
        %1224 = vmatpush1.xpose.msra.mxu0 %v1221
        %1225 = vmatprep.subr.mxu0 0.0
        %1226 = vmatpush1.xpose.msra.mxu0 0.0
        %1227 = vmatprep.subr.mxu0 0.0
        %1228 = vmatpush1.xpose.msra.mxu0 0.0
        %1229 = vmatprep.subr.mxu0 0.0
        %1230 = vmatpush1.xpose.msra.mxu0 0.0
        %1231 = vmatprep.subr.mxu0 0.0
        %1232 = vmatpush1.xpose.msra.mxu0 0.0
        %1233 = vmatprep.subr.mxu0 0.0
        %1234 = vmatpush1.xpose.msra.mxu0 0.0
        %1235 = vmatprep.subr.mxu0 0.0
        %1236 = vmatpush1.xpose.msra.mxu0 0.0
        %1237 = vmatprep.subr.mxu0 0.0
        %1238 = vmatpush1.xpose.msra.mxu0 0.0
        %1239 = vmatprep.subr.mxu0 0.0
        %1240 = vmatpush1.xpose.msra.mxu0 0.0
        %1241 = vmatprep.subr.mxu0 0.0
        %1242 = vmatpush1.xpose.msra.mxu0 0.0
        %1243 = vmatprep.subr.mxu0 0.0
        %1244 = vmatpush1.xpose.msra.mxu0 0.0
        %1245 = vmatprep.subr.mxu0 0.0
        %1246 = vmatpush1.xpose.msra.mxu0 0.0
        %1247 = vmatprep.subr.mxu0 0.0
        %1248 = vmatpush1.xpose.msra.mxu0 0.0
        %1249 = vmatprep.subr.mxu0 0.0
        %1250 = vmatpush1.xpose.msra.mxu0 0.0
        %1251 = vmatprep.subr.mxu0 0.0
        %1252 = vmatpush1.xpose.msra.mxu0 0.0
        %1253 = vmatprep.subr.mxu0 0.0
        %1254 = vmatpush1.xpose.msra.mxu0 0.0
        %1255 = vmatprep.subr.mxu0 0.0
        %1256 = vmatpush1.xpose.msra.mxu0 0.0
        %1257 = vmatprep.subr.mxu0 0.0
        %1258 = vmatpush1.xpose.msra.mxu0 0.0
        %1259 = vmatprep.subr.mxu0 0.0
        %1260 = vmatpush1.xpose.msra.mxu0 0.0
        %1261 = vmatprep.subr.mxu0 0.0
        %1262 = vmatpush1.xpose.msra.mxu0 0.0
        %1263 = vmatprep.subr.mxu0 0.0
        %1264 = vmatpush1.xpose.msra.mxu0 0.0
        %1265 = vmatprep.subr.mxu0 0.0
        %1266 = vmatpush1.xpose.msra.mxu0 0.0
        %1267 = vmatprep.subr.mxu0 0.0
        %1268 = vmatpush1.xpose.msra.mxu0 0.0
        %1269 = vmatprep.subr.mxu0 0.0
        %1270 = vmatpush1.xpose.msra.mxu0 0.0
        %1271 = vmatprep.subr.mxu0 0.0
        %1272 = vmatpush1.xpose.msra.mxu0 0.0
        %1273 = vmatprep.subr.mxu0 0.0
        %1274 = vmatpush1.xpose.msra.mxu0 0.0
        %1275 = vmatprep.subr.mxu0 0.0
        %1276 = vmatpush1.xpose.msra.mxu0 0.0
        %1277 = vmatprep.subr.mxu0 0.0
        %1278 = vmatpush1.xpose.msra.mxu0 0.0
        %1279 = vmatprep.subr.mxu0 0.0
        %1280 = vmatpush1.xpose.msra.mxu0 0.0
        %1281 = vmatprep.subr.mxu0 0.0
        %1282 = vmatpush1.xpose.msra.mxu0 0.0
        %1283 = vmatprep.subr.mxu0 0.0
        %1284 = vmatpush1.xpose.msra.mxu0 0.0
        %1285 = vmatprep.subr.mxu0 0.0
        %1286 = vmatpush1.xpose.msra.mxu0 0.0
        %1287 = vmatprep.mubr.f32.mxu0 0.0
        %1288 = vmatmul.mubr.f32.gmra.mrb[0].mxu0 %v1219
        %v1289 = vpop.f32.mrb[0].mxu0
        %v1290 = vadd.f32 0.0, %v1289
        %v1291 = vpop.f32.mrb[0].mxu0
        %1292 = vdwg.mxu0
        %v1293 = vsel %vm888, %v1290, -inf
        %1294 = vmax.xlane.f32.xlu0 %v1293
        %v1295 = vpop.xlane.xlu0 %1294
        %v1296 = vsub.f32 %v1290, %v1295
        %v1297 = vmul.f32 %v1296, 1.442695
        %v1298 = vpow.pop %v1297
        %v1299 = vsel %vm888, %v1298, 0.0
        %1300 = vadd.xlane.f32.xlu0 %v1299
        %v1301 = vpop.xlane.xlu0 %1300
        %v1302 = vrcp.pop %v1301
        %v1303 = vmul.f32 %v1298, %v1302
        %1304 = vrot.lane.b32.xlu0 %v882, 48
        %v1305 = vpop.permute.xlu0 %1304
        %v1308 = vsel %vm888, %v1303, 0
        %1310 = vmatprep.subr.mxu0 0.0
        %1311 = vmatpush1.msra.mxu0 %v1305
        %1312 = vmatprep.subr.mxu0 0.0
        %1313 = vmatpush1.msra.mxu0 0.0
        %1314 = vmatprep.subr.mxu0 0.0
        %1315 = vmatpush1.msra.mxu0 0.0
        %1316 = vmatprep.subr.mxu0 0.0
        %1317 = vmatpush1.msra.mxu0 0.0
        %1318 = vmatprep.subr.mxu0 0.0
        %1319 = vmatpush1.msra.mxu0 0.0
        %1320 = vmatprep.subr.mxu0 0.0
        %1321 = vmatpush1.msra.mxu0 0.0
        %1322 = vmatprep.subr.mxu0 0.0
        %1323 = vmatpush1.msra.mxu0 0.0
        %1324 = vmatprep.subr.mxu0 0.0
        %1325 = vmatpush1.msra.mxu0 0.0
        %1326 = vmatprep.subr.mxu0 0.0
        %1327 = vmatpush1.msra.mxu0 0.0
        %1328 = vmatprep.subr.mxu0 0.0
        %1329 = vmatpush1.msra.mxu0 0.0
        %1330 = vmatprep.subr.mxu0 0.0
        %1331 = vmatpush1.msra.mxu0 0.0
        %1332 = vmatprep.subr.mxu0 0.0
        %1333 = vmatpush1.msra.mxu0 0.0
        %1334 = vmatprep.subr.mxu0 0.0
        %1335 = vmatpush1.msra.mxu0 0.0
        %1336 = vmatprep.subr.mxu0 0.0
        %1337 = vmatpush1.msra.mxu0 0.0
        %1338 = vmatprep.subr.mxu0 0.0
        %1339 = vmatpush1.msra.mxu0 0.0
        %1340 = vmatprep.subr.mxu0 0.0
        %1341 = vmatpush1.msra.mxu0 0.0
        %1342 = vmatprep.subr.mxu0 0.0
        %1343 = vmatpush1.msra.mxu0 0.0
        %1344 = vmatprep.subr.mxu0 0.0
        %1345 = vmatpush1.msra.mxu0 0.0
        %1346 = vmatprep.subr.mxu0 0.0
        %1347 = vmatpush1.msra.mxu0 0.0
        %1348 = vmatprep.subr.mxu0 0.0
        %1349 = vmatpush1.msra.mxu0 0.0
        %1350 = vmatprep.subr.mxu0 0.0
        %1351 = vmatpush1.msra.mxu0 0.0
        %1352 = vmatprep.subr.mxu0 0.0
        %1353 = vmatpush1.msra.mxu0 0.0
        %1354 = vmatprep.subr.mxu0 0.0
        %1355 = vmatpush1.msra.mxu0 0.0
        %1356 = vmatprep.subr.mxu0 0.0
        %1357 = vmatpush1.msra.mxu0 0.0
        %1358 = vmatprep.subr.mxu0 0.0
        %1359 = vmatpush1.msra.mxu0 0.0
        %1360 = vmatprep.subr.mxu0 0.0
        %1361 = vmatpush1.msra.mxu0 0.0
        %1362 = vmatprep.subr.mxu0 0.0
        %1363 = vmatpush1.msra.mxu0 0.0
        %1364 = vmatprep.subr.mxu0 0.0
        %1365 = vmatpush1.msra.mxu0 0.0
        %1366 = vmatprep.subr.mxu0 0.0
        %1367 = vmatpush1.msra.mxu0 0.0
        %1368 = vmatprep.subr.mxu0 0.0
        %1369 = vmatpush1.msra.mxu0 0.0
        %1370 = vmatprep.subr.mxu0 0.0
        %1371 = vmatpush1.msra.mxu0 0.0
        %1372 = vmatprep.subr.mxu0 0.0
        %1373 = vmatpush1.msra.mxu0 0.0
        %1374 = vmatprep.mubr.f32.mxu0 0.0
        %1375 = vmatmul.mubr.f32.gmra.mrb[0].mxu0 %v1308
        %v1376 = vpop.f32.mrb[0].mxu0
        %v1377 = vadd.f32 0.0, %v1376
        %v1378 = vpop.f32.mrb[0].mxu0
        %1379 = vdwg.mxu0
        %1380 = vrot.lane.b32.xlu0 %v882, 104
        %v1381 = vpop.permute.xlu0 %1380
        %1382 = vrot.lane.b32.xlu0 %v882, 72
        %v1383 = vpop.permute.xlu0 %1382
        %v1384 = vsel %vm888, %v1381, 0
        %v1386 = vsel %vm888, %v1383, 0
        %1388 = vmatprep.subr.mxu0 0.0
        %1389 = vmatpush1.xpose.msra.mxu0 %v1386
        %1390 = vmatprep.subr.mxu0 0.0
        %1391 = vmatpush1.xpose.msra.mxu0 0.0
        %1392 = vmatprep.subr.mxu0 0.0
        %1393 = vmatpush1.xpose.msra.mxu0 0.0
        %1394 = vmatprep.subr.mxu0 0.0
        %1395 = vmatpush1.xpose.msra.mxu0 0.0
        %1396 = vmatprep.subr.mxu0 0.0
        %1397 = vmatpush1.xpose.msra.mxu0 0.0
        %1398 = vmatprep.subr.mxu0 0.0
        %1399 = vmatpush1.xpose.msra.mxu0 0.0
        %1400 = vmatprep.subr.mxu0 0.0
        %1401 = vmatpush1.xpose.msra.mxu0 0.0
        %1402 = vmatprep.subr.mxu0 0.0
        %1403 = vmatpush1.xpose.msra.mxu0 0.0
        %1404 = vmatprep.subr.mxu0 0.0
        %1405 = vmatpush1.xpose.msra.mxu0 0.0
        %1406 = vmatprep.subr.mxu0 0.0
        %1407 = vmatpush1.xpose.msra.mxu0 0.0
        %1408 = vmatprep.subr.mxu0 0.0
        %1409 = vmatpush1.xpose.msra.mxu0 0.0
        %1410 = vmatprep.subr.mxu0 0.0
        %1411 = vmatpush1.xpose.msra.mxu0 0.0
        %1412 = vmatprep.subr.mxu0 0.0
        %1413 = vmatpush1.xpose.msra.mxu0 0.0
        %1414 = vmatprep.subr.mxu0 0.0
        %1415 = vmatpush1.xpose.msra.mxu0 0.0
        %1416 = vmatprep.subr.mxu0 0.0
        %1417 = vmatpush1.xpose.msra.mxu0 0.0
        %1418 = vmatprep.subr.mxu0 0.0
        %1419 = vmatpush1.xpose.msra.mxu0 0.0
        %1420 = vmatprep.subr.mxu0 0.0
        %1421 = vmatpush1.xpose.msra.mxu0 0.0
        %1422 = vmatprep.subr.mxu0 0.0
        %1423 = vmatpush1.xpose.msra.mxu0 0.0
        %1424 = vmatprep.subr.mxu0 0.0
        %1425 = vmatpush1.xpose.msra.mxu0 0.0
        %1426 = vmatprep.subr.mxu0 0.0
        %1427 = vmatpush1.xpose.msra.mxu0 0.0
        %1428 = vmatprep.subr.mxu0 0.0
        %1429 = vmatpush1.xpose.msra.mxu0 0.0
        %1430 = vmatprep.subr.mxu0 0.0
        %1431 = vmatpush1.xpose.msra.mxu0 0.0
        %1432 = vmatprep.subr.mxu0 0.0
        %1433 = vmatpush1.xpose.msra.mxu0 0.0
        %1434 = vmatprep.subr.mxu0 0.0
        %1435 = vmatpush1.xpose.msra.mxu0 0.0
        %1436 = vmatprep.subr.mxu0 0.0
        %1437 = vmatpush1.xpose.msra.mxu0 0.0
        %1438 = vmatprep.subr.mxu0 0.0
        %1439 = vmatpush1.xpose.msra.mxu0 0.0
        %1440 = vmatprep.subr.mxu0 0.0
        %1441 = vmatpush1.xpose.msra.mxu0 0.0
        %1442 = vmatprep.subr.mxu0 0.0
        %1443 = vmatpush1.xpose.msra.mxu0 0.0
        %1444 = vmatprep.subr.mxu0 0.0
        %1445 = vmatpush1.xpose.msra.mxu0 0.0
        %1446 = vmatprep.subr.mxu0 0.0
        %1447 = vmatpush1.xpose.msra.mxu0 0.0
        %1448 = vmatprep.subr.mxu0 0.0
        %1449 = vmatpush1.xpose.msra.mxu0 0.0
        %1450 = vmatprep.subr.mxu0 0.0
        %1451 = vmatpush1.xpose.msra.mxu0 0.0
        %1452 = vmatprep.mubr.f32.mxu0 0.0
        %1453 = vmatmul.mubr.f32.gmra.mrb[0].mxu0 %v1384
        %v1454 = vpop.f32.mrb[0].mxu0
        %v1455 = vadd.f32 0.0, %v1454
        %v1456 = vpop.f32.mrb[0].mxu0
        %1457 = vdwg.mxu0
        %v1458 = vsel %vm888, %v1455, -inf
        %1459 = vmax.xlane.f32.xlu0 %v1458
        %v1460 = vpop.xlane.xlu0 %1459
        %v1461 = vsub.f32 %v1455, %v1460
        %v1462 = vmul.f32 %v1461, 1.442695
        %v1463 = vpow.pop %v1462
        %v1464 = vsel %vm888, %v1463, 0.0
        %1465 = vadd.xlane.f32.xlu0 %v1464
        %v1466 = vpop.xlane.xlu0 %1465
        %v1467 = vrcp.pop %v1466
        %v1468 = vmul.f32 %v1463, %v1467
        %1469 = vrot.lane.b32.xlu0 %v882, 40
        %v1470 = vpop.permute.xlu0 %1469
        %v1473 = vsel %vm888, %v1468, 0
        %1475 = vmatprep.subr.mxu0 0.0
        %1476 = vmatpush1.msra.mxu0 %v1470
        %1477 = vmatprep.subr.mxu0 0.0
        %1478 = vmatpush1.msra.mxu0 0.0
        %1479 = vmatprep.subr.mxu0 0.0
        %1480 = vmatpush1.msra.mxu0 0.0
        %1481 = vmatprep.subr.mxu0 0.0
        %1482 = vmatpush1.msra.mxu0 0.0
        %1483 = vmatprep.subr.mxu0 0.0
        %1484 = vmatpush1.msra.mxu0 0.0
        %1485 = vmatprep.subr.mxu0 0.0
        %1486 = vmatpush1.msra.mxu0 0.0
        %1487 = vmatprep.subr.mxu0 0.0
        %1488 = vmatpush1.msra.mxu0 0.0
        %1489 = vmatprep.subr.mxu0 0.0
        %1490 = vmatpush1.msra.mxu0 0.0
        %1491 = vmatprep.subr.mxu0 0.0
        %1492 = vmatpush1.msra.mxu0 0.0
        %1493 = vmatprep.subr.mxu0 0.0
        %1494 = vmatpush1.msra.mxu0 0.0
        %1495 = vmatprep.subr.mxu0 0.0
        %1496 = vmatpush1.msra.mxu0 0.0
        %1497 = vmatprep.subr.mxu0 0.0
        %1498 = vmatpush1.msra.mxu0 0.0
        %1499 = vmatprep.subr.mxu0 0.0
        %1500 = vmatpush1.msra.mxu0 0.0
        %1501 = vmatprep.subr.mxu0 0.0
        %1502 = vmatpush1.msra.mxu0 0.0
        %1503 = vmatprep.subr.mxu0 0.0
        %1504 = vmatpush1.msra.mxu0 0.0
        %1505 = vmatprep.subr.mxu0 0.0
        %1506 = vmatpush1.msra.mxu0 0.0
        %1507 = vmatprep.subr.mxu0 0.0
        %1508 = vmatpush1.msra.mxu0 0.0
        %1509 = vmatprep.subr.mxu0 0.0
        %1510 = vmatpush1.msra.mxu0 0.0
        %1511 = vmatprep.subr.mxu0 0.0
        %1512 = vmatpush1.msra.mxu0 0.0
        %1513 = vmatprep.subr.mxu0 0.0
        %1514 = vmatpush1.msra.mxu0 0.0
        %1515 = vmatprep.subr.mxu0 0.0
        %1516 = vmatpush1.msra.mxu0 0.0
        %1517 = vmatprep.subr.mxu0 0.0
        %1518 = vmatpush1.msra.mxu0 0.0
        %1519 = vmatprep.subr.mxu0 0.0
        %1520 = vmatpush1.msra.mxu0 0.0
        %1521 = vmatprep.subr.mxu0 0.0
        %1522 = vmatpush1.msra.mxu0 0.0
        %1523 = vmatprep.subr.mxu0 0.0
        %1524 = vmatpush1.msra.mxu0 0.0
        %1525 = vmatprep.subr.mxu0 0.0
        %1526 = vmatpush1.msra.mxu0 0.0
        %1527 = vmatprep.subr.mxu0 0.0
        %1528 = vmatpush1.msra.mxu0 0.0
        %1529 = vmatprep.subr.mxu0 0.0
        %1530 = vmatpush1.msra.mxu0 0.0
        %1531 = vmatprep.subr.mxu0 0.0
        %1532 = vmatpush1.msra.mxu0 0.0
        %1533 = vmatprep.subr.mxu0 0.0
        %1534 = vmatpush1.msra.mxu0 0.0
        %1535 = vmatprep.subr.mxu0 0.0
        %1536 = vmatpush1.msra.mxu0 0.0
        %1537 = vmatprep.subr.mxu0 0.0
        %1538 = vmatpush1.msra.mxu0 0.0
        %1539 = vmatprep.mubr.f32.mxu0 0.0
        %1540 = vmatmul.mubr.f32.gmra.mrb[0].mxu0 %v1473
        %v1541 = vpop.f32.mrb[0].mxu0
        %v1542 = vadd.f32 0.0, %v1541
        %v1543 = vpop.f32.mrb[0].mxu0
        %1544 = vdwg.mxu0
        %1546 = vrot.lane.b32.xlu0 %v1212, 8
        %v1547 = vpop.permute.xlu0 %1546
        %1550 = vrot.lane.b32.xlu0 %v1377, 16
        %v1551 = vpop.permute.xlu0 %1550
        %1554 = vrot.lane.b32.xlu0 %v1542, 24
        %v1555 = vpop.permute.xlu0 %1554
        %v1557 = vsel %vm888, %v1047, %v1547
        %vm1558 = vcmask 130048
        %v1559 = vsel %vm1558, %v1557, %v1551
        %vm1560 = vcmask 195584
        %v1561 = vsel %vm1560, %v1559, %v1555
        %v1562 = vld [vmem:[%s4] sm:$0xff]
        %v1563 = vld [vmem:[%s4 + $0x8] sm:$0xff]
        %v1564 = vld [vmem:[%s4 + $0x10] sm:$0xff]
        %v1565 = vld [vmem:[%s4 + $0x18] sm:$0xff]
        %v1566 = vld [vmem:[%s5] sm:$0x1]
        %v1568 = vlaneseq
        %v1569 = vshrl.u32 %v1568, 7
        %v1570 = vsub.s32 0, %v1569
        %v1571 = vrot.slane %v1566, %v1570
        %v1574 = vsel %vm772, %v1561, 0
        %1576 = vmatprep.subr.mxu0 0.0
        %1577 = vmatpush1.msra.mxu0 %v1562
        %1578 = vmatprep.subr.mxu0 0.0
        %1579 = vmatpush1.msra.mxu0 %v1563
        %1580 = vmatprep.subr.mxu0 0.0
        %1581 = vmatpush1.msra.mxu0 %v1564
        %1582 = vmatprep.subr.mxu0 0.0
        %1583 = vmatpush1.msra.mxu0 %v1565
        %1584 = vmatprep.subr.mxu0 0.0
        %1585 = vmatpush1.msra.mxu0 0.0
        %1586 = vmatprep.subr.mxu0 0.0
        %1587 = vmatpush1.msra.mxu0 0.0
        %1588 = vmatprep.subr.mxu0 0.0
        %1589 = vmatpush1.msra.mxu0 0.0
        %1590 = vmatprep.subr.mxu0 0.0
        %1591 = vmatpush1.msra.mxu0 0.0
        %1592 = vmatprep.subr.mxu0 0.0
        %1593 = vmatpush1.msra.mxu0 0.0
        %1594 = vmatprep.subr.mxu0 0.0
        %1595 = vmatpush1.msra.mxu0 0.0
        %1596 = vmatprep.subr.mxu0 0.0
        %1597 = vmatpush1.msra.mxu0 0.0
        %1598 = vmatprep.subr.mxu0 0.0
        %1599 = vmatpush1.msra.mxu0 0.0
        %1600 = vmatprep.subr.mxu0 0.0
        %1601 = vmatpush1.msra.mxu0 0.0
        %1602 = vmatprep.subr.mxu0 0.0
        %1603 = vmatpush1.msra.mxu0 0.0
        %1604 = vmatprep.subr.mxu0 0.0
        %1605 = vmatpush1.msra.mxu0 0.0
        %1606 = vmatprep.subr.mxu0 0.0
        %1607 = vmatpush1.msra.mxu0 0.0
        %1608 = vmatprep.subr.mxu0 0.0
        %1609 = vmatpush1.msra.mxu0 0.0
        %1610 = vmatprep.subr.mxu0 0.0
        %1611 = vmatpush1.msra.mxu0 0.0
        %1612 = vmatprep.subr.mxu0 0.0
        %1613 = vmatpush1.msra.mxu0 0.0
        %1614 = vmatprep.subr.mxu0 0.0
        %1615 = vmatpush1.msra.mxu0 0.0
        %1616 = vmatprep.subr.mxu0 0.0
        %1617 = vmatpush1.msra.mxu0 0.0
        %1618 = vmatprep.subr.mxu0 0.0
        %1619 = vmatpush1.msra.mxu0 0.0
        %1620 = vmatprep.subr.mxu0 0.0
        %1621 = vmatpush1.msra.mxu0 0.0
        %1622 = vmatprep.subr.mxu0 0.0
        %1623 = vmatpush1.msra.mxu0 0.0
        %1624 = vmatprep.subr.mxu0 0.0
        %1625 = vmatpush1.msra.mxu0 0.0
        %1626 = vmatprep.subr.mxu0 0.0
        %1627 = vmatpush1.msra.mxu0 0.0
        %1628 = vmatprep.subr.mxu0 0.0
        %1629 = vmatpush1.msra.mxu0 0.0
        %1630 = vmatprep.subr.mxu0 0.0
        %1631 = vmatpush1.msra.mxu0 0.0
        %1632 = vmatprep.subr.mxu0 0.0
        %1633 = vmatpush1.msra.mxu0 0.0
        %1634 = vmatprep.subr.mxu0 0.0
        %1635 = vmatpush1.msra.mxu0 0.0
        %1636 = vmatprep.subr.mxu0 0.0
        %1637 = vmatpush1.msra.mxu0 0.0
        %1638 = vmatprep.subr.mxu0 0.0
        %1639 = vmatpush1.msra.mxu0 0.0
        %1640 = vmatprep.mubr.f32.mxu0 0.0
        %1641 = vmatmul.mubr.f32.gmra.mrb[0].mxu0 %v1574
        %v1642 = vpop.f32.mrb[0].mxu0
        %v1643 = vadd.f32 %v1571, %v1642
        %v1644 = vpop.f32.mrb[0].mxu0
        %1645 = vdwg.mxu0
        %v1646 = vadd.f32 %v768, %v1643
        %v1647 = vld [vmem:[%s18] sm:$0x1]
        %v1648 = vld [vmem:[%s19] sm:$0x1]
        %v1649 = vsel %vm772, %v1646, 0.0
        %1650 = vadd.xlane.f32.xlu0 %v1649
        %v1651 = vpop.xlane.xlu0 %1650
        %v1652 = vmul.f32 %v1651, %v776
        %v1653 = vsub.f32 %v1646, %v1652
        %v1654 = vmul.f32 %v1653, %v1653
        %v1655 = vsel %vm772, %v1654, 0.0
        %1656 = vadd.xlane.f32.xlu0 %v1655
        %v1657 = vpop.xlane.xlu0 %1656
        %v1658 = vmul.f32 %v1657, %v776
        %v1659 = vadd.f32 %v1658, 1e-05
        %v1660 = vrsqrt.pop %v1659
        %v1661 = vmul.f32 %v1653, %v1660
        %v1663 = vlaneseq
        %v1664 = vshrl.u32 %v1663, 7
        %v1665 = vsub.s32 0, %v1664
        %v1666 = vrot.slane %v1647, %v1665
        %v1668 = vmul.f32 %v1661, %v1666
        %v1670 = vlaneseq
        %v1671 = vshrl.u32 %v1670, 7
        %v1672 = vsub.s32 0, %v1671
        %v1673 = vrot.slane %v1648, %v1672
        %v1675 = vadd.f32 %v1668, %v1673
        %v1676 = vld [vmem:[%s6] sm:$0xff]
        %v1677 = vld [vmem:[%s6 + $0x8] sm:$0xff]
        %v1678 = vld [vmem:[%s6 + $0x10] sm:$0xff]
        %v1679 = vld [vmem:[%s6 + $0x18] sm:$0xff]
        %v1680 = vld [vmem:[%s7] sm:$0x1]
        %v1682 = vlaneseq
        %v1683 = vshrl.u32 %v1682, 7
        %v1684 = vsub.s32 0, %v1683
        %v1685 = vrot.slane %v1680, %v1684
        %v1688 = vsel %vm772, %v1675, 0
        %1690 = vmatprep.subr.mxu0 0.0
        %1691 = vmatpush1.msra.mxu0 %v1676
        %1692 = vmatprep.subr.mxu0 0.0
        %1693 = vmatpush1.msra.mxu0 %v1677
        %1694 = vmatprep.subr.mxu0 0.0
        %1695 = vmatpush1.msra.mxu0 %v1678
        %1696 = vmatprep.subr.mxu0 0.0
        %1697 = vmatpush1.msra.mxu0 %v1679
        %1698 = vmatprep.subr.mxu0 0.0
        %1699 = vmatpush1.msra.mxu0 0.0
        %1700 = vmatprep.subr.mxu0 0.0
        %1701 = vmatpush1.msra.mxu0 0.0
        %1702 = vmatprep.subr.mxu0 0.0
        %1703 = vmatpush1.msra.mxu0 0.0
        %1704 = vmatprep.subr.mxu0 0.0
        %1705 = vmatpush1.msra.mxu0 0.0
        %1706 = vmatprep.subr.mxu0 0.0
        %1707 = vmatpush1.msra.mxu0 0.0
        %1708 = vmatprep.subr.mxu0 0.0
        %1709 = vmatpush1.msra.mxu0 0.0
        %1710 = vmatprep.subr.mxu0 0.0
        %1711 = vmatpush1.msra.mxu0 0.0
        %1712 = vmatprep.subr.mxu0 0.0
        %1713 = vmatpush1.msra.mxu0 0.0
        %1714 = vmatprep.subr.mxu0 0.0
        %1715 = vmatpush1.msra.mxu0 0.0
        %1716 = vmatprep.subr.mxu0 0.0
        %1717 = vmatpush1.msra.mxu0 0.0
        %1718 = vmatprep.subr.mxu0 0.0
        %1719 = vmatpush1.msra.mxu0 0.0
        %1720 = vmatprep.subr.mxu0 0.0
        %1721 = vmatpush1.msra.mxu0 0.0
        %1722 = vmatprep.subr.mxu0 0.0
        %1723 = vmatpush1.msra.mxu0 0.0
        %1724 = vmatprep.subr.mxu0 0.0
        %1725 = vmatpush1.msra.mxu0 0.0
        %1726 = vmatprep.subr.mxu0 0.0
        %1727 = vmatpush1.msra.mxu0 0.0
        %1728 = vmatprep.subr.mxu0 0.0
        %1729 = vmatpush1.msra.mxu0 0.0
        %1730 = vmatprep.subr.mxu0 0.0
        %1731 = vmatpush1.msra.mxu0 0.0
        %1732 = vmatprep.subr.mxu0 0.0
        %1733 = vmatpush1.msra.mxu0 0.0
        %1734 = vmatprep.subr.mxu0 0.0
        %1735 = vmatpush1.msra.mxu0 0.0
        %1736 = vmatprep.subr.mxu0 0.0
        %1737 = vmatpush1.msra.mxu0 0.0
        %1738 = vmatprep.subr.mxu0 0.0
        %1739 = vmatpush1.msra.mxu0 0.0
        %1740 = vmatprep.subr.mxu0 0.0
        %1741 = vmatpush1.msra.mxu0 0.0
        %1742 = vmatprep.subr.mxu0 0.0
        %1743 = vmatpush1.msra.mxu0 0.0
        %1744 = vmatprep.subr.mxu0 0.0
        %1745 = vmatpush1.msra.mxu0 0.0
        %1746 = vmatprep.subr.mxu0 0.0
        %1747 = vmatpush1.msra.mxu0 0.0
        %1748 = vmatprep.subr.mxu0 0.0
        %1749 = vmatpush1.msra.mxu0 0.0
        %1750 = vmatprep.subr.mxu0 0.0
        %1751 = vmatpush1.msra.mxu0 0.0
        %1752 = vmatprep.subr.mxu0 0.0
        %1753 = vmatpush1.msra.mxu0 0.0
        %1754 = vmatprep.mubr.f32.mxu0 0.0
        %1755 = vmatmul.mubr.f32.gmra.mrb[0].mxu0 %v1688
        %v1756 = vpop.f32.mrb[0].mxu0
        %v1757 = vadd.f32 %v1685, %v1756
        %v1758 = vpop.f32.mrb[0].mxu0
        %1759 = vdwg.mxu0
        %v1760 = vld [vmem:[%s8] sm:$0xff]
        %v1761 = vld [vmem:[%s8 + $0x8] sm:$0xff]
        %v1762 = vld [vmem:[%s8 + $0x10] sm:$0xff]
        %v1763 = vld [vmem:[%s8 + $0x18] sm:$0xff]
        %v1764 = vld [vmem:[#allocation4] sm:$0x1]
        %v1766 = vlaneseq
        %v1767 = vshrl.u32 %v1766, 7
        %v1768 = vsub.s32 0, %v1767
        %v1769 = vrot.slane %v1764, %v1768
        %v1772 = vsel %vm772, %v769, 0
        %1774 = vmatprep.subr.mxu0 0.0
        %1775 = vmatpush1.msra.mxu0 %v1760
        %1776 = vmatprep.subr.mxu0 0.0
        %1777 = vmatpush1.msra.mxu0 %v1761
        %1778 = vmatprep.subr.mxu0 0.0
        %1779 = vmatpush1.msra.mxu0 %v1762
        %1780 = vmatprep.subr.mxu0 0.0
        %1781 = vmatpush1.msra.mxu0 %v1763
        %1782 = vmatprep.subr.mxu0 0.0
        %1783 = vmatpush1.msra.mxu0 0.0
        %1784 = vmatprep.subr.mxu0 0.0
        %1785 = vmatpush1.msra.mxu0 0.0
        %1786 = vmatprep.subr.mxu0 0.0
        %1787 = vmatpush1.msra.mxu0 0.0
        %1788 = vmatprep.subr.mxu0 0.0
        %1789 = vmatpush1.msra.mxu0 0.0
        %1790 = vmatprep.subr.mxu0 0.0
        %1791 = vmatpush1.msra.mxu0 0.0
        %1792 = vmatprep.subr.mxu0 0.0
        %1793 = vmatpush1.msra.mxu0 0.0
        %1794 = vmatprep.subr.mxu0 0.0
        %1795 = vmatpush1.msra.mxu0 0.0
        %1796 = vmatprep.subr.mxu0 0.0
        %1797 = vmatpush1.msra.mxu0 0.0
        %1798 = vmatprep.subr.mxu0 0.0
        %1799 = vmatpush1.msra.mxu0 0.0
        %1800 = vmatprep.subr.mxu0 0.0
        %1801 = vmatpush1.msra.mxu0 0.0
        %1802 = vmatprep.subr.mxu0 0.0
        %1803 = vmatpush1.msra.mxu0 0.0
        %1804 = vmatprep.subr.mxu0 0.0
        %1805 = vmatpush1.msra.mxu0 0.0
        %1806 = vmatprep.subr.mxu0 0.0
        %1807 = vmatpush1.msra.mxu0 0.0
        %1808 = vmatprep.subr.mxu0 0.0
        %1809 = vmatpush1.msra.mxu0 0.0
        %1810 = vmatprep.subr.mxu0 0.0
        %1811 = vmatpush1.msra.mxu0 0.0
        %1812 = vmatprep.subr.mxu0 0.0
        %1813 = vmatpush1.msra.mxu0 0.0
        %1814 = vmatprep.subr.mxu0 0.0
        %1815 = vmatpush1.msra.mxu0 0.0
        %1816 = vmatprep.subr.mxu0 0.0
        %1817 = vmatpush1.msra.mxu0 0.0
        %1818 = vmatprep.subr.mxu0 0.0
        %1819 = vmatpush1.msra.mxu0 0.0
        %1820 = vmatprep.subr.mxu0 0.0
        %1821 = vmatpush1.msra.mxu0 0.0
        %1822 = vmatprep.subr.mxu0 0.0
        %1823 = vmatpush1.msra.mxu0 0.0
        %1824 = vmatprep.subr.mxu0 0.0
        %1825 = vmatpush1.msra.mxu0 0.0
        %1826 = vmatprep.subr.mxu0 0.0
        %1827 = vmatpush1.msra.mxu0 0.0
        %1828 = vmatprep.subr.mxu0 0.0
        %1829 = vmatpush1.msra.mxu0 0.0
        %1830 = vmatprep.subr.mxu0 0.0
        %1831 = vmatpush1.msra.mxu0 0.0
        %1832 = vmatprep.subr.mxu0 0.0
        %1833 = vmatpush1.msra.mxu0 0.0
        %1834 = vmatprep.subr.mxu0 0.0
        %1835 = vmatpush1.msra.mxu0 0.0
        %1836 = vmatprep.subr.mxu0 0.0
        %1837 = vmatpush1.msra.mxu0 0.0
        %1838 = vmatprep.mubr.f32.mxu0 0.0
        %1839 = vmatmul.mubr.f32.gmra.mrb[0].mxu0 %v1772
        %v1840 = vpop.f32.mrb[0].mxu0
        %v1841 = vadd.f32 %v1769, %v1840
        %v1842 = vpop.f32.mrb[0].mxu0
        %1843 = vdwg.mxu0
        %v1845 = vsel %vm888, %v1757, 0
        %v1848 = vsel %vm888, %v1841, 0
        %1850 = vmatprep.subr.mxu0 0.0
        %1851 = vmatpush1.xpose.msra.mxu0 %v1848
        %1852 = vmatprep.subr.mxu0 0.0
        %1853 = vmatpush1.xpose.msra.mxu0 0.0
        %1854 = vmatprep.subr.mxu0 0.0
        %1855 = vmatpush1.xpose.msra.mxu0 0.0
        %1856 = vmatprep.subr.mxu0 0.0
        %1857 = vmatpush1.xpose.msra.mxu0 0.0
        %1858 = vmatprep.subr.mxu0 0.0
        %1859 = vmatpush1.xpose.msra.mxu0 0.0
        %1860 = vmatprep.subr.mxu0 0.0
        %1861 = vmatpush1.xpose.msra.mxu0 0.0
        %1862 = vmatprep.subr.mxu0 0.0
        %1863 = vmatpush1.xpose.msra.mxu0 0.0
        %1864 = vmatprep.subr.mxu0 0.0
        %1865 = vmatpush1.xpose.msra.mxu0 0.0
        %1866 = vmatprep.subr.mxu0 0.0
        %1867 = vmatpush1.xpose.msra.mxu0 0.0
        %1868 = vmatprep.subr.mxu0 0.0
        %1869 = vmatpush1.xpose.msra.mxu0 0.0
        %1870 = vmatprep.subr.mxu0 0.0
        %1871 = vmatpush1.xpose.msra.mxu0 0.0
        %1872 = vmatprep.subr.mxu0 0.0
        %1873 = vmatpush1.xpose.msra.mxu0 0.0
        %1874 = vmatprep.subr.mxu0 0.0
        %1875 = vmatpush1.xpose.msra.mxu0 0.0
        %1876 = vmatprep.subr.mxu0 0.0
        %1877 = vmatpush1.xpose.msra.mxu0 0.0
        %1878 = vmatprep.subr.mxu0 0.0
        %1879 = vmatpush1.xpose.msra.mxu0 0.0
        %1880 = vmatprep.subr.mxu0 0.0
        %1881 = vmatpush1.xpose.msra.mxu0 0.0
        %1882 = vmatprep.subr.mxu0 0.0
        %1883 = vmatpush1.xpose.msra.mxu0 0.0
        %1884 = vmatprep.subr.mxu0 0.0
        %1885 = vmatpush1.xpose.msra.mxu0 0.0
        %1886 = vmatprep.subr.mxu0 0.0
        %1887 = vmatpush1.xpose.msra.mxu0 0.0
        %1888 = vmatprep.subr.mxu0 0.0
        %1889 = vmatpush1.xpose.msra.mxu0 0.0
        %1890 = vmatprep.subr.mxu0 0.0
        %1891 = vmatpush1.xpose.msra.mxu0 0.0
        %1892 = vmatprep.subr.mxu0 0.0
        %1893 = vmatpush1.xpose.msra.mxu0 0.0
        %1894 = vmatprep.subr.mxu0 0.0
        %1895 = vmatpush1.xpose.msra.mxu0 0.0
        %1896 = vmatprep.subr.mxu0 0.0
        %1897 = vmatpush1.xpose.msra.mxu0 0.0
        %1898 = vmatprep.subr.mxu0 0.0
        %1899 = vmatpush1.xpose.msra.mxu0 0.0
        %1900 = vmatprep.subr.mxu0 0.0
        %1901 = vmatpush1.xpose.msra.mxu0 0.0
        %1902 = vmatprep.subr.mxu0 0.0
        %1903 = vmatpush1.xpose.msra.mxu0 0.0
        %1904 = vmatprep.subr.mxu0 0.0
        %1905 = vmatpush1.xpose.msra.mxu0 0.0
        %1906 = vmatprep.subr.mxu0 0.0
        %1907 = vmatpush1.xpose.msra.mxu0 0.0
        %1908 = vmatprep.subr.mxu0 0.0
        %1909 = vmatpush1.xpose.msra.mxu0 0.0
        %1910 = vmatprep.subr.mxu0 0.0
        %1911 = vmatpush1.xpose.msra.mxu0 0.0
        %1912 = vmatprep.subr.mxu0 0.0
        %1913 = vmatpush1.xpose.msra.mxu0 0.0
        %1914 = vmatprep.mubr.f32.mxu0 0.0
        %1915 = vmatmul.mubr.f32.gmra.mrb[0].mxu0 %v1845
        %v1916 = vpop.f32.mrb[0].mxu0
        %v1917 = vadd.f32 0.0, %v1916
        %v1918 = vpop.f32.mrb[0].mxu0
        %1919 = vdwg.mxu0
        %v1920 = vsel %vm888, %v1917, -inf
        %1921 = vmax.xlane.f32.xlu0 %v1920
        %v1922 = vpop.xlane.xlu0 %1921
        %v1923 = vsub.f32 %v1917, %v1922
        %v1924 = vmul.f32 %v1923, 1.442695
        %v1925 = vpow.pop %v1924
        %v1926 = vsel %vm888, %v1925, 0.0
        %1927 = vadd.xlane.f32.xlu0 %v1926
        %v1928 = vpop.xlane.xlu0 %1927
        %v1929 = vrcp.pop %v1928
        %v1930 = vmul.f32 %v1925, %v1929
        %1931 = vrot.lane.b32.xlu0 %v1841, 96
        %v1932 = vpop.permute.xlu0 %1931
        %v1935 = vsel %vm888, %v1930, 0
        %1937 = vmatprep.subr.mxu0 0.0
        %1938 = vmatpush1.msra.mxu0 %v1932
        %1939 = vmatprep.subr.mxu0 0.0
        %1940 = vmatpush1.msra.mxu0 0.0
        %1941 = vmatprep.subr.mxu0 0.0
        %1942 = vmatpush1.msra.mxu0 0.0
        %1943 = vmatprep.subr.mxu0 0.0
        %1944 = vmatpush1.msra.mxu0 0.0
        %1945 = vmatprep.subr.mxu0 0.0
        %1946 = vmatpush1.msra.mxu0 0.0
        %1947 = vmatprep.subr.mxu0 0.0
        %1948 = vmatpush1.msra.mxu0 0.0
        %1949 = vmatprep.subr.mxu0 0.0
        %1950 = vmatpush1.msra.mxu0 0.0
        %1951 = vmatprep.subr.mxu0 0.0
        %1952 = vmatpush1.msra.mxu0 0.0
        %1953 = vmatprep.subr.mxu0 0.0
        %1954 = vmatpush1.msra.mxu0 0.0
        %1955 = vmatprep.subr.mxu0 0.0
        %1956 = vmatpush1.msra.mxu0 0.0
        %1957 = vmatprep.subr.mxu0 0.0
        %1958 = vmatpush1.msra.mxu0 0.0
        %1959 = vmatprep.subr.mxu0 0.0
        %1960 = vmatpush1.msra.mxu0 0.0
        %1961 = vmatprep.subr.mxu0 0.0
        %1962 = vmatpush1.msra.mxu0 0.0
        %1963 = vmatprep.subr.mxu0 0.0
        %1964 = vmatpush1.msra.mxu0 0.0
        %1965 = vmatprep.subr.mxu0 0.0
        %1966 = vmatpush1.msra.mxu0 0.0
        %1967 = vmatprep.subr.mxu0 0.0
        %1968 = vmatpush1.msra.mxu0 0.0
        %1969 = vmatprep.subr.mxu0 0.0
        %1970 = vmatpush1.msra.mxu0 0.0
        %1971 = vmatprep.subr.mxu0 0.0
        %1972 = vmatpush1.msra.mxu0 0.0
        %1973 = vmatprep.subr.mxu0 0.0
        %1974 = vmatpush1.msra.mxu0 0.0
        %1975 = vmatprep.subr.mxu0 0.0
        %1976 = vmatpush1.msra.mxu0 0.0
        %1977 = vmatprep.subr.mxu0 0.0
        %1978 = vmatpush1.msra.mxu0 0.0
        %1979 = vmatprep.subr.mxu0 0.0
        %1980 = vmatpush1.msra.mxu0 0.0
        %1981 = vmatprep.subr.mxu0 0.0
        %1982 = vmatpush1.msra.mxu0 0.0
        %1983 = vmatprep.subr.mxu0 0.0
        %1984 = vmatpush1.msra.mxu0 0.0
        %1985 = vmatprep.subr.mxu0 0.0
        %1986 = vmatpush1.msra.mxu0 0.0
        %1987 = vmatprep.subr.mxu0 0.0
        %1988 = vmatpush1.msra.mxu0 0.0
        %1989 = vmatprep.subr.mxu0 0.0
        %1990 = vmatpush1.msra.mxu0 0.0
        %1991 = vmatprep.subr.mxu0 0.0
        %1992 = vmatpush1.msra.mxu0 0.0
        %1993 = vmatprep.subr.mxu0 0.0
        %1994 = vmatpush1.msra.mxu0 0.0
        %1995 = vmatprep.subr.mxu0 0.0
        %1996 = vmatpush1.msra.mxu0 0.0
        %1997 = vmatprep.subr.mxu0 0.0
        %1998 = vmatpush1.msra.mxu0 0.0
        %1999 = vmatprep.subr.mxu0 0.0
        %2000 = vmatpush1.msra.mxu0 0.0
        %2001 = vmatprep.mubr.f32.mxu0 0.0
        %2002 = vmatmul.mubr.f32.gmra.mrb[0].mxu0 %v1935
        %v2003 = vpop.f32.mrb[0].mxu0
        %v2004 = vadd.f32 0.0, %v2003
        %v2005 = vpop.f32.mrb[0].mxu0
        %2006 = vdwg.mxu0
        %2007 = vrot.lane.b32.xlu0 %v1757, 120
        %v2008 = vpop.permute.xlu0 %2007
        %2009 = vrot.lane.b32.xlu0 %v1841, 120
        %v2010 = vpop.permute.xlu0 %2009
        %v2011 = vsel %vm888, %v2008, 0
        %v2013 = vsel %vm888, %v2010, 0
        %2015 = vmatprep.subr.mxu0 0.0
        %2016 = vmatpush1.xpose.msra.mxu0 %v2013
        %2017 = vmatprep.subr.mxu0 0.0
        %2018 = vmatpush1.xpose.msra.mxu0 0.0
        %2019 = vmatprep.subr.mxu0 0.0
        %2020 = vmatpush1.xpose.msra.mxu0 0.0
        %2021 = vmatprep.subr.mxu0 0.0
        %2022 = vmatpush1.xpose.msra.mxu0 0.0
        %2023 = vmatprep.subr.mxu0 0.0
        %2024 = vmatpush1.xpose.msra.mxu0 0.0
        %2025 = vmatprep.subr.mxu0 0.0
        %2026 = vmatpush1.xpose.msra.mxu0 0.0
        %2027 = vmatprep.subr.mxu0 0.0
        %2028 = vmatpush1.xpose.msra.mxu0 0.0
        %2029 = vmatprep.subr.mxu0 0.0
        %2030 = vmatpush1.xpose.msra.mxu0 0.0
        %2031 = vmatprep.subr.mxu0 0.0
        %2032 = vmatpush1.xpose.msra.mxu0 0.0
        %2033 = vmatprep.subr.mxu0 0.0
        %2034 = vmatpush1.xpose.msra.mxu0 0.0
        %2035 = vmatprep.subr.mxu0 0.0
        %2036 = vmatpush1.xpose.msra.mxu0 0.0
        %2037 = vmatprep.subr.mxu0 0.0
        %2038 = vmatpush1.xpose.msra.mxu0 0.0
        %2039 = vmatprep.subr.mxu0 0.0
        %2040 = vmatpush1.xpose.msra.mxu0 0.0
        %2041 = vmatprep.subr.mxu0 0.0
        %2042 = vmatpush1.xpose.msra.mxu0 0.0
        %2043 = vmatprep.subr.mxu0 0.0
        %2044 = vmatpush1.xpose.msra.mxu0 0.0
        %2045 = vmatprep.subr.mxu0 0.0
        %2046 = vmatpush1.xpose.msra.mxu0 0.0
        %2047 = vmatprep.subr.mxu0 0.0
        %2048 = vmatpush1.xpose.msra.mxu0 0.0
        %2049 = vmatprep.subr.mxu0 0.0
        %2050 = vmatpush1.xpose.msra.mxu0 0.0
        %2051 = vmatprep.subr.mxu0 0.0
        %2052 = vmatpush1.xpose.msra.mxu0 0.0
        %2053 = vmatprep.subr.mxu0 0.0
        %2054 = vmatpush1.xpose.msra.mxu0 0.0
        %2055 = vmatprep.subr.mxu0 0.0
        %2056 = vmatpush1.xpose.msra.mxu0 0.0
        %2057 = vmatprep.subr.mxu0 0.0
        %2058 = vmatpush1.xpose.msra.mxu0 0.0
        %2059 = vmatprep.subr.mxu0 0.0
        %2060 = vmatpush1.xpose.msra.mxu0 0.0
        %2061 = vmatprep.subr.mxu0 0.0
        %2062 = vmatpush1.xpose.msra.mxu0 0.0
        %2063 = vmatprep.subr.mxu0 0.0
        %2064 = vmatpush1.xpose.msra.mxu0 0.0
        %2065 = vmatprep.subr.mxu0 0.0
        %2066 = vmatpush1.xpose.msra.mxu0 0.0
        %2067 = vmatprep.subr.mxu0 0.0
        %2068 = vmatpush1.xpose.msra.mxu0 0.0
        %2069 = vmatprep.subr.mxu0 0.0
        %2070 = vmatpush1.xpose.msra.mxu0 0.0
        %2071 = vmatprep.subr.mxu0 0.0
        %2072 = vmatpush1.xpose.msra.mxu0 0.0
        %2073 = vmatprep.subr.mxu0 0.0
        %2074 = vmatpush1.xpose.msra.mxu0 0.0
        %2075 = vmatprep.subr.mxu0 0.0
        %2076 = vmatpush1.xpose.msra.mxu0 0.0
        %2077 = vmatprep.subr.mxu0 0.0
        %2078 = vmatpush1.xpose.msra.mxu0 0.0
        %2079 = vmatprep.mubr.f32.mxu0 0.0
        %2080 = vmatmul.mubr.f32.gmra.mrb[0].mxu0 %v2011
        %v2081 = vpop.f32.mrb[0].mxu0
        %v2082 = vadd.f32 0.0, %v2081
        %v2083 = vpop.f32.mrb[0].mxu0
        %2084 = vdwg.mxu0
        %v2085 = vsel %vm888, %v2082, -inf
        %2086 = vmax.xlane.f32.xlu0 %v2085
        %v2087 = vpop.xlane.xlu0 %2086
        %v2088 = vsub.f32 %v2082, %v2087
        %v2089 = vmul.f32 %v2088, 1.442695
        %v2090 = vpow.pop %v2089
        %v2091 = vsel %vm888, %v2090, 0.0
        %2092 = vadd.xlane.f32.xlu0 %v2091
        %v2093 = vpop.xlane.xlu0 %2092
        %v2094 = vrcp.pop %v2093
        %v2095 = vmul.f32 %v2090, %v2094
        %2096 = vrot.lane.b32.xlu0 %v1841, 88
        %v2097 = vpop.permute.xlu0 %2096
        %v2100 = vsel %vm888, %v2095, 0
        %2102 = vmatprep.subr.mxu0 0.0
        %2103 = vmatpush1.msra.mxu0 %v2097
        %2104 = vmatprep.subr.mxu0 0.0
        %2105 = vmatpush1.msra.mxu0 0.0
        %2106 = vmatprep.subr.mxu0 0.0
        %2107 = vmatpush1.msra.mxu0 0.0
        %2108 = vmatprep.subr.mxu0 0.0
        %2109 = vmatpush1.msra.mxu0 0.0
        %2110 = vmatprep.subr.mxu0 0.0
        %2111 = vmatpush1.msra.mxu0 0.0
        %2112 = vmatprep.subr.mxu0 0.0
        %2113 = vmatpush1.msra.mxu0 0.0
        %2114 = vmatprep.subr.mxu0 0.0
        %2115 = vmatpush1.msra.mxu0 0.0
        %2116 = vmatprep.subr.mxu0 0.0
        %2117 = vmatpush1.msra.mxu0 0.0
        %2118 = vmatprep.subr.mxu0 0.0
        %2119 = vmatpush1.msra.mxu0 0.0
        %2120 = vmatprep.subr.mxu0 0.0
        %2121 = vmatpush1.msra.mxu0 0.0
        %2122 = vmatprep.subr.mxu0 0.0
        %2123 = vmatpush1.msra.mxu0 0.0
        %2124 = vmatprep.subr.mxu0 0.0
        %2125 = vmatpush1.msra.mxu0 0.0
        %2126 = vmatprep.subr.mxu0 0.0
        %2127 = vmatpush1.msra.mxu0 0.0
        %2128 = vmatprep.subr.mxu0 0.0
        %2129 = vmatpush1.msra.mxu0 0.0
        %2130 = vmatprep.subr.mxu0 0.0
        %2131 = vmatpush1.msra.mxu0 0.0
        %2132 = vmatprep.subr.mxu0 0.0
        %2133 = vmatpush1.msra.mxu0 0.0
        %2134 = vmatprep.subr.mxu0 0.0
        %2135 = vmatpush1.msra.mxu0 0.0
        %2136 = vmatprep.subr.mxu0 0.0
        %2137 = vmatpush1.msra.mxu0 0.0
        %2138 = vmatprep.subr.mxu0 0.0
        %2139 = vmatpush1.msra.mxu0 0.0
        %2140 = vmatprep.subr.mxu0 0.0
        %2141 = vmatpush1.msra.mxu0 0.0
        %2142 = vmatprep.subr.mxu0 0.0
        %2143 = vmatpush1.msra.mxu0 0.0
        %2144 = vmatprep.subr.mxu0 0.0
        %2145 = vmatpush1.msra.mxu0 0.0
        %2146 = vmatprep.subr.mxu0 0.0
        %2147 = vmatpush1.msra.mxu0 0.0
        %2148 = vmatprep.subr.mxu0 0.0
        %2149 = vmatpush1.msra.mxu0 0.0
        %2150 = vmatprep.subr.mxu0 0.0
        %2151 = vmatpush1.msra.mxu0 0.0
        %2152 = vmatprep.subr.mxu0 0.0
        %2153 = vmatpush1.msra.mxu0 0.0
        %2154 = vmatprep.subr.mxu0 0.0
        %2155 = vmatpush1.msra.mxu0 0.0
        %2156 = vmatprep.subr.mxu0 0.0
        %2157 = vmatpush1.msra.mxu0 0.0
        %2158 = vmatprep.subr.mxu0 0.0
        %2159 = vmatpush1.msra.mxu0 0.0
        %2160 = vmatprep.subr.mxu0 0.0
        %2161 = vmatpush1.msra.mxu0 0.0
        %2162 = vmatprep.subr.mxu0 0.0
        %2163 = vmatpush1.msra.mxu0 0.0
        %2164 = vmatprep.subr.mxu0 0.0
        %2165 = vmatpush1.msra.mxu0 0.0
        %2166 = vmatprep.mubr.f32.mxu0 0.0
        %2167 = vmatmul.mubr.f32.gmra.mrb[0].mxu0 %v2100
        %v2168 = vpop.f32.mrb[0].mxu0
        %v2169 = vadd.f32 0.0, %v2168
        %v2170 = vpop.f32.mrb[0].mxu0
        %2171 = vdwg.mxu0
        %2172 = vrot.lane.b32.xlu0 %v1757, 112
        %v2173 = vpop.permute.xlu0 %2172
        %2174 = vrot.lane.b32.xlu0 %v1841, 112
        %v2175 = vpop.permute.xlu0 %2174
        %v2176 = vsel %vm888, %v2173, 0
        %v2178 = vsel %vm888, %v2175, 0
        %2180 = vmatprep.subr.mxu0 0.0
        %2181 = vmatpush1.xpose.msra.mxu0 %v2178
        %2182 = vmatprep.subr.mxu0 0.0
        %2183 = vmatpush1.xpose.msra.mxu0 0.0
        %2184 = vmatprep.subr.mxu0 0.0
        %2185 = vmatpush1.xpose.msra.mxu0 0.0
        %2186 = vmatprep.subr.mxu0 0.0
        %2187 = vmatpush1.xpose.msra.mxu0 0.0
        %2188 = vmatprep.subr.mxu0 0.0
        %2189 = vmatpush1.xpose.msra.mxu0 0.0
        %2190 = vmatprep.subr.mxu0 0.0
        %2191 = vmatpush1.xpose.msra.mxu0 0.0
        %2192 = vmatprep.subr.mxu0 0.0
        %2193 = vmatpush1.xpose.msra.mxu0 0.0
        %2194 = vmatprep.subr.mxu0 0.0
        %2195 = vmatpush1.xpose.msra.mxu0 0.0
        %2196 = vmatprep.subr.mxu0 0.0
        %2197 = vmatpush1.xpose.msra.mxu0 0.0
        %2198 = vmatprep.subr.mxu0 0.0
        %2199 = vmatpush1.xpose.msra.mxu0 0.0
        %2200 = vmatprep.subr.mxu0 0.0
        %2201 = vmatpush1.xpose.msra.mxu0 0.0
        %2202 = vmatprep.subr.mxu0 0.0
        %2203 = vmatpush1.xpose.msra.mxu0 0.0
        %2204 = vmatprep.subr.mxu0 0.0
        %2205 = vmatpush1.xpose.msra.mxu0 0.0
        %2206 = vmatprep.subr.mxu0 0.0
        %2207 = vmatpush1.xpose.msra.mxu0 0.0
        %2208 = vmatprep.subr.mxu0 0.0
        %2209 = vmatpush1.xpose.msra.mxu0 0.0
        %2210 = vmatprep.subr.mxu0 0.0
        %2211 = vmatpush1.xpose.msra.mxu0 0.0
        %2212 = vmatprep.subr.mxu0 0.0
        %2213 = vmatpush1.xpose.msra.mxu0 0.0
        %2214 = vmatprep.subr.mxu0 0.0
        %2215 = vmatpush1.xpose.msra.mxu0 0.0
        %2216 = vmatprep.subr.mxu0 0.0
        %2217 = vmatpush1.xpose.msra.mxu0 0.0
        %2218 = vmatprep.subr.mxu0 0.0
        %2219 = vmatpush1.xpose.msra.mxu0 0.0
        %2220 = vmatprep.subr.mxu0 0.0
        %2221 = vmatpush1.xpose.msra.mxu0 0.0
        %2222 = vmatprep.subr.mxu0 0.0
        %2223 = vmatpush1.xpose.msra.mxu0 0.0
        %2224 = vmatprep.subr.mxu0 0.0
        %2225 = vmatpush1.xpose.msra.mxu0 0.0
        %2226 = vmatprep.subr.mxu0 0.0
        %2227 = vmatpush1.xpose.msra.mxu0 0.0
        %2228 = vmatprep.subr.mxu0 0.0
        %2229 = vmatpush1.xpose.msra.mxu0 0.0
        %2230 = vmatprep.subr.mxu0 0.0
        %2231 = vmatpush1.xpose.msra.mxu0 0.0
        %2232 = vmatprep.subr.mxu0 0.0
        %2233 = vmatpush1.xpose.msra.mxu0 0.0
        %2234 = vmatprep.subr.mxu0 0.0
        %2235 = vmatpush1.xpose.msra.mxu0 0.0
        %2236 = vmatprep.subr.mxu0 0.0
        %2237 = vmatpush1.xpose.msra.mxu0 0.0
        %2238 = vmatprep.subr.mxu0 0.0
        %2239 = vmatpush1.xpose.msra.mxu0 0.0
        %2240 = vmatprep.subr.mxu0 0.0
        %2241 = vmatpush1.xpose.msra.mxu0 0.0
        %2242 = vmatprep.subr.mxu0 0.0
        %2243 = vmatpush1.xpose.msra.mxu0 0.0
        %2244 = vmatprep.mubr.f32.mxu0 0.0
        %2245 = vmatmul.mubr.f32.gmra.mrb[0].mxu0 %v2176
        %v2246 = vpop.f32.mrb[0].mxu0
        %v2247 = vadd.f32 0.0, %v2246
        %v2248 = vpop.f32.mrb[0].mxu0
        %2249 = vdwg.mxu0
        %v2250 = vsel %vm888, %v2247, -inf
        %2251 = vmax.xlane.f32.xlu0 %v2250
        %v2252 = vpop.xlane.xlu0 %2251
        %v2253 = vsub.f32 %v2247, %v2252
        %v2254 = vmul.f32 %v2253, 1.442695
        %v2255 = vpow.pop %v2254
        %v2256 = vsel %vm888, %v2255, 0.0
        %2257 = vadd.xlane.f32.xlu0 %v2256
        %v2258 = vpop.xlane.xlu0 %2257
        %v2259 = vrcp.pop %v2258
        %v2260 = vmul.f32 %v2255, %v2259
        %2261 = vrot.lane.b32.xlu0 %v1841, 80
        %v2262 = vpop.permute.xlu0 %2261
        %v2265 = vsel %vm888, %v2260, 0
        %2267 = vmatprep.subr.mxu0 0.0
        %2268 = vmatpush1.msra.mxu0 %v2262
        %2269 = vmatprep.subr.mxu0 0.0
        %2270 = vmatpush1.msra.mxu0 0.0
        %2271 = vmatprep.subr.mxu0 0.0
        %2272 = vmatpush1.msra.mxu0 0.0
        %2273 = vmatprep.subr.mxu0 0.0
        %2274 = vmatpush1.msra.mxu0 0.0
        %2275 = vmatprep.subr.mxu0 0.0
        %2276 = vmatpush1.msra.mxu0 0.0
        %2277 = vmatprep.subr.mxu0 0.0
        %2278 = vmatpush1.msra.mxu0 0.0
        %2279 = vmatprep.subr.mxu0 0.0
        %2280 = vmatpush1.msra.mxu0 0.0
        %2281 = vmatprep.subr.mxu0 0.0
        %2282 = vmatpush1.msra.mxu0 0.0
        %2283 = vmatprep.subr.mxu0 0.0
        %2284 = vmatpush1.msra.mxu0 0.0
        %2285 = vmatprep.subr.mxu0 0.0
        %2286 = vmatpush1.msra.mxu0 0.0
        %2287 = vmatprep.subr.mxu0 0.0
        %2288 = vmatpush1.msra.mxu0 0.0
        %2289 = vmatprep.subr.mxu0 0.0
        %2290 = vmatpush1.msra.mxu0 0.0
        %2291 = vmatprep.subr.mxu0 0.0
        %2292 = vmatpush1.msra.mxu0 0.0
        %2293 = vmatprep.subr.mxu0 0.0
        %2294 = vmatpush1.msra.mxu0 0.0
        %2295 = vmatprep.subr.mxu0 0.0
        %2296 = vmatpush1.msra.mxu0 0.0
        %2297 = vmatprep.subr.mxu0 0.0
        %2298 = vmatpush1.msra.mxu0 0.0
        %2299 = vmatprep.subr.mxu0 0.0
        %2300 = vmatpush1.msra.mxu0 0.0
        %2301 = vmatprep.subr.mxu0 0.0
        %2302 = vmatpush1.msra.mxu0 0.0
        %2303 = vmatprep.subr.mxu0 0.0
        %2304 = vmatpush1.msra.mxu0 0.0
        %2305 = vmatprep.subr.mxu0 0.0
        %2306 = vmatpush1.msra.mxu0 0.0
        %2307 = vmatprep.subr.mxu0 0.0
        %2308 = vmatpush1.msra.mxu0 0.0
        %2309 = vmatprep.subr.mxu0 0.0
        %2310 = vmatpush1.msra.mxu0 0.0
        %2311 = vmatprep.subr.mxu0 0.0
        %2312 = vmatpush1.msra.mxu0 0.0
        %2313 = vmatprep.subr.mxu0 0.0
        %2314 = vmatpush1.msra.mxu0 0.0
        %2315 = vmatprep.subr.mxu0 0.0
        %2316 = vmatpush1.msra.mxu0 0.0
        %2317 = vmatprep.subr.mxu0 0.0
        %2318 = vmatpush1.msra.mxu0 0.0
        %2319 = vmatprep.subr.mxu0 0.0
        %2320 = vmatpush1.msra.mxu0 0.0
        %2321 = vmatprep.subr.mxu0 0.0
        %2322 = vmatpush1.msra.mxu0 0.0
        %2323 = vmatprep.subr.mxu0 0.0
        %2324 = vmatpush1.msra.mxu0 0.0
        %2325 = vmatprep.subr.mxu0 0.0
        %2326 = vmatpush1.msra.mxu0 0.0
        %2327 = vmatprep.subr.mxu0 0.0
        %2328 = vmatpush1.msra.mxu0 0.0
        %2329 = vmatprep.subr.mxu0 0.0
        %2330 = vmatpush1.msra.mxu0 0.0
        %2331 = vmatprep.mubr.f32.mxu0 0.0
        %2332 = vmatmul.mubr.f32.gmra.mrb[0].mxu0 %v2265
        %v2333 = vpop.f32.mrb[0].mxu0
        %v2334 = vadd.f32 0.0, %v2333
        %v2335 = vpop.f32.mrb[0].mxu0
        %2336 = vdwg.mxu0
        %2337 = vrot.lane.b32.xlu0 %v1757, 104
        %v2338 = vpop.permute.xlu0 %2337
        %2339 = vrot.lane.b32.xlu0 %v1841, 104
        %v2340 = vpop.permute.xlu0 %2339
        %v2341 = vsel %vm888, %v2338, 0
        %v2343 = vsel %vm888, %v2340, 0
        %2345 = vmatprep.subr.mxu0 0.0
        %2346 = vmatpush1.xpose.msra.mxu0 %v2343
        %2347 = vmatprep.subr.mxu0 0.0
        %2348 = vmatpush1.xpose.msra.mxu0 0.0
        %2349 = vmatprep.subr.mxu0 0.0
        %2350 = vmatpush1.xpose.msra.mxu0 0.0
        %2351 = vmatprep.subr.mxu0 0.0
        %2352 = vmatpush1.xpose.msra.mxu0 0.0
        %2353 = vmatprep.subr.mxu0 0.0
        %2354 = vmatpush1.xpose.msra.mxu0 0.0
        %2355 = vmatprep.subr.mxu0 0.0
        %2356 = vmatpush1.xpose.msra.mxu0 0.0
        %2357 = vmatprep.subr.mxu0 0.0
        %2358 = vmatpush1.xpose.msra.mxu0 0.0
        %2359 = vmatprep.subr.mxu0 0.0
        %2360 = vmatpush1.xpose.msra.mxu0 0.0
        %2361 = vmatprep.subr.mxu0 0.0
        %2362 = vmatpush1.xpose.msra.mxu0 0.0
        %2363 = vmatprep.subr.mxu0 0.0
        %2364 = vmatpush1.xpose.msra.mxu0 0.0
        %2365 = vmatprep.subr.mxu0 0.0
        %2366 = vmatpush1.xpose.msra.mxu0 0.0
        %2367 = vmatprep.subr.mxu0 0.0
        %2368 = vmatpush1.xpose.msra.mxu0 0.0
        %2369 = vmatprep.subr.mxu0 0.0
        %2370 = vmatpush1.xpose.msra.mxu0 0.0
        %2371 = vmatprep.subr.mxu0 0.0
        %2372 = vmatpush1.xpose.msra.mxu0 0.0
        %2373 = vmatprep.subr.mxu0 0.0
        %2374 = vmatpush1.xpose.msra.mxu0 0.0
        %2375 = vmatprep.subr.mxu0 0.0
        %2376 = vmatpush1.xpose.msra.mxu0 0.0
        %2377 = vmatprep.subr.mxu0 0.0
        %2378 = vmatpush1.xpose.msra.mxu0 0.0
        %2379 = vmatprep.subr.mxu0 0.0
        %2380 = vmatpush1.xpose.msra.mxu0 0.0
        %2381 = vmatprep.subr.mxu0 0.0
        %2382 = vmatpush1.xpose.msra.mxu0 0.0
        %2383 = vmatprep.subr.mxu0 0.0
        %2384 = vmatpush1.xpose.msra.mxu0 0.0
        %2385 = vmatprep.subr.mxu0 0.0
        %2386 = vmatpush1.xpose.msra.mxu0 0.0
        %2387 = vmatprep.subr.mxu0 0.0
        %2388 = vmatpush1.xpose.msra.mxu0 0.0
        %2389 = vmatprep.subr.mxu0 0.0
        %2390 = vmatpush1.xpose.msra.mxu0 0.0
        %2391 = vmatprep.subr.mxu0 0.0
        %2392 = vmatpush1.xpose.msra.mxu0 0.0
        %2393 = vmatprep.subr.mxu0 0.0
        %2394 = vmatpush1.xpose.msra.mxu0 0.0
        %2395 = vmatprep.subr.mxu0 0.0
        %2396 = vmatpush1.xpose.msra.mxu0 0.0
        %2397 = vmatprep.subr.mxu0 0.0
        %2398 = vmatpush1.xpose.msra.mxu0 0.0
        %2399 = vmatprep.subr.mxu0 0.0
        %2400 = vmatpush1.xpose.msra.mxu0 0.0
        %2401 = vmatprep.subr.mxu0 0.0
        %2402 = vmatpush1.xpose.msra.mxu0 0.0
        %2403 = vmatprep.subr.mxu0 0.0
        %2404 = vmatpush1.xpose.msra.mxu0 0.0
        %2405 = vmatprep.subr.mxu0 0.0
        %2406 = vmatpush1.xpose.msra.mxu0 0.0
        %2407 = vmatprep.subr.mxu0 0.0
        %2408 = vmatpush1.xpose.msra.mxu0 0.0
        %2409 = vmatprep.mubr.f32.mxu0 0.0
        %2410 = vmatmul.mubr.f32.gmra.mrb[0].mxu0 %v2341
        %v2411 = vpop.f32.mrb[0].mxu0
        %v2412 = vadd.f32 0.0, %v2411
        %v2413 = vpop.f32.mrb[0].mxu0
        %2414 = vdwg.mxu0
        %v2415 = vsel %vm888, %v2412, -inf
        %2416 = vmax.xlane.f32.xlu0 %v2415
        %v2417 = vpop.xlane.xlu0 %2416
        %v2418 = vsub.f32 %v2412, %v2417
        %v2419 = vmul.f32 %v2418, 1.442695
        %v2420 = vpow.pop %v2419
        %v2421 = vsel %vm888, %v2420, 0.0
        %2422 = vadd.xlane.f32.xlu0 %v2421
        %v2423 = vpop.xlane.xlu0 %2422
        %v2424 = vrcp.pop %v2423
        %v2425 = vmul.f32 %v2420, %v2424
        %2426 = vrot.lane.b32.xlu0 %v1841, 72
        %v2427 = vpop.permute.xlu0 %2426
        %v2430 = vsel %vm888, %v2425, 0
        %2432 = vmatprep.subr.mxu0 0.0
        %2433 = vmatpush1.msra.mxu0 %v2427
        %2434 = vmatprep.subr.mxu0 0.0
        %2435 = vmatpush1.msra.mxu0 0.0
        %2436 = vmatprep.subr.mxu0 0.0
        %2437 = vmatpush1.msra.mxu0 0.0
        %2438 = vmatprep.subr.mxu0 0.0
        %2439 = vmatpush1.msra.mxu0 0.0
        %2440 = vmatprep.subr.mxu0 0.0
        %2441 = vmatpush1.msra.mxu0 0.0
        %2442 = vmatprep.subr.mxu0 0.0
        %2443 = vmatpush1.msra.mxu0 0.0
        %2444 = vmatprep.subr.mxu0 0.0
        %2445 = vmatpush1.msra.mxu0 0.0
        %2446 = vmatprep.subr.mxu0 0.0
        %2447 = vmatpush1.msra.mxu0 0.0
        %2448 = vmatprep.subr.mxu0 0.0
        %2449 = vmatpush1.msra.mxu0 0.0
        %2450 = vmatprep.subr.mxu0 0.0
        %2451 = vmatpush1.msra.mxu0 0.0
        %2452 = vmatprep.subr.mxu0 0.0
        %2453 = vmatpush1.msra.mxu0 0.0
        %2454 = vmatprep.subr.mxu0 0.0
        %2455 = vmatpush1.msra.mxu0 0.0
        %2456 = vmatprep.subr.mxu0 0.0
        %2457 = vmatpush1.msra.mxu0 0.0
        %2458 = vmatprep.subr.mxu0 0.0
        %2459 = vmatpush1.msra.mxu0 0.0
        %2460 = vmatprep.subr.mxu0 0.0
        %2461 = vmatpush1.msra.mxu0 0.0
        %2462 = vmatprep.subr.mxu0 0.0
        %2463 = vmatpush1.msra.mxu0 0.0
        %2464 = vmatprep.subr.mxu0 0.0
        %2465 = vmatpush1.msra.mxu0 0.0
        %2466 = vmatprep.subr.mxu0 0.0
        %2467 = vmatpush1.msra.mxu0 0.0
        %2468 = vmatprep.subr.mxu0 0.0
        %2469 = vmatpush1.msra.mxu0 0.0
        %2470 = vmatprep.subr.mxu0 0.0
        %2471 = vmatpush1.msra.mxu0 0.0
        %2472 = vmatprep.subr.mxu0 0.0
        %2473 = vmatpush1.msra.mxu0 0.0
        %2474 = vmatprep.subr.mxu0 0.0
        %2475 = vmatpush1.msra.mxu0 0.0
        %2476 = vmatprep.subr.mxu0 0.0
        %2477 = vmatpush1.msra.mxu0 0.0
        %2478 = vmatprep.subr.mxu0 0.0
        %2479 = vmatpush1.msra.mxu0 0.0
        %2480 = vmatprep.subr.mxu0 0.0
        %2481 = vmatpush1.msra.mxu0 0.0
        %2482 = vmatprep.subr.mxu0 0.0
        %2483 = vmatpush1.msra.mxu0 0.0
        %2484 = vmatprep.subr.mxu0 0.0
        %2485 = vmatpush1.msra.mxu0 0.0
        %2486 = vmatprep.subr.mxu0 0.0
        %2487 = vmatpush1.msra.mxu0 0.0
        %2488 = vmatprep.subr.mxu0 0.0
        %2489 = vmatpush1.msra.mxu0 0.0
        %2490 = vmatprep.subr.mxu0 0.0
        %2491 = vmatpush1.msra.mxu0 0.0
        %2492 = vmatprep.subr.mxu0 0.0
        %2493 = vmatpush1.msra.mxu0 0.0
        %2494 = vmatprep.subr.mxu0 0.0
        %2495 = vmatpush1.msra.mxu0 0.0
        %2496 = vmatprep.mubr.f32.mxu0 0.0
        %2497 = vmatmul.mubr.f32.gmra.mrb[0].mxu0 %v2430
        %v2498 = vpop.f32.mrb[0].mxu0
        %v2499 = vadd.f32 0.0, %v2498
        %v2500 = vpop.f32.mrb[0].mxu0
        %2501 = vdwg.mxu0
        %2503 = vrot.lane.b32.xlu0 %v2169, 8
        %v2504 = vpop.permute.xlu0 %2503
        %2507 = vrot.lane.b32.xlu0 %v2334, 16
        %v2508 = vpop.permute.xlu0 %2507
        %2511 = vrot.lane.b32.xlu0 %v2499, 24
        %v2512 = vpop.permute.xlu0 %2511
        %v2514 = vsel %vm888, %v2004, %v2504
        %v2515 = vsel %vm1558, %v2514, %v2508
        %v2516 = vsel %vm1560, %v2515, %v2512
        %v2517 = vld [vmem:[%s10] sm:$0xff]
        %v2518 = vld [vmem:[%s10 + $0x8] sm:$0xff]
        %v2519 = vld [vmem:[%s10 + $0x10] sm:$0xff]
        %v2520 = vld [vmem:[%s10 + $0x18] sm:$0xff]
        %v2521 = vld [vmem:[%s11] sm:$0x1]
        %v2523 = vlaneseq
        %v2524 = vshrl.u32 %v2523, 7
        %v2525 = vsub.s32 0, %v2524
        %v2526 = vrot.slane %v2521, %v2525
        %v2529 = vsel %vm772, %v2516, 0
        %2531 = vmatprep.subr.mxu0 0.0
        %2532 = vmatpush1.msra.mxu0 %v2517
        %2533 = vmatprep.subr.mxu0 0.0
        %2534 = vmatpush1.msra.mxu0 %v2518
        %2535 = vmatprep.subr.mxu0 0.0
        %2536 = vmatpush1.msra.mxu0 %v2519
        %2537 = vmatprep.subr.mxu0 0.0
        %2538 = vmatpush1.msra.mxu0 %v2520
        %2539 = vmatprep.subr.mxu0 0.0
        %2540 = vmatpush1.msra.mxu0 0.0
        %2541 = vmatprep.subr.mxu0 0.0
        %2542 = vmatpush1.msra.mxu0 0.0
        %2543 = vmatprep.subr.mxu0 0.0
        %2544 = vmatpush1.msra.mxu0 0.0
        %2545 = vmatprep.subr.mxu0 0.0
        %2546 = vmatpush1.msra.mxu0 0.0
        %2547 = vmatprep.subr.mxu0 0.0
        %2548 = vmatpush1.msra.mxu0 0.0
        %2549 = vmatprep.subr.mxu0 0.0
        %2550 = vmatpush1.msra.mxu0 0.0
        %2551 = vmatprep.subr.mxu0 0.0
        %2552 = vmatpush1.msra.mxu0 0.0
        %2553 = vmatprep.subr.mxu0 0.0
        %2554 = vmatpush1.msra.mxu0 0.0
        %2555 = vmatprep.subr.mxu0 0.0
        %2556 = vmatpush1.msra.mxu0 0.0
        %2557 = vmatprep.subr.mxu0 0.0
        %2558 = vmatpush1.msra.mxu0 0.0
        %2559 = vmatprep.subr.mxu0 0.0
        %2560 = vmatpush1.msra.mxu0 0.0
        %2561 = vmatprep.subr.mxu0 0.0
        %2562 = vmatpush1.msra.mxu0 0.0
        %2563 = vmatprep.subr.mxu0 0.0
        %2564 = vmatpush1.msra.mxu0 0.0
        %2565 = vmatprep.subr.mxu0 0.0
        %2566 = vmatpush1.msra.mxu0 0.0
        %2567 = vmatprep.subr.mxu0 0.0
        %2568 = vmatpush1.msra.mxu0 0.0
        %2569 = vmatprep.subr.mxu0 0.0
        %2570 = vmatpush1.msra.mxu0 0.0
        %2571 = vmatprep.subr.mxu0 0.0
        %2572 = vmatpush1.msra.mxu0 0.0
        %2573 = vmatprep.subr.mxu0 0.0
        %2574 = vmatpush1.msra.mxu0 0.0
        %2575 = vmatprep.subr.mxu0 0.0
        %2576 = vmatpush1.msra.mxu0 0.0
        %2577 = vmatprep.subr.mxu0 0.0
        %2578 = vmatpush1.msra.mxu0 0.0
        %2579 = vmatprep.subr.mxu0 0.0
        %2580 = vmatpush1.msra.mxu0 0.0
        %2581 = vmatprep.subr.mxu0 0.0
        %2582 = vmatpush1.msra.mxu0 0.0
        %2583 = vmatprep.subr.mxu0 0.0
        %2584 = vmatpush1.msra.mxu0 0.0
        %2585 = vmatprep.subr.mxu0 0.0
        %2586 = vmatpush1.msra.mxu0 0.0
        %2587 = vmatprep.subr.mxu0 0.0
        %2588 = vmatpush1.msra.mxu0 0.0
        %2589 = vmatprep.subr.mxu0 0.0
        %2590 = vmatpush1.msra.mxu0 0.0
        %2591 = vmatprep.subr.mxu0 0.0
        %2592 = vmatpush1.msra.mxu0 0.0
        %2593 = vmatprep.subr.mxu0 0.0
        %2594 = vmatpush1.msra.mxu0 0.0
        %2595 = vmatprep.mubr.f32.mxu0 0.0
        %2596 = vmatmul.mubr.f32.gmra.mrb[0].mxu0 %v2529
        %v2597 = vpop.f32.mrb[0].mxu0
        %v2598 = vadd.f32 %v2526, %v2597
        %v2599 = vpop.f32.mrb[0].mxu0
        %2600 = vdwg.mxu0
        %v2601 = vadd.f32 %v1646, %v2598
        %v2602 = vld [vmem:[%s20] sm:$0x1]
        %v2603 = vld [vmem:[%s21] sm:$0x1]
        %v2604 = vsel %vm772, %v2601, 0.0
        %2605 = vadd.xlane.f32.xlu0 %v2604
        %v2606 = vpop.xlane.xlu0 %2605
        %v2607 = vmul.f32 %v2606, %v776
        %v2608 = vsub.f32 %v2601, %v2607
        %v2609 = vmul.f32 %v2608, %v2608
        %v2610 = vsel %vm772, %v2609, 0.0
        %2611 = vadd.xlane.f32.xlu0 %v2610
        %v2612 = vpop.xlane.xlu0 %2611
        %v2613 = vmul.f32 %v2612, %v776
        %v2614 = vadd.f32 %v2613, 1e-05
        %v2615 = vrsqrt.pop %v2614
        %v2616 = vmul.f32 %v2608, %v2615
        %v2618 = vlaneseq
        %v2619 = vshrl.u32 %v2618, 7
        %v2620 = vsub.s32 0, %v2619
        %v2621 = vrot.slane %v2602, %v2620
        %v2623 = vmul.f32 %v2616, %v2621
        %v2625 = vlaneseq
        %v2626 = vshrl.u32 %v2625, 7
        %v2627 = vsub.s32 0, %v2626
        %v2628 = vrot.slane %v2603, %v2627
        %v2630 = vadd.f32 %v2623, %v2628
        %v2631 = vld [vmem:[#allocation6] sm:$0xff]
        %v2632 = vld [vmem:[#allocation6 + $0x8] sm:$0xff]
        %v2633 = vld [vmem:[#allocation6 + $0x10] sm:$0xff]
        %v2634 = vld [vmem:[#allocation6 + $0x18] sm:$0xff]
        %v2635 = vld [vmem:[#allocation7] sm:$0x1]
        %v2637 = vlaneseq
        %v2638 = vshrl.u32 %v2637, 7
        %v2639 = vsub.s32 0, %v2638
        %v2640 = vrot.slane %v2635, %v2639
        %v2643 = vsel %vm772, %v2630, 0
        %2645 = vmatprep.subr.mxu0 0.0
        %2646 = vmatpush1.msra.mxu0 %v2631
        %2647 = vmatprep.subr.mxu0 0.0
        %2648 = vmatpush1.msra.mxu0 %v2632
        %2649 = vmatprep.subr.mxu0 0.0
        %2650 = vmatpush1.msra.mxu0 %v2633
        %2651 = vmatprep.subr.mxu0 0.0
        %2652 = vmatpush1.msra.mxu0 %v2634
        %2653 = vmatprep.subr.mxu0 0.0
        %2654 = vmatpush1.msra.mxu0 0.0
        %2655 = vmatprep.subr.mxu0 0.0
        %2656 = vmatpush1.msra.mxu0 0.0
        %2657 = vmatprep.subr.mxu0 0.0
        %2658 = vmatpush1.msra.mxu0 0.0
        %2659 = vmatprep.subr.mxu0 0.0
        %2660 = vmatpush1.msra.mxu0 0.0
        %2661 = vmatprep.subr.mxu0 0.0
        %2662 = vmatpush1.msra.mxu0 0.0
        %2663 = vmatprep.subr.mxu0 0.0
        %2664 = vmatpush1.msra.mxu0 0.0
        %2665 = vmatprep.subr.mxu0 0.0
        %2666 = vmatpush1.msra.mxu0 0.0
        %2667 = vmatprep.subr.mxu0 0.0
        %2668 = vmatpush1.msra.mxu0 0.0
        %2669 = vmatprep.subr.mxu0 0.0
        %2670 = vmatpush1.msra.mxu0 0.0
        %2671 = vmatprep.subr.mxu0 0.0
        %2672 = vmatpush1.msra.mxu0 0.0
        %2673 = vmatprep.subr.mxu0 0.0
        %2674 = vmatpush1.msra.mxu0 0.0
        %2675 = vmatprep.subr.mxu0 0.0
        %2676 = vmatpush1.msra.mxu0 0.0
        %2677 = vmatprep.subr.mxu0 0.0
        %2678 = vmatpush1.msra.mxu0 0.0
        %2679 = vmatprep.subr.mxu0 0.0
        %2680 = vmatpush1.msra.mxu0 0.0
        %2681 = vmatprep.subr.mxu0 0.0
        %2682 = vmatpush1.msra.mxu0 0.0
        %2683 = vmatprep.subr.mxu0 0.0
        %2684 = vmatpush1.msra.mxu0 0.0
        %2685 = vmatprep.subr.mxu0 0.0
        %2686 = vmatpush1.msra.mxu0 0.0
        %2687 = vmatprep.subr.mxu0 0.0
        %2688 = vmatpush1.msra.mxu0 0.0
        %2689 = vmatprep.subr.mxu0 0.0
        %2690 = vmatpush1.msra.mxu0 0.0
        %2691 = vmatprep.subr.mxu0 0.0
        %2692 = vmatpush1.msra.mxu0 0.0
        %2693 = vmatprep.subr.mxu0 0.0
        %2694 = vmatpush1.msra.mxu0 0.0
        %2695 = vmatprep.subr.mxu0 0.0
        %2696 = vmatpush1.msra.mxu0 0.0
        %2697 = vmatprep.subr.mxu0 0.0
        %2698 = vmatpush1.msra.mxu0 0.0
        %2699 = vmatprep.subr.mxu0 0.0
        %2700 = vmatpush1.msra.mxu0 0.0
        %2701 = vmatprep.subr.mxu0 0.0
        %2702 = vmatpush1.msra.mxu0 0.0
        %2703 = vmatprep.subr.mxu0 0.0
        %2704 = vmatpush1.msra.mxu0 0.0
        %2705 = vmatprep.subr.mxu0 0.0
        %2706 = vmatpush1.msra.mxu0 0.0
        %2707 = vmatprep.subr.mxu0 0.0
        %2708 = vmatpush1.msra.mxu0 0.0
        %2709 = vmatprep.mubr.f32.mxu0 0.0
        %2710 = vmatmul.mubr.f32.gmra.mrb[0].mxu0 %v2643
        %v2711 = vpop.f32.mrb[0].mxu0
        %v2712 = vadd.f32 %v2640, %v2711
        %v2713 = vpop.f32.mrb[0].mxu0
        %2714 = vdwg.mxu0
        %v2715 = vmul.f32 %v2712, 0.5
        %v2716 = vmul.f32 %v2712, 0.70710677
        %v2717 = vand.u32 2147483647, %v2716
        %v2718 = vmul.f32 %v2717, 0.3275911
        %v2719 = vadd.f32 %v2718, 1.0
        %v2720 = vrcp.pop %v2719
        %v2721 = vmul.f32 %v2720, 1.0614054
        %v2722 = vadd.f32 %v2721, -1.4531521
        %v2723 = vmul.f32 %v2722, %v2720
        %v2724 = vadd.f32 %v2723, 1.4214138
        %v2725 = vmul.f32 %v2724, %v2720
        %v2726 = vadd.f32 %v2725, -0.28449672
        %v2727 = vmul.f32 %v2726, %v2720
        %v2728 = vadd.f32 %v2727, 0.2548296
        %v2729 = vmul.f32 %v2728, %v2720
        %v2730 = vsub.f32 0.0, %v2717
        %v2731 = vmul.f32 %v2730, %v2717
        %v2732 = vmul.f32 %v2731, 1.442695
        %v2733 = vpow.pop %v2732
        %v2734 = vmul.f32 %v2729, %v2733
        %v2735 = vsub.f32 1.0, %v2734
        %vm2736 = vcmp.lt.f32.partialorder %v2716, 0.0
        %v2737 = vsub.f32 0.0, %v2735
        %v2738 = vsel %vm2736, %v2737, %v2735
        %v2739 = vadd.f32 %v2738, 1.0
        %v2740 = vmul.f32 %v2715, %v2739
        %v2741 = vld [vmem:[%s14] sm:$0xff]
        %v2742 = vld [vmem:[%s14 + $0x8] sm:$0xff]
        %v2743 = vld [vmem:[%s14 + $0x10] sm:$0xff]
        %v2744 = vld [vmem:[%s14 + $0x18] sm:$0xff]
        %v2745 = vld [vmem:[%s14 + $0x20] sm:$0xff]
        %v2746 = vld [vmem:[%s14 + $0x28] sm:$0xff]
        %v2747 = vld [vmem:[%s14 + $0x30] sm:$0xff]
        %v2748 = vld [vmem:[%s14 + $0x38] sm:$0xff]
        %v2749 = vld [vmem:[%s14 + $0x40] sm:$0xff]
        %v2750 = vld [vmem:[%s14 + $0x48] sm:$0xff]
        %v2751 = vld [vmem:[%s14 + $0x50] sm:$0xff]
        %v2752 = vld [vmem:[%s14 + $0x58] sm:$0xff]
        %v2753 = vld [vmem:[%s14 + $0x60] sm:$0xff]
        %v2754 = vld [vmem:[%s14 + $0x68] sm:$0xff]
        %v2755 = vld [vmem:[%s14 + $0x70] sm:$0xff]
        %v2756 = vld [vmem:[%s14 + $0x78] sm:$0xff]
        %v2757 = vld [vmem:[#allocation9] sm:$0x1]
        %v2759 = vlaneseq
        %v2760 = vshrl.u32 %v2759, 7
        %v2761 = vsub.s32 0, %v2760
        %v2762 = vrot.slane %v2757, %v2761
        %2764 = vmatprep.subr.mxu0 0.0
        %2765 = vmatpush1.msra.mxu0 %v2741
        %2766 = vmatprep.subr.mxu0 0.0
        %2767 = vmatpush1.msra.mxu0 %v2742
        %2768 = vmatprep.subr.mxu0 0.0
        %2769 = vmatpush1.msra.mxu0 %v2743
        %2770 = vmatprep.subr.mxu0 0.0
        %2771 = vmatpush1.msra.mxu0 %v2744
        %2772 = vmatprep.subr.mxu0 0.0
        %2773 = vmatpush1.msra.mxu0 %v2745
        %2774 = vmatprep.subr.mxu0 0.0
        %2775 = vmatpush1.msra.mxu0 %v2746
        %2776 = vmatprep.subr.mxu0 0.0
        %2777 = vmatpush1.msra.mxu0 %v2747
        %2778 = vmatprep.subr.mxu0 0.0
        %2779 = vmatpush1.msra.mxu0 %v2748
        %2780 = vmatprep.subr.mxu0 0.0
        %2781 = vmatpush1.msra.mxu0 %v2749
        %2782 = vmatprep.subr.mxu0 0.0
        %2783 = vmatpush1.msra.mxu0 %v2750
        %2784 = vmatprep.subr.mxu0 0.0
        %2785 = vmatpush1.msra.mxu0 %v2751
        %2786 = vmatprep.subr.mxu0 0.0
        %2787 = vmatpush1.msra.mxu0 %v2752
        %2788 = vmatprep.subr.mxu0 0.0
        %2789 = vmatpush1.msra.mxu0 %v2753
        %2790 = vmatprep.subr.mxu0 0.0
        %2791 = vmatpush1.msra.mxu0 %v2754
        %2792 = vmatprep.subr.mxu0 0.0
        %2793 = vmatpush1.msra.mxu0 %v2755
        %2794 = vmatprep.subr.mxu0 0.0
        %2795 = vmatpush1.msra.mxu0 %v2756
        %2796 = vmatprep.subr.mxu0 0.0
        %2797 = vmatpush1.msra.mxu0 0.0
        %2798 = vmatprep.subr.mxu0 0.0
        %2799 = vmatpush1.msra.mxu0 0.0
        %2800 = vmatprep.subr.mxu0 0.0
        %2801 = vmatpush1.msra.mxu0 0.0
        %2802 = vmatprep.subr.mxu0 0.0
        %2803 = vmatpush1.msra.mxu0 0.0
        %2804 = vmatprep.subr.mxu0 0.0
        %2805 = vmatpush1.msra.mxu0 0.0
        %2806 = vmatprep.subr.mxu0 0.0
        %2807 = vmatpush1.msra.mxu0 0.0
        %2808 = vmatprep.subr.mxu0 0.0
        %2809 = vmatpush1.msra.mxu0 0.0
        %2810 = vmatprep.subr.mxu0 0.0
        %2811 = vmatpush1.msra.mxu0 0.0
        %2812 = vmatprep.subr.mxu0 0.0
        %2813 = vmatpush1.msra.mxu0 0.0
        %2814 = vmatprep.subr.mxu0 0.0
        %2815 = vmatpush1.msra.mxu0 0.0
        %2816 = vmatprep.subr.mxu0 0.0
        %2817 = vmatpush1.msra.mxu0 0.0
        %2818 = vmatprep.subr.mxu0 0.0
        %2819 = vmatpush1.msra.mxu0 0.0
        %2820 = vmatprep.subr.mxu0 0.0
        %2821 = vmatpush1.msra.mxu0 0.0
        %2822 = vmatprep.subr.mxu0 0.0
        %2823 = vmatpush1.msra.mxu0 0.0
        %2824 = vmatprep.subr.mxu0 0.0
        %2825 = vmatpush1.msra.mxu0 0.0
        %2826 = vmatprep.subr.mxu0 0.0
        %2827 = vmatpush1.msra.mxu0 0.0
        %2828 = vmatprep.mubr.f32.mxu0 0.0
        %2829 = vmatmul.mubr.f32.gmra.mrb[0].mxu0 %v2740
        %v2830 = vpop.f32.mrb[0].mxu0
        %v2831 = vadd.f32 %v2762, %v2830
        %v2832 = vpop.f32.mrb[0].mxu0
        %2833 = vdwg.mxu0
        %v2834 = vadd.f32 %v2601, %v2831
        %2835 = vst.msk [vmem:[%s767] sm:$0xff] %vm772, %v2834
        %p2836 = scmp.lt.s32.totalorder %s38, 1
        %s2837 = scalar_select %p2836, %s38, 1
        %s2838 = smul.addr %s2837, 8
        %s2839 = scalar_lea.vmem %s22, %s2838
        // Predicated region
        $region129: #{trans_module.2} parent=107 // pred_check
          %p2840 = pneg %p528
        $region130: #{trans_module.2} parent=107 // pred_check_branch
          %2842 = sbr.rel (%p2840) target = $region132
        $region131: #{trans_module.2} parent=107 // pred_region
          _
        $region132: #{trans_module.2} parent=107 // pred_fallthru
          _
      $region108: #{trans_module.2} parent=5 // pred_fallthru
        _
      %p2843 = scmp.le.s32.totalorder 2, %s33
      // Predicated region
      $region133: #{trans_module.2} parent=5 // pred_check
        %p2844 = pneg %p2843
      $region134: #{trans_module.2} parent=5 // pred_check_branch
        %2846 = sbr.rel (%p2844) target = $region136
      $region135: #{trans_module.2} parent=5 // pred_region
        %s2847 = ssub.s32 %s33, 2
        // Predicated region
        $region137: #{trans_module.2} parent=135 // pred_check
          %p2848 = pneg %p534
        $region138: #{trans_module.2} parent=135 // pred_check_branch
          %2850 = sbr.rel (%p2848) target = $region140
        $region139: #{trans_module.2} parent=135 // pred_region
          %p2851 = scmp.lt.s32.totalorder %s39, 1
          %s2852 = scalar_select %p2851, %s39, 1
          %s2853 = smul.addr %s2852, 8
          %s2854 = scalar_lea.vmem %s22, %s2853
        $region140: #{trans_module.2} parent=135 // pred_fallthru
          _
      $region136: #{trans_module.2} parent=5 // pred_fallthru
        _
    $region6: #{trans_module.2} parent=1 // loop_footer
      %s37 = sadd.s32 1, %s33
    $region7: #{trans_module.2} parent=1 // loop_footer_branch
      %32 = sbr.rel target = $region3
    $region8: #{trans_module.2} parent=1 // loop_exit
      _
    %2855 = vsyncpa [#allocation3], 1
    %s2856 = scalar_lea.sflag [#allocation3], 1
    %2857 = vsyncpa %s2856, 1
    %2858 = vsyncpa [#allocation5], 1
    %2859 = vsyncpa [#allocation8], 1

// kernel: trans_module.3
$region0: #{trans_module.3}
  #allocation0 [shape = 'u32[]', space=smem, size = 0x4, offset = 0x4, fixed_abs, tag = 'smem constant byte address 0x4 - core index']
  #allocation1 [shape = 'u32[144,128]{1,0:T(1,128)}', space=vmem, size = 0x12000, scoped, tag = 'internal scratch']
  %s0 = inlined_call_operand.vmem [shape: f32[2,8,32], index: 0, kind: input, shape index: {}]
  %s1 = inlined_call_operand.vmem [shape: f32[2,8,32], index: 1, kind: input, shape index: {}]
  %s2 = inlined_call_operand.vmem [shape: f32[32,96], index: 2, kind: input, shape index: {}]
  %s3 = inlined_call_operand.vmem [shape: f32[1,96], index: 3, kind: input, shape index: {}]
  %s4 = inlined_call_operand.vmem [shape: f32[32,32], index: 4, kind: input, shape index: {}]
  %s5 = inlined_call_operand.vmem [shape: f32[1,32], index: 5, kind: input, shape index: {}]
  %s6 = inlined_call_operand.vmem [shape: f32[32,32], index: 6, kind: input, shape index: {}]
  %s7 = inlined_call_operand.vmem [shape: f32[1,32], index: 7, kind: input, shape index: {}]
  %s8 = inlined_call_operand.vmem [shape: f32[32,64], index: 8, kind: input, shape index: {}]
  %s9 = inlined_call_operand.vmem [shape: f32[1,64], index: 9, kind: input, shape index: {}]
  %s10 = inlined_call_operand.vmem [shape: f32[32,32], index: 10, kind: input, shape index: {}]
  %s11 = inlined_call_operand.vmem [shape: f32[1,32], index: 11, kind: input, shape index: {}]
  %s12 = inlined_call_operand.vmem [shape: f32[32,128], index: 12, kind: input, shape index: {}]
  %s13 = inlined_call_operand.vmem [shape: f32[1,128], index: 13, kind: input, shape index: {}]
  %s14 = inlined_call_operand.vmem [shape: f32[128,32], index: 14, kind: input, shape index: {}]
  %s15 = inlined_call_operand.vmem [shape: f32[1,32], index: 15, kind: input, shape index: {}]
  %s16 = inlined_call_operand.vmem [shape: f32[1,32], index: 16, kind: input, shape index: {}]
  %s17 = inlined_call_operand.vmem [shape: f32[1,32], index: 17, kind: input, shape index: {}]
  %s18 = inlined_call_operand.vmem [shape: f32[1,32], index: 18, kind: input, shape index: {}]
  %s19 = inlined_call_operand.vmem [shape: f32[1,32], index: 19, kind: input, shape index: {}]
  %s20 = inlined_call_operand.vmem [shape: f32[1,32], index: 20, kind: input, shape index: {}]
  %s21 = inlined_call_operand.vmem [shape: f32[1,32], index: 21, kind: input, shape index: {}]
  %s22 = inlined_call_operand.hbm [shape: f32[2,8,32], index: 22, kind: output, shape index: {}]
  %s23 = sld [smem:[#allocation0]]
  $region121: #{trans_module.3} parent=0
    _
  %s25 = ssub.s32 1, %s23
  %s26 = scalar_select 0, %s25, %s23
  $region1: #{trans_module.3} parent=0
    #allocation2 [shape = 'u8[8192]{0}', space=vmem, size = 0x2000, scoped, tag = 'output window, operand 0']
    #allocation3 [shape = 's32[2]{0}', space=sflag, size = 0x8, scoped, tag = 'scoped memory for trans_module.3']
    %27 = vsyncpa [#allocation3], 0
    %s28 = scalar_lea.sflag [#allocation3], 1
    %29 = vsyncpa %s28, 0
    loop: start=0, step=1, limit=4
    $region2: #{trans_module.3} parent=1 // loop_pre_header
      _
    $region3: #{trans_module.3} parent=1 // loop_header
      %s31 = sphi 0, %s35
      %p32 = scmp.ge.s32.totalorder %s31, 4
      %s41 = sphi 0, %s43
      %s44 = sphi 0, %s41
      %s45 = sphi 0, %s44
      %s61 = sphi 0, %s45
      %s67 = sphi 0, %s69
      %s70 = sphi 0, %s67
      %s71 = sphi 0, %s70
      %s87 = sphi 0, %s71
      %s91 = sphi 0, %s91
      %s93 = sphi 0, %s91
      %s94 = sphi 0, %s93
      %s108 = sphi 0, %s94
      %s112 = sphi 0, %s112
      %s114 = sphi 0, %s112
      %s115 = sphi 0, %s114
      %s129 = sphi 0, %s115
      %s133 = sphi 0, %s133
      %s135 = sphi 0, %s133
      %s136 = sphi 0, %s135
      %s150 = sphi 0, %s136
      %s154 = sphi 0, %s154
      %s156 = sphi 0, %s154
      %s157 = sphi 0, %s156
      %s171 = sphi 0, %s157
      %s175 = sphi 0, %s175
      %s177 = sphi 0, %s175
      %s178 = sphi 0, %s177
      %s192 = sphi 0, %s178
      %s196 = sphi 0, %s196
      %s198 = sphi 0, %s196
      %s199 = sphi 0, %s198
      %s213 = sphi 0, %s199
      %s217 = sphi 0, %s217
      %s219 = sphi 0, %s217
      %s220 = sphi 0, %s219
      %s234 = sphi 0, %s220
      %s238 = sphi 0, %s238
      %s240 = sphi 0, %s238
      %s241 = sphi 0, %s240
      %s255 = sphi 0, %s241
      %s259 = sphi 0, %s259
      %s261 = sphi 0, %s259
      %s262 = sphi 0, %s261
      %s276 = sphi 0, %s262
      %s280 = sphi 0, %s280
      %s282 = sphi 0, %s280
      %s283 = sphi 0, %s282
      %s297 = sphi 0, %s283
      %s301 = sphi 0, %s301
      %s303 = sphi 0, %s301
      %s304 = sphi 0, %s303
      %s318 = sphi 0, %s304
      %s322 = sphi 0, %s322
      %s324 = sphi 0, %s322
      %s325 = sphi 0, %s324
      %s339 = sphi 0, %s325
      %s343 = sphi 0, %s343
      %s345 = sphi 0, %s343
      %s346 = sphi 0, %s345
      %s360 = sphi 0, %s346
      %s364 = sphi 0, %s364
      %s366 = sphi 0, %s364
      %s367 = sphi 0, %s366
      %s381 = sphi 0, %s367
      %s385 = sphi 0, %s385
      %s387 = sphi 0, %s385
      %s388 = sphi 0, %s387
      %s402 = sphi 0, %s388
      %s406 = sphi 0, %s406
      %s408 = sphi 0, %s406
      %s409 = sphi 0, %s408
      %s423 = sphi 0, %s409
      %s427 = sphi 0, %s427
      %s429 = sphi 0, %s427
      %s430 = sphi 0, %s429
      %s444 = sphi 0, %s430
      %s448 = sphi 0, %s448
      %s450 = sphi 0, %s448
      %s451 = sphi 0, %s450
      %s465 = sphi 0, %s451
      %s469 = sphi 0, %s469
      %s471 = sphi 0, %s469
      %s472 = sphi 0, %s471
      %s486 = sphi 0, %s472
      %s490 = sphi 0, %s490
      %s492 = sphi 0, %s490
      %s493 = sphi 0, %s492
      %s507 = sphi 0, %s493
      %s513 = sphi 0, %s515
      %s516 = sphi 0, %s513
      %s517 = sphi 0, %s516
      %s533 = sphi 0, %s517
    $region4: #{trans_module.3} parent=1 // loop_header_branch
      %34 = sbr.rel (%p32) target = $region8
    $region5: #{trans_module.3} parent=1 // loop_body
      %s36 = ssub.s32 %s31, 1
      %s37 = ssub.s32 %s31, 2
      %s38 = sadd.s32 %s31, 1
      %s39 = ssub.s32 %s31, %s38
      %p40 = scmp.eq.s32.totalorder %s39, 0
      %s42 = sadd.s32 %s41, 1
      %s43 = scalar_select %p40, %s41, %s42
      %p46 = pneg %p40
      %p47 = scmp.eq.s32.totalorder %s31, 1
      %p48 = por %p46, %p47
      %p49 = scmp.ne.s32.totalorder %s41, %s44
      %p50 = scmp.eq.s32.totalorder %s31, 0
      %p51 = por %p49, %p50
      %p52 = scmp.ne.s32.totalorder %s41, %s44
      %p53 = scmp.eq.s32.totalorder %s36, 1
      %p54 = por %p52, %p53
      %p55 = scmp.ne.s32.totalorder %s44, %s45
      %p56 = scmp.eq.s32.totalorder %s36, 0
      %p57 = por %p55, %p56
      %p58 = scmp.ne.s32.totalorder %s44, %s45
      %p59 = scmp.eq.s32.totalorder %s37, 1
      %p60 = por %p58, %p59
      %p62 = scmp.ne.s32.totalorder %s45, %s61
      %p63 = scmp.eq.s32.totalorder %s37, 0
      %p64 = por %p62, %p63
      %s65 = ssub.s32 %s31, %s38
      %p66 = scmp.eq.s32.totalorder %s65, 0
      %s68 = sadd.s32 %s67, 1
      %s69 = scalar_select %p66, %s67, %s68
      %p72 = pneg %p66
      %p73 = scmp.eq.s32.totalorder %s31, 1
      %p74 = por %p72, %p73
      %p75 = scmp.ne.s32.totalorder %s67, %s70
      %p76 = scmp.eq.s32.totalorder %s31, 0
      %p77 = por %p75, %p76
      %p78 = scmp.ne.s32.totalorder %s67, %s70
      %p79 = scmp.eq.s32.totalorder %s36, 1
      %p80 = por %p78, %p79
      %p81 = scmp.ne.s32.totalorder %s70, %s71
      %p82 = scmp.eq.s32.totalorder %s36, 0
      %p83 = por %p81, %p82
      %p84 = scmp.ne.s32.totalorder %s70, %s71
      %p85 = scmp.eq.s32.totalorder %s37, 1
      %p86 = por %p84, %p85
      %p88 = scmp.ne.s32.totalorder %s71, %s87
      %p89 = scmp.eq.s32.totalorder %s37, 0
      %p90 = por %p88, %p89
      %s92 = sadd.s32 %s91, 1
      %p95 = scmp.eq.s32.totalorder %s31, 1
      %p96 = scmp.ne.s32.totalorder %s91, %s93
      %p97 = scmp.eq.s32.totalorder %s31, 0
      %p98 = por %p96, %p97
      %p99 = scmp.ne.s32.totalorder %s91, %s93
      %p100 = scmp.eq.s32.totalorder %s36, 1
      %p101 = por %p99, %p100
      %p102 = scmp.ne.s32.totalorder %s93, %s94
      %p103 = scmp.eq.s32.totalorder %s36, 0
      %p104 = por %p102, %p103
      %p105 = scmp.ne.s32.totalorder %s93, %s94
      %p106 = scmp.eq.s32.totalorder %s37, 1
      %p107 = por %p105, %p106
      %p109 = scmp.ne.s32.totalorder %s94, %s108
      %p110 = scmp.eq.s32.totalorder %s37, 0
      %p111 = por %p109, %p110
      %s113 = sadd.s32 %s112, 1
      %p116 = scmp.eq.s32.totalorder %s31, 1
      %p117 = scmp.ne.s32.totalorder %s112, %s114
      %p118 = scmp.eq.s32.totalorder %s31, 0
      %p119 = por %p117, %p118
      %p120 = scmp.ne.s32.totalorder %s112, %s114
      %p121 = scmp.eq.s32.totalorder %s36, 1
      %p122 = por %p120, %p121
      %p123 = scmp.ne.s32.totalorder %s114, %s115
      %p124 = scmp.eq.s32.totalorder %s36, 0
      %p125 = por %p123, %p124
      %p126 = scmp.ne.s32.totalorder %s114, %s115
      %p127 = scmp.eq.s32.totalorder %s37, 1
      %p128 = por %p126, %p127
      %p130 = scmp.ne.s32.totalorder %s115, %s129
      %p131 = scmp.eq.s32.totalorder %s37, 0
      %p132 = por %p130, %p131
      %s134 = sadd.s32 %s133, 1
      %p137 = scmp.eq.s32.totalorder %s31, 1
      %p138 = scmp.ne.s32.totalorder %s133, %s135
      %p139 = scmp.eq.s32.totalorder %s31, 0
      %p140 = por %p138, %p139
      %p141 = scmp.ne.s32.totalorder %s133, %s135
      %p142 = scmp.eq.s32.totalorder %s36, 1
      %p143 = por %p141, %p142
      %p144 = scmp.ne.s32.totalorder %s135, %s136
      %p145 = scmp.eq.s32.totalorder %s36, 0
      %p146 = por %p144, %p145
      %p147 = scmp.ne.s32.totalorder %s135, %s136
      %p148 = scmp.eq.s32.totalorder %s37, 1
      %p149 = por %p147, %p148
      %p151 = scmp.ne.s32.totalorder %s136, %s150
      %p152 = scmp.eq.s32.totalorder %s37, 0
      %p153 = por %p151, %p152
      %s155 = sadd.s32 %s154, 1
      %p158 = scmp.eq.s32.totalorder %s31, 1
      %p159 = scmp.ne.s32.totalorder %s154, %s156
      %p160 = scmp.eq.s32.totalorder %s31, 0
      %p161 = por %p159, %p160
      %p162 = scmp.ne.s32.totalorder %s154, %s156
      %p163 = scmp.eq.s32.totalorder %s36, 1
      %p164 = por %p162, %p163
      %p165 = scmp.ne.s32.totalorder %s156, %s157
      %p166 = scmp.eq.s32.totalorder %s36, 0
      %p167 = por %p165, %p166
      %p168 = scmp.ne.s32.totalorder %s156, %s157
      %p169 = scmp.eq.s32.totalorder %s37, 1
      %p170 = por %p168, %p169
      %p172 = scmp.ne.s32.totalorder %s157, %s171
      %p173 = scmp.eq.s32.totalorder %s37, 0
      %p174 = por %p172, %p173
      %s176 = sadd.s32 %s175, 1
      %p179 = scmp.eq.s32.totalorder %s31, 1
      %p180 = scmp.ne.s32.totalorder %s175, %s177
      %p181 = scmp.eq.s32.totalorder %s31, 0
      %p182 = por %p180, %p181
      %p183 = scmp.ne.s32.totalorder %s175, %s177
      %p184 = scmp.eq.s32.totalorder %s36, 1
      %p185 = por %p183, %p184
      %p186 = scmp.ne.s32.totalorder %s177, %s178
      %p187 = scmp.eq.s32.totalorder %s36, 0
      %p188 = por %p186, %p187
      %p189 = scmp.ne.s32.totalorder %s177, %s178
      %p190 = scmp.eq.s32.totalorder %s37, 1
      %p191 = por %p189, %p190
      %p193 = scmp.ne.s32.totalorder %s178, %s192
      %p194 = scmp.eq.s32.totalorder %s37, 0
      %p195 = por %p193, %p194
      %s197 = sadd.s32 %s196, 1
      %p200 = scmp.eq.s32.totalorder %s31, 1
      %p201 = scmp.ne.s32.totalorder %s196, %s198
      %p202 = scmp.eq.s32.totalorder %s31, 0
      %p203 = por %p201, %p202
      %p204 = scmp.ne.s32.totalorder %s196, %s198
      %p205 = scmp.eq.s32.totalorder %s36, 1
      %p206 = por %p204, %p205
      %p207 = scmp.ne.s32.totalorder %s198, %s199
      %p208 = scmp.eq.s32.totalorder %s36, 0
      %p209 = por %p207, %p208
      %p210 = scmp.ne.s32.totalorder %s198, %s199
      %p211 = scmp.eq.s32.totalorder %s37, 1
      %p212 = por %p210, %p211
      %p214 = scmp.ne.s32.totalorder %s199, %s213
      %p215 = scmp.eq.s32.totalorder %s37, 0
      %p216 = por %p214, %p215
      %s218 = sadd.s32 %s217, 1
      %p221 = scmp.eq.s32.totalorder %s31, 1
      %p222 = scmp.ne.s32.totalorder %s217, %s219
      %p223 = scmp.eq.s32.totalorder %s31, 0
      %p224 = por %p222, %p223
      %p225 = scmp.ne.s32.totalorder %s217, %s219
      %p226 = scmp.eq.s32.totalorder %s36, 1
      %p227 = por %p225, %p226
      %p228 = scmp.ne.s32.totalorder %s219, %s220
      %p229 = scmp.eq.s32.totalorder %s36, 0
      %p230 = por %p228, %p229
      %p231 = scmp.ne.s32.totalorder %s219, %s220
      %p232 = scmp.eq.s32.totalorder %s37, 1
      %p233 = por %p231, %p232
      %p235 = scmp.ne.s32.totalorder %s220, %s234
      %p236 = scmp.eq.s32.totalorder %s37, 0
      %p237 = por %p235, %p236
      %s239 = sadd.s32 %s238, 1
      %p242 = scmp.eq.s32.totalorder %s31, 1
      %p243 = scmp.ne.s32.totalorder %s238, %s240
      %p244 = scmp.eq.s32.totalorder %s31, 0
      %p245 = por %p243, %p244
      %p246 = scmp.ne.s32.totalorder %s238, %s240
      %p247 = scmp.eq.s32.totalorder %s36, 1
      %p248 = por %p246, %p247
      %p249 = scmp.ne.s32.totalorder %s240, %s241
      %p250 = scmp.eq.s32.totalorder %s36, 0
      %p251 = por %p249, %p250
      %p252 = scmp.ne.s32.totalorder %s240, %s241
      %p253 = scmp.eq.s32.totalorder %s37, 1
      %p254 = por %p252, %p253
      %p256 = scmp.ne.s32.totalorder %s241, %s255
      %p257 = scmp.eq.s32.totalorder %s37, 0
      %p258 = por %p256, %p257
      %s260 = sadd.s32 %s259, 1
      %p263 = scmp.eq.s32.totalorder %s31, 1
      %p264 = scmp.ne.s32.totalorder %s259, %s261
      %p265 = scmp.eq.s32.totalorder %s31, 0
      %p266 = por %p264, %p265
      %p267 = scmp.ne.s32.totalorder %s259, %s261
      %p268 = scmp.eq.s32.totalorder %s36, 1
      %p269 = por %p267, %p268
      %p270 = scmp.ne.s32.totalorder %s261, %s262
      %p271 = scmp.eq.s32.totalorder %s36, 0
      %p272 = por %p270, %p271
      %p273 = scmp.ne.s32.totalorder %s261, %s262
      %p274 = scmp.eq.s32.totalorder %s37, 1
      %p275 = por %p273, %p274
      %p277 = scmp.ne.s32.totalorder %s262, %s276
      %p278 = scmp.eq.s32.totalorder %s37, 0
      %p279 = por %p277, %p278
      %s281 = sadd.s32 %s280, 1
      %p284 = scmp.eq.s32.totalorder %s31, 1
      %p285 = scmp.ne.s32.totalorder %s280, %s282
      %p286 = scmp.eq.s32.totalorder %s31, 0
      %p287 = por %p285, %p286
      %p288 = scmp.ne.s32.totalorder %s280, %s282
      %p289 = scmp.eq.s32.totalorder %s36, 1
      %p290 = por %p288, %p289
      %p291 = scmp.ne.s32.totalorder %s282, %s283
      %p292 = scmp.eq.s32.totalorder %s36, 0
      %p293 = por %p291, %p292
      %p294 = scmp.ne.s32.totalorder %s282, %s283
      %p295 = scmp.eq.s32.totalorder %s37, 1
      %p296 = por %p294, %p295
      %p298 = scmp.ne.s32.totalorder %s283, %s297
      %p299 = scmp.eq.s32.totalorder %s37, 0
      %p300 = por %p298, %p299
      %s302 = sadd.s32 %s301, 1
      %p305 = scmp.eq.s32.totalorder %s31, 1
      %p306 = scmp.ne.s32.totalorder %s301, %s303
      %p307 = scmp.eq.s32.totalorder %s31, 0
      %p308 = por %p306, %p307
      %p309 = scmp.ne.s32.totalorder %s301, %s303
      %p310 = scmp.eq.s32.totalorder %s36, 1
      %p311 = por %p309, %p310
      %p312 = scmp.ne.s32.totalorder %s303, %s304
      %p313 = scmp.eq.s32.totalorder %s36, 0
      %p314 = por %p312, %p313
      %p315 = scmp.ne.s32.totalorder %s303, %s304
      %p316 = scmp.eq.s32.totalorder %s37, 1
      %p317 = por %p315, %p316
      %p319 = scmp.ne.s32.totalorder %s304, %s318
      %p320 = scmp.eq.s32.totalorder %s37, 0
      %p321 = por %p319, %p320
      %s323 = sadd.s32 %s322, 1
      %p326 = scmp.eq.s32.totalorder %s31, 1
      %p327 = scmp.ne.s32.totalorder %s322, %s324
      %p328 = scmp.eq.s32.totalorder %s31, 0
      %p329 = por %p327, %p328
      %p330 = scmp.ne.s32.totalorder %s322, %s324
      %p331 = scmp.eq.s32.totalorder %s36, 1
      %p332 = por %p330, %p331
      %p333 = scmp.ne.s32.totalorder %s324, %s325
      %p334 = scmp.eq.s32.totalorder %s36, 0
      %p335 = por %p333, %p334
      %p336 = scmp.ne.s32.totalorder %s324, %s325
      %p337 = scmp.eq.s32.totalorder %s37, 1
      %p338 = por %p336, %p337
      %p340 = scmp.ne.s32.totalorder %s325, %s339
      %p341 = scmp.eq.s32.totalorder %s37, 0
      %p342 = por %p340, %p341
      %s344 = sadd.s32 %s343, 1
      %p347 = scmp.eq.s32.totalorder %s31, 1
      %p348 = scmp.ne.s32.totalorder %s343, %s345
      %p349 = scmp.eq.s32.totalorder %s31, 0
      %p350 = por %p348, %p349
      %p351 = scmp.ne.s32.totalorder %s343, %s345
      %p352 = scmp.eq.s32.totalorder %s36, 1
      %p353 = por %p351, %p352
      %p354 = scmp.ne.s32.totalorder %s345, %s346
      %p355 = scmp.eq.s32.totalorder %s36, 0
      %p356 = por %p354, %p355
      %p357 = scmp.ne.s32.totalorder %s345, %s346
      %p358 = scmp.eq.s32.totalorder %s37, 1
      %p359 = por %p357, %p358
      %p361 = scmp.ne.s32.totalorder %s346, %s360
      %p362 = scmp.eq.s32.totalorder %s37, 0
      %p363 = por %p361, %p362
      %s365 = sadd.s32 %s364, 1
      %p368 = scmp.eq.s32.totalorder %s31, 1
      %p369 = scmp.ne.s32.totalorder %s364, %s366
      %p370 = scmp.eq.s32.totalorder %s31, 0
      %p371 = por %p369, %p370
      %p372 = scmp.ne.s32.totalorder %s364, %s366
      %p373 = scmp.eq.s32.totalorder %s36, 1
      %p374 = por %p372, %p373
      %p375 = scmp.ne.s32.totalorder %s366, %s367
      %p376 = scmp.eq.s32.totalorder %s36, 0
      %p377 = por %p375, %p376
      %p378 = scmp.ne.s32.totalorder %s366, %s367
      %p379 = scmp.eq.s32.totalorder %s37, 1
      %p380 = por %p378, %p379
      %p382 = scmp.ne.s32.totalorder %s367, %s381
      %p383 = scmp.eq.s32.totalorder %s37, 0
      %p384 = por %p382, %p383
      %s386 = sadd.s32 %s385, 1
      %p389 = scmp.eq.s32.totalorder %s31, 1
      %p390 = scmp.ne.s32.totalorder %s385, %s387
      %p391 = scmp.eq.s32.totalorder %s31, 0
      %p392 = por %p390, %p391
      %p393 = scmp.ne.s32.totalorder %s385, %s387
      %p394 = scmp.eq.s32.totalorder %s36, 1
      %p395 = por %p393, %p394
      %p396 = scmp.ne.s32.totalorder %s387, %s388
      %p397 = scmp.eq.s32.totalorder %s36, 0
      %p398 = por %p396, %p397
      %p399 = scmp.ne.s32.totalorder %s387, %s388
      %p400 = scmp.eq.s32.totalorder %s37, 1
      %p401 = por %p399, %p400
      %p403 = scmp.ne.s32.totalorder %s388, %s402
      %p404 = scmp.eq.s32.totalorder %s37, 0
      %p405 = por %p403, %p404
      %s407 = sadd.s32 %s406, 1
      %p410 = scmp.eq.s32.totalorder %s31, 1
      %p411 = scmp.ne.s32.totalorder %s406, %s408
      %p412 = scmp.eq.s32.totalorder %s31, 0
      %p413 = por %p411, %p412
      %p414 = scmp.ne.s32.totalorder %s406, %s408
      %p415 = scmp.eq.s32.totalorder %s36, 1
      %p416 = por %p414, %p415
      %p417 = scmp.ne.s32.totalorder %s408, %s409
      %p418 = scmp.eq.s32.totalorder %s36, 0
      %p419 = por %p417, %p418
      %p420 = scmp.ne.s32.totalorder %s408, %s409
      %p421 = scmp.eq.s32.totalorder %s37, 1
      %p422 = por %p420, %p421
      %p424 = scmp.ne.s32.totalorder %s409, %s423
      %p425 = scmp.eq.s32.totalorder %s37, 0
      %p426 = por %p424, %p425
      %s428 = sadd.s32 %s427, 1
      %p431 = scmp.eq.s32.totalorder %s31, 1
      %p432 = scmp.ne.s32.totalorder %s427, %s429
      %p433 = scmp.eq.s32.totalorder %s31, 0
      %p434 = por %p432, %p433
      %p435 = scmp.ne.s32.totalorder %s427, %s429
      %p436 = scmp.eq.s32.totalorder %s36, 1
      %p437 = por %p435, %p436
      %p438 = scmp.ne.s32.totalorder %s429, %s430
      %p439 = scmp.eq.s32.totalorder %s36, 0
      %p440 = por %p438, %p439
      %p441 = scmp.ne.s32.totalorder %s429, %s430
      %p442 = scmp.eq.s32.totalorder %s37, 1
      %p443 = por %p441, %p442
      %p445 = scmp.ne.s32.totalorder %s430, %s444
      %p446 = scmp.eq.s32.totalorder %s37, 0
      %p447 = por %p445, %p446
      %s449 = sadd.s32 %s448, 1
      %p452 = scmp.eq.s32.totalorder %s31, 1
      %p453 = scmp.ne.s32.totalorder %s448, %s450
      %p454 = scmp.eq.s32.totalorder %s31, 0
      %p455 = por %p453, %p454
      %p456 = scmp.ne.s32.totalorder %s448, %s450
      %p457 = scmp.eq.s32.totalorder %s36, 1
      %p458 = por %p456, %p457
      %p459 = scmp.ne.s32.totalorder %s450, %s451
      %p460 = scmp.eq.s32.totalorder %s36, 0
      %p461 = por %p459, %p460
      %p462 = scmp.ne.s32.totalorder %s450, %s451
      %p463 = scmp.eq.s32.totalorder %s37, 1
      %p464 = por %p462, %p463
      %p466 = scmp.ne.s32.totalorder %s451, %s465
      %p467 = scmp.eq.s32.totalorder %s37, 0
      %p468 = por %p466, %p467
      %s470 = sadd.s32 %s469, 1
      %p473 = scmp.eq.s32.totalorder %s31, 1
      %p474 = scmp.ne.s32.totalorder %s469, %s471
      %p475 = scmp.eq.s32.totalorder %s31, 0
      %p476 = por %p474, %p475
      %p477 = scmp.ne.s32.totalorder %s469, %s471
      %p478 = scmp.eq.s32.totalorder %s36, 1
      %p479 = por %p477, %p478
      %p480 = scmp.ne.s32.totalorder %s471, %s472
      %p481 = scmp.eq.s32.totalorder %s36, 0
      %p482 = por %p480, %p481
      %p483 = scmp.ne.s32.totalorder %s471, %s472
      %p484 = scmp.eq.s32.totalorder %s37, 1
      %p485 = por %p483, %p484
      %p487 = scmp.ne.s32.totalorder %s472, %s486
      %p488 = scmp.eq.s32.totalorder %s37, 0
      %p489 = por %p487, %p488
      %s491 = sadd.s32 %s490, 1
      %p494 = scmp.eq.s32.totalorder %s31, 1
      %p495 = scmp.ne.s32.totalorder %s490, %s492
      %p496 = scmp.eq.s32.totalorder %s31, 0
      %p497 = por %p495, %p496
      %p498 = scmp.ne.s32.totalorder %s490, %s492
      %p499 = scmp.eq.s32.totalorder %s36, 1
      %p500 = por %p498, %p499
      %p501 = scmp.ne.s32.totalorder %s492, %s493
      %p502 = scmp.eq.s32.totalorder %s36, 0
      %p503 = por %p501, %p502
      %p504 = scmp.ne.s32.totalorder %s492, %s493
      %p505 = scmp.eq.s32.totalorder %s37, 1
      %p506 = por %p504, %p505
      %p508 = scmp.ne.s32.totalorder %s493, %s507
      %p509 = scmp.eq.s32.totalorder %s37, 0
      %p510 = por %p508, %p509
      %s511 = ssub.s32 %s31, %s38
      %p512 = scmp.eq.s32.totalorder %s511, 0
      %s514 = sadd.s32 %s513, 1
      %s515 = scalar_select %p512, %s513, %s514
      %p518 = pneg %p512
      %p519 = scmp.eq.s32.totalorder %s31, 1
      %p520 = por %p518, %p519
      %p521 = scmp.ne.s32.totalorder %s513, %s516
      %p522 = scmp.eq.s32.totalorder %s31, 0
      %p523 = por %p521, %p522
      %p524 = scmp.ne.s32.totalorder %s513, %s516
      %p525 = scmp.eq.s32.totalorder %s36, 1
      %p526 = por %p524, %p525
      %p527 = scmp.ne.s32.totalorder %s516, %s517
      %p528 = scmp.eq.s32.totalorder %s36, 0
      %p529 = por %p527, %p528
      %p530 = scmp.ne.s32.totalorder %s516, %s517
      %p531 = scmp.eq.s32.totalorder %s37, 1
      %p532 = por %p530, %p531
      %p534 = scmp.ne.s32.totalorder %s517, %s533
      %p535 = scmp.eq.s32.totalorder %s37, 0
      %p536 = por %p534, %p535
      %p537 = scmp.le.s32.totalorder 1, %s31
      %p538 = scmp.lt.s32.totalorder %s31, 3
      %p539 = pnand %p537, %p538
      %p540 = pneg %p539
      // Predicated region
      $region9: #{trans_module.3} parent=5 // pred_check
        _
      $region10: #{trans_module.3} parent=5 // pred_check_branch
        %542 = sbr.rel (%p539) target = $region12
      $region11: #{trans_module.3} parent=5 // pred_region
        %s543 = ssub.s32 %s31, 1
        // Predicated region
        $region13: #{trans_module.3} parent=11 // pred_check
          %p544 = pneg %p104
        $region14: #{trans_module.3} parent=11 // pred_check_branch
          %546 = sbr.rel (%p544) target = $region16
        $region15: #{trans_module.3} parent=11 // pred_region
          _
        $region16: #{trans_module.3} parent=11 // pred_fallthru
          _
        // Predicated region
        $region17: #{trans_module.3} parent=11 // pred_check
          %p547 = pneg %p125
        $region18: #{trans_module.3} parent=11 // pred_check_branch
          %549 = sbr.rel (%p547) target = $region20
        $region19: #{trans_module.3} parent=11 // pred_region
          _
        $region20: #{trans_module.3} parent=11 // pred_fallthru
          _
        // Predicated region
        $region21: #{trans_module.3} parent=11 // pred_check
          %p550 = pneg %p146
        $region22: #{trans_module.3} parent=11 // pred_check_branch
          %552 = sbr.rel (%p550) target = $region24
        $region23: #{trans_module.3} parent=11 // pred_region
          _
        $region24: #{trans_module.3} parent=11 // pred_fallthru
          _
        // Predicated region
        $region25: #{trans_module.3} parent=11 // pred_check
          %p553 = pneg %p167
        $region26: #{trans_module.3} parent=11 // pred_check_branch
          %555 = sbr.rel (%p553) target = $region28
        $region27: #{trans_module.3} parent=11 // pred_region
          _
        $region28: #{trans_module.3} parent=11 // pred_fallthru
          _
        // Predicated region
        $region29: #{trans_module.3} parent=11 // pred_check
          %p556 = pneg %p188
        $region30: #{trans_module.3} parent=11 // pred_check_branch
          %558 = sbr.rel (%p556) target = $region32
        $region31: #{trans_module.3} parent=11 // pred_region
          _
        $region32: #{trans_module.3} parent=11 // pred_fallthru
          _
        // Predicated region
        $region33: #{trans_module.3} parent=11 // pred_check
          %p559 = pneg %p209
        $region34: #{trans_module.3} parent=11 // pred_check_branch
          %561 = sbr.rel (%p559) target = $region36
        $region35: #{trans_module.3} parent=11 // pred_region
          _
        $region36: #{trans_module.3} parent=11 // pred_fallthru
          _
        // Predicated region
        $region37: #{trans_module.3} parent=11 // pred_check
          %p562 = pneg %p230
        $region38: #{trans_module.3} parent=11 // pred_check_branch
          %564 = sbr.rel (%p562) target = $region40
        $region39: #{trans_module.3} parent=11 // pred_region
          _
        $region40: #{trans_module.3} parent=11 // pred_fallthru
          _
        // Predicated region
        $region41: #{trans_module.3} parent=11 // pred_check
          %p565 = pneg %p251
        $region42: #{trans_module.3} parent=11 // pred_check_branch
          %567 = sbr.rel (%p565) target = $region44
        $region43: #{trans_module.3} parent=11 // pred_region
          _
        $region44: #{trans_module.3} parent=11 // pred_fallthru
          _
        // Predicated region
        $region45: #{trans_module.3} parent=11 // pred_check
          %p568 = pneg %p272
        $region46: #{trans_module.3} parent=11 // pred_check_branch
          %570 = sbr.rel (%p568) target = $region48
        $region47: #{trans_module.3} parent=11 // pred_region
          _
        $region48: #{trans_module.3} parent=11 // pred_fallthru
          _
        // Predicated region
        $region49: #{trans_module.3} parent=11 // pred_check
          %p571 = pneg %p293
        $region50: #{trans_module.3} parent=11 // pred_check_branch
          %573 = sbr.rel (%p571) target = $region52
        $region51: #{trans_module.3} parent=11 // pred_region
          _
        $region52: #{trans_module.3} parent=11 // pred_fallthru
          _
        // Predicated region
        $region53: #{trans_module.3} parent=11 // pred_check
          %p574 = pneg %p314
        $region54: #{trans_module.3} parent=11 // pred_check_branch
          %576 = sbr.rel (%p574) target = $region56
        $region55: #{trans_module.3} parent=11 // pred_region
          _
        $region56: #{trans_module.3} parent=11 // pred_fallthru
          _
        // Predicated region
        $region57: #{trans_module.3} parent=11 // pred_check
          %p577 = pneg %p335
        $region58: #{trans_module.3} parent=11 // pred_check_branch
          %579 = sbr.rel (%p577) target = $region60
        $region59: #{trans_module.3} parent=11 // pred_region
          _
        $region60: #{trans_module.3} parent=11 // pred_fallthru
          _
        // Predicated region
        $region61: #{trans_module.3} parent=11 // pred_check
          %p580 = pneg %p356
        $region62: #{trans_module.3} parent=11 // pred_check_branch
          %582 = sbr.rel (%p580) target = $region64
        $region63: #{trans_module.3} parent=11 // pred_region
          _
        $region64: #{trans_module.3} parent=11 // pred_fallthru
          _
        // Predicated region
        $region65: #{trans_module.3} parent=11 // pred_check
          %p583 = pneg %p377
        $region66: #{trans_module.3} parent=11 // pred_check_branch
          %585 = sbr.rel (%p583) target = $region68
        $region67: #{trans_module.3} parent=11 // pred_region
          _
        $region68: #{trans_module.3} parent=11 // pred_fallthru
          _
        // Predicated region
        $region69: #{trans_module.3} parent=11 // pred_check
          %p586 = pneg %p398
        $region70: #{trans_module.3} parent=11 // pred_check_branch
          %588 = sbr.rel (%p586) target = $region72
        $region71: #{trans_module.3} parent=11 // pred_region
          _
        $region72: #{trans_module.3} parent=11 // pred_fallthru
          _
        // Predicated region
        $region73: #{trans_module.3} parent=11 // pred_check
          %p589 = pneg %p419
        $region74: #{trans_module.3} parent=11 // pred_check_branch
          %591 = sbr.rel (%p589) target = $region76
        $region75: #{trans_module.3} parent=11 // pred_region
          _
        $region76: #{trans_module.3} parent=11 // pred_fallthru
          _
        // Predicated region
        $region77: #{trans_module.3} parent=11 // pred_check
          %p592 = pneg %p440
        $region78: #{trans_module.3} parent=11 // pred_check_branch
          %594 = sbr.rel (%p592) target = $region80
        $region79: #{trans_module.3} parent=11 // pred_region
          _
        $region80: #{trans_module.3} parent=11 // pred_fallthru
          _
        // Predicated region
        $region81: #{trans_module.3} parent=11 // pred_check
          %p595 = pneg %p461
        $region82: #{trans_module.3} parent=11 // pred_check_branch
          %597 = sbr.rel (%p595) target = $region84
        $region83: #{trans_module.3} parent=11 // pred_region
          _
        $region84: #{trans_module.3} parent=11 // pred_fallthru
          _
        // Predicated region
        $region85: #{trans_module.3} parent=11 // pred_check
          %p598 = pneg %p482
        $region86: #{trans_module.3} parent=11 // pred_check_branch
          %600 = sbr.rel (%p598) target = $region88
        $region87: #{trans_module.3} parent=11 // pred_region
          _
        $region88: #{trans_module.3} parent=11 // pred_fallthru
          _
        // Predicated region
        $region89: #{trans_module.3} parent=11 // pred_check
          %p601 = pneg %p503
        $region90: #{trans_module.3} parent=11 // pred_check_branch
          %603 = sbr.rel (%p601) target = $region92
        $region91: #{trans_module.3} parent=11 // pred_region
          _
        $region92: #{trans_module.3} parent=11 // pred_fallthru
          _
      $region12: #{trans_module.3} parent=5 // pred_fallthru
        _
      %p604 = scmp.lt.s32.totalorder %s31, 2
      // Predicated region
      $region93: #{trans_module.3} parent=5 // pred_check
        %p605 = pneg %p604
      $region94: #{trans_module.3} parent=5 // pred_check_branch
        %607 = sbr.rel (%p605) target = $region96
      $region95: #{trans_module.3} parent=5 // pred_region
        // Predicated region
        $region97: #{trans_module.3} parent=95 // pred_check
          %p608 = pneg %p51
        $region98: #{trans_module.3} parent=95 // pred_check_branch
          %610 = sbr.rel (%p608) target = $region100
        $region99: #{trans_module.3} parent=95 // pred_region
          %p611 = scmp.lt.s32.totalorder %s31, 1
          %s612 = scalar_select %p611, %s31, 1
          %s613 = smul.addr %s612, 8
          %s614 = scalar_lea.vmem %s0, %s613
        $region100: #{trans_module.3} parent=95 // pred_fallthru
          _
        // Predicated region
        $region101: #{trans_module.3} parent=95 // pred_check
          %p615 = pneg %p77
        $region102: #{trans_module.3} parent=95 // pred_check_branch
          %617 = sbr.rel (%p615) target = $region104
        $region103: #{trans_module.3} parent=95 // pred_region
          %p618 = scmp.lt.s32.totalorder %s31, 1
          %s619 = scalar_select %p618, %s31, 1
          %s620 = smul.addr %s619, 8
          %s621 = scalar_lea.vmem %s1, %s620
        $region104: #{trans_module.3} parent=95 // pred_fallthru
          _
      $region96: #{trans_module.3} parent=5 // pred_fallthru
        _
      %p622 = scmp.le.s32.totalorder 1, %s31
      %p623 = scmp.lt.s32.totalorder %s31, 3
      %p624 = pnand %p622, %p623
      %p625 = pneg %p624
      // Predicated region
      $region105: #{trans_module.3} parent=5 // pred_check
        _
      $region106: #{trans_module.3} parent=5 // pred_check_branch
        %627 = sbr.rel (%p624) target = $region108
      $region107: #{trans_module.3} parent=5 // pred_region
        %s628 = ssub.s32 %s31, 1
        %p629 = scmp.lt.s32.totalorder %s36, 1
        %s630 = scalar_select %p629, %s36, 1
        %s631 = smul.addr %s630, 8
        %s632 = scalar_lea.vmem %s0, %s631
        %p633 = pneg %p57
        %p634 = pneg %p54
        %p635 = scmp.lt.s32.totalorder %s36, 1
        %s636 = scalar_select %p635, %s36, 1
        %s637 = smul.addr %s636, 8
        %s638 = scalar_lea.vmem %s1, %s637
        %p639 = pneg %p83
        %p640 = pneg %p80
        %p641 = pneg %p104
        %p642 = pneg %p101
        %p643 = pneg %p125
        %p644 = pneg %p122
        %p645 = pneg %p146
        %p646 = pneg %p143
        %p647 = pneg %p167
        %p648 = pneg %p164
        %p649 = pneg %p188
        %p650 = pneg %p185
        %p651 = pneg %p209
        %p652 = pneg %p206
        %p653 = pneg %p230
        %p654 = pneg %p227
        %p655 = pneg %p251
        %p656 = pneg %p248
        %p657 = pneg %p272
        %p658 = pneg %p269
        %p659 = pneg %p293
        %p660 = pneg %p290
        %p661 = pneg %p314
        %p662 = pneg %p311
        %p663 = pneg %p335
        %p664 = pneg %p332
        %p665 = pneg %p356
        %p666 = pneg %p353
        %p667 = pneg %p377
        %p668 = pneg %p374
        %p669 = pneg %p398
        %p670 = pneg %p395
        %p671 = pneg %p419
        %p672 = pneg %p416
        %p673 = pneg %p440
        %p674 = pneg %p437
        %p675 = pneg %p461
        %p676 = pneg %p458
        %p677 = pneg %p482
        %p678 = pneg %p479
        %p679 = pneg %p503
        %p680 = pneg %p500
        %p681 = pneg %p529
        %p682 = pneg %p526
        %s683 = sand.u32 %s516, 1
        %s684 = scalar_lea.sflag [#allocation3], %s683
        %s685 = sand.u32 %s516, 1
        %s686 = smul.addr %s685, 8
        %s687 = scalar_lea.vmem [#allocation2], %s686
        %p688 = scmp.lt.s32.totalorder %s36, 1
        %s689 = scalar_select %p688, %s36, 1
        %s690 = smul.addr %s689, 8
        %s691 = scalar_lea.vmem %s0, %s690
        %p692 = scmp.lt.s32.totalorder %s36, 1
        %s693 = scalar_select %p692, %s36, 1
        %s694 = smul.addr %s693, 8
        %s695 = scalar_lea.vmem %s1, %s694
        %v696 = vld [vmem:[%s691] sm:$0xff]
        %v697 = vld [vmem:[%s695] sm:$0xff]
        %v698 = vld [vmem:[%s16] sm:$0x1]
        %v699 = vld [vmem:[%s17] sm:$0x1]
        %vm700 = vcmask 261120
        %v701 = vsel %vm700, %v696, 0.0
        %702 = vadd.xlane.f32.xlu0 %v701
        %v703 = vpop.xlane.xlu0 %702
        %v704 = vrcp.pop 32.0
        %v705 = vmul.f32 %v703, %v704
        %v706 = vsub.f32 %v696, %v705
        %v707 = vmul.f32 %v706, %v706
        %v708 = vsel %vm700, %v707, 0.0
        %709 = vadd.xlane.f32.xlu0 %v708
        %v710 = vpop.xlane.xlu0 %709
        %v711 = vmul.f32 %v710, %v704
        %v712 = vadd.f32 %v711, 1e-05
        %v713 = vrsqrt.pop %v712
        %v714 = vmul.f32 %v706, %v713
        %v716 = vlaneseq
        %v717 = vshrl.u32 %v716, 7
        %v718 = vsub.s32 0, %v717
        %v719 = vrot.slane %v698, %v718
        %v721 = vmul.f32 %v714, %v719
        %v723 = vlaneseq
        %v724 = vshrl.u32 %v723, 7
        %v725 = vsub.s32 0, %v724
        %v726 = vrot.slane %v699, %v725
        %v728 = vadd.f32 %v721, %v726
        %v729 = vld [vmem:[%s2] sm:$0xff]
        %v730 = vld [vmem:[%s2 + $0x8] sm:$0xff]
        %v731 = vld [vmem:[%s2 + $0x10] sm:$0xff]
        %v732 = vld [vmem:[%s2 + $0x18] sm:$0xff]
        %v733 = vld [vmem:[%s3] sm:$0x1]
        %v735 = vlaneseq
        %v736 = vshrl.u32 %v735, 7
        %v737 = vsub.s32 0, %v736
        %v738 = vrot.slane %v733, %v737
        %v741 = vsel %vm700, %v728, 0
        %743 = vmatprep.subr.mxu0 0.0
        %744 = vmatpush1.msra.mxu0 %v729
        %745 = vmatprep.subr.mxu0 0.0
        %746 = vmatpush1.msra.mxu0 %v730
        %747 = vmatprep.subr.mxu0 0.0
        %748 = vmatpush1.msra.mxu0 %v731
        %749 = vmatprep.subr.mxu0 0.0
        %750 = vmatpush1.msra.mxu0 %v732
        %751 = vmatprep.subr.mxu0 0.0
        %752 = vmatpush1.msra.mxu0 0.0
        %753 = vmatprep.subr.mxu0 0.0
        %754 = vmatpush1.msra.mxu0 0.0
        %755 = vmatprep.subr.mxu0 0.0
        %756 = vmatpush1.msra.mxu0 0.0
        %757 = vmatprep.subr.mxu0 0.0
        %758 = vmatpush1.msra.mxu0 0.0
        %759 = vmatprep.subr.mxu0 0.0
        %760 = vmatpush1.msra.mxu0 0.0
        %761 = vmatprep.subr.mxu0 0.0
        %762 = vmatpush1.msra.mxu0 0.0
        %763 = vmatprep.subr.mxu0 0.0
        %764 = vmatpush1.msra.mxu0 0.0
        %765 = vmatprep.subr.mxu0 0.0
        %766 = vmatpush1.msra.mxu0 0.0
        %767 = vmatprep.subr.mxu0 0.0
        %768 = vmatpush1.msra.mxu0 0.0
        %769 = vmatprep.subr.mxu0 0.0
        %770 = vmatpush1.msra.mxu0 0.0
        %771 = vmatprep.subr.mxu0 0.0
        %772 = vmatpush1.msra.mxu0 0.0
        %773 = vmatprep.subr.mxu0 0.0
        %774 = vmatpush1.msra.mxu0 0.0
        %775 = vmatprep.subr.mxu0 0.0
        %776 = vmatpush1.msra.mxu0 0.0
        %777 = vmatprep.subr.mxu0 0.0
        %778 = vmatpush1.msra.mxu0 0.0
        %779 = vmatprep.subr.mxu0 0.0
        %780 = vmatpush1.msra.mxu0 0.0
        %781 = vmatprep.subr.mxu0 0.0
        %782 = vmatpush1.msra.mxu0 0.0
        %783 = vmatprep.subr.mxu0 0.0
        %784 = vmatpush1.msra.mxu0 0.0
        %785 = vmatprep.subr.mxu0 0.0
        %786 = vmatpush1.msra.mxu0 0.0
        %787 = vmatprep.subr.mxu0 0.0
        %788 = vmatpush1.msra.mxu0 0.0
        %789 = vmatprep.subr.mxu0 0.0
        %790 = vmatpush1.msra.mxu0 0.0
        %791 = vmatprep.subr.mxu0 0.0
        %792 = vmatpush1.msra.mxu0 0.0
        %793 = vmatprep.subr.mxu0 0.0
        %794 = vmatpush1.msra.mxu0 0.0
        %795 = vmatprep.subr.mxu0 0.0
        %796 = vmatpush1.msra.mxu0 0.0
        %797 = vmatprep.subr.mxu0 0.0
        %798 = vmatpush1.msra.mxu0 0.0
        %799 = vmatprep.subr.mxu0 0.0
        %800 = vmatpush1.msra.mxu0 0.0
        %801 = vmatprep.subr.mxu0 0.0
        %802 = vmatpush1.msra.mxu0 0.0
        %803 = vmatprep.subr.mxu0 0.0
        %804 = vmatpush1.msra.mxu0 0.0
        %805 = vmatprep.subr.mxu0 0.0
        %806 = vmatpush1.msra.mxu0 0.0
        %807 = vmatprep.mubr.f32.mxu0 0.0
        %808 = vmatmul.mubr.f32.gmra.mrb[0].mxu0 %v741
        %v809 = vpop.f32.mrb[0].mxu0
        %v810 = vadd.f32 %v738, %v809
        %v811 = vpop.f32.mrb[0].mxu0
        %812 = vdwg.mxu0
        %814 = vrot.lane.b32.xlu0 %v810, 96
        %v815 = vpop.permute.xlu0 %814
        %vm816 = vcmask 64512
        %v817 = vsel %vm816, %v810, 0
        %v819 = vsel %vm816, %v815, 0
        %821 = vmatprep.subr.mxu0 0.0
        %822 = vmatpush1.xpose.msra.mxu0 %v819
        %823 = vmatprep.subr.mxu0 0.0
        %824 = vmatpush1.xpose.msra.mxu0 0.0
        %825 = vmatprep.subr.mxu0 0.0
        %826 = vmatpush1.xpose.msra.mxu0 0.0
        %827 = vmatprep.subr.mxu0 0.0
        %828 = vmatpush1.xpose.msra.mxu0 0.0
        %829 = vmatprep.subr.mxu0 0.0
        %830 = vmatpush1.xpose.msra.mxu0 0.0
        %831 = vmatprep.subr.mxu0 0.0
        %832 = vmatpush1.xpose.msra.mxu0 0.0
        %833 = vmatprep.subr.mxu0 0.0
        %834 = vmatpush1.xpose.msra.mxu0 0.0
        %835 = vmatprep.subr.mxu0 0.0
        %836 = vmatpush1.xpose.msra.mxu0 0.0
        %837 = vmatprep.subr.mxu0 0.0
        %838 = vmatpush1.xpose.msra.mxu0 0.0
        %839 = vmatprep.subr.mxu0 0.0
        %840 = vmatpush1.xpose.msra.mxu0 0.0
        %841 = vmatprep.subr.mxu0 0.0
        %842 = vmatpush1.xpose.msra.mxu0 0.0
        %843 = vmatprep.subr.mxu0 0.0
        %844 = vmatpush1.xpose.msra.mxu0 0.0
        %845 = vmatprep.subr.mxu0 0.0
        %846 = vmatpush1.xpose.msra.mxu0 0.0
        %847 = vmatprep.subr.mxu0 0.0
        %848 = vmatpush1.xpose.msra.mxu0 0.0
        %849 = vmatprep.subr.mxu0 0.0
        %850 = vmatpush1.xpose.msra.mxu0 0.0
        %851 = vmatprep.subr.mxu0 0.0
        %852 = vmatpush1.xpose.msra.mxu0 0.0
        %853 = vmatprep.subr.mxu0 0.0
        %854 = vmatpush1.xpose.msra.mxu0 0.0
        %855 = vmatprep.subr.mxu0 0.0
        %856 = vmatpush1.xpose.msra.mxu0 0.0
        %857 = vmatprep.subr.mxu0 0.0
        %858 = vmatpush1.xpose.msra.mxu0 0.0
        %859 = vmatprep.subr.mxu0 0.0
        %860 = vmatpush1.xpose.msra.mxu0 0.0
        %861 = vmatprep.subr.mxu0 0.0
        %862 = vmatpush1.xpose.msra.mxu0 0.0
        %863 = vmatprep.subr.mxu0 0.0
        %864 = vmatpush1.xpose.msra.mxu0 0.0
        %865 = vmatprep.subr.mxu0 0.0
        %866 = vmatpush1.xpose.msra.mxu0 0.0
        %867 = vmatprep.subr.mxu0 0.0
        %868 = vmatpush1.xpose.msra.mxu0 0.0
        %869 = vmatprep.subr.mxu0 0.0
        %870 = vmatpush1.xpose.msra.mxu0 0.0
        %871 = vmatprep.subr.mxu0 0.0
        %872 = vmatpush1.xpose.msra.mxu0 0.0
        %873 = vmatprep.subr.mxu0 0.0
        %874 = vmatpush1.xpose.msra.mxu0 0.0
        %875 = vmatprep.subr.mxu0 0.0
        %876 = vmatpush1.xpose.msra.mxu0 0.0
        %877 = vmatprep.subr.mxu0 0.0
        %878 = vmatpush1.xpose.msra.mxu0 0.0
        %879 = vmatprep.subr.mxu0 0.0
        %880 = vmatpush1.xpose.msra.mxu0 0.0
        %881 = vmatprep.subr.mxu0 0.0
        %882 = vmatpush1.xpose.msra.mxu0 0.0
        %883 = vmatprep.subr.mxu0 0.0
        %884 = vmatpush1.xpose.msra.mxu0 0.0
        %885 = vmatprep.mubr.f32.mxu0 0.0
        %886 = vmatmul.mubr.f32.gmra.mrb[0].mxu0 %v817
        %v887 = vpop.f32.mrb[0].mxu0
        %v888 = vadd.f32 0.0, %v887
        %v889 = vpop.f32.mrb[0].mxu0
        %890 = vdwg.mxu0
        %v891 = vsel %vm816, %v888, -inf
        %892 = vmax.xlane.f32.xlu0 %v891
        %v893 = vpop.xlane.xlu0 %892
        %v894 = vsub.f32 %v888, %v893
        %v895 = vmul.f32 %v894, 1.442695
        %v896 = vpow.pop %v895
        %v897 = vsel %vm816, %v896, 0.0
        %898 = vadd.xlane.f32.xlu0 %v897
        %v899 = vpop.xlane.xlu0 %898
        %v900 = vrcp.pop %v899
        %v901 = vmul.f32 %v896, %v900
        %902 = vrot.lane.b32.xlu0 %v810, 64
        %v903 = vpop.permute.xlu0 %902
        %v906 = vsel %vm816, %v901, 0
        %908 = vmatprep.subr.mxu0 0.0
        %909 = vmatpush1.msra.mxu0 %v903
        %910 = vmatprep.subr.mxu0 0.0
        %911 = vmatpush1.msra.mxu0 0.0
        %912 = vmatprep.subr.mxu0 0.0
        %913 = vmatpush1.msra.mxu0 0.0
        %914 = vmatprep.subr.mxu0 0.0
        %915 = vmatpush1.msra.mxu0 0.0
        %916 = vmatprep.subr.mxu0 0.0
        %917 = vmatpush1.msra.mxu0 0.0
        %918 = vmatprep.subr.mxu0 0.0
        %919 = vmatpush1.msra.mxu0 0.0
        %920 = vmatprep.subr.mxu0 0.0
        %921 = vmatpush1.msra.mxu0 0.0
        %922 = vmatprep.subr.mxu0 0.0
        %923 = vmatpush1.msra.mxu0 0.0
        %924 = vmatprep.subr.mxu0 0.0
        %925 = vmatpush1.msra.mxu0 0.0
        %926 = vmatprep.subr.mxu0 0.0
        %927 = vmatpush1.msra.mxu0 0.0
        %928 = vmatprep.subr.mxu0 0.0
        %929 = vmatpush1.msra.mxu0 0.0
        %930 = vmatprep.subr.mxu0 0.0
        %931 = vmatpush1.msra.mxu0 0.0
        %932 = vmatprep.subr.mxu0 0.0
        %933 = vmatpush1.msra.mxu0 0.0
        %934 = vmatprep.subr.mxu0 0.0
        %935 = vmatpush1.msra.mxu0 0.0
        %936 = vmatprep.subr.mxu0 0.0
        %937 = vmatpush1.msra.mxu0 0.0
        %938 = vmatprep.subr.mxu0 0.0
        %939 = vmatpush1.msra.mxu0 0.0
        %940 = vmatprep.subr.mxu0 0.0
        %941 = vmatpush1.msra.mxu0 0.0
        %942 = vmatprep.subr.mxu0 0.0
        %943 = vmatpush1.msra.mxu0 0.0
        %944 = vmatprep.subr.mxu0 0.0
        %945 = vmatpush1.msra.mxu0 0.0
        %946 = vmatprep.subr.mxu0 0.0
        %947 = vmatpush1.msra.mxu0 0.0
        %948 = vmatprep.subr.mxu0 0.0
        %949 = vmatpush1.msra.mxu0 0.0
        %950 = vmatprep.subr.mxu0 0.0
        %951 = vmatpush1.msra.mxu0 0.0
        %952 = vmatprep.subr.mxu0 0.0
        %953 = vmatpush1.msra.mxu0 0.0
        %954 = vmatprep.subr.mxu0 0.0
        %955 = vmatpush1.msra.mxu0 0.0
        %956 = vmatprep.subr.mxu0 0.0
        %957 = vmatpush1.msra.mxu0 0.0
        %958 = vmatprep.subr.mxu0 0.0
        %959 = vmatpush1.msra.mxu0 0.0
        %960 = vmatprep.subr.mxu0 0.0
        %961 = vmatpush1.msra.mxu0 0.0
        %962 = vmatprep.subr.mxu0 0.0
        %963 = vmatpush1.msra.mxu0 0.0
        %964 = vmatprep.subr.mxu0 0.0
        %965 = vmatpush1.msra.mxu0 0.0
        %966 = vmatprep.subr.mxu0 0.0
        %967 = vmatpush1.msra.mxu0 0.0
        %968 = vmatprep.subr.mxu0 0.0
        %969 = vmatpush1.msra.mxu0 0.0
        %970 = vmatprep.subr.mxu0 0.0
        %971 = vmatpush1.msra.mxu0 0.0
        %972 = vmatprep.mubr.f32.mxu0 0.0
        %973 = vmatmul.mubr.f32.gmra.mrb[0].mxu0 %v906
        %v974 = vpop.f32.mrb[0].mxu0
        %v975 = vadd.f32 0.0, %v974
        %v976 = vpop.f32.mrb[0].mxu0
        %977 = vdwg.mxu0
        %978 = vrot.lane.b32.xlu0 %v810, 120
        %v979 = vpop.permute.xlu0 %978
        %980 = vrot.lane.b32.xlu0 %v810, 88
        %v981 = vpop.permute.xlu0 %980
        %v982 = vsel %vm816, %v979, 0
        %v984 = vsel %vm816, %v981, 0
        %986 = vmatprep.subr.mxu0 0.0
        %987 = vmatpush1.xpose.msra.mxu0 %v984
        %988 = vmatprep.subr.mxu0 0.0
        %989 = vmatpush1.xpose.msra.mxu0 0.0
        %990 = vmatprep.subr.mxu0 0.0
        %991 = vmatpush1.xpose.msra.mxu0 0.0
        %992 = vmatprep.subr.mxu0 0.0
        %993 = vmatpush1.xpose.msra.mxu0 0.0
        %994 = vmatprep.subr.mxu0 0.0
        %995 = vmatpush1.xpose.msra.mxu0 0.0
        %996 = vmatprep.subr.mxu0 0.0
        %997 = vmatpush1.xpose.msra.mxu0 0.0
        %998 = vmatprep.subr.mxu0 0.0
        %999 = vmatpush1.xpose.msra.mxu0 0.0
        %1000 = vmatprep.subr.mxu0 0.0
        %1001 = vmatpush1.xpose.msra.mxu0 0.0
        %1002 = vmatprep.subr.mxu0 0.0
        %1003 = vmatpush1.xpose.msra.mxu0 0.0
        %1004 = vmatprep.subr.mxu0 0.0
        %1005 = vmatpush1.xpose.msra.mxu0 0.0
        %1006 = vmatprep.subr.mxu0 0.0
        %1007 = vmatpush1.xpose.msra.mxu0 0.0
        %1008 = vmatprep.subr.mxu0 0.0
        %1009 = vmatpush1.xpose.msra.mxu0 0.0
        %1010 = vmatprep.subr.mxu0 0.0
        %1011 = vmatpush1.xpose.msra.mxu0 0.0
        %1012 = vmatprep.subr.mxu0 0.0
        %1013 = vmatpush1.xpose.msra.mxu0 0.0
        %1014 = vmatprep.subr.mxu0 0.0
        %1015 = vmatpush1.xpose.msra.mxu0 0.0
        %1016 = vmatprep.subr.mxu0 0.0
        %1017 = vmatpush1.xpose.msra.mxu0 0.0
        %1018 = vmatprep.subr.mxu0 0.0
        %1019 = vmatpush1.xpose.msra.mxu0 0.0
        %1020 = vmatprep.subr.mxu0 0.0
        %1021 = vmatpush1.xpose.msra.mxu0 0.0
        %1022 = vmatprep.subr.mxu0 0.0
        %1023 = vmatpush1.xpose.msra.mxu0 0.0
        %1024 = vmatprep.subr.mxu0 0.0
        %1025 = vmatpush1.xpose.msra.mxu0 0.0
        %1026 = vmatprep.subr.mxu0 0.0
        %1027 = vmatpush1.xpose.msra.mxu0 0.0
        %1028 = vmatprep.subr.mxu0 0.0
        %1029 = vmatpush1.xpose.msra.mxu0 0.0
        %1030 = vmatprep.subr.mxu0 0.0
        %1031 = vmatpush1.xpose.msra.mxu0 0.0
        %1032 = vmatprep.subr.mxu0 0.0
        %1033 = vmatpush1.xpose.msra.mxu0 0.0
        %1034 = vmatprep.subr.mxu0 0.0
        %1035 = vmatpush1.xpose.msra.mxu0 0.0
        %1036 = vmatprep.subr.mxu0 0.0
        %1037 = vmatpush1.xpose.msra.mxu0 0.0
        %1038 = vmatprep.subr.mxu0 0.0
        %1039 = vmatpush1.xpose.msra.mxu0 0.0
        %1040 = vmatprep.subr.mxu0 0.0
        %1041 = vmatpush1.xpose.msra.mxu0 0.0
        %1042 = vmatprep.subr.mxu0 0.0
        %1043 = vmatpush1.xpose.msra.mxu0 0.0
        %1044 = vmatprep.subr.mxu0 0.0
        %1045 = vmatpush1.xpose.msra.mxu0 0.0
        %1046 = vmatprep.subr.mxu0 0.0
        %1047 = vmatpush1.xpose.msra.mxu0 0.0
        %1048 = vmatprep.subr.mxu0 0.0
        %1049 = vmatpush1.xpose.msra.mxu0 0.0
        %1050 = vmatprep.mubr.f32.mxu0 0.0
        %1051 = vmatmul.mubr.f32.gmra.mrb[0].mxu0 %v982
        %v1052 = vpop.f32.mrb[0].mxu0
        %v1053 = vadd.f32 0.0, %v1052
        %v1054 = vpop.f32.mrb[0].mxu0
        %1055 = vdwg.mxu0
        %v1056 = vsel %vm816, %v1053, -inf
        %1057 = vmax.xlane.f32.xlu0 %v1056
        %v1058 = vpop.xlane.xlu0 %1057
        %v1059 = vsub.f32 %v1053, %v1058
        %v1060 = vmul.f32 %v1059, 1.442695
        %v1061 = vpow.pop %v1060
        %v1062 = vsel %vm816, %v1061, 0.0
        %1063 = vadd.xlane.f32.xlu0 %v1062
        %v1064 = vpop.xlane.xlu0 %1063
        %v1065 = vrcp.pop %v1064
        %v1066 = vmul.f32 %v1061, %v1065
        %1067 = vrot.lane.b32.xlu0 %v810, 56
        %v1068 = vpop.permute.xlu0 %1067
        %v1071 = vsel %vm816, %v1066, 0
        %1073 = vmatprep.subr.mxu0 0.0
        %1074 = vmatpush1.msra.mxu0 %v1068
        %1075 = vmatprep.subr.mxu0 0.0
        %1076 = vmatpush1.msra.mxu0 0.0
        %1077 = vmatprep.subr.mxu0 0.0
        %1078 = vmatpush1.msra.mxu0 0.0
        %1079 = vmatprep.subr.mxu0 0.0
        %1080 = vmatpush1.msra.mxu0 0.0
        %1081 = vmatprep.subr.mxu0 0.0
        %1082 = vmatpush1.msra.mxu0 0.0
        %1083 = vmatprep.subr.mxu0 0.0
        %1084 = vmatpush1.msra.mxu0 0.0
        %1085 = vmatprep.subr.mxu0 0.0
        %1086 = vmatpush1.msra.mxu0 0.0
        %1087 = vmatprep.subr.mxu0 0.0
        %1088 = vmatpush1.msra.mxu0 0.0
        %1089 = vmatprep.subr.mxu0 0.0
        %1090 = vmatpush1.msra.mxu0 0.0
        %1091 = vmatprep.subr.mxu0 0.0
        %1092 = vmatpush1.msra.mxu0 0.0
        %1093 = vmatprep.subr.mxu0 0.0
        %1094 = vmatpush1.msra.mxu0 0.0
        %1095 = vmatprep.subr.mxu0 0.0
        %1096 = vmatpush1.msra.mxu0 0.0
        %1097 = vmatprep.subr.mxu0 0.0
        %1098 = vmatpush1.msra.mxu0 0.0
        %1099 = vmatprep.subr.mxu0 0.0
        %1100 = vmatpush1.msra.mxu0 0.0
        %1101 = vmatprep.subr.mxu0 0.0
        %1102 = vmatpush1.msra.mxu0 0.0
        %1103 = vmatprep.subr.mxu0 0.0
        %1104 = vmatpush1.msra.mxu0 0.0
        %1105 = vmatprep.subr.mxu0 0.0
        %1106 = vmatpush1.msra.mxu0 0.0
        %1107 = vmatprep.subr.mxu0 0.0
        %1108 = vmatpush1.msra.mxu0 0.0
        %1109 = vmatprep.subr.mxu0 0.0
        %1110 = vmatpush1.msra.mxu0 0.0
        %1111 = vmatprep.subr.mxu0 0.0
        %1112 = vmatpush1.msra.mxu0 0.0
        %1113 = vmatprep.subr.mxu0 0.0
        %1114 = vmatpush1.msra.mxu0 0.0
        %1115 = vmatprep.subr.mxu0 0.0
        %1116 = vmatpush1.msra.mxu0 0.0
        %1117 = vmatprep.subr.mxu0 0.0
        %1118 = vmatpush1.msra.mxu0 0.0
        %1119 = vmatprep.subr.mxu0 0.0
        %1120 = vmatpush1.msra.mxu0 0.0
        %1121 = vmatprep.subr.mxu0 0.0
        %1122 = vmatpush1.msra.mxu0 0.0
        %1123 = vmatprep.subr.mxu0 0.0
        %1124 = vmatpush1.msra.mxu0 0.0
        %1125 = vmatprep.subr.mxu0 0.0
        %1126 = vmatpush1.msra.mxu0 0.0
        %1127 = vmatprep.subr.mxu0 0.0
        %1128 = vmatpush1.msra.mxu0 0.0
        %1129 = vmatprep.subr.mxu0 0.0
        %1130 = vmatpush1.msra.mxu0 0.0
        %1131 = vmatprep.subr.mxu0 0.0
        %1132 = vmatpush1.msra.mxu0 0.0
        %1133 = vmatprep.subr.mxu0 0.0
        %1134 = vmatpush1.msra.mxu0 0.0
        %1135 = vmatprep.subr.mxu0 0.0
        %1136 = vmatpush1.msra.mxu0 0.0
        %1137 = vmatprep.mubr.f32.mxu0 0.0
        %1138 = vmatmul.mubr.f32.gmra.mrb[0].mxu0 %v1071
        %v1139 = vpop.f32.mrb[0].mxu0
        %v1140 = vadd.f32 0.0, %v1139
        %v1141 = vpop.f32.mrb[0].mxu0
        %1142 = vdwg.mxu0
        %1143 = vrot.lane.b32.xlu0 %v810, 112
        %v1144 = vpop.permute.xlu0 %1143
        %1145 = vrot.lane.b32.xlu0 %v810, 80
        %v1146 = vpop.permute.xlu0 %1145
        %v1147 = vsel %vm816, %v1144, 0
        %v1149 = vsel %vm816, %v1146, 0
        %1151 = vmatprep.subr.mxu0 0.0
        %1152 = vmatpush1.xpose.msra.mxu0 %v1149
        %1153 = vmatprep.subr.mxu0 0.0
        %1154 = vmatpush1.xpose.msra.mxu0 0.0
        %1155 = vmatprep.subr.mxu0 0.0
        %1156 = vmatpush1.xpose.msra.mxu0 0.0
        %1157 = vmatprep.subr.mxu0 0.0
        %1158 = vmatpush1.xpose.msra.mxu0 0.0
        %1159 = vmatprep.subr.mxu0 0.0
        %1160 = vmatpush1.xpose.msra.mxu0 0.0
        %1161 = vmatprep.subr.mxu0 0.0
        %1162 = vmatpush1.xpose.msra.mxu0 0.0
        %1163 = vmatprep.subr.mxu0 0.0
        %1164 = vmatpush1.xpose.msra.mxu0 0.0
        %1165 = vmatprep.subr.mxu0 0.0
        %1166 = vmatpush1.xpose.msra.mxu0 0.0
        %1167 = vmatprep.subr.mxu0 0.0
        %1168 = vmatpush1.xpose.msra.mxu0 0.0
        %1169 = vmatprep.subr.mxu0 0.0
        %1170 = vmatpush1.xpose.msra.mxu0 0.0
        %1171 = vmatprep.subr.mxu0 0.0
        %1172 = vmatpush1.xpose.msra.mxu0 0.0
        %1173 = vmatprep.subr.mxu0 0.0
        %1174 = vmatpush1.xpose.msra.mxu0 0.0
        %1175 = vmatprep.subr.mxu0 0.0
        %1176 = vmatpush1.xpose.msra.mxu0 0.0
        %1177 = vmatprep.subr.mxu0 0.0
        %1178 = vmatpush1.xpose.msra.mxu0 0.0
        %1179 = vmatprep.subr.mxu0 0.0
        %1180 = vmatpush1.xpose.msra.mxu0 0.0
        %1181 = vmatprep.subr.mxu0 0.0
        %1182 = vmatpush1.xpose.msra.mxu0 0.0
        %1183 = vmatprep.subr.mxu0 0.0
        %1184 = vmatpush1.xpose.msra.mxu0 0.0
        %1185 = vmatprep.subr.mxu0 0.0
        %1186 = vmatpush1.xpose.msra.mxu0 0.0
        %1187 = vmatprep.subr.mxu0 0.0
        %1188 = vmatpush1.xpose.msra.mxu0 0.0
        %1189 = vmatprep.subr.mxu0 0.0
        %1190 = vmatpush1.xpose.msra.mxu0 0.0
        %1191 = vmatprep.subr.mxu0 0.0
        %1192 = vmatpush1.xpose.msra.mxu0 0.0
        %1193 = vmatprep.subr.mxu0 0.0
        %1194 = vmatpush1.xpose.msra.mxu0 0.0
        %1195 = vmatprep.subr.mxu0 0.0
        %1196 = vmatpush1.xpose.msra.mxu0 0.0
        %1197 = vmatprep.subr.mxu0 0.0
        %1198 = vmatpush1.xpose.msra.mxu0 0.0
        %1199 = vmatprep.subr.mxu0 0.0
        %1200 = vmatpush1.xpose.msra.mxu0 0.0
        %1201 = vmatprep.subr.mxu0 0.0
        %1202 = vmatpush1.xpose.msra.mxu0 0.0
        %1203 = vmatprep.subr.mxu0 0.0
        %1204 = vmatpush1.xpose.msra.mxu0 0.0
        %1205 = vmatprep.subr.mxu0 0.0
        %1206 = vmatpush1.xpose.msra.mxu0 0.0
        %1207 = vmatprep.subr.mxu0 0.0
        %1208 = vmatpush1.xpose.msra.mxu0 0.0
        %1209 = vmatprep.subr.mxu0 0.0
        %1210 = vmatpush1.xpose.msra.mxu0 0.0
        %1211 = vmatprep.subr.mxu0 0.0
        %1212 = vmatpush1.xpose.msra.mxu0 0.0
        %1213 = vmatprep.subr.mxu0 0.0
        %1214 = vmatpush1.xpose.msra.mxu0 0.0
        %1215 = vmatprep.mubr.f32.mxu0 0.0
        %1216 = vmatmul.mubr.f32.gmra.mrb[0].mxu0 %v1147
        %v1217 = vpop.f32.mrb[0].mxu0
        %v1218 = vadd.f32 0.0, %v1217
        %v1219 = vpop.f32.mrb[0].mxu0
        %1220 = vdwg.mxu0
        %v1221 = vsel %vm816, %v1218, -inf
        %1222 = vmax.xlane.f32.xlu0 %v1221
        %v1223 = vpop.xlane.xlu0 %1222
        %v1224 = vsub.f32 %v1218, %v1223
        %v1225 = vmul.f32 %v1224, 1.442695
        %v1226 = vpow.pop %v1225
        %v1227 = vsel %vm816, %v1226, 0.0
        %1228 = vadd.xlane.f32.xlu0 %v1227
        %v1229 = vpop.xlane.xlu0 %1228
        %v1230 = vrcp.pop %v1229
        %v1231 = vmul.f32 %v1226, %v1230
        %1232 = vrot.lane.b32.xlu0 %v810, 48
        %v1233 = vpop.permute.xlu0 %1232
        %v1236 = vsel %vm816, %v1231, 0
        %1238 = vmatprep.subr.mxu0 0.0
        %1239 = vmatpush1.msra.mxu0 %v1233
        %1240 = vmatprep.subr.mxu0 0.0
        %1241 = vmatpush1.msra.mxu0 0.0
        %1242 = vmatprep.subr.mxu0 0.0
        %1243 = vmatpush1.msra.mxu0 0.0
        %1244 = vmatprep.subr.mxu0 0.0
        %1245 = vmatpush1.msra.mxu0 0.0
        %1246 = vmatprep.subr.mxu0 0.0
        %1247 = vmatpush1.msra.mxu0 0.0
        %1248 = vmatprep.subr.mxu0 0.0
        %1249 = vmatpush1.msra.mxu0 0.0
        %1250 = vmatprep.subr.mxu0 0.0
        %1251 = vmatpush1.msra.mxu0 0.0
        %1252 = vmatprep.subr.mxu0 0.0
        %1253 = vmatpush1.msra.mxu0 0.0
        %1254 = vmatprep.subr.mxu0 0.0
        %1255 = vmatpush1.msra.mxu0 0.0
        %1256 = vmatprep.subr.mxu0 0.0
        %1257 = vmatpush1.msra.mxu0 0.0
        %1258 = vmatprep.subr.mxu0 0.0
        %1259 = vmatpush1.msra.mxu0 0.0
        %1260 = vmatprep.subr.mxu0 0.0
        %1261 = vmatpush1.msra.mxu0 0.0
        %1262 = vmatprep.subr.mxu0 0.0
        %1263 = vmatpush1.msra.mxu0 0.0
        %1264 = vmatprep.subr.mxu0 0.0
        %1265 = vmatpush1.msra.mxu0 0.0
        %1266 = vmatprep.subr.mxu0 0.0
        %1267 = vmatpush1.msra.mxu0 0.0
        %1268 = vmatprep.subr.mxu0 0.0
        %1269 = vmatpush1.msra.mxu0 0.0
        %1270 = vmatprep.subr.mxu0 0.0
        %1271 = vmatpush1.msra.mxu0 0.0
        %1272 = vmatprep.subr.mxu0 0.0
        %1273 = vmatpush1.msra.mxu0 0.0
        %1274 = vmatprep.subr.mxu0 0.0
        %1275 = vmatpush1.msra.mxu0 0.0
        %1276 = vmatprep.subr.mxu0 0.0
        %1277 = vmatpush1.msra.mxu0 0.0
        %1278 = vmatprep.subr.mxu0 0.0
        %1279 = vmatpush1.msra.mxu0 0.0
        %1280 = vmatprep.subr.mxu0 0.0
        %1281 = vmatpush1.msra.mxu0 0.0
        %1282 = vmatprep.subr.mxu0 0.0
        %1283 = vmatpush1.msra.mxu0 0.0
        %1284 = vmatprep.subr.mxu0 0.0
        %1285 = vmatpush1.msra.mxu0 0.0
        %1286 = vmatprep.subr.mxu0 0.0
        %1287 = vmatpush1.msra.mxu0 0.0
        %1288 = vmatprep.subr.mxu0 0.0
        %1289 = vmatpush1.msra.mxu0 0.0
        %1290 = vmatprep.subr.mxu0 0.0
        %1291 = vmatpush1.msra.mxu0 0.0
        %1292 = vmatprep.subr.mxu0 0.0
        %1293 = vmatpush1.msra.mxu0 0.0
        %1294 = vmatprep.subr.mxu0 0.0
        %1295 = vmatpush1.msra.mxu0 0.0
        %1296 = vmatprep.subr.mxu0 0.0
        %1297 = vmatpush1.msra.mxu0 0.0
        %1298 = vmatprep.subr.mxu0 0.0
        %1299 = vmatpush1.msra.mxu0 0.0
        %1300 = vmatprep.subr.mxu0 0.0
        %1301 = vmatpush1.msra.mxu0 0.0
        %1302 = vmatprep.mubr.f32.mxu0 0.0
        %1303 = vmatmul.mubr.f32.gmra.mrb[0].mxu0 %v1236
        %v1304 = vpop.f32.mrb[0].mxu0
        %v1305 = vadd.f32 0.0, %v1304
        %v1306 = vpop.f32.mrb[0].mxu0
        %1307 = vdwg.mxu0
        %1308 = vrot.lane.b32.xlu0 %v810, 104
        %v1309 = vpop.permute.xlu0 %1308
        %1310 = vrot.lane.b32.xlu0 %v810, 72
        %v1311 = vpop.permute.xlu0 %1310
        %v1312 = vsel %vm816, %v1309, 0
        %v1314 = vsel %vm816, %v1311, 0
        %1316 = vmatprep.subr.mxu0 0.0
        %1317 = vmatpush1.xpose.msra.mxu0 %v1314
        %1318 = vmatprep.subr.mxu0 0.0
        %1319 = vmatpush1.xpose.msra.mxu0 0.0
        %1320 = vmatprep.subr.mxu0 0.0
        %1321 = vmatpush1.xpose.msra.mxu0 0.0
        %1322 = vmatprep.subr.mxu0 0.0
        %1323 = vmatpush1.xpose.msra.mxu0 0.0
        %1324 = vmatprep.subr.mxu0 0.0
        %1325 = vmatpush1.xpose.msra.mxu0 0.0
        %1326 = vmatprep.subr.mxu0 0.0
        %1327 = vmatpush1.xpose.msra.mxu0 0.0
        %1328 = vmatprep.subr.mxu0 0.0
        %1329 = vmatpush1.xpose.msra.mxu0 0.0
        %1330 = vmatprep.subr.mxu0 0.0
        %1331 = vmatpush1.xpose.msra.mxu0 0.0
        %1332 = vmatprep.subr.mxu0 0.0
        %1333 = vmatpush1.xpose.msra.mxu0 0.0
        %1334 = vmatprep.subr.mxu0 0.0
        %1335 = vmatpush1.xpose.msra.mxu0 0.0
        %1336 = vmatprep.subr.mxu0 0.0
        %1337 = vmatpush1.xpose.msra.mxu0 0.0
        %1338 = vmatprep.subr.mxu0 0.0
        %1339 = vmatpush1.xpose.msra.mxu0 0.0
        %1340 = vmatprep.subr.mxu0 0.0
        %1341 = vmatpush1.xpose.msra.mxu0 0.0
        %1342 = vmatprep.subr.mxu0 0.0
        %1343 = vmatpush1.xpose.msra.mxu0 0.0
        %1344 = vmatprep.subr.mxu0 0.0
        %1345 = vmatpush1.xpose.msra.mxu0 0.0
        %1346 = vmatprep.subr.mxu0 0.0
        %1347 = vmatpush1.xpose.msra.mxu0 0.0
        %1348 = vmatprep.subr.mxu0 0.0
        %1349 = vmatpush1.xpose.msra.mxu0 0.0
        %1350 = vmatprep.subr.mxu0 0.0
        %1351 = vmatpush1.xpose.msra.mxu0 0.0
        %1352 = vmatprep.subr.mxu0 0.0
        %1353 = vmatpush1.xpose.msra.mxu0 0.0
        %1354 = vmatprep.subr.mxu0 0.0
        %1355 = vmatpush1.xpose.msra.mxu0 0.0
        %1356 = vmatprep.subr.mxu0 0.0
        %1357 = vmatpush1.xpose.msra.mxu0 0.0
        %1358 = vmatprep.subr.mxu0 0.0
        %1359 = vmatpush1.xpose.msra.mxu0 0.0
        %1360 = vmatprep.subr.mxu0 0.0
        %1361 = vmatpush1.xpose.msra.mxu0 0.0
        %1362 = vmatprep.subr.mxu0 0.0
        %1363 = vmatpush1.xpose.msra.mxu0 0.0
        %1364 = vmatprep.subr.mxu0 0.0
        %1365 = vmatpush1.xpose.msra.mxu0 0.0
        %1366 = vmatprep.subr.mxu0 0.0
        %1367 = vmatpush1.xpose.msra.mxu0 0.0
        %1368 = vmatprep.subr.mxu0 0.0
        %1369 = vmatpush1.xpose.msra.mxu0 0.0
        %1370 = vmatprep.subr.mxu0 0.0
        %1371 = vmatpush1.xpose.msra.mxu0 0.0
        %1372 = vmatprep.subr.mxu0 0.0
        %1373 = vmatpush1.xpose.msra.mxu0 0.0
        %1374 = vmatprep.subr.mxu0 0.0
        %1375 = vmatpush1.xpose.msra.mxu0 0.0
        %1376 = vmatprep.subr.mxu0 0.0
        %1377 = vmatpush1.xpose.msra.mxu0 0.0
        %1378 = vmatprep.subr.mxu0 0.0
        %1379 = vmatpush1.xpose.msra.mxu0 0.0
        %1380 = vmatprep.mubr.f32.mxu0 0.0
        %1381 = vmatmul.mubr.f32.gmra.mrb[0].mxu0 %v1312
        %v1382 = vpop.f32.mrb[0].mxu0
        %v1383 = vadd.f32 0.0, %v1382
        %v1384 = vpop.f32.mrb[0].mxu0
        %1385 = vdwg.mxu0
        %v1386 = vsel %vm816, %v1383, -inf
        %1387 = vmax.xlane.f32.xlu0 %v1386
        %v1388 = vpop.xlane.xlu0 %1387
        %v1389 = vsub.f32 %v1383, %v1388
        %v1390 = vmul.f32 %v1389, 1.442695
        %v1391 = vpow.pop %v1390
        %v1392 = vsel %vm816, %v1391, 0.0
        %1393 = vadd.xlane.f32.xlu0 %v1392
        %v1394 = vpop.xlane.xlu0 %1393
        %v1395 = vrcp.pop %v1394
        %v1396 = vmul.f32 %v1391, %v1395
        %1397 = vrot.lane.b32.xlu0 %v810, 40
        %v1398 = vpop.permute.xlu0 %1397
        %v1401 = vsel %vm816, %v1396, 0
        %1403 = vmatprep.subr.mxu0 0.0
        %1404 = vmatpush1.msra.mxu0 %v1398
        %1405 = vmatprep.subr.mxu0 0.0
        %1406 = vmatpush1.msra.mxu0 0.0
        %1407 = vmatprep.subr.mxu0 0.0
        %1408 = vmatpush1.msra.mxu0 0.0
        %1409 = vmatprep.subr.mxu0 0.0
        %1410 = vmatpush1.msra.mxu0 0.0
        %1411 = vmatprep.subr.mxu0 0.0
        %1412 = vmatpush1.msra.mxu0 0.0
        %1413 = vmatprep.subr.mxu0 0.0
        %1414 = vmatpush1.msra.mxu0 0.0
        %1415 = vmatprep.subr.mxu0 0.0
        %1416 = vmatpush1.msra.mxu0 0.0
        %1417 = vmatprep.subr.mxu0 0.0
        %1418 = vmatpush1.msra.mxu0 0.0
        %1419 = vmatprep.subr.mxu0 0.0
        %1420 = vmatpush1.msra.mxu0 0.0
        %1421 = vmatprep.subr.mxu0 0.0
        %1422 = vmatpush1.msra.mxu0 0.0
        %1423 = vmatprep.subr.mxu0 0.0
        %1424 = vmatpush1.msra.mxu0 0.0
        %1425 = vmatprep.subr.mxu0 0.0
        %1426 = vmatpush1.msra.mxu0 0.0
        %1427 = vmatprep.subr.mxu0 0.0
        %1428 = vmatpush1.msra.mxu0 0.0
        %1429 = vmatprep.subr.mxu0 0.0
        %1430 = vmatpush1.msra.mxu0 0.0
        %1431 = vmatprep.subr.mxu0 0.0
        %1432 = vmatpush1.msra.mxu0 0.0
        %1433 = vmatprep.subr.mxu0 0.0
        %1434 = vmatpush1.msra.mxu0 0.0
        %1435 = vmatprep.subr.mxu0 0.0
        %1436 = vmatpush1.msra.mxu0 0.0
        %1437 = vmatprep.subr.mxu0 0.0
        %1438 = vmatpush1.msra.mxu0 0.0
        %1439 = vmatprep.subr.mxu0 0.0
        %1440 = vmatpush1.msra.mxu0 0.0
        %1441 = vmatprep.subr.mxu0 0.0
        %1442 = vmatpush1.msra.mxu0 0.0
        %1443 = vmatprep.subr.mxu0 0.0
        %1444 = vmatpush1.msra.mxu0 0.0
        %1445 = vmatprep.subr.mxu0 0.0
        %1446 = vmatpush1.msra.mxu0 0.0
        %1447 = vmatprep.subr.mxu0 0.0
        %1448 = vmatpush1.msra.mxu0 0.0
        %1449 = vmatprep.subr.mxu0 0.0
        %1450 = vmatpush1.msra.mxu0 0.0
        %1451 = vmatprep.subr.mxu0 0.0
        %1452 = vmatpush1.msra.mxu0 0.0
        %1453 = vmatprep.subr.mxu0 0.0
        %1454 = vmatpush1.msra.mxu0 0.0
        %1455 = vmatprep.subr.mxu0 0.0
        %1456 = vmatpush1.msra.mxu0 0.0
        %1457 = vmatprep.subr.mxu0 0.0
        %1458 = vmatpush1.msra.mxu0 0.0
        %1459 = vmatprep.subr.mxu0 0.0
        %1460 = vmatpush1.msra.mxu0 0.0
        %1461 = vmatprep.subr.mxu0 0.0
        %1462 = vmatpush1.msra.mxu0 0.0
        %1463 = vmatprep.subr.mxu0 0.0
        %1464 = vmatpush1.msra.mxu0 0.0
        %1465 = vmatprep.subr.mxu0 0.0
        %1466 = vmatpush1.msra.mxu0 0.0
        %1467 = vmatprep.mubr.f32.mxu0 0.0
        %1468 = vmatmul.mubr.f32.gmra.mrb[0].mxu0 %v1401
        %v1469 = vpop.f32.mrb[0].mxu0
        %v1470 = vadd.f32 0.0, %v1469
        %v1471 = vpop.f32.mrb[0].mxu0
        %1472 = vdwg.mxu0
        %1474 = vrot.lane.b32.xlu0 %v1140, 8
        %v1475 = vpop.permute.xlu0 %1474
        %1478 = vrot.lane.b32.xlu0 %v1305, 16
        %v1479 = vpop.permute.xlu0 %1478
        %1482 = vrot.lane.b32.xlu0 %v1470, 24
        %v1483 = vpop.permute.xlu0 %1482
        %v1485 = vsel %vm816, %v975, %v1475
        %vm1486 = vcmask 130048
        %v1487 = vsel %vm1486, %v1485, %v1479
        %vm1488 = vcmask 195584
        %v1489 = vsel %vm1488, %v1487, %v1483
        %v1490 = vld [vmem:[%s4] sm:$0xff]
        %v1491 = vld [vmem:[%s4 + $0x8] sm:$0xff]
        %v1492 = vld [vmem:[%s4 + $0x10] sm:$0xff]
        %v1493 = vld [vmem:[%s4 + $0x18] sm:$0xff]
        %v1494 = vld [vmem:[%s5] sm:$0x1]
        %v1496 = vlaneseq
        %v1497 = vshrl.u32 %v1496, 7
        %v1498 = vsub.s32 0, %v1497
        %v1499 = vrot.slane %v1494, %v1498
        %v1502 = vsel %vm700, %v1489, 0
        %1504 = vmatprep.subr.mxu0 0.0
        %1505 = vmatpush1.msra.mxu0 %v1490
        %1506 = vmatprep.subr.mxu0 0.0
        %1507 = vmatpush1.msra.mxu0 %v1491
        %1508 = vmatprep.subr.mxu0 0.0
        %1509 = vmatpush1.msra.mxu0 %v1492
        %1510 = vmatprep.subr.mxu0 0.0
        %1511 = vmatpush1.msra.mxu0 %v1493
        %1512 = vmatprep.subr.mxu0 0.0
        %1513 = vmatpush1.msra.mxu0 0.0
        %1514 = vmatprep.subr.mxu0 0.0
        %1515 = vmatpush1.msra.mxu0 0.0
        %1516 = vmatprep.subr.mxu0 0.0
        %1517 = vmatpush1.msra.mxu0 0.0
        %1518 = vmatprep.subr.mxu0 0.0
        %1519 = vmatpush1.msra.mxu0 0.0
        %1520 = vmatprep.subr.mxu0 0.0
        %1521 = vmatpush1.msra.mxu0 0.0
        %1522 = vmatprep.subr.mxu0 0.0
        %1523 = vmatpush1.msra.mxu0 0.0
        %1524 = vmatprep.subr.mxu0 0.0
        %1525 = vmatpush1.msra.mxu0 0.0
        %1526 = vmatprep.subr.mxu0 0.0
        %1527 = vmatpush1.msra.mxu0 0.0
        %1528 = vmatprep.subr.mxu0 0.0
        %1529 = vmatpush1.msra.mxu0 0.0
        %1530 = vmatprep.subr.mxu0 0.0
        %1531 = vmatpush1.msra.mxu0 0.0
        %1532 = vmatprep.subr.mxu0 0.0
        %1533 = vmatpush1.msra.mxu0 0.0
        %1534 = vmatprep.subr.mxu0 0.0
        %1535 = vmatpush1.msra.mxu0 0.0
        %1536 = vmatprep.subr.mxu0 0.0
        %1537 = vmatpush1.msra.mxu0 0.0
        %1538 = vmatprep.subr.mxu0 0.0
        %1539 = vmatpush1.msra.mxu0 0.0
        %1540 = vmatprep.subr.mxu0 0.0
        %1541 = vmatpush1.msra.mxu0 0.0
        %1542 = vmatprep.subr.mxu0 0.0
        %1543 = vmatpush1.msra.mxu0 0.0
        %1544 = vmatprep.subr.mxu0 0.0
        %1545 = vmatpush1.msra.mxu0 0.0
        %1546 = vmatprep.subr.mxu0 0.0
        %1547 = vmatpush1.msra.mxu0 0.0
        %1548 = vmatprep.subr.mxu0 0.0
        %1549 = vmatpush1.msra.mxu0 0.0
        %1550 = vmatprep.subr.mxu0 0.0
        %1551 = vmatpush1.msra.mxu0 0.0
        %1552 = vmatprep.subr.mxu0 0.0
        %1553 = vmatpush1.msra.mxu0 0.0
        %1554 = vmatprep.subr.mxu0 0.0
        %1555 = vmatpush1.msra.mxu0 0.0
        %1556 = vmatprep.subr.mxu0 0.0
        %1557 = vmatpush1.msra.mxu0 0.0
        %1558 = vmatprep.subr.mxu0 0.0
        %1559 = vmatpush1.msra.mxu0 0.0
        %1560 = vmatprep.subr.mxu0 0.0
        %1561 = vmatpush1.msra.mxu0 0.0
        %1562 = vmatprep.subr.mxu0 0.0
        %1563 = vmatpush1.msra.mxu0 0.0
        %1564 = vmatprep.subr.mxu0 0.0
        %1565 = vmatpush1.msra.mxu0 0.0
        %1566 = vmatprep.subr.mxu0 0.0
        %1567 = vmatpush1.msra.mxu0 0.0
        %1568 = vmatprep.mubr.f32.mxu0 0.0
        %1569 = vmatmul.mubr.f32.gmra.mrb[0].mxu0 %v1502
        %v1570 = vpop.f32.mrb[0].mxu0
        %v1571 = vadd.f32 %v1499, %v1570
        %v1572 = vpop.f32.mrb[0].mxu0
        %1573 = vdwg.mxu0
        %v1574 = vadd.f32 %v696, %v1571
        %v1575 = vld [vmem:[%s18] sm:$0x1]
        %v1576 = vld [vmem:[%s19] sm:$0x1]
        %v1577 = vsel %vm700, %v1574, 0.0
        %1578 = vadd.xlane.f32.xlu0 %v1577
        %v1579 = vpop.xlane.xlu0 %1578
        %v1580 = vmul.f32 %v1579, %v704
        %v1581 = vsub.f32 %v1574, %v1580
        %v1582 = vmul.f32 %v1581, %v1581
        %v1583 = vsel %vm700, %v1582, 0.0
        %1584 = vadd.xlane.f32.xlu0 %v1583
        %v1585 = vpop.xlane.xlu0 %1584
        %v1586 = vmul.f32 %v1585, %v704
        %v1587 = vadd.f32 %v1586, 1e-05
        %v1588 = vrsqrt.pop %v1587
        %v1589 = vmul.f32 %v1581, %v1588
        %v1591 = vlaneseq
        %v1592 = vshrl.u32 %v1591, 7
        %v1593 = vsub.s32 0, %v1592
        %v1594 = vrot.slane %v1575, %v1593
        %v1596 = vmul.f32 %v1589, %v1594
        %v1598 = vlaneseq
        %v1599 = vshrl.u32 %v1598, 7
        %v1600 = vsub.s32 0, %v1599
        %v1601 = vrot.slane %v1576, %v1600
        %v1603 = vadd.f32 %v1596, %v1601
        %v1604 = vld [vmem:[%s6] sm:$0xff]
        %v1605 = vld [vmem:[%s6 + $0x8] sm:$0xff]
        %v1606 = vld [vmem:[%s6 + $0x10] sm:$0xff]
        %v1607 = vld [vmem:[%s6 + $0x18] sm:$0xff]
        %v1608 = vld [vmem:[%s7] sm:$0x1]
        %v1610 = vlaneseq
        %v1611 = vshrl.u32 %v1610, 7
        %v1612 = vsub.s32 0, %v1611
        %v1613 = vrot.slane %v1608, %v1612
        %v1616 = vsel %vm700, %v1603, 0
        %1618 = vmatprep.subr.mxu0 0.0
        %1619 = vmatpush1.msra.mxu0 %v1604
        %1620 = vmatprep.subr.mxu0 0.0
        %1621 = vmatpush1.msra.mxu0 %v1605
        %1622 = vmatprep.subr.mxu0 0.0
        %1623 = vmatpush1.msra.mxu0 %v1606
        %1624 = vmatprep.subr.mxu0 0.0
        %1625 = vmatpush1.msra.mxu0 %v1607
        %1626 = vmatprep.subr.mxu0 0.0
        %1627 = vmatpush1.msra.mxu0 0.0
        %1628 = vmatprep.subr.mxu0 0.0
        %1629 = vmatpush1.msra.mxu0 0.0
        %1630 = vmatprep.subr.mxu0 0.0
        %1631 = vmatpush1.msra.mxu0 0.0
        %1632 = vmatprep.subr.mxu0 0.0
        %1633 = vmatpush1.msra.mxu0 0.0
        %1634 = vmatprep.subr.mxu0 0.0
        %1635 = vmatpush1.msra.mxu0 0.0
        %1636 = vmatprep.subr.mxu0 0.0
        %1637 = vmatpush1.msra.mxu0 0.0
        %1638 = vmatprep.subr.mxu0 0.0
        %1639 = vmatpush1.msra.mxu0 0.0
        %1640 = vmatprep.subr.mxu0 0.0
        %1641 = vmatpush1.msra.mxu0 0.0
        %1642 = vmatprep.subr.mxu0 0.0
        %1643 = vmatpush1.msra.mxu0 0.0
        %1644 = vmatprep.subr.mxu0 0.0
        %1645 = vmatpush1.msra.mxu0 0.0
        %1646 = vmatprep.subr.mxu0 0.0
        %1647 = vmatpush1.msra.mxu0 0.0
        %1648 = vmatprep.subr.mxu0 0.0
        %1649 = vmatpush1.msra.mxu0 0.0
        %1650 = vmatprep.subr.mxu0 0.0
        %1651 = vmatpush1.msra.mxu0 0.0
        %1652 = vmatprep.subr.mxu0 0.0
        %1653 = vmatpush1.msra.mxu0 0.0
        %1654 = vmatprep.subr.mxu0 0.0
        %1655 = vmatpush1.msra.mxu0 0.0
        %1656 = vmatprep.subr.mxu0 0.0
        %1657 = vmatpush1.msra.mxu0 0.0
        %1658 = vmatprep.subr.mxu0 0.0
        %1659 = vmatpush1.msra.mxu0 0.0
        %1660 = vmatprep.subr.mxu0 0.0
        %1661 = vmatpush1.msra.mxu0 0.0
        %1662 = vmatprep.subr.mxu0 0.0
        %1663 = vmatpush1.msra.mxu0 0.0
        %1664 = vmatprep.subr.mxu0 0.0
        %1665 = vmatpush1.msra.mxu0 0.0
        %1666 = vmatprep.subr.mxu0 0.0
        %1667 = vmatpush1.msra.mxu0 0.0
        %1668 = vmatprep.subr.mxu0 0.0
        %1669 = vmatpush1.msra.mxu0 0.0
        %1670 = vmatprep.subr.mxu0 0.0
        %1671 = vmatpush1.msra.mxu0 0.0
        %1672 = vmatprep.subr.mxu0 0.0
        %1673 = vmatpush1.msra.mxu0 0.0
        %1674 = vmatprep.subr.mxu0 0.0
        %1675 = vmatpush1.msra.mxu0 0.0
        %1676 = vmatprep.subr.mxu0 0.0
        %1677 = vmatpush1.msra.mxu0 0.0
        %1678 = vmatprep.subr.mxu0 0.0
        %1679 = vmatpush1.msra.mxu0 0.0
        %1680 = vmatprep.subr.mxu0 0.0
        %1681 = vmatpush1.msra.mxu0 0.0
        %1682 = vmatprep.mubr.f32.mxu0 0.0
        %1683 = vmatmul.mubr.f32.gmra.mrb[0].mxu0 %v1616
        %v1684 = vpop.f32.mrb[0].mxu0
        %v1685 = vadd.f32 %v1613, %v1684
        %v1686 = vpop.f32.mrb[0].mxu0
        %1687 = vdwg.mxu0
        %v1688 = vld [vmem:[%s8] sm:$0xff]
        %v1689 = vld [vmem:[%s8 + $0x8] sm:$0xff]
        %v1690 = vld [vmem:[%s8 + $0x10] sm:$0xff]
        %v1691 = vld [vmem:[%s8 + $0x18] sm:$0xff]
        %v1692 = vld [vmem:[%s9] sm:$0x1]
        %v1694 = vlaneseq
        %v1695 = vshrl.u32 %v1694, 7
        %v1696 = vsub.s32 0, %v1695
        %v1697 = vrot.slane %v1692, %v1696
        %v1700 = vsel %vm700, %v697, 0
        %1702 = vmatprep.subr.mxu0 0.0
        %1703 = vmatpush1.msra.mxu0 %v1688
        %1704 = vmatprep.subr.mxu0 0.0
        %1705 = vmatpush1.msra.mxu0 %v1689
        %1706 = vmatprep.subr.mxu0 0.0
        %1707 = vmatpush1.msra.mxu0 %v1690
        %1708 = vmatprep.subr.mxu0 0.0
        %1709 = vmatpush1.msra.mxu0 %v1691
        %1710 = vmatprep.subr.mxu0 0.0
        %1711 = vmatpush1.msra.mxu0 0.0
        %1712 = vmatprep.subr.mxu0 0.0
        %1713 = vmatpush1.msra.mxu0 0.0
        %1714 = vmatprep.subr.mxu0 0.0
        %1715 = vmatpush1.msra.mxu0 0.0
        %1716 = vmatprep.subr.mxu0 0.0
        %1717 = vmatpush1.msra.mxu0 0.0
        %1718 = vmatprep.subr.mxu0 0.0
        %1719 = vmatpush1.msra.mxu0 0.0
        %1720 = vmatprep.subr.mxu0 0.0
        %1721 = vmatpush1.msra.mxu0 0.0
        %1722 = vmatprep.subr.mxu0 0.0
        %1723 = vmatpush1.msra.mxu0 0.0
        %1724 = vmatprep.subr.mxu0 0.0
        %1725 = vmatpush1.msra.mxu0 0.0
        %1726 = vmatprep.subr.mxu0 0.0
        %1727 = vmatpush1.msra.mxu0 0.0
        %1728 = vmatprep.subr.mxu0 0.0
        %1729 = vmatpush1.msra.mxu0 0.0
        %1730 = vmatprep.subr.mxu0 0.0
        %1731 = vmatpush1.msra.mxu0 0.0
        %1732 = vmatprep.subr.mxu0 0.0
        %1733 = vmatpush1.msra.mxu0 0.0
        %1734 = vmatprep.subr.mxu0 0.0
        %1735 = vmatpush1.msra.mxu0 0.0
        %1736 = vmatprep.subr.mxu0 0.0
        %1737 = vmatpush1.msra.mxu0 0.0
        %1738 = vmatprep.subr.mxu0 0.0
        %1739 = vmatpush1.msra.mxu0 0.0
        %1740 = vmatprep.subr.mxu0 0.0
        %1741 = vmatpush1.msra.mxu0 0.0
        %1742 = vmatprep.subr.mxu0 0.0
        %1743 = vmatpush1.msra.mxu0 0.0
        %1744 = vmatprep.subr.mxu0 0.0
        %1745 = vmatpush1.msra.mxu0 0.0
        %1746 = vmatprep.subr.mxu0 0.0
        %1747 = vmatpush1.msra.mxu0 0.0
        %1748 = vmatprep.subr.mxu0 0.0
        %1749 = vmatpush1.msra.mxu0 0.0
        %1750 = vmatprep.subr.mxu0 0.0
        %1751 = vmatpush1.msra.mxu0 0.0
        %1752 = vmatprep.subr.mxu0 0.0
        %1753 = vmatpush1.msra.mxu0 0.0
        %1754 = vmatprep.subr.mxu0 0.0
        %1755 = vmatpush1.msra.mxu0 0.0
        %1756 = vmatprep.subr.mxu0 0.0
        %1757 = vmatpush1.msra.mxu0 0.0
        %1758 = vmatprep.subr.mxu0 0.0
        %1759 = vmatpush1.msra.mxu0 0.0
        %1760 = vmatprep.subr.mxu0 0.0
        %1761 = vmatpush1.msra.mxu0 0.0
        %1762 = vmatprep.subr.mxu0 0.0
        %1763 = vmatpush1.msra.mxu0 0.0
        %1764 = vmatprep.subr.mxu0 0.0
        %1765 = vmatpush1.msra.mxu0 0.0
        %1766 = vmatprep.mubr.f32.mxu0 0.0
        %1767 = vmatmul.mubr.f32.gmra.mrb[0].mxu0 %v1700
        %v1768 = vpop.f32.mrb[0].mxu0
        %v1769 = vadd.f32 %v1697, %v1768
        %v1770 = vpop.f32.mrb[0].mxu0
        %1771 = vdwg.mxu0
        %v1773 = vsel %vm816, %v1685, 0
        %v1776 = vsel %vm816, %v1769, 0
        %1778 = vmatprep.subr.mxu0 0.0
        %1779 = vmatpush1.xpose.msra.mxu0 %v1776
        %1780 = vmatprep.subr.mxu0 0.0
        %1781 = vmatpush1.xpose.msra.mxu0 0.0
        %1782 = vmatprep.subr.mxu0 0.0
        %1783 = vmatpush1.xpose.msra.mxu0 0.0
        %1784 = vmatprep.subr.mxu0 0.0
        %1785 = vmatpush1.xpose.msra.mxu0 0.0
        %1786 = vmatprep.subr.mxu0 0.0
        %1787 = vmatpush1.xpose.msra.mxu0 0.0
        %1788 = vmatprep.subr.mxu0 0.0
        %1789 = vmatpush1.xpose.msra.mxu0 0.0
        %1790 = vmatprep.subr.mxu0 0.0
        %1791 = vmatpush1.xpose.msra.mxu0 0.0
        %1792 = vmatprep.subr.mxu0 0.0
        %1793 = vmatpush1.xpose.msra.mxu0 0.0
        %1794 = vmatprep.subr.mxu0 0.0
        %1795 = vmatpush1.xpose.msra.mxu0 0.0
        %1796 = vmatprep.subr.mxu0 0.0
        %1797 = vmatpush1.xpose.msra.mxu0 0.0
        %1798 = vmatprep.subr.mxu0 0.0
        %1799 = vmatpush1.xpose.msra.mxu0 0.0
        %1800 = vmatprep.subr.mxu0 0.0
        %1801 = vmatpush1.xpose.msra.mxu0 0.0
        %1802 = vmatprep.subr.mxu0 0.0
        %1803 = vmatpush1.xpose.msra.mxu0 0.0
        %1804 = vmatprep.subr.mxu0 0.0
        %1805 = vmatpush1.xpose.msra.mxu0 0.0
        %1806 = vmatprep.subr.mxu0 0.0
        %1807 = vmatpush1.xpose.msra.mxu0 0.0
        %1808 = vmatprep.subr.mxu0 0.0
        %1809 = vmatpush1.xpose.msra.mxu0 0.0
        %1810 = vmatprep.subr.mxu0 0.0
        %1811 = vmatpush1.xpose.msra.mxu0 0.0
        %1812 = vmatprep.subr.mxu0 0.0
        %1813 = vmatpush1.xpose.msra.mxu0 0.0
        %1814 = vmatprep.subr.mxu0 0.0
        %1815 = vmatpush1.xpose.msra.mxu0 0.0
        %1816 = vmatprep.subr.mxu0 0.0
        %1817 = vmatpush1.xpose.msra.mxu0 0.0
        %1818 = vmatprep.subr.mxu0 0.0
        %1819 = vmatpush1.xpose.msra.mxu0 0.0
        %1820 = vmatprep.subr.mxu0 0.0
        %1821 = vmatpush1.xpose.msra.mxu0 0.0
        %1822 = vmatprep.subr.mxu0 0.0
        %1823 = vmatpush1.xpose.msra.mxu0 0.0
        %1824 = vmatprep.subr.mxu0 0.0
        %1825 = vmatpush1.xpose.msra.mxu0 0.0
        %1826 = vmatprep.subr.mxu0 0.0
        %1827 = vmatpush1.xpose.msra.mxu0 0.0
        %1828 = vmatprep.subr.mxu0 0.0
        %1829 = vmatpush1.xpose.msra.mxu0 0.0
        %1830 = vmatprep.subr.mxu0 0.0
        %1831 = vmatpush1.xpose.msra.mxu0 0.0
        %1832 = vmatprep.subr.mxu0 0.0
        %1833 = vmatpush1.xpose.msra.mxu0 0.0
        %1834 = vmatprep.subr.mxu0 0.0
        %1835 = vmatpush1.xpose.msra.mxu0 0.0
        %1836 = vmatprep.subr.mxu0 0.0
        %1837 = vmatpush1.xpose.msra.mxu0 0.0
        %1838 = vmatprep.subr.mxu0 0.0
        %1839 = vmatpush1.xpose.msra.mxu0 0.0
        %1840 = vmatprep.subr.mxu0 0.0
        %1841 = vmatpush1.xpose.msra.mxu0 0.0
        %1842 = vmatprep.mubr.f32.mxu0 0.0
        %1843 = vmatmul.mubr.f32.gmra.mrb[0].mxu0 %v1773
        %v1844 = vpop.f32.mrb[0].mxu0
        %v1845 = vadd.f32 0.0, %v1844
        %v1846 = vpop.f32.mrb[0].mxu0
        %1847 = vdwg.mxu0
        %v1848 = vsel %vm816, %v1845, -inf
        %1849 = vmax.xlane.f32.xlu0 %v1848
        %v1850 = vpop.xlane.xlu0 %1849
        %v1851 = vsub.f32 %v1845, %v1850
        %v1852 = vmul.f32 %v1851, 1.442695
        %v1853 = vpow.pop %v1852
        %v1854 = vsel %vm816, %v1853, 0.0
        %1855 = vadd.xlane.f32.xlu0 %v1854
        %v1856 = vpop.xlane.xlu0 %1855
        %v1857 = vrcp.pop %v1856
        %v1858 = vmul.f32 %v1853, %v1857
        %1859 = vrot.lane.b32.xlu0 %v1769, 96
        %v1860 = vpop.permute.xlu0 %1859
        %v1863 = vsel %vm816, %v1858, 0
        %1865 = vmatprep.subr.mxu0 0.0
        %1866 = vmatpush1.msra.mxu0 %v1860
        %1867 = vmatprep.subr.mxu0 0.0
        %1868 = vmatpush1.msra.mxu0 0.0
        %1869 = vmatprep.subr.mxu0 0.0
        %1870 = vmatpush1.msra.mxu0 0.0
        %1871 = vmatprep.subr.mxu0 0.0
        %1872 = vmatpush1.msra.mxu0 0.0
        %1873 = vmatprep.subr.mxu0 0.0
        %1874 = vmatpush1.msra.mxu0 0.0
        %1875 = vmatprep.subr.mxu0 0.0
        %1876 = vmatpush1.msra.mxu0 0.0
        %1877 = vmatprep.subr.mxu0 0.0
        %1878 = vmatpush1.msra.mxu0 0.0
        %1879 = vmatprep.subr.mxu0 0.0
        %1880 = vmatpush1.msra.mxu0 0.0
        %1881 = vmatprep.subr.mxu0 0.0
        %1882 = vmatpush1.msra.mxu0 0.0
        %1883 = vmatprep.subr.mxu0 0.0
        %1884 = vmatpush1.msra.mxu0 0.0
        %1885 = vmatprep.subr.mxu0 0.0
        %1886 = vmatpush1.msra.mxu0 0.0
        %1887 = vmatprep.subr.mxu0 0.0
        %1888 = vmatpush1.msra.mxu0 0.0
        %1889 = vmatprep.subr.mxu0 0.0
        %1890 = vmatpush1.msra.mxu0 0.0
        %1891 = vmatprep.subr.mxu0 0.0
        %1892 = vmatpush1.msra.mxu0 0.0
        %1893 = vmatprep.subr.mxu0 0.0
        %1894 = vmatpush1.msra.mxu0 0.0
        %1895 = vmatprep.subr.mxu0 0.0
        %1896 = vmatpush1.msra.mxu0 0.0
        %1897 = vmatprep.subr.mxu0 0.0
        %1898 = vmatpush1.msra.mxu0 0.0
        %1899 = vmatprep.subr.mxu0 0.0
        %1900 = vmatpush1.msra.mxu0 0.0
        %1901 = vmatprep.subr.mxu0 0.0
        %1902 = vmatpush1.msra.mxu0 0.0
        %1903 = vmatprep.subr.mxu0 0.0
        %1904 = vmatpush1.msra.mxu0 0.0
        %1905 = vmatprep.subr.mxu0 0.0
        %1906 = vmatpush1.msra.mxu0 0.0
        %1907 = vmatprep.subr.mxu0 0.0
        %1908 = vmatpush1.msra.mxu0 0.0
        %1909 = vmatprep.subr.mxu0 0.0
        %1910 = vmatpush1.msra.mxu0 0.0
        %1911 = vmatprep.subr.mxu0 0.0
        %1912 = vmatpush1.msra.mxu0 0.0
        %1913 = vmatprep.subr.mxu0 0.0
        %1914 = vmatpush1.msra.mxu0 0.0
        %1915 = vmatprep.subr.mxu0 0.0
        %1916 = vmatpush1.msra.mxu0 0.0
        %1917 = vmatprep.subr.mxu0 0.0
        %1918 = vmatpush1.msra.mxu0 0.0
        %1919 = vmatprep.subr.mxu0 0.0
        %1920 = vmatpush1.msra.mxu0 0.0
        %1921 = vmatprep.subr.mxu0 0.0
        %1922 = vmatpush1.msra.mxu0 0.0
        %1923 = vmatprep.subr.mxu0 0.0
        %1924 = vmatpush1.msra.mxu0 0.0
        %1925 = vmatprep.subr.mxu0 0.0
        %1926 = vmatpush1.msra.mxu0 0.0
        %1927 = vmatprep.subr.mxu0 0.0
        %1928 = vmatpush1.msra.mxu0 0.0
        %1929 = vmatprep.mubr.f32.mxu0 0.0
        %1930 = vmatmul.mubr.f32.gmra.mrb[0].mxu0 %v1863
        %v1931 = vpop.f32.mrb[0].mxu0
        %v1932 = vadd.f32 0.0, %v1931
        %v1933 = vpop.f32.mrb[0].mxu0
        %1934 = vdwg.mxu0
        %1935 = vrot.lane.b32.xlu0 %v1685, 120
        %v1936 = vpop.permute.xlu0 %1935
        %1937 = vrot.lane.b32.xlu0 %v1769, 120
        %v1938 = vpop.permute.xlu0 %1937
        %v1939 = vsel %vm816, %v1936, 0
        %v1941 = vsel %vm816, %v1938, 0
        %1943 = vmatprep.subr.mxu0 0.0
        %1944 = vmatpush1.xpose.msra.mxu0 %v1941
        %1945 = vmatprep.subr.mxu0 0.0
        %1946 = vmatpush1.xpose.msra.mxu0 0.0
        %1947 = vmatprep.subr.mxu0 0.0
        %1948 = vmatpush1.xpose.msra.mxu0 0.0
        %1949 = vmatprep.subr.mxu0 0.0
        %1950 = vmatpush1.xpose.msra.mxu0 0.0
        %1951 = vmatprep.subr.mxu0 0.0
        %1952 = vmatpush1.xpose.msra.mxu0 0.0
        %1953 = vmatprep.subr.mxu0 0.0
        %1954 = vmatpush1.xpose.msra.mxu0 0.0
        %1955 = vmatprep.subr.mxu0 0.0
        %1956 = vmatpush1.xpose.msra.mxu0 0.0
        %1957 = vmatprep.subr.mxu0 0.0
        %1958 = vmatpush1.xpose.msra.mxu0 0.0
        %1959 = vmatprep.subr.mxu0 0.0
        %1960 = vmatpush1.xpose.msra.mxu0 0.0
        %1961 = vmatprep.subr.mxu0 0.0
        %1962 = vmatpush1.xpose.msra.mxu0 0.0
        %1963 = vmatprep.subr.mxu0 0.0
        %1964 = vmatpush1.xpose.msra.mxu0 0.0
        %1965 = vmatprep.subr.mxu0 0.0
        %1966 = vmatpush1.xpose.msra.mxu0 0.0
        %1967 = vmatprep.subr.mxu0 0.0
        %1968 = vmatpush1.xpose.msra.mxu0 0.0
        %1969 = vmatprep.subr.mxu0 0.0
        %1970 = vmatpush1.xpose.msra.mxu0 0.0
        %1971 = vmatprep.subr.mxu0 0.0
        %1972 = vmatpush1.xpose.msra.mxu0 0.0
        %1973 = vmatprep.subr.mxu0 0.0
        %1974 = vmatpush1.xpose.msra.mxu0 0.0
        %1975 = vmatprep.subr.mxu0 0.0
        %1976 = vmatpush1.xpose.msra.mxu0 0.0
        %1977 = vmatprep.subr.mxu0 0.0
        %1978 = vmatpush1.xpose.msra.mxu0 0.0
        %1979 = vmatprep.subr.mxu0 0.0
        %1980 = vmatpush1.xpose.msra.mxu0 0.0
        %1981 = vmatprep.subr.mxu0 0.0
        %1982 = vmatpush1.xpose.msra.mxu0 0.0
        %1983 = vmatprep.subr.mxu0 0.0
        %1984 = vmatpush1.xpose.msra.mxu0 0.0
        %1985 = vmatprep.subr.mxu0 0.0
        %1986 = vmatpush1.xpose.msra.mxu0 0.0
        %1987 = vmatprep.subr.mxu0 0.0
        %1988 = vmatpush1.xpose.msra.mxu0 0.0
        %1989 = vmatprep.subr.mxu0 0.0
        %1990 = vmatpush1.xpose.msra.mxu0 0.0
        %1991 = vmatprep.subr.mxu0 0.0
        %1992 = vmatpush1.xpose.msra.mxu0 0.0
        %1993 = vmatprep.subr.mxu0 0.0
        %1994 = vmatpush1.xpose.msra.mxu0 0.0
        %1995 = vmatprep.subr.mxu0 0.0
        %1996 = vmatpush1.xpose.msra.mxu0 0.0
        %1997 = vmatprep.subr.mxu0 0.0
        %1998 = vmatpush1.xpose.msra.mxu0 0.0
        %1999 = vmatprep.subr.mxu0 0.0
        %2000 = vmatpush1.xpose.msra.mxu0 0.0
        %2001 = vmatprep.subr.mxu0 0.0
        %2002 = vmatpush1.xpose.msra.mxu0 0.0
        %2003 = vmatprep.subr.mxu0 0.0
        %2004 = vmatpush1.xpose.msra.mxu0 0.0
        %2005 = vmatprep.subr.mxu0 0.0
        %2006 = vmatpush1.xpose.msra.mxu0 0.0
        %2007 = vmatprep.mubr.f32.mxu0 0.0
        %2008 = vmatmul.mubr.f32.gmra.mrb[0].mxu0 %v1939
        %v2009 = vpop.f32.mrb[0].mxu0
        %v2010 = vadd.f32 0.0, %v2009
        %v2011 = vpop.f32.mrb[0].mxu0
        %2012 = vdwg.mxu0
        %v2013 = vsel %vm816, %v2010, -inf
        %2014 = vmax.xlane.f32.xlu0 %v2013
        %v2015 = vpop.xlane.xlu0 %2014
        %v2016 = vsub.f32 %v2010, %v2015
        %v2017 = vmul.f32 %v2016, 1.442695
        %v2018 = vpow.pop %v2017
        %v2019 = vsel %vm816, %v2018, 0.0
        %2020 = vadd.xlane.f32.xlu0 %v2019
        %v2021 = vpop.xlane.xlu0 %2020
        %v2022 = vrcp.pop %v2021
        %v2023 = vmul.f32 %v2018, %v2022
        %2024 = vrot.lane.b32.xlu0 %v1769, 88
        %v2025 = vpop.permute.xlu0 %2024
        %v2028 = vsel %vm816, %v2023, 0
        %2030 = vmatprep.subr.mxu0 0.0
        %2031 = vmatpush1.msra.mxu0 %v2025
        %2032 = vmatprep.subr.mxu0 0.0
        %2033 = vmatpush1.msra.mxu0 0.0
        %2034 = vmatprep.subr.mxu0 0.0
        %2035 = vmatpush1.msra.mxu0 0.0
        %2036 = vmatprep.subr.mxu0 0.0
        %2037 = vmatpush1.msra.mxu0 0.0
        %2038 = vmatprep.subr.mxu0 0.0
        %2039 = vmatpush1.msra.mxu0 0.0
        %2040 = vmatprep.subr.mxu0 0.0
        %2041 = vmatpush1.msra.mxu0 0.0
        %2042 = vmatprep.subr.mxu0 0.0
        %2043 = vmatpush1.msra.mxu0 0.0
        %2044 = vmatprep.subr.mxu0 0.0
        %2045 = vmatpush1.msra.mxu0 0.0
        %2046 = vmatprep.subr.mxu0 0.0
        %2047 = vmatpush1.msra.mxu0 0.0
        %2048 = vmatprep.subr.mxu0 0.0
        %2049 = vmatpush1.msra.mxu0 0.0
        %2050 = vmatprep.subr.mxu0 0.0
        %2051 = vmatpush1.msra.mxu0 0.0
        %2052 = vmatprep.subr.mxu0 0.0
        %2053 = vmatpush1.msra.mxu0 0.0
        %2054 = vmatprep.subr.mxu0 0.0
        %2055 = vmatpush1.msra.mxu0 0.0
        %2056 = vmatprep.subr.mxu0 0.0
        %2057 = vmatpush1.msra.mxu0 0.0
        %2058 = vmatprep.subr.mxu0 0.0
        %2059 = vmatpush1.msra.mxu0 0.0
        %2060 = vmatprep.subr.mxu0 0.0
        %2061 = vmatpush1.msra.mxu0 0.0
        %2062 = vmatprep.subr.mxu0 0.0
        %2063 = vmatpush1.msra.mxu0 0.0
        %2064 = vmatprep.subr.mxu0 0.0
        %2065 = vmatpush1.msra.mxu0 0.0
        %2066 = vmatprep.subr.mxu0 0.0
        %2067 = vmatpush1.msra.mxu0 0.0
        %2068 = vmatprep.subr.mxu0 0.0
        %2069 = vmatpush1.msra.mxu0 0.0
        %2070 = vmatprep.subr.mxu0 0.0
        %2071 = vmatpush1.msra.mxu0 0.0
        %2072 = vmatprep.subr.mxu0 0.0
        %2073 = vmatpush1.msra.mxu0 0.0
        %2074 = vmatprep.subr.mxu0 0.0
        %2075 = vmatpush1.msra.mxu0 0.0
        %2076 = vmatprep.subr.mxu0 0.0
        %2077 = vmatpush1.msra.mxu0 0.0
        %2078 = vmatprep.subr.mxu0 0.0
        %2079 = vmatpush1.msra.mxu0 0.0
        %2080 = vmatprep.subr.mxu0 0.0
        %2081 = vmatpush1.msra.mxu0 0.0
        %2082 = vmatprep.subr.mxu0 0.0
        %2083 = vmatpush1.msra.mxu0 0.0
        %2084 = vmatprep.subr.mxu0 0.0
        %2085 = vmatpush1.msra.mxu0 0.0
        %2086 = vmatprep.subr.mxu0 0.0
        %2087 = vmatpush1.msra.mxu0 0.0
        %2088 = vmatprep.subr.mxu0 0.0
        %2089 = vmatpush1.msra.mxu0 0.0
        %2090 = vmatprep.subr.mxu0 0.0
        %2091 = vmatpush1.msra.mxu0 0.0
        %2092 = vmatprep.subr.mxu0 0.0
        %2093 = vmatpush1.msra.mxu0 0.0
        %2094 = vmatprep.mubr.f32.mxu0 0.0
        %2095 = vmatmul.mubr.f32.gmra.mrb[0].mxu0 %v2028
        %v2096 = vpop.f32.mrb[0].mxu0
        %v2097 = vadd.f32 0.0, %v2096
        %v2098 = vpop.f32.mrb[0].mxu0
        %2099 = vdwg.mxu0
        %2100 = vrot.lane.b32.xlu0 %v1685, 112
        %v2101 = vpop.permute.xlu0 %2100
        %2102 = vrot.lane.b32.xlu0 %v1769, 112
        %v2103 = vpop.permute.xlu0 %2102
        %v2104 = vsel %vm816, %v2101, 0
        %v2106 = vsel %vm816, %v2103, 0
        %2108 = vmatprep.subr.mxu0 0.0
        %2109 = vmatpush1.xpose.msra.mxu0 %v2106
        %2110 = vmatprep.subr.mxu0 0.0
        %2111 = vmatpush1.xpose.msra.mxu0 0.0
        %2112 = vmatprep.subr.mxu0 0.0
        %2113 = vmatpush1.xpose.msra.mxu0 0.0
        %2114 = vmatprep.subr.mxu0 0.0
        %2115 = vmatpush1.xpose.msra.mxu0 0.0
        %2116 = vmatprep.subr.mxu0 0.0
        %2117 = vmatpush1.xpose.msra.mxu0 0.0
        %2118 = vmatprep.subr.mxu0 0.0
        %2119 = vmatpush1.xpose.msra.mxu0 0.0
        %2120 = vmatprep.subr.mxu0 0.0
        %2121 = vmatpush1.xpose.msra.mxu0 0.0
        %2122 = vmatprep.subr.mxu0 0.0
        %2123 = vmatpush1.xpose.msra.mxu0 0.0
        %2124 = vmatprep.subr.mxu0 0.0
        %2125 = vmatpush1.xpose.msra.mxu0 0.0
        %2126 = vmatprep.subr.mxu0 0.0
        %2127 = vmatpush1.xpose.msra.mxu0 0.0
        %2128 = vmatprep.subr.mxu0 0.0
        %2129 = vmatpush1.xpose.msra.mxu0 0.0
        %2130 = vmatprep.subr.mxu0 0.0
        %2131 = vmatpush1.xpose.msra.mxu0 0.0
        %2132 = vmatprep.subr.mxu0 0.0
        %2133 = vmatpush1.xpose.msra.mxu0 0.0
        %2134 = vmatprep.subr.mxu0 0.0
        %2135 = vmatpush1.xpose.msra.mxu0 0.0
        %2136 = vmatprep.subr.mxu0 0.0
        %2137 = vmatpush1.xpose.msra.mxu0 0.0
        %2138 = vmatprep.subr.mxu0 0.0
        %2139 = vmatpush1.xpose.msra.mxu0 0.0
        %2140 = vmatprep.subr.mxu0 0.0
        %2141 = vmatpush1.xpose.msra.mxu0 0.0
        %2142 = vmatprep.subr.mxu0 0.0
        %2143 = vmatpush1.xpose.msra.mxu0 0.0
        %2144 = vmatprep.subr.mxu0 0.0
        %2145 = vmatpush1.xpose.msra.mxu0 0.0
        %2146 = vmatprep.subr.mxu0 0.0
        %2147 = vmatpush1.xpose.msra.mxu0 0.0
        %2148 = vmatprep.subr.mxu0 0.0
        %2149 = vmatpush1.xpose.msra.mxu0 0.0
        %2150 = vmatprep.subr.mxu0 0.0
        %2151 = vmatpush1.xpose.msra.mxu0 0.0
        %2152 = vmatprep.subr.mxu0 0.0
        %2153 = vmatpush1.xpose.msra.mxu0 0.0
        %2154 = vmatprep.subr.mxu0 0.0
        %2155 = vmatpush1.xpose.msra.mxu0 0.0
        %2156 = vmatprep.subr.mxu0 0.0
        %2157 = vmatpush1.xpose.msra.mxu0 0.0
        %2158 = vmatprep.subr.mxu0 0.0
        %2159 = vmatpush1.xpose.msra.mxu0 0.0
        %2160 = vmatprep.subr.mxu0 0.0
        %2161 = vmatpush1.xpose.msra.mxu0 0.0
        %2162 = vmatprep.subr.mxu0 0.0
        %2163 = vmatpush1.xpose.msra.mxu0 0.0
        %2164 = vmatprep.subr.mxu0 0.0
        %2165 = vmatpush1.xpose.msra.mxu0 0.0
        %2166 = vmatprep.subr.mxu0 0.0
        %2167 = vmatpush1.xpose.msra.mxu0 0.0
        %2168 = vmatprep.subr.mxu0 0.0
        %2169 = vmatpush1.xpose.msra.mxu0 0.0
        %2170 = vmatprep.subr.mxu0 0.0
        %2171 = vmatpush1.xpose.msra.mxu0 0.0
        %2172 = vmatprep.mubr.f32.mxu0 0.0
        %2173 = vmatmul.mubr.f32.gmra.mrb[0].mxu0 %v2104
        %v2174 = vpop.f32.mrb[0].mxu0
        %v2175 = vadd.f32 0.0, %v2174
        %v2176 = vpop.f32.mrb[0].mxu0
        %2177 = vdwg.mxu0
        %v2178 = vsel %vm816, %v2175, -inf
        %2179 = vmax.xlane.f32.xlu0 %v2178
        %v2180 = vpop.xlane.xlu0 %2179
        %v2181 = vsub.f32 %v2175, %v2180
        %v2182 = vmul.f32 %v2181, 1.442695
        %v2183 = vpow.pop %v2182
        %v2184 = vsel %vm816, %v2183, 0.0
        %2185 = vadd.xlane.f32.xlu0 %v2184
        %v2186 = vpop.xlane.xlu0 %2185
        %v2187 = vrcp.pop %v2186
        %v2188 = vmul.f32 %v2183, %v2187
        %2189 = vrot.lane.b32.xlu0 %v1769, 80
        %v2190 = vpop.permute.xlu0 %2189
        %v2193 = vsel %vm816, %v2188, 0
        %2195 = vmatprep.subr.mxu0 0.0
        %2196 = vmatpush1.msra.mxu0 %v2190
        %2197 = vmatprep.subr.mxu0 0.0
        %2198 = vmatpush1.msra.mxu0 0.0
        %2199 = vmatprep.subr.mxu0 0.0
        %2200 = vmatpush1.msra.mxu0 0.0
        %2201 = vmatprep.subr.mxu0 0.0
        %2202 = vmatpush1.msra.mxu0 0.0
        %2203 = vmatprep.subr.mxu0 0.0
        %2204 = vmatpush1.msra.mxu0 0.0
        %2205 = vmatprep.subr.mxu0 0.0
        %2206 = vmatpush1.msra.mxu0 0.0
        %2207 = vmatprep.subr.mxu0 0.0
        %2208 = vmatpush1.msra.mxu0 0.0
        %2209 = vmatprep.subr.mxu0 0.0
        %2210 = vmatpush1.msra.mxu0 0.0
        %2211 = vmatprep.subr.mxu0 0.0
        %2212 = vmatpush1.msra.mxu0 0.0
        %2213 = vmatprep.subr.mxu0 0.0
        %2214 = vmatpush1.msra.mxu0 0.0
        %2215 = vmatprep.subr.mxu0 0.0
        %2216 = vmatpush1.msra.mxu0 0.0
        %2217 = vmatprep.subr.mxu0 0.0
        %2218 = vmatpush1.msra.mxu0 0.0
        %2219 = vmatprep.subr.mxu0 0.0
        %2220 = vmatpush1.msra.mxu0 0.0
        %2221 = vmatprep.subr.mxu0 0.0
        %2222 = vmatpush1.msra.mxu0 0.0
        %2223 = vmatprep.subr.mxu0 0.0
        %2224 = vmatpush1.msra.mxu0 0.0
        %2225 = vmatprep.subr.mxu0 0.0
        %2226 = vmatpush1.msra.mxu0 0.0
        %2227 = vmatprep.subr.mxu0 0.0
        %2228 = vmatpush1.msra.mxu0 0.0
        %2229 = vmatprep.subr.mxu0 0.0
        %2230 = vmatpush1.msra.mxu0 0.0
        %2231 = vmatprep.subr.mxu0 0.0
        %2232 = vmatpush1.msra.mxu0 0.0
        %2233 = vmatprep.subr.mxu0 0.0
        %2234 = vmatpush1.msra.mxu0 0.0
        %2235 = vmatprep.subr.mxu0 0.0
        %2236 = vmatpush1.msra.mxu0 0.0
        %2237 = vmatprep.subr.mxu0 0.0
        %2238 = vmatpush1.msra.mxu0 0.0
        %2239 = vmatprep.subr.mxu0 0.0
        %2240 = vmatpush1.msra.mxu0 0.0
        %2241 = vmatprep.subr.mxu0 0.0
        %2242 = vmatpush1.msra.mxu0 0.0
        %2243 = vmatprep.subr.mxu0 0.0
        %2244 = vmatpush1.msra.mxu0 0.0
        %2245 = vmatprep.subr.mxu0 0.0
        %2246 = vmatpush1.msra.mxu0 0.0
        %2247 = vmatprep.subr.mxu0 0.0
        %2248 = vmatpush1.msra.mxu0 0.0
        %2249 = vmatprep.subr.mxu0 0.0
        %2250 = vmatpush1.msra.mxu0 0.0
        %2251 = vmatprep.subr.mxu0 0.0
        %2252 = vmatpush1.msra.mxu0 0.0
        %2253 = vmatprep.subr.mxu0 0.0
        %2254 = vmatpush1.msra.mxu0 0.0
        %2255 = vmatprep.subr.mxu0 0.0
        %2256 = vmatpush1.msra.mxu0 0.0
        %2257 = vmatprep.subr.mxu0 0.0
        %2258 = vmatpush1.msra.mxu0 0.0
        %2259 = vmatprep.mubr.f32.mxu0 0.0
        %2260 = vmatmul.mubr.f32.gmra.mrb[0].mxu0 %v2193
        %v2261 = vpop.f32.mrb[0].mxu0
        %v2262 = vadd.f32 0.0, %v2261
        %v2263 = vpop.f32.mrb[0].mxu0
        %2264 = vdwg.mxu0
        %2265 = vrot.lane.b32.xlu0 %v1685, 104
        %v2266 = vpop.permute.xlu0 %2265
        %2267 = vrot.lane.b32.xlu0 %v1769, 104
        %v2268 = vpop.permute.xlu0 %2267
        %v2269 = vsel %vm816, %v2266, 0
        %v2271 = vsel %vm816, %v2268, 0
        %2273 = vmatprep.subr.mxu0 0.0
        %2274 = vmatpush1.xpose.msra.mxu0 %v2271
        %2275 = vmatprep.subr.mxu0 0.0
        %2276 = vmatpush1.xpose.msra.mxu0 0.0
        %2277 = vmatprep.subr.mxu0 0.0
        %2278 = vmatpush1.xpose.msra.mxu0 0.0
        %2279 = vmatprep.subr.mxu0 0.0
        %2280 = vmatpush1.xpose.msra.mxu0 0.0
        %2281 = vmatprep.subr.mxu0 0.0
        %2282 = vmatpush1.xpose.msra.mxu0 0.0
        %2283 = vmatprep.subr.mxu0 0.0
        %2284 = vmatpush1.xpose.msra.mxu0 0.0
        %2285 = vmatprep.subr.mxu0 0.0
        %2286 = vmatpush1.xpose.msra.mxu0 0.0
        %2287 = vmatprep.subr.mxu0 0.0
        %2288 = vmatpush1.xpose.msra.mxu0 0.0
        %2289 = vmatprep.subr.mxu0 0.0
        %2290 = vmatpush1.xpose.msra.mxu0 0.0
        %2291 = vmatprep.subr.mxu0 0.0
        %2292 = vmatpush1.xpose.msra.mxu0 0.0
        %2293 = vmatprep.subr.mxu0 0.0
        %2294 = vmatpush1.xpose.msra.mxu0 0.0
        %2295 = vmatprep.subr.mxu0 0.0
        %2296 = vmatpush1.xpose.msra.mxu0 0.0
        %2297 = vmatprep.subr.mxu0 0.0
        %2298 = vmatpush1.xpose.msra.mxu0 0.0
        %2299 = vmatprep.subr.mxu0 0.0
        %2300 = vmatpush1.xpose.msra.mxu0 0.0
        %2301 = vmatprep.subr.mxu0 0.0
        %2302 = vmatpush1.xpose.msra.mxu0 0.0
        %2303 = vmatprep.subr.mxu0 0.0
        %2304 = vmatpush1.xpose.msra.mxu0 0.0
        %2305 = vmatprep.subr.mxu0 0.0
        %2306 = vmatpush1.xpose.msra.mxu0 0.0
        %2307 = vmatprep.subr.mxu0 0.0
        %2308 = vmatpush1.xpose.msra.mxu0 0.0
        %2309 = vmatprep.subr.mxu0 0.0
        %2310 = vmatpush1.xpose.msra.mxu0 0.0
        %2311 = vmatprep.subr.mxu0 0.0
        %2312 = vmatpush1.xpose.msra.mxu0 0.0
        %2313 = vmatprep.subr.mxu0 0.0
        %2314 = vmatpush1.xpose.msra.mxu0 0.0
        %2315 = vmatprep.subr.mxu0 0.0
        %2316 = vmatpush1.xpose.msra.mxu0 0.0
        %2317 = vmatprep.subr.mxu0 0.0
        %2318 = vmatpush1.xpose.msra.mxu0 0.0
        %2319 = vmatprep.subr.mxu0 0.0
        %2320 = vmatpush1.xpose.msra.mxu0 0.0
        %2321 = vmatprep.subr.mxu0 0.0
        %2322 = vmatpush1.xpose.msra.mxu0 0.0
        %2323 = vmatprep.subr.mxu0 0.0
        %2324 = vmatpush1.xpose.msra.mxu0 0.0
        %2325 = vmatprep.subr.mxu0 0.0
        %2326 = vmatpush1.xpose.msra.mxu0 0.0
        %2327 = vmatprep.subr.mxu0 0.0
        %2328 = vmatpush1.xpose.msra.mxu0 0.0
        %2329 = vmatprep.subr.mxu0 0.0
        %2330 = vmatpush1.xpose.msra.mxu0 0.0
        %2331 = vmatprep.subr.mxu0 0.0
        %2332 = vmatpush1.xpose.msra.mxu0 0.0
        %2333 = vmatprep.subr.mxu0 0.0
        %2334 = vmatpush1.xpose.msra.mxu0 0.0
        %2335 = vmatprep.subr.mxu0 0.0
        %2336 = vmatpush1.xpose.msra.mxu0 0.0
        %2337 = vmatprep.mubr.f32.mxu0 0.0
        %2338 = vmatmul.mubr.f32.gmra.mrb[0].mxu0 %v2269
        %v2339 = vpop.f32.mrb[0].mxu0
        %v2340 = vadd.f32 0.0, %v2339
        %v2341 = vpop.f32.mrb[0].mxu0
        %2342 = vdwg.mxu0
        %v2343 = vsel %vm816, %v2340, -inf
        %2344 = vmax.xlane.f32.xlu0 %v2343
        %v2345 = vpop.xlane.xlu0 %2344
        %v2346 = vsub.f32 %v2340, %v2345
        %v2347 = vmul.f32 %v2346, 1.442695
        %v2348 = vpow.pop %v2347
        %v2349 = vsel %vm816, %v2348, 0.0
        %2350 = vadd.xlane.f32.xlu0 %v2349
        %v2351 = vpop.xlane.xlu0 %2350
        %v2352 = vrcp.pop %v2351
        %v2353 = vmul.f32 %v2348, %v2352
        %2354 = vrot.lane.b32.xlu0 %v1769, 72
        %v2355 = vpop.permute.xlu0 %2354
        %v2358 = vsel %vm816, %v2353, 0
        %2360 = vmatprep.subr.mxu0 0.0
        %2361 = vmatpush1.msra.mxu0 %v2355
        %2362 = vmatprep.subr.mxu0 0.0
        %2363 = vmatpush1.msra.mxu0 0.0
        %2364 = vmatprep.subr.mxu0 0.0
        %2365 = vmatpush1.msra.mxu0 0.0
        %2366 = vmatprep.subr.mxu0 0.0
        %2367 = vmatpush1.msra.mxu0 0.0
        %2368 = vmatprep.subr.mxu0 0.0
        %2369 = vmatpush1.msra.mxu0 0.0
        %2370 = vmatprep.subr.mxu0 0.0
        %2371 = vmatpush1.msra.mxu0 0.0
        %2372 = vmatprep.subr.mxu0 0.0
        %2373 = vmatpush1.msra.mxu0 0.0
        %2374 = vmatprep.subr.mxu0 0.0
        %2375 = vmatpush1.msra.mxu0 0.0
        %2376 = vmatprep.subr.mxu0 0.0
        %2377 = vmatpush1.msra.mxu0 0.0
        %2378 = vmatprep.subr.mxu0 0.0
        %2379 = vmatpush1.msra.mxu0 0.0
        %2380 = vmatprep.subr.mxu0 0.0
        %2381 = vmatpush1.msra.mxu0 0.0
        %2382 = vmatprep.subr.mxu0 0.0
        %2383 = vmatpush1.msra.mxu0 0.0
        %2384 = vmatprep.subr.mxu0 0.0
        %2385 = vmatpush1.msra.mxu0 0.0
        %2386 = vmatprep.subr.mxu0 0.0
        %2387 = vmatpush1.msra.mxu0 0.0
        %2388 = vmatprep.subr.mxu0 0.0
        %2389 = vmatpush1.msra.mxu0 0.0
        %2390 = vmatprep.subr.mxu0 0.0
        %2391 = vmatpush1.msra.mxu0 0.0
        %2392 = vmatprep.subr.mxu0 0.0
        %2393 = vmatpush1.msra.mxu0 0.0
        %2394 = vmatprep.subr.mxu0 0.0
        %2395 = vmatpush1.msra.mxu0 0.0
        %2396 = vmatprep.subr.mxu0 0.0
        %2397 = vmatpush1.msra.mxu0 0.0
        %2398 = vmatprep.subr.mxu0 0.0
        %2399 = vmatpush1.msra.mxu0 0.0
        %2400 = vmatprep.subr.mxu0 0.0
        %2401 = vmatpush1.msra.mxu0 0.0
        %2402 = vmatprep.subr.mxu0 0.0
        %2403 = vmatpush1.msra.mxu0 0.0
        %2404 = vmatprep.subr.mxu0 0.0
        %2405 = vmatpush1.msra.mxu0 0.0
        %2406 = vmatprep.subr.mxu0 0.0
        %2407 = vmatpush1.msra.mxu0 0.0
        %2408 = vmatprep.subr.mxu0 0.0
        %2409 = vmatpush1.msra.mxu0 0.0
        %2410 = vmatprep.subr.mxu0 0.0
        %2411 = vmatpush1.msra.mxu0 0.0
        %2412 = vmatprep.subr.mxu0 0.0
        %2413 = vmatpush1.msra.mxu0 0.0
        %2414 = vmatprep.subr.mxu0 0.0
        %2415 = vmatpush1.msra.mxu0 0.0
        %2416 = vmatprep.subr.mxu0 0.0
        %2417 = vmatpush1.msra.mxu0 0.0
        %2418 = vmatprep.subr.mxu0 0.0
        %2419 = vmatpush1.msra.mxu0 0.0
        %2420 = vmatprep.subr.mxu0 0.0
        %2421 = vmatpush1.msra.mxu0 0.0
        %2422 = vmatprep.subr.mxu0 0.0
        %2423 = vmatpush1.msra.mxu0 0.0
        %2424 = vmatprep.mubr.f32.mxu0 0.0
        %2425 = vmatmul.mubr.f32.gmra.mrb[0].mxu0 %v2358
        %v2426 = vpop.f32.mrb[0].mxu0
        %v2427 = vadd.f32 0.0, %v2426
        %v2428 = vpop.f32.mrb[0].mxu0
        %2429 = vdwg.mxu0
        %2431 = vrot.lane.b32.xlu0 %v2097, 8
        %v2432 = vpop.permute.xlu0 %2431
        %2435 = vrot.lane.b32.xlu0 %v2262, 16
        %v2436 = vpop.permute.xlu0 %2435
        %2439 = vrot.lane.b32.xlu0 %v2427, 24
        %v2440 = vpop.permute.xlu0 %2439
        %v2442 = vsel %vm816, %v1932, %v2432
        %v2443 = vsel %vm1486, %v2442, %v2436
        %v2444 = vsel %vm1488, %v2443, %v2440
        %v2445 = vld [vmem:[%s10] sm:$0xff]
        %v2446 = vld [vmem:[%s10 + $0x8] sm:$0xff]
        %v2447 = vld [vmem:[%s10 + $0x10] sm:$0xff]
        %v2448 = vld [vmem:[%s10 + $0x18] sm:$0xff]
        %v2449 = vld [vmem:[%s11] sm:$0x1]
        %v2451 = vlaneseq
        %v2452 = vshrl.u32 %v2451, 7
        %v2453 = vsub.s32 0, %v2452
        %v2454 = vrot.slane %v2449, %v2453
        %v2457 = vsel %vm700, %v2444, 0
        %2459 = vmatprep.subr.mxu0 0.0
        %2460 = vmatpush1.msra.mxu0 %v2445
        %2461 = vmatprep.subr.mxu0 0.0
        %2462 = vmatpush1.msra.mxu0 %v2446
        %2463 = vmatprep.subr.mxu0 0.0
        %2464 = vmatpush1.msra.mxu0 %v2447
        %2465 = vmatprep.subr.mxu0 0.0
        %2466 = vmatpush1.msra.mxu0 %v2448
        %2467 = vmatprep.subr.mxu0 0.0
        %2468 = vmatpush1.msra.mxu0 0.0
        %2469 = vmatprep.subr.mxu0 0.0
        %2470 = vmatpush1.msra.mxu0 0.0
        %2471 = vmatprep.subr.mxu0 0.0
        %2472 = vmatpush1.msra.mxu0 0.0
        %2473 = vmatprep.subr.mxu0 0.0
        %2474 = vmatpush1.msra.mxu0 0.0
        %2475 = vmatprep.subr.mxu0 0.0
        %2476 = vmatpush1.msra.mxu0 0.0
        %2477 = vmatprep.subr.mxu0 0.0
        %2478 = vmatpush1.msra.mxu0 0.0
        %2479 = vmatprep.subr.mxu0 0.0
        %2480 = vmatpush1.msra.mxu0 0.0
        %2481 = vmatprep.subr.mxu0 0.0
        %2482 = vmatpush1.msra.mxu0 0.0
        %2483 = vmatprep.subr.mxu0 0.0
        %2484 = vmatpush1.msra.mxu0 0.0
        %2485 = vmatprep.subr.mxu0 0.0
        %2486 = vmatpush1.msra.mxu0 0.0
        %2487 = vmatprep.subr.mxu0 0.0
        %2488 = vmatpush1.msra.mxu0 0.0
        %2489 = vmatprep.subr.mxu0 0.0
        %2490 = vmatpush1.msra.mxu0 0.0
        %2491 = vmatprep.subr.mxu0 0.0
        %2492 = vmatpush1.msra.mxu0 0.0
        %2493 = vmatprep.subr.mxu0 0.0
        %2494 = vmatpush1.msra.mxu0 0.0
        %2495 = vmatprep.subr.mxu0 0.0
        %2496 = vmatpush1.msra.mxu0 0.0
        %2497 = vmatprep.subr.mxu0 0.0
        %2498 = vmatpush1.msra.mxu0 0.0
        %2499 = vmatprep.subr.mxu0 0.0
        %2500 = vmatpush1.msra.mxu0 0.0
        %2501 = vmatprep.subr.mxu0 0.0
        %2502 = vmatpush1.msra.mxu0 0.0
        %2503 = vmatprep.subr.mxu0 0.0
        %2504 = vmatpush1.msra.mxu0 0.0
        %2505 = vmatprep.subr.mxu0 0.0
        %2506 = vmatpush1.msra.mxu0 0.0
        %2507 = vmatprep.subr.mxu0 0.0
        %2508 = vmatpush1.msra.mxu0 0.0
        %2509 = vmatprep.subr.mxu0 0.0
        %2510 = vmatpush1.msra.mxu0 0.0
        %2511 = vmatprep.subr.mxu0 0.0
        %2512 = vmatpush1.msra.mxu0 0.0
        %2513 = vmatprep.subr.mxu0 0.0
        %2514 = vmatpush1.msra.mxu0 0.0
        %2515 = vmatprep.subr.mxu0 0.0
        %2516 = vmatpush1.msra.mxu0 0.0
        %2517 = vmatprep.subr.mxu0 0.0
        %2518 = vmatpush1.msra.mxu0 0.0
        %2519 = vmatprep.subr.mxu0 0.0
        %2520 = vmatpush1.msra.mxu0 0.0
        %2521 = vmatprep.subr.mxu0 0.0
        %2522 = vmatpush1.msra.mxu0 0.0
        %2523 = vmatprep.mubr.f32.mxu0 0.0
        %2524 = vmatmul.mubr.f32.gmra.mrb[0].mxu0 %v2457
        %v2525 = vpop.f32.mrb[0].mxu0
        %v2526 = vadd.f32 %v2454, %v2525
        %v2527 = vpop.f32.mrb[0].mxu0
        %2528 = vdwg.mxu0
        %v2529 = vadd.f32 %v1574, %v2526
        %v2530 = vld [vmem:[%s20] sm:$0x1]
        %v2531 = vld [vmem:[%s21] sm:$0x1]
        %v2532 = vsel %vm700, %v2529, 0.0
        %2533 = vadd.xlane.f32.xlu0 %v2532
        %v2534 = vpop.xlane.xlu0 %2533
        %v2535 = vmul.f32 %v2534, %v704
        %v2536 = vsub.f32 %v2529, %v2535
        %v2537 = vmul.f32 %v2536, %v2536
        %v2538 = vsel %vm700, %v2537, 0.0
        %2539 = vadd.xlane.f32.xlu0 %v2538
        %v2540 = vpop.xlane.xlu0 %2539
        %v2541 = vmul.f32 %v2540, %v704
        %v2542 = vadd.f32 %v2541, 1e-05
        %v2543 = vrsqrt.pop %v2542
        %v2544 = vmul.f32 %v2536, %v2543
        %v2546 = vlaneseq
        %v2547 = vshrl.u32 %v2546, 7
        %v2548 = vsub.s32 0, %v2547
        %v2549 = vrot.slane %v2530, %v2548
        %v2551 = vmul.f32 %v2544, %v2549
        %v2553 = vlaneseq
        %v2554 = vshrl.u32 %v2553, 7
        %v2555 = vsub.s32 0, %v2554
        %v2556 = vrot.slane %v2531, %v2555
        %v2558 = vadd.f32 %v2551, %v2556
        %v2559 = vld [vmem:[%s12] sm:$0xff]
        %v2560 = vld [vmem:[%s12 + $0x8] sm:$0xff]
        %v2561 = vld [vmem:[%s12 + $0x10] sm:$0xff]
        %v2562 = vld [vmem:[%s12 + $0x18] sm:$0xff]
        %v2563 = vld [vmem:[%s13] sm:$0x1]
        %v2565 = vlaneseq
        %v2566 = vshrl.u32 %v2565, 7
        %v2567 = vsub.s32 0, %v2566
        %v2568 = vrot.slane %v2563, %v2567
        %v2571 = vsel %vm700, %v2558, 0
        %2573 = vmatprep.subr.mxu0 0.0
        %2574 = vmatpush1.msra.mxu0 %v2559
        %2575 = vmatprep.subr.mxu0 0.0
        %2576 = vmatpush1.msra.mxu0 %v2560
        %2577 = vmatprep.subr.mxu0 0.0
        %2578 = vmatpush1.msra.mxu0 %v2561
        %2579 = vmatprep.subr.mxu0 0.0
        %2580 = vmatpush1.msra.mxu0 %v2562
        %2581 = vmatprep.subr.mxu0 0.0
        %2582 = vmatpush1.msra.mxu0 0.0
        %2583 = vmatprep.subr.mxu0 0.0
        %2584 = vmatpush1.msra.mxu0 0.0
        %2585 = vmatprep.subr.mxu0 0.0
        %2586 = vmatpush1.msra.mxu0 0.0
        %2587 = vmatprep.subr.mxu0 0.0
        %2588 = vmatpush1.msra.mxu0 0.0
        %2589 = vmatprep.subr.mxu0 0.0
        %2590 = vmatpush1.msra.mxu0 0.0
        %2591 = vmatprep.subr.mxu0 0.0
        %2592 = vmatpush1.msra.mxu0 0.0
        %2593 = vmatprep.subr.mxu0 0.0
        %2594 = vmatpush1.msra.mxu0 0.0
        %2595 = vmatprep.subr.mxu0 0.0
        %2596 = vmatpush1.msra.mxu0 0.0
        %2597 = vmatprep.subr.mxu0 0.0
        %2598 = vmatpush1.msra.mxu0 0.0
        %2599 = vmatprep.subr.mxu0 0.0
        %2600 = vmatpush1.msra.mxu0 0.0
        %2601 = vmatprep.subr.mxu0 0.0
        %2602 = vmatpush1.msra.mxu0 0.0
        %2603 = vmatprep.subr.mxu0 0.0
        %2604 = vmatpush1.msra.mxu0 0.0
        %2605 = vmatprep.subr.mxu0 0.0
        %2606 = vmatpush1.msra.mxu0 0.0
        %2607 = vmatprep.subr.mxu0 0.0
        %2608 = vmatpush1.msra.mxu0 0.0
        %2609 = vmatprep.subr.mxu0 0.0
        %2610 = vmatpush1.msra.mxu0 0.0
        %2611 = vmatprep.subr.mxu0 0.0
        %2612 = vmatpush1.msra.mxu0 0.0
        %2613 = vmatprep.subr.mxu0 0.0
        %2614 = vmatpush1.msra.mxu0 0.0
        %2615 = vmatprep.subr.mxu0 0.0
        %2616 = vmatpush1.msra.mxu0 0.0
        %2617 = vmatprep.subr.mxu0 0.0
        %2618 = vmatpush1.msra.mxu0 0.0
        %2619 = vmatprep.subr.mxu0 0.0
        %2620 = vmatpush1.msra.mxu0 0.0
        %2621 = vmatprep.subr.mxu0 0.0
        %2622 = vmatpush1.msra.mxu0 0.0
        %2623 = vmatprep.subr.mxu0 0.0
        %2624 = vmatpush1.msra.mxu0 0.0
        %2625 = vmatprep.subr.mxu0 0.0
        %2626 = vmatpush1.msra.mxu0 0.0
        %2627 = vmatprep.subr.mxu0 0.0
        %2628 = vmatpush1.msra.mxu0 0.0
        %2629 = vmatprep.subr.mxu0 0.0
        %2630 = vmatpush1.msra.mxu0 0.0
        %2631 = vmatprep.subr.mxu0 0.0
        %2632 = vmatpush1.msra.mxu0 0.0
        %2633 = vmatprep.subr.mxu0 0.0
        %2634 = vmatpush1.msra.mxu0 0.0
        %2635 = vmatprep.subr.mxu0 0.0
        %2636 = vmatpush1.msra.mxu0 0.0
        %2637 = vmatprep.mubr.f32.mxu0 0.0
        %2638 = vmatmul.mubr.f32.gmra.mrb[0].mxu0 %v2571
        %v2639 = vpop.f32.mrb[0].mxu0
        %v2640 = vadd.f32 %v2568, %v2639
        %v2641 = vpop.f32.mrb[0].mxu0
        %2642 = vdwg.mxu0
        %v2643 = vmul.f32 %v2640, 0.5
        %v2644 = vmul.f32 %v2640, 0.70710677
        %v2645 = vand.u32 2147483647, %v2644
        %v2646 = vmul.f32 %v2645, 0.3275911
        %v2647 = vadd.f32 %v2646, 1.0
        %v2648 = vrcp.pop %v2647
        %v2649 = vmul.f32 %v2648, 1.0614054
        %v2650 = vadd.f32 %v2649, -1.4531521
        %v2651 = vmul.f32 %v2650, %v2648
        %v2652 = vadd.f32 %v2651, 1.4214138
        %v2653 = vmul.f32 %v2652, %v2648
        %v2654 = vadd.f32 %v2653, -0.28449672
        %v2655 = vmul.f32 %v2654, %v2648
        %v2656 = vadd.f32 %v2655, 0.2548296
        %v2657 = vmul.f32 %v2656, %v2648
        %v2658 = vsub.f32 0.0, %v2645
        %v2659 = vmul.f32 %v2658, %v2645
        %v2660 = vmul.f32 %v2659, 1.442695
        %v2661 = vpow.pop %v2660
        %v2662 = vmul.f32 %v2657, %v2661
        %v2663 = vsub.f32 1.0, %v2662
        %vm2664 = vcmp.lt.f32.partialorder %v2644, 0.0
        %v2665 = vsub.f32 0.0, %v2663
        %v2666 = vsel %vm2664, %v2665, %v2663
        %v2667 = vadd.f32 %v2666, 1.0
        %v2668 = vmul.f32 %v2643, %v2667
        %v2669 = vld [vmem:[%s14] sm:$0xff]
        %v2670 = vld [vmem:[%s14 + $0x8] sm:$0xff]
        %v2671 = vld [vmem:[%s14 + $0x10] sm:$0xff]
        %v2672 = vld [vmem:[%s14 + $0x18] sm:$0xff]
        %v2673 = vld [vmem:[%s14 + $0x20] sm:$0xff]
        %v2674 = vld [vmem:[%s14 + $0x28] sm:$0xff]
        %v2675 = vld [vmem:[%s14 + $0x30] sm:$0xff]
        %v2676 = vld [vmem:[%s14 + $0x38] sm:$0xff]
        %v2677 = vld [vmem:[%s14 + $0x40] sm:$0xff]
        %v2678 = vld [vmem:[%s14 + $0x48] sm:$0xff]
        %v2679 = vld [vmem:[%s14 + $0x50] sm:$0xff]
        %v2680 = vld [vmem:[%s14 + $0x58] sm:$0xff]
        %v2681 = vld [vmem:[%s14 + $0x60] sm:$0xff]
        %v2682 = vld [vmem:[%s14 + $0x68] sm:$0xff]
        %v2683 = vld [vmem:[%s14 + $0x70] sm:$0xff]
        %v2684 = vld [vmem:[%s14 + $0x78] sm:$0xff]
        %v2685 = vld [vmem:[%s15] sm:$0x1]
        %v2687 = vlaneseq
        %v2688 = vshrl.u32 %v2687, 7
        %v2689 = vsub.s32 0, %v2688
        %v2690 = vrot.slane %v2685, %v2689
        %2692 = vmatprep.subr.mxu0 0.0
        %2693 = vmatpush1.msra.mxu0 %v2669
        %2694 = vmatprep.subr.mxu0 0.0
        %2695 = vmatpush1.msra.mxu0 %v2670
        %2696 = vmatprep.subr.mxu0 0.0
        %2697 = vmatpush1.msra.mxu0 %v2671
        %2698 = vmatprep.subr.mxu0 0.0
        %2699 = vmatpush1.msra.mxu0 %v2672
        %2700 = vmatprep.subr.mxu0 0.0
        %2701 = vmatpush1.msra.mxu0 %v2673
        %2702 = vmatprep.subr.mxu0 0.0
        %2703 = vmatpush1.msra.mxu0 %v2674
        %2704 = vmatprep.subr.mxu0 0.0
        %2705 = vmatpush1.msra.mxu0 %v2675
        %2706 = vmatprep.subr.mxu0 0.0
        %2707 = vmatpush1.msra.mxu0 %v2676
        %2708 = vmatprep.subr.mxu0 0.0
        %2709 = vmatpush1.msra.mxu0 %v2677
        %2710 = vmatprep.subr.mxu0 0.0
        %2711 = vmatpush1.msra.mxu0 %v2678
        %2712 = vmatprep.subr.mxu0 0.0
        %2713 = vmatpush1.msra.mxu0 %v2679
        %2714 = vmatprep.subr.mxu0 0.0
        %2715 = vmatpush1.msra.mxu0 %v2680
        %2716 = vmatprep.subr.mxu0 0.0
        %2717 = vmatpush1.msra.mxu0 %v2681
        %2718 = vmatprep.subr.mxu0 0.0
        %2719 = vmatpush1.msra.mxu0 %v2682
        %2720 = vmatprep.subr.mxu0 0.0
        %2721 = vmatpush1.msra.mxu0 %v2683
        %2722 = vmatprep.subr.mxu0 0.0
        %2723 = vmatpush1.msra.mxu0 %v2684
        %2724 = vmatprep.subr.mxu0 0.0
        %2725 = vmatpush1.msra.mxu0 0.0
        %2726 = vmatprep.subr.mxu0 0.0
        %2727 = vmatpush1.msra.mxu0 0.0
        %2728 = vmatprep.subr.mxu0 0.0
        %2729 = vmatpush1.msra.mxu0 0.0
        %2730 = vmatprep.subr.mxu0 0.0
        %2731 = vmatpush1.msra.mxu0 0.0
        %2732 = vmatprep.subr.mxu0 0.0
        %2733 = vmatpush1.msra.mxu0 0.0
        %2734 = vmatprep.subr.mxu0 0.0
        %2735 = vmatpush1.msra.mxu0 0.0
        %2736 = vmatprep.subr.mxu0 0.0
        %2737 = vmatpush1.msra.mxu0 0.0
        %2738 = vmatprep.subr.mxu0 0.0
        %2739 = vmatpush1.msra.mxu0 0.0
        %2740 = vmatprep.subr.mxu0 0.0
        %2741 = vmatpush1.msra.mxu0 0.0
        %2742 = vmatprep.subr.mxu0 0.0
        %2743 = vmatpush1.msra.mxu0 0.0
        %2744 = vmatprep.subr.mxu0 0.0
        %2745 = vmatpush1.msra.mxu0 0.0
        %2746 = vmatprep.subr.mxu0 0.0
        %2747 = vmatpush1.msra.mxu0 0.0
        %2748 = vmatprep.subr.mxu0 0.0
        %2749 = vmatpush1.msra.mxu0 0.0
        %2750 = vmatprep.subr.mxu0 0.0
        %2751 = vmatpush1.msra.mxu0 0.0
        %2752 = vmatprep.subr.mxu0 0.0
        %2753 = vmatpush1.msra.mxu0 0.0
        %2754 = vmatprep.subr.mxu0 0.0
        %2755 = vmatpush1.msra.mxu0 0.0
        %2756 = vmatprep.mubr.f32.mxu0 0.0
        %2757 = vmatmul.mubr.f32.gmra.mrb[0].mxu0 %v2668
        %v2758 = vpop.f32.mrb[0].mxu0
        %v2759 = vadd.f32 %v2690, %v2758
        %v2760 = vpop.f32.mrb[0].mxu0
        %2761 = vdwg.mxu0
        %v2762 = vadd.f32 %v2529, %v2759
        %2763 = vst.msk [vmem:[%s687] sm:$0xff] %vm700, %v2762
        %s2764 = sand.u32 %s516, 1
        %s2765 = scalar_lea.sflag [#allocation3], %s2764
        %s2766 = sand.u32 %s516, 1
        %s2767 = smul.addr %s2766, 8
        %s2768 = scalar_lea.vmem [#allocation2], %s2767
        // Predicated region
        $region109: #{trans_module.3} parent=107 // pred_check
          %p2769 = pneg %p526
        $region110: #{trans_module.3} parent=107 // pred_check_branch
          %2771 = sbr.rel (%p2769) target = $region112
        $region111: #{trans_module.3} parent=107 // pred_region
          %s2773 = ssub.s32 128, 128
          %2774 = vsyncadd %s2765, %s2773
          %s2775 = smul.addr %s36, 128
          %s2776 = scalar_lea.hbm %s22, %s2775
          %s2778 = sshll.u32 %s2768, 4
          %s2779 = int_to_ptr.vmem [resolvable:$true] %s2778
          %2781 = dma.vmem_to_hbm [thread:$0]  %s2779, 128, %s2776, %s2765
        $region112: #{trans_module.3} parent=107 // pred_fallthru
          _
      $region108: #{trans_module.3} parent=5 // pred_fallthru
        _
      %p2782 = scmp.le.s32.totalorder 2, %s31
      // Predicated region
      $region113: #{trans_module.3} parent=5 // pred_check
        %p2783 = pneg %p2782
      $region114: #{trans_module.3} parent=5 // pred_check_branch
        %2785 = sbr.rel (%p2783) target = $region116
      $region115: #{trans_module.3} parent=5 // pred_region
        %s2786 = ssub.s32 %s31, 2
        // Predicated region
        $region117: #{trans_module.3} parent=115 // pred_check
          %p2787 = pneg %p532
        $region118: #{trans_module.3} parent=115 // pred_check_branch
          %2789 = sbr.rel (%p2787) target = $region120
        $region119: #{trans_module.3} parent=115 // pred_region
          %s2790 = sand.u32 %s517, 1
          %s2791 = scalar_lea.sflag [#allocation3], %s2790
          %s2792 = sand.u32 %s517, 1
          %s2793 = smul.addr %s2792, 8
          %s2794 = scalar_lea.vmem [#allocation2], %s2793
          %2795 = dma.done %s2791, 128
        $region120: #{trans_module.3} parent=115 // pred_fallthru
          _
      $region116: #{trans_module.3} parent=5 // pred_fallthru
        _
    $region6: #{trans_module.3} parent=1 // loop_footer
      %s35 = sadd.s32 1, %s31
    $region7: #{trans_module.3} parent=1 // loop_footer_branch
      %30 = sbr.rel target = $region3
    $region8: #{trans_module.3} parent=1 // loop_exit
      _
    %2796 = vsyncpa [#allocation3], 1
    %s2797 = scalar_lea.sflag [#allocation3], 1
    %2798 = vsyncpa %s2797, 1

</llo_original>
